<compile_context>
chip_gen: v7x
topology: tpu7x:2x2x1
jax: 0.10.0
libtpu: 0.0.40
codegen_flags: <defaults>
</compile_context>

<pallas_src>
import functools

import jax
import jax.numpy as jnp
from jax import lax
from jax.experimental import pallas as pl
from jax.experimental.pallas import tpu as pltpu


def _transformer_block1_kernel(
    x_ref, ln1w_ref, ln1b_ref, wqkv_ref, wdw_ref, wdws_ref, temp_ref,
    hmask_ref, wpo_ref, ln2w_ref, ln2b_ref, wpi_ref, wpo2_ref, o_ref,
    *, H, W, theta, hidden):
    f32 = jnp.float32
    HW = H * W
    x = x_ref[0].astype(f32)                    # (HW, C), channels-last (lane dim)
    C = x.shape[1]
    C3 = 3 * C

    # ---------------- LayerNorm 1 (WithBias) over channels ----------------
    mu = jnp.mean(x, axis=-1, keepdims=True)
    xc = x - mu
    var = jnp.mean(xc * xc, axis=-1, keepdims=True)
    y = xc * lax.rsqrt(var + 1e-5) * ln1w_ref[...] + ln1b_ref[...]

    # ---------------- qkv 1x1 conv: one lane-dense MXU matmul -------------
    qkv = jnp.dot(y, wqkv_ref[...], preferred_element_type=f32)       # (HW, 3C)

    # ------ CDC depthwise 3x3 conv (groups=3C, pad=1) in flat layout ------
    # tap(kh,kw)[p] = qkv[p + (kh-1)*W + (kw-1)]   (zero outside the image)
    wdw = wdw_ref[...]                                                # (9, 3C)
    col = lax.broadcasted_iota(jnp.int32, (HW, C3), 0) % W
    ok_left = col >= 1                 # source column j-1 in range
    ok_right = col <= (W - 2)          # source column j+1 in range
    acc = jnp.zeros((HW, C3), f32)
    for kh in range(3):
        for kw in range(3):
            dh, dv = kh - 1, kw - 1
            s = dh * W + dv
            if s > 0:
                tap = jnp.concatenate(
                    [qkv[s:, :], jnp.zeros((s, C3), f32)], axis=0)
            elif s < 0:
                tap = jnp.concatenate(
                    [jnp.zeros((-s, C3), f32), qkv[:s, :]], axis=0)
            else:
                tap = qkv
            if dv == -1:
                tap = jnp.where(ok_left, tap, 0.0)
            elif dv == 1:
                tap = jnp.where(ok_right, tap, 0.0)
            acc = acc + tap * wdw[kh * 3 + kw:kh * 3 + kw + 1, :]
    # Conv2d_cd:  conv(x) - theta * (x * sum_{kh,kw} w)   (depthwise -> per-channel scale)
    dwo = acc - theta * qkv * wdws_ref[...]

    # ------------- split q, k, v; L2-normalize each channel over HW -------
    q = dwo[:, :C]
    k = dwo[:, C:2 * C]
    v = dwo[:, 2 * C:]

    def l2n(t):
        n = jnp.sqrt(jnp.sum(t * t, axis=0, keepdims=True))
        return t / jnp.maximum(n, 1e-12)

    qn = l2n(q)
    kn = l2n(k)

    # ---- per-head channel attention as one block-diagonal-masked matmul ----
    # g[c, c'] = <qn[:, c], kn[:, c']>  ; only same-head (c, c') pairs survive the mask
    g = lax.dot_general(qn, kn, (((0,), (0,)), ((), ())),
                        preferred_element_type=f32)                   # (C, C)
    g = g * temp_ref[...]                         # per-head temperature (per-channel row)
    g = jnp.where(hmask_ref[...] > 0.5, g, -1e30)                     # block-diagonal mask
    g = g - jnp.max(g, axis=-1, keepdims=True)
    e = jnp.exp(g)
    a = e / jnp.sum(e, axis=-1, keepdims=True)                        # per-head softmax
    # out[p, c] = sum_{c'} v[p, c'] * a[c, c']   ==  v @ a^T
    attn_out = lax.dot_general(v, a, (((1,), (1,)), ((), ())),
                               preferred_element_type=f32)            # (HW, C)
    attn_out = jnp.dot(attn_out, wpo_ref[...], preferred_element_type=f32)
    x = x + attn_out

    # ---------------- LayerNorm 2 + gated FFN ----------------
    mu2 = jnp.mean(x, axis=-1, keepdims=True)
    xc2 = x - mu2
    var2 = jnp.mean(xc2 * xc2, axis=-1, keepdims=True)
    y2 = xc2 * lax.rsqrt(var2 + 1e-5) * ln2w_ref[...] + ln2b_ref[...]
    h = jnp.dot(y2, wpi_ref[...], preferred_element_type=f32)         # (HW, 2*hidden)
    h1 = h[:, :hidden]
    h2 = h[:, hidden:]
    # TODO(synk): PyTorch F.gelu defaults to the exact erf GELU; tanh approximation used here.
    g1 = 0.5 * h1 * (1.0 + jnp.tanh(0.7978845608028654
                                    * (h1 + 0.044715 * h1 * h1 * h1)))
    ff = jnp.dot(g1 * h2, wpo2_ref[...], preferred_element_type=f32)  # (HW, C)

    o_ref[0] = (x + ff).astype(o_ref.dtype)


def transformer_block1(x_nchw, params, *, num_heads, theta=0.7):
    """Forward pass of TransformerBlock1 (WithBias LayerNorm, bias=False convs).

    x_nchw : (N, C, H, W) float32
    params : dict with
        ln1_w, ln1_b, ln2_w, ln2_b : (C,)
        w_qkv  : (C, 3C)        1x1 conv,  qkv = y @ w_qkv
        w_dw   : (9, 3C)        depthwise 3x3 weights, w_dw[kh*3+kw, ch]
        temperature : (num_heads,)
        w_po   : (C, C)         attention output 1x1 conv
        w_pi   : (C, 2*hidden)  FFN project_in
        w_po2  : (hidden, C)    FFN project_out
    """
    N, C, H, W = x_nchw.shape
    HW = H * W
    hd = C // num_heads
    hidden = params['w_po2'].shape[0]
    f32 = jnp.float32

    # Layout glue (cheap, one-time): NCHW -> (N, HW, C) channels-last.
    x3d = jnp.transpose(x_nchw, (0, 2, 3, 1)).reshape(N, HW, C)

    ln1w = params['ln1_w'].reshape(1, C).astype(f32)
    ln1b = params['ln1_b'].reshape(1, C).astype(f32)
    ln2w = params['ln2_w'].reshape(1, C).astype(f32)
    ln2b = params['ln2_b'].reshape(1, C).astype(f32)
    w_qkv = params['w_qkv'].astype(f32)                        # (C, 3C)
    w_dw = params['w_dw'].astype(f32)                          # (9, 3C)
    w_dws = jnp.sum(w_dw, axis=0, keepdims=True)               # (1, 3C) CDC diff term
    w_po = params['w_po'].astype(f32)                          # (C, C)
    w_pi = params['w_pi'].astype(f32)                          # (C, 2*hidden)
    w_po2 = params['w_po2'].astype(f32)                        # (hidden, C)
    temp_row = jnp.repeat(params['temperature'].reshape(num_heads).astype(f32),
                          hd).reshape(1, C)                    # per-channel temperature
    head_id = jnp.arange(C, dtype=jnp.int32) // hd
    head_mask = (head_id[:, None] == head_id[None, :]).astype(f32)   # (C, C)

    kernel = functools.partial(_transformer_block1_kernel,
                               H=H, W=W, theta=theta, hidden=hidden)

    def full(shape):
        return pl.BlockSpec(shape, lambda n: (0,) * len(shape))

    in_specs = [
        pl.BlockSpec((1, HW, C), lambda n: (n, 0, 0)),   # x
        full((1, C)), full((1, C)),                      # ln1 w, b
        full((C, 3 * C)),                                # w_qkv
        full((9, 3 * C)), full((1, 3 * C)),              # w_dw, sum(w_dw)
        full((1, C)),                                    # temperature (per channel)
        full((C, C)),                                    # head mask
        full((C, C)),                                    # w_po
        full((1, C)), full((1, C)),                      # ln2 w, b
        full((C, 2 * hidden)),                           # w_pi
        full((hidden, C)),                               # w_po2
    ]

    out3d = pl.pallas_call(
        kernel,
        out_shape=jax.ShapeDtypeStruct((N, HW, C), x_nchw.dtype),
        grid_spec=pltpu.PrefetchScalarGridSpec(
            num_scalar_prefetch=0,
            grid=(N,),
            in_specs=in_specs,
            out_specs=pl.BlockSpec((1, HW, C), lambda n: (n, 0, 0)),
        ),
        compiler_params=pltpu.CompilerParams(
            dimension_semantics=("parallel",)),
    )(x3d, ln1w, ln1b, w_qkv, w_dw, w_dws, temp_row, head_mask,
      w_po, ln2w, ln2b, w_pi, w_po2)

    return jnp.transpose(out3d.reshape(N, H, W, C), (0, 3, 1, 2))


# ----------------------------- pure-JAX reference -----------------------------
def transformer_block1_reference(x_nchw, params, *, num_heads, theta=0.7):
    N, C, H, W = x_nchw.shape
    HW = H * W
    hd = C // num_heads
    hidden = params['w_po2'].shape[0]
    hp = jax.lax.Precision.HIGHEST

    x = jnp.transpose(x_nchw, (0, 2, 3, 1)).reshape(N, HW, C)

    def layer_norm(t, w, b):
        mu = t.mean(-1, keepdims=True)
        var = ((t - mu) ** 2).mean(-1, keepdims=True)
        return (t - mu) / jnp.sqrt(var + 1e-5) * w + b

    # ---- attention branch ----
    y = layer_norm(x, params['ln1_w'], params['ln1_b'])
    qkv = jnp.einsum('npc,cd->npd', y, params['w_qkv'], precision=hp)

    w_dw_hwio = params['w_dw'].reshape(3, 3, 1, 3 * C)          # depthwise HWIO
    qkv_hw = qkv.reshape(N, H, W, 3 * C)
    conv = lax.conv_general_dilated(
        qkv_hw, w_dw_hwio, window_strides=(1, 1), padding='SAME',
        dimension_numbers=('NHWC', 'HWIO', 'NHWC'),
        feature_group_count=3 * C, precision=hp)
    dwo = conv - theta * qkv_hw * params['w_dw'].sum(0)[None, None, None, :]
    dwo = dwo.reshape(N, HW, 3 * C)

    q, k, v = dwo[..., :C], dwo[..., C:2 * C], dwo[..., 2 * C:]

    def heads(t):   # (N, HW, C) -> (N, head, hd, HW)  == rearrange 'b (head c) h w -> b head c (h w)'
        return jnp.transpose(t.reshape(N, HW, num_heads, hd), (0, 2, 3, 1))

    qh, kh, vh = heads(q), heads(k), heads(v)
    qh = qh / jnp.maximum(jnp.linalg.norm(qh, axis=-1, keepdims=True), 1e-12)
    kh = kh / jnp.maximum(jnp.linalg.norm(kh, axis=-1, keepdims=True), 1e-12)
    temp = params['temperature'].reshape(1, num_heads, 1, 1)
    attn = jnp.einsum('nhcp,nhdp->nhcd', qh, kh, precision=hp) * temp
    attn = jax.nn.softmax(attn, axis=-1)
    out = jnp.einsum('nhcd,nhdp->nhcp', attn, vh, precision=hp)
    out = jnp.transpose(out, (0, 3, 1, 2)).reshape(N, HW, C)
    out = jnp.einsum('npc,cd->npd', out, params['w_po'], precision=hp)
    x = x + out

    # ---- FFN branch ----
    y2 = layer_norm(x, params['ln2_w'], params['ln2_b'])
    h = jnp.einsum('npc,cd->npd', y2, params['w_pi'], precision=hp)
    h1, h2 = h[..., :hidden], h[..., hidden:]
    g1 = 0.5 * h1 * (1.0 + jnp.tanh(0.7978845608028654
                                    * (h1 + 0.044715 * h1 * h1 * h1)))
    ff = jnp.einsum('nph,hc->npc', g1 * h2, params['w_po2'], precision=hp)
    x = x + ff
    return jnp.transpose(x.reshape(N, H, W, C), (0, 3, 1, 2))


if __name__ == "__main__":
    # Small shapes: batch=2, dim=64, 16x16 spatial, 4 heads, ffn_expansion_factor=2.
    N, dim, H, W = 2, 64, 16, 16
    num_heads = 4
    ffn_expansion_factor = 2.0
    hidden = int(dim * ffn_expansion_factor)
    theta = 0.7

    key = jax.random.PRNGKey(0)
    ks = jax.random.split(key, 11)

    def unif(k, shape, fan_in):
        b = 1.0 / (fan_in ** 0.5)
        return jax.random.uniform(k, shape, jnp.float32, minval=-b, maxval=b)

    x = jax.random.normal(ks[0], (N, dim, H, W), jnp.float32)
    params = {
        'ln1_w': 1.0 + 0.1 * jax.random.normal(ks[1], (dim,), jnp.float32),
        'ln1_b': 0.1 * jax.random.normal(ks[2], (dim,), jnp.float32),
        'w_qkv': unif(ks[3], (dim, 3 * dim), dim),
        'w_dw': unif(ks[4], (9, 3 * dim), 9),
        'temperature': 1.0 + 0.1 * jax.random.normal(ks[5], (num_heads,), jnp.float32),
        'w_po': unif(ks[6], (dim, dim), dim),
        'ln2_w': 1.0 + 0.1 * jax.random.normal(ks[7], (dim,), jnp.float32),
        'ln2_b': 0.1 * jax.random.normal(ks[8], (dim,), jnp.float32),
        'w_pi': unif(ks[9], (dim, 2 * hidden), dim),
        'w_po2': unif(ks[10], (hidden, dim), hidden),
    }

    out = transformer_block1(x, params, num_heads=num_heads, theta=theta)
    out = jax.block_until_ready(out)

    ref = transformer_block1_reference(x, params, num_heads=num_heads, theta=theta)
    ref = jax.block_until_ready(ref)

    assert out.shape == (N, dim, H, W)
    assert bool(jnp.all(jnp.isfinite(out)))
    max_err = float(jnp.max(jnp.abs(out - ref)))
    assert jnp.allclose(out, ref, atol=2e-2, rtol=2e-2), \
        f"mismatch vs reference: max abs err {max_err}"

    print("KERNEL_OK")
</pallas_src>

<mosaic_0001>
module attributes {stable_mosaic.version = 11 : i64} {
  func.func @_transformer_block1_kernel(%arg0: i32, %arg1: memref<1x256x64xf32, #tpu.memory_space<vmem>>, %arg2: memref<1x64xf32, #tpu.memory_space<vmem>>, %arg3: memref<1x64xf32, #tpu.memory_space<vmem>>, %arg4: memref<64x192xf32, #tpu.memory_space<vmem>>, %arg5: memref<9x192xf32, #tpu.memory_space<vmem>>, %arg6: memref<1x192xf32, #tpu.memory_space<vmem>>, %arg7: memref<1x64xf32, #tpu.memory_space<vmem>>, %arg8: memref<64x64xf32, #tpu.memory_space<vmem>>, %arg9: memref<64x64xf32, #tpu.memory_space<vmem>>, %arg10: memref<1x64xf32, #tpu.memory_space<vmem>>, %arg11: memref<1x64xf32, #tpu.memory_space<vmem>>, %arg12: memref<64x256xf32, #tpu.memory_space<vmem>>, %arg13: memref<128x64xf32, #tpu.memory_space<vmem>>, %arg14: memref<1x256x64xf32, #tpu.memory_space<vmem>>) attributes {dimension_semantics = [#tpu.dimension_semantics<parallel>], iteration_bounds = array<i64: 2>, scalar_prefetch = 0 : i64, scratch_operands = 0 : i64, tpu.core_type = #tpu.core_type<tc>, window_params = [{transform_indices = @transform_0, window_bounds = array<i64: 1, 256, 64>}, {pipeline_mode = #tpu.pipeline_mode<synchronous>, transform_indices = @transform_1, window_bounds = array<i64: 1, 64>}, {pipeline_mode = #tpu.pipeline_mode<synchronous>, transform_indices = @transform_2, window_bounds = array<i64: 1, 64>}, {pipeline_mode = #tpu.pipeline_mode<synchronous>, transform_indices = @transform_3, window_bounds = array<i64: 64, 192>}, {pipeline_mode = #tpu.pipeline_mode<synchronous>, transform_indices = @transform_4, window_bounds = array<i64: 9, 192>}, {pipeline_mode = #tpu.pipeline_mode<synchronous>, transform_indices = @transform_5, window_bounds = array<i64: 1, 192>}, {pipeline_mode = #tpu.pipeline_mode<synchronous>, transform_indices = @transform_6, window_bounds = array<i64: 1, 64>}, {pipeline_mode = #tpu.pipeline_mode<synchronous>, transform_indices = @transform_7, window_bounds = array<i64: 64, 64>}, {pipeline_mode = #tpu.pipeline_mode<synchronous>, transform_indices = @transform_8, window_bounds = array<i64: 64, 64>}, {pipeline_mode = #tpu.pipeline_mode<synchronous>, transform_indices = @transform_9, window_bounds = array<i64: 1, 64>}, {pipeline_mode = #tpu.pipeline_mode<synchronous>, transform_indices = @transform_10, window_bounds = array<i64: 1, 64>}, {pipeline_mode = #tpu.pipeline_mode<synchronous>, transform_indices = @transform_11, window_bounds = array<i64: 64, 256>}, {pipeline_mode = #tpu.pipeline_mode<synchronous>, transform_indices = @transform_12, window_bounds = array<i64: 128, 64>}, {transform_indices = @transform_13, window_bounds = array<i64: 1, 256, 64>}]} {
    %c0 = arith.constant 0 : index
    %c0_0 = arith.constant 0 : index
    %c0_1 = arith.constant 0 : index
    %0 = vector.load %arg1[%c0, %c0_0, %c0_1] : memref<1x256x64xf32, #tpu.memory_space<vmem>>, vector<1x256x64xf32>
    %1 = vector.shape_cast %0 : vector<1x256x64xf32> to vector<256x64xf32>
    %cst = arith.constant dense<0.000000e+00> : vector<256xf32>
    %2 = vector.multi_reduction <add>, %1, %cst [1] : vector<256x64xf32> to vector<256xf32>
    %3 = vector.shape_cast %2 : vector<256xf32> to vector<256x1xf32>
    %cst_2 = arith.constant 6.400000e+01 : f32
    %4 = vector.broadcast %cst_2 : f32 to vector<256x1xf32>
    %5 = arith.divf %3, %4 : vector<256x1xf32>
    %6 = vector.broadcast %5 : vector<256x1xf32> to vector<256x64xf32>
    %7 = arith.subf %1, %6 : vector<256x64xf32>
    %8 = arith.mulf %7, %7 : vector<256x64xf32>
    %cst_3 = arith.constant dense<0.000000e+00> : vector<256xf32>
    %9 = vector.multi_reduction <add>, %8, %cst_3 [1] : vector<256x64xf32> to vector<256xf32>
    %10 = vector.shape_cast %9 : vector<256xf32> to vector<256x1xf32>
    %cst_4 = arith.constant 6.400000e+01 : f32
    %11 = vector.broadcast %cst_4 : f32 to vector<256x1xf32>
    %12 = arith.divf %10, %11 : vector<256x1xf32>
    %cst_5 = arith.constant 9.99999974E-6 : f32
    %13 = vector.broadcast %cst_5 : f32 to vector<256x1xf32>
    %14 = arith.addf %12, %13 : vector<256x1xf32>
    %15 = math.rsqrt %14 : vector<256x1xf32>
    %16 = vector.broadcast %15 : vector<256x1xf32> to vector<256x64xf32>
    %17 = arith.mulf %7, %16 : vector<256x64xf32>
    %c0_6 = arith.constant 0 : index
    %c0_7 = arith.constant 0 : index
    %18 = vector.load %arg2[%c0_6, %c0_7] : memref<1x64xf32, #tpu.memory_space<vmem>>, vector<1x64xf32>
    %19 = vector.broadcast %18 : vector<1x64xf32> to vector<256x64xf32>
    %20 = arith.mulf %17, %19 : vector<256x64xf32>
    %c0_8 = arith.constant 0 : index
    %c0_9 = arith.constant 0 : index
    %21 = vector.load %arg3[%c0_8, %c0_9] : memref<1x64xf32, #tpu.memory_space<vmem>>, vector<1x64xf32>
    %22 = vector.broadcast %21 : vector<1x64xf32> to vector<256x64xf32>
    %23 = arith.addf %20, %22 : vector<256x64xf32>
    %c0_10 = arith.constant 0 : index
    %c0_11 = arith.constant 0 : index
    %24 = vector.load %arg4[%c0_10, %c0_11] : memref<64x192xf32, #tpu.memory_space<vmem>>, vector<64x192xf32>
    %cst_12 = arith.constant dense<0.000000e+00> : vector<256x192xf32>
    %25 = tpu.matmul %23, %24, %cst_12 {dimension_numbers = #tpu.dot_dimension_numbers<[1], [0], [0], [1], [0, 0, 1, 1], [], []>} : vector<256x64xf32>, vector<64x192xf32>, vector<256x192xf32> -> vector<256x192xf32>
    %c0_13 = arith.constant 0 : index
    %c0_14 = arith.constant 0 : index
    %26 = vector.load %arg5[%c0_13, %c0_14] : memref<9x192xf32, #tpu.memory_space<vmem>>, vector<9x192xf32>
    %27 = tpu.iota {dimensions = array<i32: 0>} : vector<256x192xi32>
    %c16_i32 = arith.constant 16 : i32
    %c0_i32 = arith.constant 0 : i32
    %28 = arith.cmpi eq, %c16_i32, %c0_i32 : i32
    %c1_i32 = arith.constant 1 : i32
    %29 = arith.select %28, %c1_i32, %c16_i32 : i32
    %30 = vector.broadcast %29 : i32 to vector<256x192xi32>
    %31 = arith.remsi %27, %30 : vector<256x192xi32>
    %c0_i32_15 = arith.constant 0 : i32
    %32 = vector.broadcast %c0_i32_15 : i32 to vector<256x192xi32>
    %33 = arith.cmpi ne, %31, %32 : vector<256x192xi32>
    %c0_i32_16 = arith.constant 0 : i32
    %34 = vector.broadcast %c0_i32_16 : i32 to vector<256x192xi32>
    %35 = arith.cmpi slt, %31, %34 : vector<256x192xi32>
    %c0_i32_17 = arith.constant 0 : i32
    %36 = arith.cmpi slt, %29, %c0_i32_17 : i32
    %37 = vector.broadcast %36 : i1 to vector<256x192xi1>
    %38 = vector.broadcast %37 : vector<256x192xi1> to vector<256x192xi1>
    %39 = arith.xori %35, %38 : vector<256x192xi1>
    %40 = arith.andi %39, %33 : vector<256x192xi1>
    %41 = vector.broadcast %29 : i32 to vector<256x192xi32>
    %42 = arith.addi %31, %41 : vector<256x192xi32>
    %43 = arith.select %40, %42, %31 : vector<256x192xi1>, vector<256x192xi32>
    %c1_i32_18 = arith.constant 1 : i32
    %44 = vector.broadcast %c1_i32_18 : i32 to vector<256x192xi32>
    %45 = arith.cmpi sge, %43, %44 : vector<256x192xi32>
    %c14_i32 = arith.constant 14 : i32
    %46 = vector.broadcast %c14_i32 : i32 to vector<256x192xi32>
    %47 = arith.cmpi sle, %43, %46 : vector<256x192xi32>
    %cst_19 = arith.constant 0.000000e+00 : f32
    %48 = vector.broadcast %cst_19 : f32 to vector<256x192xf32>
    %cst_20 = arith.constant 0.000000e+00 : f32
    %49 = vector.broadcast %cst_20 : f32 to vector<17x192xf32>
    %50 = vector.extract_strided_slice %25 {offsets = [0, 0], sizes = [239, 192], strides = [1, 1]} : vector<256x192xf32> to vector<239x192xf32>
    %51 = tpu.concatenate %49, %50 in 0 : vector<17x192xf32>, vector<239x192xf32> -> vector<256x192xf32>
    %cst_21 = arith.constant 0.000000e+00 : f32
    %52 = vector.broadcast %cst_21 : f32 to vector<256x192xf32>
    %53 = arith.select %45, %51, %52 : vector<256x192xi1>, vector<256x192xf32>
    %54 = vector.extract_strided_slice %26 {offsets = [0, 0], sizes = [1, 192], strides = [1, 1]} : vector<9x192xf32> to vector<1x192xf32>
    %55 = vector.broadcast %54 : vector<1x192xf32> to vector<256x192xf32>
    %56 = arith.mulf %53, %55 : vector<256x192xf32>
    %57 = arith.addf %48, %56 : vector<256x192xf32>
    %cst_22 = arith.constant 0.000000e+00 : f32
    %58 = vector.broadcast %cst_22 : f32 to vector<16x192xf32>
    %59 = vector.extract_strided_slice %25 {offsets = [0, 0], sizes = [240, 192], strides = [1, 1]} : vector<256x192xf32> to vector<240x192xf32>
    %60 = tpu.concatenate %58, %59 in 0 : vector<16x192xf32>, vector<240x192xf32> -> vector<256x192xf32>
    %61 = vector.extract_strided_slice %26 {offsets = [1, 0], sizes = [1, 192], strides = [1, 1]} : vector<9x192xf32> to vector<1x192xf32>
    %62 = vector.broadcast %61 : vector<1x192xf32> to vector<256x192xf32>
    %63 = arith.mulf %60, %62 : vector<256x192xf32>
    %64 = arith.addf %57, %63 : vector<256x192xf32>
    %cst_23 = arith.constant 0.000000e+00 : f32
    %65 = vector.broadcast %cst_23 : f32 to vector<15x192xf32>
    %66 = vector.extract_strided_slice %25 {offsets = [0, 0], sizes = [241, 192], strides = [1, 1]} : vector<256x192xf32> to vector<241x192xf32>
    %67 = tpu.concatenate %65, %66 in 0 : vector<15x192xf32>, vector<241x192xf32> -> vector<256x192xf32>
    %cst_24 = arith.constant 0.000000e+00 : f32
    %68 = vector.broadcast %cst_24 : f32 to vector<256x192xf32>
    %69 = arith.select %47, %67, %68 : vector<256x192xi1>, vector<256x192xf32>
    %70 = vector.extract_strided_slice %26 {offsets = [2, 0], sizes = [1, 192], strides = [1, 1]} : vector<9x192xf32> to vector<1x192xf32>
    %71 = vector.broadcast %70 : vector<1x192xf32> to vector<256x192xf32>
    %72 = arith.mulf %69, %71 : vector<256x192xf32>
    %73 = arith.addf %64, %72 : vector<256x192xf32>
    %cst_25 = arith.constant 0.000000e+00 : f32
    %74 = vector.broadcast %cst_25 : f32 to vector<1x192xf32>
    %75 = vector.extract_strided_slice %25 {offsets = [0, 0], sizes = [255, 192], strides = [1, 1]} : vector<256x192xf32> to vector<255x192xf32>
    %76 = tpu.concatenate %74, %75 in 0 : vector<1x192xf32>, vector<255x192xf32> -> vector<256x192xf32>
    %cst_26 = arith.constant 0.000000e+00 : f32
    %77 = vector.broadcast %cst_26 : f32 to vector<256x192xf32>
    %78 = arith.select %45, %76, %77 : vector<256x192xi1>, vector<256x192xf32>
    %79 = vector.extract_strided_slice %26 {offsets = [3, 0], sizes = [1, 192], strides = [1, 1]} : vector<9x192xf32> to vector<1x192xf32>
    %80 = vector.broadcast %79 : vector<1x192xf32> to vector<256x192xf32>
    %81 = arith.mulf %78, %80 : vector<256x192xf32>
    %82 = arith.addf %73, %81 : vector<256x192xf32>
    %83 = vector.extract_strided_slice %26 {offsets = [4, 0], sizes = [1, 192], strides = [1, 1]} : vector<9x192xf32> to vector<1x192xf32>
    %84 = vector.broadcast %83 : vector<1x192xf32> to vector<256x192xf32>
    %85 = arith.mulf %25, %84 : vector<256x192xf32>
    %86 = arith.addf %82, %85 : vector<256x192xf32>
    %87 = vector.extract_strided_slice %25 {offsets = [1, 0], sizes = [255, 192], strides = [1, 1]} : vector<256x192xf32> to vector<255x192xf32>
    %cst_27 = arith.constant 0.000000e+00 : f32
    %88 = vector.broadcast %cst_27 : f32 to vector<1x192xf32>
    %89 = tpu.concatenate %87, %88 in 0 : vector<255x192xf32>, vector<1x192xf32> -> vector<256x192xf32>
    %cst_28 = arith.constant 0.000000e+00 : f32
    %90 = vector.broadcast %cst_28 : f32 to vector<256x192xf32>
    %91 = arith.select %47, %89, %90 : vector<256x192xi1>, vector<256x192xf32>
    %92 = vector.extract_strided_slice %26 {offsets = [5, 0], sizes = [1, 192], strides = [1, 1]} : vector<9x192xf32> to vector<1x192xf32>
    %93 = vector.broadcast %92 : vector<1x192xf32> to vector<256x192xf32>
    %94 = arith.mulf %91, %93 : vector<256x192xf32>
    %95 = arith.addf %86, %94 : vector<256x192xf32>
    %96 = vector.extract_strided_slice %25 {offsets = [15, 0], sizes = [241, 192], strides = [1, 1]} : vector<256x192xf32> to vector<241x192xf32>
    %cst_29 = arith.constant 0.000000e+00 : f32
    %97 = vector.broadcast %cst_29 : f32 to vector<15x192xf32>
    %98 = tpu.concatenate %96, %97 in 0 : vector<241x192xf32>, vector<15x192xf32> -> vector<256x192xf32>
    %cst_30 = arith.constant 0.000000e+00 : f32
    %99 = vector.broadcast %cst_30 : f32 to vector<256x192xf32>
    %100 = arith.select %45, %98, %99 : vector<256x192xi1>, vector<256x192xf32>
    %101 = vector.extract_strided_slice %26 {offsets = [6, 0], sizes = [1, 192], strides = [1, 1]} : vector<9x192xf32> to vector<1x192xf32>
    %102 = vector.broadcast %101 : vector<1x192xf32> to vector<256x192xf32>
    %103 = arith.mulf %100, %102 : vector<256x192xf32>
    %104 = arith.addf %95, %103 : vector<256x192xf32>
    %105 = vector.extract_strided_slice %25 {offsets = [16, 0], sizes = [240, 192], strides = [1, 1]} : vector<256x192xf32> to vector<240x192xf32>
    %cst_31 = arith.constant 0.000000e+00 : f32
    %106 = vector.broadcast %cst_31 : f32 to vector<16x192xf32>
    %107 = tpu.concatenate %105, %106 in 0 : vector<240x192xf32>, vector<16x192xf32> -> vector<256x192xf32>
    %108 = vector.extract_strided_slice %26 {offsets = [7, 0], sizes = [1, 192], strides = [1, 1]} : vector<9x192xf32> to vector<1x192xf32>
    %109 = vector.broadcast %108 : vector<1x192xf32> to vector<256x192xf32>
    %110 = arith.mulf %107, %109 : vector<256x192xf32>
    %111 = arith.addf %104, %110 : vector<256x192xf32>
    %112 = vector.extract_strided_slice %25 {offsets = [17, 0], sizes = [239, 192], strides = [1, 1]} : vector<256x192xf32> to vector<239x192xf32>
    %cst_32 = arith.constant 0.000000e+00 : f32
    %113 = vector.broadcast %cst_32 : f32 to vector<17x192xf32>
    %114 = tpu.concatenate %112, %113 in 0 : vector<239x192xf32>, vector<17x192xf32> -> vector<256x192xf32>
    %cst_33 = arith.constant 0.000000e+00 : f32
    %115 = vector.broadcast %cst_33 : f32 to vector<256x192xf32>
    %116 = arith.select %47, %114, %115 : vector<256x192xi1>, vector<256x192xf32>
    %117 = vector.extract_strided_slice %26 {offsets = [8, 0], sizes = [1, 192], strides = [1, 1]} : vector<9x192xf32> to vector<1x192xf32>
    %118 = vector.broadcast %117 : vector<1x192xf32> to vector<256x192xf32>
    %119 = arith.mulf %116, %118 : vector<256x192xf32>
    %120 = arith.addf %111, %119 : vector<256x192xf32>
    %cst_34 = arith.constant 0.699999988 : f32
    %121 = vector.broadcast %cst_34 : f32 to vector<256x192xf32>
    %122 = arith.mulf %121, %25 : vector<256x192xf32>
    %c0_35 = arith.constant 0 : index
    %c0_36 = arith.constant 0 : index
    %123 = vector.load %arg6[%c0_35, %c0_36] : memref<1x192xf32, #tpu.memory_space<vmem>>, vector<1x192xf32>
    %124 = vector.broadcast %123 : vector<1x192xf32> to vector<256x192xf32>
    %125 = arith.mulf %122, %124 : vector<256x192xf32>
    %126 = arith.subf %120, %125 : vector<256x192xf32>
    %127 = vector.extract_strided_slice %126 {offsets = [0, 0], sizes = [256, 64], strides = [1, 1]} : vector<256x192xf32> to vector<256x64xf32>
    %128 = vector.extract_strided_slice %126 {offsets = [0, 64], sizes = [256, 64], strides = [1, 1]} : vector<256x192xf32> to vector<256x64xf32>
    %129 = vector.extract_strided_slice %126 {offsets = [0, 128], sizes = [256, 64], strides = [1, 1]} : vector<256x192xf32> to vector<256x64xf32>
    %130 = arith.mulf %127, %127 : vector<256x64xf32>
    %cst_37 = arith.constant dense<0.000000e+00> : vector<64xf32>
    %131 = vector.multi_reduction <add>, %130, %cst_37 [0] : vector<256x64xf32> to vector<64xf32>
    %132 = vector.shape_cast %131 : vector<64xf32> to vector<1x64xf32>
    %133 = math.sqrt %132 : vector<1x64xf32>
    %cst_38 = arith.constant 9.99999996E-13 : f32
    %134 = vector.broadcast %cst_38 : f32 to vector<1x64xf32>
    %135 = arith.maximumf %133, %134 : vector<1x64xf32>
    %136 = vector.broadcast %135 : vector<1x64xf32> to vector<256x64xf32>
    %137 = arith.divf %127, %136 : vector<256x64xf32>
    %138 = arith.mulf %128, %128 : vector<256x64xf32>
    %cst_39 = arith.constant dense<0.000000e+00> : vector<64xf32>
    %139 = vector.multi_reduction <add>, %138, %cst_39 [0] : vector<256x64xf32> to vector<64xf32>
    %140 = vector.shape_cast %139 : vector<64xf32> to vector<1x64xf32>
    %141 = math.sqrt %140 : vector<1x64xf32>
    %cst_40 = arith.constant 9.99999996E-13 : f32
    %142 = vector.broadcast %cst_40 : f32 to vector<1x64xf32>
    %143 = arith.maximumf %141, %142 : vector<1x64xf32>
    %144 = vector.broadcast %143 : vector<1x64xf32> to vector<256x64xf32>
    %145 = arith.divf %128, %144 : vector<256x64xf32>
    %cst_41 = arith.constant dense<0.000000e+00> : vector<64x64xf32>
    %146 = tpu.matmul %137, %145, %cst_41 {dimension_numbers = #tpu.dot_dimension_numbers<[0], [0], [1], [1], [0, 1, 1, 1], [], []>} : vector<256x64xf32>, vector<256x64xf32>, vector<64x64xf32> -> vector<64x64xf32>
    %c0_42 = arith.constant 0 : index
    %c0_43 = arith.constant 0 : index
    %147 = vector.load %arg7[%c0_42, %c0_43] : memref<1x64xf32, #tpu.memory_space<vmem>>, vector<1x64xf32>
    %148 = vector.broadcast %147 : vector<1x64xf32> to vector<64x64xf32>
    %149 = arith.mulf %146, %148 : vector<64x64xf32>
    %c0_44 = arith.constant 0 : index
    %c0_45 = arith.constant 0 : index
    %150 = vector.load %arg8[%c0_44, %c0_45] : memref<64x64xf32, #tpu.memory_space<vmem>>, vector<64x64xf32>
    %cst_46 = arith.constant 5.000000e-01 : f32
    %151 = vector.broadcast %cst_46 : f32 to vector<64x64xf32>
    %152 = arith.cmpf ogt, %150, %151 : vector<64x64xf32>
    %cst_47 = arith.constant -1.000000e+30 : f32
    %153 = vector.broadcast %cst_47 : f32 to vector<64x64xf32>
    %154 = arith.select %152, %149, %153 : vector<64x64xi1>, vector<64x64xf32>
    %cst_48 = arith.constant dense<0xFF800000> : vector<64xf32>
    %155 = vector.multi_reduction <maximumf>, %154, %cst_48 [1] : vector<64x64xf32> to vector<64xf32>
    %156 = vector.shape_cast %155 : vector<64xf32> to vector<64x1xf32>
    %157 = vector.broadcast %156 : vector<64x1xf32> to vector<64x64xf32>
    %158 = arith.subf %154, %157 : vector<64x64xf32>
    %159 = math.exp %158 : vector<64x64xf32>
    %cst_49 = arith.constant dense<0.000000e+00> : vector<64xf32>
    %160 = vector.multi_reduction <add>, %159, %cst_49 [1] : vector<64x64xf32> to vector<64xf32>
    %161 = vector.shape_cast %160 : vector<64xf32> to vector<64x1xf32>
    %162 = vector.broadcast %161 : vector<64x1xf32> to vector<64x64xf32>
    %163 = arith.divf %159, %162 : vector<64x64xf32>
    %cst_50 = arith.constant dense<0.000000e+00> : vector<256x64xf32>
    %164 = tpu.matmul %129, %163, %cst_50 {dimension_numbers = #tpu.dot_dimension_numbers<[1], [1], [0], [0], [0, 0, 1, 0], [], []>} : vector<256x64xf32>, vector<64x64xf32>, vector<256x64xf32> -> vector<256x64xf32>
    %c0_51 = arith.constant 0 : index
    %c0_52 = arith.constant 0 : index
    %165 = vector.load %arg9[%c0_51, %c0_52] : memref<64x64xf32, #tpu.memory_space<vmem>>, vector<64x64xf32>
    %cst_53 = arith.constant dense<0.000000e+00> : vector<256x64xf32>
    %166 = tpu.matmul %164, %165, %cst_53 {dimension_numbers = #tpu.dot_dimension_numbers<[1], [0], [0], [1], [0, 0, 1, 1], [], []>} : vector<256x64xf32>, vector<64x64xf32>, vector<256x64xf32> -> vector<256x64xf32>
    %167 = arith.addf %1, %166 : vector<256x64xf32>
    %cst_54 = arith.constant dense<0.000000e+00> : vector<256xf32>
    %168 = vector.multi_reduction <add>, %167, %cst_54 [1] : vector<256x64xf32> to vector<256xf32>
    %169 = vector.shape_cast %168 : vector<256xf32> to vector<256x1xf32>
    %cst_55 = arith.constant 6.400000e+01 : f32
    %170 = vector.broadcast %cst_55 : f32 to vector<256x1xf32>
    %171 = arith.divf %169, %170 : vector<256x1xf32>
    %172 = vector.broadcast %171 : vector<256x1xf32> to vector<256x64xf32>
    %173 = arith.subf %167, %172 : vector<256x64xf32>
    %174 = arith.mulf %173, %173 : vector<256x64xf32>
    %cst_56 = arith.constant dense<0.000000e+00> : vector<256xf32>
    %175 = vector.multi_reduction <add>, %174, %cst_56 [1] : vector<256x64xf32> to vector<256xf32>
    %176 = vector.shape_cast %175 : vector<256xf32> to vector<256x1xf32>
    %cst_57 = arith.constant 6.400000e+01 : f32
    %177 = vector.broadcast %cst_57 : f32 to vector<256x1xf32>
    %178 = arith.divf %176, %177 : vector<256x1xf32>
    %cst_58 = arith.constant 9.99999974E-6 : f32
    %179 = vector.broadcast %cst_58 : f32 to vector<256x1xf32>
    %180 = arith.addf %178, %179 : vector<256x1xf32>
    %181 = math.rsqrt %180 : vector<256x1xf32>
    %182 = vector.broadcast %181 : vector<256x1xf32> to vector<256x64xf32>
    %183 = arith.mulf %173, %182 : vector<256x64xf32>
    %c0_59 = arith.constant 0 : index
    %c0_60 = arith.constant 0 : index
    %184 = vector.load %arg10[%c0_59, %c0_60] : memref<1x64xf32, #tpu.memory_space<vmem>>, vector<1x64xf32>
    %185 = vector.broadcast %184 : vector<1x64xf32> to vector<256x64xf32>
    %186 = arith.mulf %183, %185 : vector<256x64xf32>
    %c0_61 = arith.constant 0 : index
    %c0_62 = arith.constant 0 : index
    %187 = vector.load %arg11[%c0_61, %c0_62] : memref<1x64xf32, #tpu.memory_space<vmem>>, vector<1x64xf32>
    %188 = vector.broadcast %187 : vector<1x64xf32> to vector<256x64xf32>
    %189 = arith.addf %186, %188 : vector<256x64xf32>
    %c0_63 = arith.constant 0 : index
    %c0_64 = arith.constant 0 : index
    %190 = vector.load %arg12[%c0_63, %c0_64] : memref<64x256xf32, #tpu.memory_space<vmem>>, vector<64x256xf32>
    %cst_65 = arith.constant dense<0.000000e+00> : vector<256x256xf32>
    %191 = tpu.matmul %189, %190, %cst_65 {dimension_numbers = #tpu.dot_dimension_numbers<[1], [0], [0], [1], [0, 0, 1, 1], [], []>} : vector<256x64xf32>, vector<64x256xf32>, vector<256x256xf32> -> vector<256x256xf32>
    %192 = vector.extract_strided_slice %191 {offsets = [0, 0], sizes = [256, 128], strides = [1, 1]} : vector<256x256xf32> to vector<256x128xf32>
    %193 = vector.extract_strided_slice %191 {offsets = [0, 128], sizes = [256, 128], strides = [1, 1]} : vector<256x256xf32> to vector<256x128xf32>
    %cst_66 = arith.constant 5.000000e-01 : f32
    %194 = vector.broadcast %cst_66 : f32 to vector<256x128xf32>
    %195 = arith.mulf %194, %192 : vector<256x128xf32>
    %cst_67 = arith.constant 4.471500e-02 : f32
    %196 = vector.broadcast %cst_67 : f32 to vector<256x128xf32>
    %197 = arith.mulf %196, %192 : vector<256x128xf32>
    %198 = arith.mulf %197, %192 : vector<256x128xf32>
    %199 = arith.mulf %198, %192 : vector<256x128xf32>
    %200 = arith.addf %192, %199 : vector<256x128xf32>
    %cst_68 = arith.constant 0.797884583 : f32
    %201 = vector.broadcast %cst_68 : f32 to vector<256x128xf32>
    %202 = arith.mulf %201, %200 : vector<256x128xf32>
    %203 = math.tanh %202 : vector<256x128xf32>
    %cst_69 = arith.constant 1.000000e+00 : f32
    %204 = vector.broadcast %cst_69 : f32 to vector<256x128xf32>
    %205 = arith.addf %204, %203 : vector<256x128xf32>
    %206 = arith.mulf %195, %205 : vector<256x128xf32>
    %207 = arith.mulf %206, %193 : vector<256x128xf32>
    %c0_70 = arith.constant 0 : index
    %c0_71 = arith.constant 0 : index
    %208 = vector.load %arg13[%c0_70, %c0_71] : memref<128x64xf32, #tpu.memory_space<vmem>>, vector<128x64xf32>
    %cst_72 = arith.constant dense<0.000000e+00> : vector<256x64xf32>
    %209 = tpu.matmul %207, %208, %cst_72 {dimension_numbers = #tpu.dot_dimension_numbers<[1], [0], [0], [1], [0, 0, 1, 1], [], []>} : vector<256x128xf32>, vector<128x64xf32>, vector<256x64xf32> -> vector<256x64xf32>
    %210 = arith.addf %167, %209 : vector<256x64xf32>
    %c0_73 = arith.constant 0 : index
    %c0_74 = arith.constant 0 : index
    %c0_75 = arith.constant 0 : index
    %211 = vector.load %arg14[%c0_73, %c0_74, %c0_75] : memref<1x256x64xf32, #tpu.memory_space<vmem>>, vector<1x256x64xf32>
    %212 = vector.shape_cast %211 : vector<1x256x64xf32> to vector<256x64xf32>
    %213 = vector.shape_cast %210 : vector<256x64xf32> to vector<1x256x64xf32>
    tpu.vector_store %arg14[%c0_73, %c0_74, %c0_75], %213 {strides = array<i32>} : memref<1x256x64xf32, #tpu.memory_space<vmem>>, vector<1x256x64xf32>,
    return
  }
  func.func @transform_0(%arg0: i32) -> (i32, i32, i32) {
    %c0_i32 = arith.constant 0 : i32
    %c0_i32_0 = arith.constant 0 : i32
    %c0_i32_1 = arith.constant 0 : i32
    return %arg0, %c0_i32, %c0_i32_0 : i32, i32, i32
  }
  func.func @transform_1(%arg0: i32) -> (i32, i32) {
    %c0_i32 = arith.constant 0 : i32
    %c0_i32_0 = arith.constant 0 : i32
    %c0_i32_1 = arith.constant 0 : i32
    return %c0_i32, %c0_i32_0 : i32, i32
  }
  func.func @transform_2(%arg0: i32) -> (i32, i32) {
    %c0_i32 = arith.constant 0 : i32
    %c0_i32_0 = arith.constant 0 : i32
    %c0_i32_1 = arith.constant 0 : i32
    return %c0_i32, %c0_i32_0 : i32, i32
  }
  func.func @transform_3(%arg0: i32) -> (i32, i32) {
    %c0_i32 = arith.constant 0 : i32
    %c0_i32_0 = arith.constant 0 : i32
    %c0_i32_1 = arith.constant 0 : i32
    return %c0_i32, %c0_i32_0 : i32, i32
  }
  func.func @transform_4(%arg0: i32) -> (i32, i32) {
    %c0_i32 = arith.constant 0 : i32
    %c0_i32_0 = arith.constant 0 : i32
    %c0_i32_1 = arith.constant 0 : i32
    return %c0_i32, %c0_i32_0 : i32, i32
  }
  func.func @transform_5(%arg0: i32) -> (i32, i32) {
    %c0_i32 = arith.constant 0 : i32
    %c0_i32_0 = arith.constant 0 : i32
    %c0_i32_1 = arith.constant 0 : i32
    return %c0_i32, %c0_i32_0 : i32, i32
  }
  func.func @transform_6(%arg0: i32) -> (i32, i32) {
    %c0_i32 = arith.constant 0 : i32
    %c0_i32_0 = arith.constant 0 : i32
    %c0_i32_1 = arith.constant 0 : i32
    return %c0_i32, %c0_i32_0 : i32, i32
  }
  func.func @transform_7(%arg0: i32) -> (i32, i32) {
    %c0_i32 = arith.constant 0 : i32
    %c0_i32_0 = arith.constant 0 : i32
    %c0_i32_1 = arith.constant 0 : i32
    return %c0_i32, %c0_i32_0 : i32, i32
  }
  func.func @transform_8(%arg0: i32) -> (i32, i32) {
    %c0_i32 = arith.constant 0 : i32
    %c0_i32_0 = arith.constant 0 : i32
    %c0_i32_1 = arith.constant 0 : i32
    return %c0_i32, %c0_i32_0 : i32, i32
  }
  func.func @transform_9(%arg0: i32) -> (i32, i32) {
    %c0_i32 = arith.constant 0 : i32
    %c0_i32_0 = arith.constant 0 : i32
    %c0_i32_1 = arith.constant 0 : i32
    return %c0_i32, %c0_i32_0 : i32, i32
  }
  func.func @transform_10(%arg0: i32) -> (i32, i32) {
    %c0_i32 = arith.constant 0 : i32
    %c0_i32_0 = arith.constant 0 : i32
    %c0_i32_1 = arith.constant 0 : i32
    return %c0_i32, %c0_i32_0 : i32, i32
  }
  func.func @transform_11(%arg0: i32) -> (i32, i32) {
    %c0_i32 = arith.constant 0 : i32
    %c0_i32_0 = arith.constant 0 : i32
    %c0_i32_1 = arith.constant 0 : i32
    return %c0_i32, %c0_i32_0 : i32, i32
  }
  func.func @transform_12(%arg0: i32) -> (i32, i32) {
    %c0_i32 = arith.constant 0 : i32
    %c0_i32_0 = arith.constant 0 : i32
    %c0_i32_1 = arith.constant 0 : i32
    return %c0_i32, %c0_i32_0 : i32, i32
  }
  func.func @transform_13(%arg0: i32) -> (i32, i32, i32) {
    %c0_i32 = arith.constant 0 : i32
    %c0_i32_0 = arith.constant 0 : i32
    %c0_i32_1 = arith.constant 0 : i32
    return %arg0, %c0_i32, %c0_i32_0 : i32, i32, i32
  }
}

</mosaic_0001>

<llo_original>
// kernel: tpu_custom_call.1
$region0: #{tpu_custom_call.1}
  #allocation0 [shape = 'u32[]', space=smem, size = 0x4, offset = 0x4, fixed_abs, tag = 'smem constant byte address 0x4 - core index']
  #allocation1 [shape = 'u32[144,128]{1,0:T(1,128)}', space=vmem, size = 0x12000, scoped, tag = 'internal scratch']
  %s0 = inlined_call_operand.vmem [shape: f32[2,256,64], index: 0, kind: input, shape index: {}]
  %s1 = inlined_call_operand.vmem [shape: f32[1,64], index: 1, kind: input, shape index: {}]
  %s2 = inlined_call_operand.vmem [shape: f32[1,64], index: 2, kind: input, shape index: {}]
  %s3 = inlined_call_operand.vmem [shape: f32[64,192], index: 3, kind: input, shape index: {}]
  %s4 = inlined_call_operand.vmem [shape: f32[9,192], index: 4, kind: input, shape index: {}]
  %s5 = inlined_call_operand.vmem [shape: f32[1,192], index: 5, kind: input, shape index: {}]
  %s6 = inlined_call_operand.vmem [shape: f32[1,64], index: 6, kind: input, shape index: {}]
  %s7 = inlined_call_operand.vmem [shape: f32[64,64], index: 7, kind: input, shape index: {}]
  %s8 = inlined_call_operand.vmem [shape: f32[64,64], index: 8, kind: input, shape index: {}]
  %s9 = inlined_call_operand.vmem [shape: f32[1,64], index: 9, kind: input, shape index: {}]
  %s10 = inlined_call_operand.vmem [shape: f32[1,64], index: 10, kind: input, shape index: {}]
  %s11 = inlined_call_operand.vmem [shape: f32[64,256], index: 11, kind: input, shape index: {}]
  %s12 = inlined_call_operand.vmem [shape: f32[128,64], index: 12, kind: input, shape index: {}]
  %s13 = inlined_call_operand.vmem [shape: f32[2,256,64], index: 13, kind: output, shape index: {}]
  %s14 = sld [smem:[#allocation0]]
  $region85: #{tpu_custom_call.1} parent=0
    _
  %s16 = ssub.s32 1, %s14
  %s17 = scalar_select 0, %s16, %s14
  loop: start=0, step=1, limit=4
  $region2: #{tpu_custom_call.1} parent=0 // loop_pre_header
    _
  $region3: #{tpu_custom_call.1} parent=0 // loop_header
    %s19 = sphi 0, %s23
    %p20 = scmp.ge.s32.totalorder %s19, 4
    %s29 = sphi 0, %s31
    %s32 = sphi 0, %s29
    %s33 = sphi 0, %s32
    %s49 = sphi 0, %s33
    %s53 = sphi 0, %s53
    %s55 = sphi 0, %s53
    %s56 = sphi 0, %s55
    %s70 = sphi 0, %s56
    %s74 = sphi 0, %s74
    %s76 = sphi 0, %s74
    %s77 = sphi 0, %s76
    %s91 = sphi 0, %s77
    %s95 = sphi 0, %s95
    %s97 = sphi 0, %s95
    %s98 = sphi 0, %s97
    %s112 = sphi 0, %s98
    %s116 = sphi 0, %s116
    %s118 = sphi 0, %s116
    %s119 = sphi 0, %s118
    %s133 = sphi 0, %s119
    %s137 = sphi 0, %s137
    %s139 = sphi 0, %s137
    %s140 = sphi 0, %s139
    %s154 = sphi 0, %s140
    %s158 = sphi 0, %s158
    %s160 = sphi 0, %s158
    %s161 = sphi 0, %s160
    %s175 = sphi 0, %s161
    %s179 = sphi 0, %s179
    %s181 = sphi 0, %s179
    %s182 = sphi 0, %s181
    %s196 = sphi 0, %s182
    %s200 = sphi 0, %s200
    %s202 = sphi 0, %s200
    %s203 = sphi 0, %s202
    %s217 = sphi 0, %s203
    %s221 = sphi 0, %s221
    %s223 = sphi 0, %s221
    %s224 = sphi 0, %s223
    %s238 = sphi 0, %s224
    %s242 = sphi 0, %s242
    %s244 = sphi 0, %s242
    %s245 = sphi 0, %s244
    %s259 = sphi 0, %s245
    %s263 = sphi 0, %s263
    %s265 = sphi 0, %s263
    %s266 = sphi 0, %s265
    %s280 = sphi 0, %s266
    %s284 = sphi 0, %s284
    %s286 = sphi 0, %s284
    %s287 = sphi 0, %s286
    %s301 = sphi 0, %s287
    %s307 = sphi 0, %s309
    %s310 = sphi 0, %s307
    %s311 = sphi 0, %s310
    %s327 = sphi 0, %s311
  $region4: #{tpu_custom_call.1} parent=0 // loop_header_branch
    %22 = sbr.rel (%p20) target = $region8
  $region5: #{tpu_custom_call.1} parent=0 // loop_body
    %s24 = ssub.s32 %s19, 1
    %s25 = ssub.s32 %s19, 2
    %s26 = sadd.s32 %s19, 1
    %s27 = ssub.s32 %s19, %s26
    %p28 = scmp.eq.s32.totalorder %s27, 0
    %s30 = sadd.s32 %s29, 1
    %s31 = scalar_select %p28, %s29, %s30
    %p34 = pneg %p28
    %p35 = scmp.eq.s32.totalorder %s19, 1
    %p36 = por %p34, %p35
    %p37 = scmp.ne.s32.totalorder %s29, %s32
    %p38 = scmp.eq.s32.totalorder %s19, 0
    %p39 = por %p37, %p38
    %p40 = scmp.ne.s32.totalorder %s29, %s32
    %p41 = scmp.eq.s32.totalorder %s24, 1
    %p42 = por %p40, %p41
    %p43 = scmp.ne.s32.totalorder %s32, %s33
    %p44 = scmp.eq.s32.totalorder %s24, 0
    %p45 = por %p43, %p44
    %p46 = scmp.ne.s32.totalorder %s32, %s33
    %p47 = scmp.eq.s32.totalorder %s25, 1
    %p48 = por %p46, %p47
    %p50 = scmp.ne.s32.totalorder %s33, %s49
    %p51 = scmp.eq.s32.totalorder %s25, 0
    %p52 = por %p50, %p51
    %s54 = sadd.s32 %s53, 1
    %p57 = scmp.eq.s32.totalorder %s19, 1
    %p58 = scmp.ne.s32.totalorder %s53, %s55
    %p59 = scmp.eq.s32.totalorder %s19, 0
    %p60 = por %p58, %p59
    %p61 = scmp.ne.s32.totalorder %s53, %s55
    %p62 = scmp.eq.s32.totalorder %s24, 1
    %p63 = por %p61, %p62
    %p64 = scmp.ne.s32.totalorder %s55, %s56
    %p65 = scmp.eq.s32.totalorder %s24, 0
    %p66 = por %p64, %p65
    %p67 = scmp.ne.s32.totalorder %s55, %s56
    %p68 = scmp.eq.s32.totalorder %s25, 1
    %p69 = por %p67, %p68
    %p71 = scmp.ne.s32.totalorder %s56, %s70
    %p72 = scmp.eq.s32.totalorder %s25, 0
    %p73 = por %p71, %p72
    %s75 = sadd.s32 %s74, 1
    %p78 = scmp.eq.s32.totalorder %s19, 1
    %p79 = scmp.ne.s32.totalorder %s74, %s76
    %p80 = scmp.eq.s32.totalorder %s19, 0
    %p81 = por %p79, %p80
    %p82 = scmp.ne.s32.totalorder %s74, %s76
    %p83 = scmp.eq.s32.totalorder %s24, 1
    %p84 = por %p82, %p83
    %p85 = scmp.ne.s32.totalorder %s76, %s77
    %p86 = scmp.eq.s32.totalorder %s24, 0
    %p87 = por %p85, %p86
    %p88 = scmp.ne.s32.totalorder %s76, %s77
    %p89 = scmp.eq.s32.totalorder %s25, 1
    %p90 = por %p88, %p89
    %p92 = scmp.ne.s32.totalorder %s77, %s91
    %p93 = scmp.eq.s32.totalorder %s25, 0
    %p94 = por %p92, %p93
    %s96 = sadd.s32 %s95, 1
    %p99 = scmp.eq.s32.totalorder %s19, 1
    %p100 = scmp.ne.s32.totalorder %s95, %s97
    %p101 = scmp.eq.s32.totalorder %s19, 0
    %p102 = por %p100, %p101
    %p103 = scmp.ne.s32.totalorder %s95, %s97
    %p104 = scmp.eq.s32.totalorder %s24, 1
    %p105 = por %p103, %p104
    %p106 = scmp.ne.s32.totalorder %s97, %s98
    %p107 = scmp.eq.s32.totalorder %s24, 0
    %p108 = por %p106, %p107
    %p109 = scmp.ne.s32.totalorder %s97, %s98
    %p110 = scmp.eq.s32.totalorder %s25, 1
    %p111 = por %p109, %p110
    %p113 = scmp.ne.s32.totalorder %s98, %s112
    %p114 = scmp.eq.s32.totalorder %s25, 0
    %p115 = por %p113, %p114
    %s117 = sadd.s32 %s116, 1
    %p120 = scmp.eq.s32.totalorder %s19, 1
    %p121 = scmp.ne.s32.totalorder %s116, %s118
    %p122 = scmp.eq.s32.totalorder %s19, 0
    %p123 = por %p121, %p122
    %p124 = scmp.ne.s32.totalorder %s116, %s118
    %p125 = scmp.eq.s32.totalorder %s24, 1
    %p126 = por %p124, %p125
    %p127 = scmp.ne.s32.totalorder %s118, %s119
    %p128 = scmp.eq.s32.totalorder %s24, 0
    %p129 = por %p127, %p128
    %p130 = scmp.ne.s32.totalorder %s118, %s119
    %p131 = scmp.eq.s32.totalorder %s25, 1
    %p132 = por %p130, %p131
    %p134 = scmp.ne.s32.totalorder %s119, %s133
    %p135 = scmp.eq.s32.totalorder %s25, 0
    %p136 = por %p134, %p135
    %s138 = sadd.s32 %s137, 1
    %p141 = scmp.eq.s32.totalorder %s19, 1
    %p142 = scmp.ne.s32.totalorder %s137, %s139
    %p143 = scmp.eq.s32.totalorder %s19, 0
    %p144 = por %p142, %p143
    %p145 = scmp.ne.s32.totalorder %s137, %s139
    %p146 = scmp.eq.s32.totalorder %s24, 1
    %p147 = por %p145, %p146
    %p148 = scmp.ne.s32.totalorder %s139, %s140
    %p149 = scmp.eq.s32.totalorder %s24, 0
    %p150 = por %p148, %p149
    %p151 = scmp.ne.s32.totalorder %s139, %s140
    %p152 = scmp.eq.s32.totalorder %s25, 1
    %p153 = por %p151, %p152
    %p155 = scmp.ne.s32.totalorder %s140, %s154
    %p156 = scmp.eq.s32.totalorder %s25, 0
    %p157 = por %p155, %p156
    %s159 = sadd.s32 %s158, 1
    %p162 = scmp.eq.s32.totalorder %s19, 1
    %p163 = scmp.ne.s32.totalorder %s158, %s160
    %p164 = scmp.eq.s32.totalorder %s19, 0
    %p165 = por %p163, %p164
    %p166 = scmp.ne.s32.totalorder %s158, %s160
    %p167 = scmp.eq.s32.totalorder %s24, 1
    %p168 = por %p166, %p167
    %p169 = scmp.ne.s32.totalorder %s160, %s161
    %p170 = scmp.eq.s32.totalorder %s24, 0
    %p171 = por %p169, %p170
    %p172 = scmp.ne.s32.totalorder %s160, %s161
    %p173 = scmp.eq.s32.totalorder %s25, 1
    %p174 = por %p172, %p173
    %p176 = scmp.ne.s32.totalorder %s161, %s175
    %p177 = scmp.eq.s32.totalorder %s25, 0
    %p178 = por %p176, %p177
    %s180 = sadd.s32 %s179, 1
    %p183 = scmp.eq.s32.totalorder %s19, 1
    %p184 = scmp.ne.s32.totalorder %s179, %s181
    %p185 = scmp.eq.s32.totalorder %s19, 0
    %p186 = por %p184, %p185
    %p187 = scmp.ne.s32.totalorder %s179, %s181
    %p188 = scmp.eq.s32.totalorder %s24, 1
    %p189 = por %p187, %p188
    %p190 = scmp.ne.s32.totalorder %s181, %s182
    %p191 = scmp.eq.s32.totalorder %s24, 0
    %p192 = por %p190, %p191
    %p193 = scmp.ne.s32.totalorder %s181, %s182
    %p194 = scmp.eq.s32.totalorder %s25, 1
    %p195 = por %p193, %p194
    %p197 = scmp.ne.s32.totalorder %s182, %s196
    %p198 = scmp.eq.s32.totalorder %s25, 0
    %p199 = por %p197, %p198
    %s201 = sadd.s32 %s200, 1
    %p204 = scmp.eq.s32.totalorder %s19, 1
    %p205 = scmp.ne.s32.totalorder %s200, %s202
    %p206 = scmp.eq.s32.totalorder %s19, 0
    %p207 = por %p205, %p206
    %p208 = scmp.ne.s32.totalorder %s200, %s202
    %p209 = scmp.eq.s32.totalorder %s24, 1
    %p210 = por %p208, %p209
    %p211 = scmp.ne.s32.totalorder %s202, %s203
    %p212 = scmp.eq.s32.totalorder %s24, 0
    %p213 = por %p211, %p212
    %p214 = scmp.ne.s32.totalorder %s202, %s203
    %p215 = scmp.eq.s32.totalorder %s25, 1
    %p216 = por %p214, %p215
    %p218 = scmp.ne.s32.totalorder %s203, %s217
    %p219 = scmp.eq.s32.totalorder %s25, 0
    %p220 = por %p218, %p219
    %s222 = sadd.s32 %s221, 1
    %p225 = scmp.eq.s32.totalorder %s19, 1
    %p226 = scmp.ne.s32.totalorder %s221, %s223
    %p227 = scmp.eq.s32.totalorder %s19, 0
    %p228 = por %p226, %p227
    %p229 = scmp.ne.s32.totalorder %s221, %s223
    %p230 = scmp.eq.s32.totalorder %s24, 1
    %p231 = por %p229, %p230
    %p232 = scmp.ne.s32.totalorder %s223, %s224
    %p233 = scmp.eq.s32.totalorder %s24, 0
    %p234 = por %p232, %p233
    %p235 = scmp.ne.s32.totalorder %s223, %s224
    %p236 = scmp.eq.s32.totalorder %s25, 1
    %p237 = por %p235, %p236
    %p239 = scmp.ne.s32.totalorder %s224, %s238
    %p240 = scmp.eq.s32.totalorder %s25, 0
    %p241 = por %p239, %p240
    %s243 = sadd.s32 %s242, 1
    %p246 = scmp.eq.s32.totalorder %s19, 1
    %p247 = scmp.ne.s32.totalorder %s242, %s244
    %p248 = scmp.eq.s32.totalorder %s19, 0
    %p249 = por %p247, %p248
    %p250 = scmp.ne.s32.totalorder %s242, %s244
    %p251 = scmp.eq.s32.totalorder %s24, 1
    %p252 = por %p250, %p251
    %p253 = scmp.ne.s32.totalorder %s244, %s245
    %p254 = scmp.eq.s32.totalorder %s24, 0
    %p255 = por %p253, %p254
    %p256 = scmp.ne.s32.totalorder %s244, %s245
    %p257 = scmp.eq.s32.totalorder %s25, 1
    %p258 = por %p256, %p257
    %p260 = scmp.ne.s32.totalorder %s245, %s259
    %p261 = scmp.eq.s32.totalorder %s25, 0
    %p262 = por %p260, %p261
    %s264 = sadd.s32 %s263, 1
    %p267 = scmp.eq.s32.totalorder %s19, 1
    %p268 = scmp.ne.s32.totalorder %s263, %s265
    %p269 = scmp.eq.s32.totalorder %s19, 0
    %p270 = por %p268, %p269
    %p271 = scmp.ne.s32.totalorder %s263, %s265
    %p272 = scmp.eq.s32.totalorder %s24, 1
    %p273 = por %p271, %p272
    %p274 = scmp.ne.s32.totalorder %s265, %s266
    %p275 = scmp.eq.s32.totalorder %s24, 0
    %p276 = por %p274, %p275
    %p277 = scmp.ne.s32.totalorder %s265, %s266
    %p278 = scmp.eq.s32.totalorder %s25, 1
    %p279 = por %p277, %p278
    %p281 = scmp.ne.s32.totalorder %s266, %s280
    %p282 = scmp.eq.s32.totalorder %s25, 0
    %p283 = por %p281, %p282
    %s285 = sadd.s32 %s284, 1
    %p288 = scmp.eq.s32.totalorder %s19, 1
    %p289 = scmp.ne.s32.totalorder %s284, %s286
    %p290 = scmp.eq.s32.totalorder %s19, 0
    %p291 = por %p289, %p290
    %p292 = scmp.ne.s32.totalorder %s284, %s286
    %p293 = scmp.eq.s32.totalorder %s24, 1
    %p294 = por %p292, %p293
    %p295 = scmp.ne.s32.totalorder %s286, %s287
    %p296 = scmp.eq.s32.totalorder %s24, 0
    %p297 = por %p295, %p296
    %p298 = scmp.ne.s32.totalorder %s286, %s287
    %p299 = scmp.eq.s32.totalorder %s25, 1
    %p300 = por %p298, %p299
    %p302 = scmp.ne.s32.totalorder %s287, %s301
    %p303 = scmp.eq.s32.totalorder %s25, 0
    %p304 = por %p302, %p303
    %s305 = ssub.s32 %s19, %s26
    %p306 = scmp.eq.s32.totalorder %s305, 0
    %s308 = sadd.s32 %s307, 1
    %s309 = scalar_select %p306, %s307, %s308
    %p312 = pneg %p306
    %p313 = scmp.eq.s32.totalorder %s19, 1
    %p314 = por %p312, %p313
    %p315 = scmp.ne.s32.totalorder %s307, %s310
    %p316 = scmp.eq.s32.totalorder %s19, 0
    %p317 = por %p315, %p316
    %p318 = scmp.ne.s32.totalorder %s307, %s310
    %p319 = scmp.eq.s32.totalorder %s24, 1
    %p320 = por %p318, %p319
    %p321 = scmp.ne.s32.totalorder %s310, %s311
    %p322 = scmp.eq.s32.totalorder %s24, 0
    %p323 = por %p321, %p322
    %p324 = scmp.ne.s32.totalorder %s310, %s311
    %p325 = scmp.eq.s32.totalorder %s25, 1
    %p326 = por %p324, %p325
    %p328 = scmp.ne.s32.totalorder %s311, %s327
    %p329 = scmp.eq.s32.totalorder %s25, 0
    %p330 = por %p328, %p329
    %p331 = scmp.le.s32.totalorder 1, %s19
    %p332 = scmp.lt.s32.totalorder %s19, 3
    %p333 = pnand %p331, %p332
    %p334 = pneg %p333
    // Predicated region
    $region9: #{tpu_custom_call.1} parent=5 // pred_check
      _
    $region10: #{tpu_custom_call.1} parent=5 // pred_check_branch
      %336 = sbr.rel (%p333) target = $region12
    $region11: #{tpu_custom_call.1} parent=5 // pred_region
      %s337 = ssub.s32 %s19, 1
      // Predicated region
      $region13: #{tpu_custom_call.1} parent=11 // pred_check
        %p338 = pneg %p66
      $region14: #{tpu_custom_call.1} parent=11 // pred_check_branch
        %340 = sbr.rel (%p338) target = $region16
      $region15: #{tpu_custom_call.1} parent=11 // pred_region
        _
      $region16: #{tpu_custom_call.1} parent=11 // pred_fallthru
        _
      // Predicated region
      $region17: #{tpu_custom_call.1} parent=11 // pred_check
        %p341 = pneg %p87
      $region18: #{tpu_custom_call.1} parent=11 // pred_check_branch
        %343 = sbr.rel (%p341) target = $region20
      $region19: #{tpu_custom_call.1} parent=11 // pred_region
        _
      $region20: #{tpu_custom_call.1} parent=11 // pred_fallthru
        _
      // Predicated region
      $region21: #{tpu_custom_call.1} parent=11 // pred_check
        %p344 = pneg %p108
      $region22: #{tpu_custom_call.1} parent=11 // pred_check_branch
        %346 = sbr.rel (%p344) target = $region24
      $region23: #{tpu_custom_call.1} parent=11 // pred_region
        _
      $region24: #{tpu_custom_call.1} parent=11 // pred_fallthru
        _
      // Predicated region
      $region25: #{tpu_custom_call.1} parent=11 // pred_check
        %p347 = pneg %p129
      $region26: #{tpu_custom_call.1} parent=11 // pred_check_branch
        %349 = sbr.rel (%p347) target = $region28
      $region27: #{tpu_custom_call.1} parent=11 // pred_region
        _
      $region28: #{tpu_custom_call.1} parent=11 // pred_fallthru
        _
      // Predicated region
      $region29: #{tpu_custom_call.1} parent=11 // pred_check
        %p350 = pneg %p150
      $region30: #{tpu_custom_call.1} parent=11 // pred_check_branch
        %352 = sbr.rel (%p350) target = $region32
      $region31: #{tpu_custom_call.1} parent=11 // pred_region
        _
      $region32: #{tpu_custom_call.1} parent=11 // pred_fallthru
        _
      // Predicated region
      $region33: #{tpu_custom_call.1} parent=11 // pred_check
        %p353 = pneg %p171
      $region34: #{tpu_custom_call.1} parent=11 // pred_check_branch
        %355 = sbr.rel (%p353) target = $region36
      $region35: #{tpu_custom_call.1} parent=11 // pred_region
        _
      $region36: #{tpu_custom_call.1} parent=11 // pred_fallthru
        _
      // Predicated region
      $region37: #{tpu_custom_call.1} parent=11 // pred_check
        %p356 = pneg %p192
      $region38: #{tpu_custom_call.1} parent=11 // pred_check_branch
        %358 = sbr.rel (%p356) target = $region40
      $region39: #{tpu_custom_call.1} parent=11 // pred_region
        _
      $region40: #{tpu_custom_call.1} parent=11 // pred_fallthru
        _
      // Predicated region
      $region41: #{tpu_custom_call.1} parent=11 // pred_check
        %p359 = pneg %p213
      $region42: #{tpu_custom_call.1} parent=11 // pred_check_branch
        %361 = sbr.rel (%p359) target = $region44
      $region43: #{tpu_custom_call.1} parent=11 // pred_region
        _
      $region44: #{tpu_custom_call.1} parent=11 // pred_fallthru
        _
      // Predicated region
      $region45: #{tpu_custom_call.1} parent=11 // pred_check
        %p362 = pneg %p234
      $region46: #{tpu_custom_call.1} parent=11 // pred_check_branch
        %364 = sbr.rel (%p362) target = $region48
      $region47: #{tpu_custom_call.1} parent=11 // pred_region
        _
      $region48: #{tpu_custom_call.1} parent=11 // pred_fallthru
        _
      // Predicated region
      $region49: #{tpu_custom_call.1} parent=11 // pred_check
        %p365 = pneg %p255
      $region50: #{tpu_custom_call.1} parent=11 // pred_check_branch
        %367 = sbr.rel (%p365) target = $region52
      $region51: #{tpu_custom_call.1} parent=11 // pred_region
        _
      $region52: #{tpu_custom_call.1} parent=11 // pred_fallthru
        _
      // Predicated region
      $region53: #{tpu_custom_call.1} parent=11 // pred_check
        %p368 = pneg %p276
      $region54: #{tpu_custom_call.1} parent=11 // pred_check_branch
        %370 = sbr.rel (%p368) target = $region56
      $region55: #{tpu_custom_call.1} parent=11 // pred_region
        _
      $region56: #{tpu_custom_call.1} parent=11 // pred_fallthru
        _
      // Predicated region
      $region57: #{tpu_custom_call.1} parent=11 // pred_check
        %p371 = pneg %p297
      $region58: #{tpu_custom_call.1} parent=11 // pred_check_branch
        %373 = sbr.rel (%p371) target = $region60
      $region59: #{tpu_custom_call.1} parent=11 // pred_region
        _
      $region60: #{tpu_custom_call.1} parent=11 // pred_fallthru
        _
    $region12: #{tpu_custom_call.1} parent=5 // pred_fallthru
      _
    %p374 = scmp.lt.s32.totalorder %s19, 2
    // Predicated region
    $region61: #{tpu_custom_call.1} parent=5 // pred_check
      %p375 = pneg %p374
    $region62: #{tpu_custom_call.1} parent=5 // pred_check_branch
      %377 = sbr.rel (%p375) target = $region64
    $region63: #{tpu_custom_call.1} parent=5 // pred_region
      // Predicated region
      $region65: #{tpu_custom_call.1} parent=63 // pred_check
        %p378 = pneg %p39
      $region66: #{tpu_custom_call.1} parent=63 // pred_check_branch
        %380 = sbr.rel (%p378) target = $region68
      $region67: #{tpu_custom_call.1} parent=63 // pred_region
        %p381 = scmp.lt.s32.totalorder %s19, 1
        %s382 = scalar_select %p381, %s19, 1
        %s383 = smul.addr %s382, 32
        %s384 = smul.addr %s383, 8
        %s385 = scalar_lea.vmem %s0, %s384
      $region68: #{tpu_custom_call.1} parent=63 // pred_fallthru
        _
    $region64: #{tpu_custom_call.1} parent=5 // pred_fallthru
      _
    %p386 = scmp.le.s32.totalorder 1, %s19
    %p387 = scmp.lt.s32.totalorder %s19, 3
    %p388 = pnand %p386, %p387
    %p389 = pneg %p388
    // Predicated region
    $region69: #{tpu_custom_call.1} parent=5 // pred_check
      _
    $region70: #{tpu_custom_call.1} parent=5 // pred_check_branch
      %391 = sbr.rel (%p388) target = $region72
    $region71: #{tpu_custom_call.1} parent=5 // pred_region
      %s392 = ssub.s32 %s19, 1
      %p393 = scmp.lt.s32.totalorder %s24, 1
      %s394 = scalar_select %p393, %s24, 1
      %s395 = smul.addr %s394, 32
      %s396 = smul.addr %s395, 8
      %s397 = scalar_lea.vmem %s0, %s396
      %p398 = pneg %p45
      %p399 = pneg %p42
      %p400 = pneg %p66
      %p401 = pneg %p63
      %p402 = pneg %p87
      %p403 = pneg %p84
      %p404 = pneg %p108
      %p405 = pneg %p105
      %p406 = pneg %p129
      %p407 = pneg %p126
      %p408 = pneg %p150
      %p409 = pneg %p147
      %p410 = pneg %p171
      %p411 = pneg %p168
      %p412 = pneg %p192
      %p413 = pneg %p189
      %p414 = pneg %p213
      %p415 = pneg %p210
      %p416 = pneg %p234
      %p417 = pneg %p231
      %p418 = pneg %p255
      %p419 = pneg %p252
      %p420 = pneg %p276
      %p421 = pneg %p273
      %p422 = pneg %p297
      %p423 = pneg %p294
      %p424 = pneg %p323
      %p425 = pneg %p320
      %p426 = scmp.lt.s32.totalorder %s24, 1
      %s427 = scalar_select %p426, %s24, 1
      %s428 = smul.addr %s427, 32
      %s429 = smul.addr %s428, 8
      %s430 = scalar_lea.vmem %s13, %s429
      %p431 = scmp.lt.s32.totalorder %s24, 1
      %s432 = scalar_select %p431, %s24, 1
      %s433 = smul.addr %s432, 32
      %s434 = smul.addr %s433, 8
      %s435 = scalar_lea.vmem %s0, %s434
      %p436 = scmp.lt.s32.totalorder %s24, 1
      %s437 = scalar_select %p436, %s24, 1
      %s438 = smul.addr %s437, 32
      %s439 = smul.addr %s438, 8
      %s440 = scalar_lea.vmem %s13, %s439
      %v441 = vld [vmem:[%s435] sm:$0xff]
      %v442 = vld [vmem:[%s435 + $0x8] sm:$0xff]
      %v443 = vld [vmem:[%s435 + $0x10] sm:$0xff]
      %v444 = vld [vmem:[%s435 + $0x18] sm:$0xff]
      %v445 = vld [vmem:[%s435 + $0x20] sm:$0xff]
      %v446 = vld [vmem:[%s435 + $0x28] sm:$0xff]
      %v447 = vld [vmem:[%s435 + $0x30] sm:$0xff]
      %v448 = vld [vmem:[%s435 + $0x38] sm:$0xff]
      %v449 = vld [vmem:[%s435 + $0x40] sm:$0xff]
      %v450 = vld [vmem:[%s435 + $0x48] sm:$0xff]
      %v451 = vld [vmem:[%s435 + $0x50] sm:$0xff]
      %v452 = vld [vmem:[%s435 + $0x58] sm:$0xff]
      %v453 = vld [vmem:[%s435 + $0x60] sm:$0xff]
      %v454 = vld [vmem:[%s435 + $0x68] sm:$0xff]
      %v455 = vld [vmem:[%s435 + $0x70] sm:$0xff]
      %v456 = vld [vmem:[%s435 + $0x78] sm:$0xff]
      %v457 = vld [vmem:[%s435 + $0x80] sm:$0xff]
      %v458 = vld [vmem:[%s435 + $0x88] sm:$0xff]
      %v459 = vld [vmem:[%s435 + $0x90] sm:$0xff]
      %v460 = vld [vmem:[%s435 + $0x98] sm:$0xff]
      %v461 = vld [vmem:[%s435 + $0xa0] sm:$0xff]
      %v462 = vld [vmem:[%s435 + $0xa8] sm:$0xff]
      %v463 = vld [vmem:[%s435 + $0xb0] sm:$0xff]
      %v464 = vld [vmem:[%s435 + $0xb8] sm:$0xff]
      %v465 = vld [vmem:[%s435 + $0xc0] sm:$0xff]
      %v466 = vld [vmem:[%s435 + $0xc8] sm:$0xff]
      %v467 = vld [vmem:[%s435 + $0xd0] sm:$0xff]
      %v468 = vld [vmem:[%s435 + $0xd8] sm:$0xff]
      %v469 = vld [vmem:[%s435 + $0xe0] sm:$0xff]
      %v470 = vld [vmem:[%s435 + $0xe8] sm:$0xff]
      %v471 = vld [vmem:[%s435 + $0xf0] sm:$0xff]
      %v472 = vld [vmem:[%s435 + $0xf8] sm:$0xff]
      %vm473 = vcmask 523264
      %v474 = vsel %vm473, %v441, 0.0
      %475 = vadd.xlane.f32.xlu0 %v474
      %v476 = vpop.xlane.xlu0 %475
      %v477 = vsel %vm473, %v442, 0.0
      %478 = vadd.xlane.f32.xlu0 %v477
      %v479 = vpop.xlane.xlu0 %478
      %v480 = vsel %vm473, %v443, 0.0
      %481 = vadd.xlane.f32.xlu0 %v480
      %v482 = vpop.xlane.xlu0 %481
      %v483 = vsel %vm473, %v444, 0.0
      %484 = vadd.xlane.f32.xlu0 %v483
      %v485 = vpop.xlane.xlu0 %484
      %v486 = vsel %vm473, %v445, 0.0
      %487 = vadd.xlane.f32.xlu0 %v486
      %v488 = vpop.xlane.xlu0 %487
      %v489 = vsel %vm473, %v446, 0.0
      %490 = vadd.xlane.f32.xlu0 %v489
      %v491 = vpop.xlane.xlu0 %490
      %v492 = vsel %vm473, %v447, 0.0
      %493 = vadd.xlane.f32.xlu0 %v492
      %v494 = vpop.xlane.xlu0 %493
      %v495 = vsel %vm473, %v448, 0.0
      %496 = vadd.xlane.f32.xlu0 %v495
      %v497 = vpop.xlane.xlu0 %496
      %v498 = vsel %vm473, %v449, 0.0
      %499 = vadd.xlane.f32.xlu0 %v498
      %v500 = vpop.xlane.xlu0 %499
      %v501 = vsel %vm473, %v450, 0.0
      %502 = vadd.xlane.f32.xlu0 %v501
      %v503 = vpop.xlane.xlu0 %502
      %v504 = vsel %vm473, %v451, 0.0
      %505 = vadd.xlane.f32.xlu0 %v504
      %v506 = vpop.xlane.xlu0 %505
      %v507 = vsel %vm473, %v452, 0.0
      %508 = vadd.xlane.f32.xlu0 %v507
      %v509 = vpop.xlane.xlu0 %508
      %v510 = vsel %vm473, %v453, 0.0
      %511 = vadd.xlane.f32.xlu0 %v510
      %v512 = vpop.xlane.xlu0 %511
      %v513 = vsel %vm473, %v454, 0.0
      %514 = vadd.xlane.f32.xlu0 %v513
      %v515 = vpop.xlane.xlu0 %514
      %v516 = vsel %vm473, %v455, 0.0
      %517 = vadd.xlane.f32.xlu0 %v516
      %v518 = vpop.xlane.xlu0 %517
      %v519 = vsel %vm473, %v456, 0.0
      %520 = vadd.xlane.f32.xlu0 %v519
      %v521 = vpop.xlane.xlu0 %520
      %v522 = vsel %vm473, %v457, 0.0
      %523 = vadd.xlane.f32.xlu0 %v522
      %v524 = vpop.xlane.xlu0 %523
      %v525 = vsel %vm473, %v458, 0.0
      %526 = vadd.xlane.f32.xlu0 %v525
      %v527 = vpop.xlane.xlu0 %526
      %v528 = vsel %vm473, %v459, 0.0
      %529 = vadd.xlane.f32.xlu0 %v528
      %v530 = vpop.xlane.xlu0 %529
      %v531 = vsel %vm473, %v460, 0.0
      %532 = vadd.xlane.f32.xlu0 %v531
      %v533 = vpop.xlane.xlu0 %532
      %v534 = vsel %vm473, %v461, 0.0
      %535 = vadd.xlane.f32.xlu0 %v534
      %v536 = vpop.xlane.xlu0 %535
      %v537 = vsel %vm473, %v462, 0.0
      %538 = vadd.xlane.f32.xlu0 %v537
      %v539 = vpop.xlane.xlu0 %538
      %v540 = vsel %vm473, %v463, 0.0
      %541 = vadd.xlane.f32.xlu0 %v540
      %v542 = vpop.xlane.xlu0 %541
      %v543 = vsel %vm473, %v464, 0.0
      %544 = vadd.xlane.f32.xlu0 %v543
      %v545 = vpop.xlane.xlu0 %544
      %v546 = vsel %vm473, %v465, 0.0
      %547 = vadd.xlane.f32.xlu0 %v546
      %v548 = vpop.xlane.xlu0 %547
      %v549 = vsel %vm473, %v466, 0.0
      %550 = vadd.xlane.f32.xlu0 %v549
      %v551 = vpop.xlane.xlu0 %550
      %v552 = vsel %vm473, %v467, 0.0
      %553 = vadd.xlane.f32.xlu0 %v552
      %v554 = vpop.xlane.xlu0 %553
      %v555 = vsel %vm473, %v468, 0.0
      %556 = vadd.xlane.f32.xlu0 %v555
      %v557 = vpop.xlane.xlu0 %556
      %v558 = vsel %vm473, %v469, 0.0
      %559 = vadd.xlane.f32.xlu0 %v558
      %v560 = vpop.xlane.xlu0 %559
      %v561 = vsel %vm473, %v470, 0.0
      %562 = vadd.xlane.f32.xlu0 %v561
      %v563 = vpop.xlane.xlu0 %562
      %v564 = vsel %vm473, %v471, 0.0
      %565 = vadd.xlane.f32.xlu0 %v564
      %v566 = vpop.xlane.xlu0 %565
      %v567 = vsel %vm473, %v472, 0.0
      %568 = vadd.xlane.f32.xlu0 %v567
      %v569 = vpop.xlane.xlu0 %568
      %v570 = vrcp.pop 64.0
      %v571 = vmul.f32 %v476, %v570
      %v572 = vmul.f32 %v479, %v570
      %v573 = vmul.f32 %v482, %v570
      %v574 = vmul.f32 %v485, %v570
      %v575 = vmul.f32 %v488, %v570
      %v576 = vmul.f32 %v491, %v570
      %v577 = vmul.f32 %v494, %v570
      %v578 = vmul.f32 %v497, %v570
      %v579 = vmul.f32 %v500, %v570
      %v580 = vmul.f32 %v503, %v570
      %v581 = vmul.f32 %v506, %v570
      %v582 = vmul.f32 %v509, %v570
      %v583 = vmul.f32 %v512, %v570
      %v584 = vmul.f32 %v515, %v570
      %v585 = vmul.f32 %v518, %v570
      %v586 = vmul.f32 %v521, %v570
      %v587 = vmul.f32 %v524, %v570
      %v588 = vmul.f32 %v527, %v570
      %v589 = vmul.f32 %v530, %v570
      %v590 = vmul.f32 %v533, %v570
      %v591 = vmul.f32 %v536, %v570
      %v592 = vmul.f32 %v539, %v570
      %v593 = vmul.f32 %v542, %v570
      %v594 = vmul.f32 %v545, %v570
      %v595 = vmul.f32 %v548, %v570
      %v596 = vmul.f32 %v551, %v570
      %v597 = vmul.f32 %v554, %v570
      %v598 = vmul.f32 %v557, %v570
      %v599 = vmul.f32 %v560, %v570
      %v600 = vmul.f32 %v563, %v570
      %v601 = vmul.f32 %v566, %v570
      %v602 = vmul.f32 %v569, %v570
      %v603 = vsub.f32 %v441, %v571
      %v604 = vsub.f32 %v442, %v572
      %v605 = vsub.f32 %v443, %v573
      %v606 = vsub.f32 %v444, %v574
      %v607 = vsub.f32 %v445, %v575
      %v608 = vsub.f32 %v446, %v576
      %v609 = vsub.f32 %v447, %v577
      %v610 = vsub.f32 %v448, %v578
      %v611 = vsub.f32 %v449, %v579
      %v612 = vsub.f32 %v450, %v580
      %v613 = vsub.f32 %v451, %v581
      %v614 = vsub.f32 %v452, %v582
      %v615 = vsub.f32 %v453, %v583
      %v616 = vsub.f32 %v454, %v584
      %v617 = vsub.f32 %v455, %v585
      %v618 = vsub.f32 %v456, %v586
      %v619 = vsub.f32 %v457, %v587
      %v620 = vsub.f32 %v458, %v588
      %v621 = vsub.f32 %v459, %v589
      %v622 = vsub.f32 %v460, %v590
      %v623 = vsub.f32 %v461, %v591
      %v624 = vsub.f32 %v462, %v592
      %v625 = vsub.f32 %v463, %v593
      %v626 = vsub.f32 %v464, %v594
      %v627 = vsub.f32 %v465, %v595
      %v628 = vsub.f32 %v466, %v596
      %v629 = vsub.f32 %v467, %v597
      %v630 = vsub.f32 %v468, %v598
      %v631 = vsub.f32 %v469, %v599
      %v632 = vsub.f32 %v470, %v600
      %v633 = vsub.f32 %v471, %v601
      %v634 = vsub.f32 %v472, %v602
      %v635 = vmul.f32 %v603, %v603
      %v636 = vmul.f32 %v604, %v604
      %v637 = vmul.f32 %v605, %v605
      %v638 = vmul.f32 %v606, %v606
      %v639 = vmul.f32 %v607, %v607
      %v640 = vmul.f32 %v608, %v608
      %v641 = vmul.f32 %v609, %v609
      %v642 = vmul.f32 %v610, %v610
      %v643 = vmul.f32 %v611, %v611
      %v644 = vmul.f32 %v612, %v612
      %v645 = vmul.f32 %v613, %v613
      %v646 = vmul.f32 %v614, %v614
      %v647 = vmul.f32 %v615, %v615
      %v648 = vmul.f32 %v616, %v616
      %v649 = vmul.f32 %v617, %v617
      %v650 = vmul.f32 %v618, %v618
      %v651 = vmul.f32 %v619, %v619
      %v652 = vmul.f32 %v620, %v620
      %v653 = vmul.f32 %v621, %v621
      %v654 = vmul.f32 %v622, %v622
      %v655 = vmul.f32 %v623, %v623
      %v656 = vmul.f32 %v624, %v624
      %v657 = vmul.f32 %v625, %v625
      %v658 = vmul.f32 %v626, %v626
      %v659 = vmul.f32 %v627, %v627
      %v660 = vmul.f32 %v628, %v628
      %v661 = vmul.f32 %v629, %v629
      %v662 = vmul.f32 %v630, %v630
      %v663 = vmul.f32 %v631, %v631
      %v664 = vmul.f32 %v632, %v632
      %v665 = vmul.f32 %v633, %v633
      %v666 = vmul.f32 %v634, %v634
      %v667 = vsel %vm473, %v635, 0.0
      %668 = vadd.xlane.f32.xlu0 %v667
      %v669 = vpop.xlane.xlu0 %668
      %v670 = vsel %vm473, %v636, 0.0
      %671 = vadd.xlane.f32.xlu0 %v670
      %v672 = vpop.xlane.xlu0 %671
      %v673 = vsel %vm473, %v637, 0.0
      %674 = vadd.xlane.f32.xlu0 %v673
      %v675 = vpop.xlane.xlu0 %674
      %v676 = vsel %vm473, %v638, 0.0
      %677 = vadd.xlane.f32.xlu0 %v676
      %v678 = vpop.xlane.xlu0 %677
      %v679 = vsel %vm473, %v639, 0.0
      %680 = vadd.xlane.f32.xlu0 %v679
      %v681 = vpop.xlane.xlu0 %680
      %v682 = vsel %vm473, %v640, 0.0
      %683 = vadd.xlane.f32.xlu0 %v682
      %v684 = vpop.xlane.xlu0 %683
      %v685 = vsel %vm473, %v641, 0.0
      %686 = vadd.xlane.f32.xlu0 %v685
      %v687 = vpop.xlane.xlu0 %686
      %v688 = vsel %vm473, %v642, 0.0
      %689 = vadd.xlane.f32.xlu0 %v688
      %v690 = vpop.xlane.xlu0 %689
      %v691 = vsel %vm473, %v643, 0.0
      %692 = vadd.xlane.f32.xlu0 %v691
      %v693 = vpop.xlane.xlu0 %692
      %v694 = vsel %vm473, %v644, 0.0
      %695 = vadd.xlane.f32.xlu0 %v694
      %v696 = vpop.xlane.xlu0 %695
      %v697 = vsel %vm473, %v645, 0.0
      %698 = vadd.xlane.f32.xlu0 %v697
      %v699 = vpop.xlane.xlu0 %698
      %v700 = vsel %vm473, %v646, 0.0
      %701 = vadd.xlane.f32.xlu0 %v700
      %v702 = vpop.xlane.xlu0 %701
      %v703 = vsel %vm473, %v647, 0.0
      %704 = vadd.xlane.f32.xlu0 %v703
      %v705 = vpop.xlane.xlu0 %704
      %v706 = vsel %vm473, %v648, 0.0
      %707 = vadd.xlane.f32.xlu0 %v706
      %v708 = vpop.xlane.xlu0 %707
      %v709 = vsel %vm473, %v649, 0.0
      %710 = vadd.xlane.f32.xlu0 %v709
      %v711 = vpop.xlane.xlu0 %710
      %v712 = vsel %vm473, %v650, 0.0
      %713 = vadd.xlane.f32.xlu0 %v712
      %v714 = vpop.xlane.xlu0 %713
      %v715 = vsel %vm473, %v651, 0.0
      %716 = vadd.xlane.f32.xlu0 %v715
      %v717 = vpop.xlane.xlu0 %716
      %v718 = vsel %vm473, %v652, 0.0
      %719 = vadd.xlane.f32.xlu0 %v718
      %v720 = vpop.xlane.xlu0 %719
      %v721 = vsel %vm473, %v653, 0.0
      %722 = vadd.xlane.f32.xlu0 %v721
      %v723 = vpop.xlane.xlu0 %722
      %v724 = vsel %vm473, %v654, 0.0
      %725 = vadd.xlane.f32.xlu0 %v724
      %v726 = vpop.xlane.xlu0 %725
      %v727 = vsel %vm473, %v655, 0.0
      %728 = vadd.xlane.f32.xlu0 %v727
      %v729 = vpop.xlane.xlu0 %728
      %v730 = vsel %vm473, %v656, 0.0
      %731 = vadd.xlane.f32.xlu0 %v730
      %v732 = vpop.xlane.xlu0 %731
      %v733 = vsel %vm473, %v657, 0.0
      %734 = vadd.xlane.f32.xlu0 %v733
      %v735 = vpop.xlane.xlu0 %734
      %v736 = vsel %vm473, %v658, 0.0
      %737 = vadd.xlane.f32.xlu0 %v736
      %v738 = vpop.xlane.xlu0 %737
      %v739 = vsel %vm473, %v659, 0.0
      %740 = vadd.xlane.f32.xlu0 %v739
      %v741 = vpop.xlane.xlu0 %740
      %v742 = vsel %vm473, %v660, 0.0
      %743 = vadd.xlane.f32.xlu0 %v742
      %v744 = vpop.xlane.xlu0 %743
      %v745 = vsel %vm473, %v661, 0.0
      %746 = vadd.xlane.f32.xlu0 %v745
      %v747 = vpop.xlane.xlu0 %746
      %v748 = vsel %vm473, %v662, 0.0
      %749 = vadd.xlane.f32.xlu0 %v748
      %v750 = vpop.xlane.xlu0 %749
      %v751 = vsel %vm473, %v663, 0.0
      %752 = vadd.xlane.f32.xlu0 %v751
      %v753 = vpop.xlane.xlu0 %752
      %v754 = vsel %vm473, %v664, 0.0
      %755 = vadd.xlane.f32.xlu0 %v754
      %v756 = vpop.xlane.xlu0 %755
      %v757 = vsel %vm473, %v665, 0.0
      %758 = vadd.xlane.f32.xlu0 %v757
      %v759 = vpop.xlane.xlu0 %758
      %v760 = vsel %vm473, %v666, 0.0
      %761 = vadd.xlane.f32.xlu0 %v760
      %v762 = vpop.xlane.xlu0 %761
      %v763 = vmul.f32 %v669, %v570
      %v764 = vmul.f32 %v672, %v570
      %v765 = vmul.f32 %v675, %v570
      %v766 = vmul.f32 %v678, %v570
      %v767 = vmul.f32 %v681, %v570
      %v768 = vmul.f32 %v684, %v570
      %v769 = vmul.f32 %v687, %v570
      %v770 = vmul.f32 %v690, %v570
      %v771 = vmul.f32 %v693, %v570
      %v772 = vmul.f32 %v696, %v570
      %v773 = vmul.f32 %v699, %v570
      %v774 = vmul.f32 %v702, %v570
      %v775 = vmul.f32 %v705, %v570
      %v776 = vmul.f32 %v708, %v570
      %v777 = vmul.f32 %v711, %v570
      %v778 = vmul.f32 %v714, %v570
      %v779 = vmul.f32 %v717, %v570
      %v780 = vmul.f32 %v720, %v570
      %v781 = vmul.f32 %v723, %v570
      %v782 = vmul.f32 %v726, %v570
      %v783 = vmul.f32 %v729, %v570
      %v784 = vmul.f32 %v732, %v570
      %v785 = vmul.f32 %v735, %v570
      %v786 = vmul.f32 %v738, %v570
      %v787 = vmul.f32 %v741, %v570
      %v788 = vmul.f32 %v744, %v570
      %v789 = vmul.f32 %v747, %v570
      %v790 = vmul.f32 %v750, %v570
      %v791 = vmul.f32 %v753, %v570
      %v792 = vmul.f32 %v756, %v570
      %v793 = vmul.f32 %v759, %v570
      %v794 = vmul.f32 %v762, %v570
      %v795 = vadd.f32 %v763, 1e-05
      %v796 = vadd.f32 %v764, 1e-05
      %v797 = vadd.f32 %v765, 1e-05
      %v798 = vadd.f32 %v766, 1e-05
      %v799 = vadd.f32 %v767, 1e-05
      %v800 = vadd.f32 %v768, 1e-05
      %v801 = vadd.f32 %v769, 1e-05
      %v802 = vadd.f32 %v770, 1e-05
      %v803 = vadd.f32 %v771, 1e-05
      %v804 = vadd.f32 %v772, 1e-05
      %v805 = vadd.f32 %v773, 1e-05
      %v806 = vadd.f32 %v774, 1e-05
      %v807 = vadd.f32 %v775, 1e-05
      %v808 = vadd.f32 %v776, 1e-05
      %v809 = vadd.f32 %v777, 1e-05
      %v810 = vadd.f32 %v778, 1e-05
      %v811 = vadd.f32 %v779, 1e-05
      %v812 = vadd.f32 %v780, 1e-05
      %v813 = vadd.f32 %v781, 1e-05
      %v814 = vadd.f32 %v782, 1e-05
      %v815 = vadd.f32 %v783, 1e-05
      %v816 = vadd.f32 %v784, 1e-05
      %v817 = vadd.f32 %v785, 1e-05
      %v818 = vadd.f32 %v786, 1e-05
      %v819 = vadd.f32 %v787, 1e-05
      %v820 = vadd.f32 %v788, 1e-05
      %v821 = vadd.f32 %v789, 1e-05
      %v822 = vadd.f32 %v790, 1e-05
      %v823 = vadd.f32 %v791, 1e-05
      %v824 = vadd.f32 %v792, 1e-05
      %v825 = vadd.f32 %v793, 1e-05
      %v826 = vadd.f32 %v794, 1e-05
      %v827 = vrsqrt.pop %v795
      %v828 = vrsqrt.pop %v796
      %v829 = vrsqrt.pop %v797
      %v830 = vrsqrt.pop %v798
      %v831 = vrsqrt.pop %v799
      %v832 = vrsqrt.pop %v800
      %v833 = vrsqrt.pop %v801
      %v834 = vrsqrt.pop %v802
      %v835 = vrsqrt.pop %v803
      %v836 = vrsqrt.pop %v804
      %v837 = vrsqrt.pop %v805
      %v838 = vrsqrt.pop %v806
      %v839 = vrsqrt.pop %v807
      %v840 = vrsqrt.pop %v808
      %v841 = vrsqrt.pop %v809
      %v842 = vrsqrt.pop %v810
      %v843 = vrsqrt.pop %v811
      %v844 = vrsqrt.pop %v812
      %v845 = vrsqrt.pop %v813
      %v846 = vrsqrt.pop %v814
      %v847 = vrsqrt.pop %v815
      %v848 = vrsqrt.pop %v816
      %v849 = vrsqrt.pop %v817
      %v850 = vrsqrt.pop %v818
      %v851 = vrsqrt.pop %v819
      %v852 = vrsqrt.pop %v820
      %v853 = vrsqrt.pop %v821
      %v854 = vrsqrt.pop %v822
      %v855 = vrsqrt.pop %v823
      %v856 = vrsqrt.pop %v824
      %v857 = vrsqrt.pop %v825
      %v858 = vrsqrt.pop %v826
      %v859 = vmul.f32 %v603, %v827
      %v860 = vmul.f32 %v604, %v828
      %v861 = vmul.f32 %v605, %v829
      %v862 = vmul.f32 %v606, %v830
      %v863 = vmul.f32 %v607, %v831
      %v864 = vmul.f32 %v608, %v832
      %v865 = vmul.f32 %v609, %v833
      %v866 = vmul.f32 %v610, %v834
      %v867 = vmul.f32 %v611, %v835
      %v868 = vmul.f32 %v612, %v836
      %v869 = vmul.f32 %v613, %v837
      %v870 = vmul.f32 %v614, %v838
      %v871 = vmul.f32 %v615, %v839
      %v872 = vmul.f32 %v616, %v840
      %v873 = vmul.f32 %v617, %v841
      %v874 = vmul.f32 %v618, %v842
      %v875 = vmul.f32 %v619, %v843
      %v876 = vmul.f32 %v620, %v844
      %v877 = vmul.f32 %v621, %v845
      %v878 = vmul.f32 %v622, %v846
      %v879 = vmul.f32 %v623, %v847
      %v880 = vmul.f32 %v624, %v848
      %v881 = vmul.f32 %v625, %v849
      %v882 = vmul.f32 %v626, %v850
      %v883 = vmul.f32 %v627, %v851
      %v884 = vmul.f32 %v628, %v852
      %v885 = vmul.f32 %v629, %v853
      %v886 = vmul.f32 %v630, %v854
      %v887 = vmul.f32 %v631, %v855
      %v888 = vmul.f32 %v632, %v856
      %v889 = vmul.f32 %v633, %v857
      %v890 = vmul.f32 %v634, %v858
      %v891 = vld [vmem:[%s1] sm:$0x1]
      %v893 = vlaneseq
      %v894 = vshrl.u32 %v893, 7
      %v895 = vsub.s32 0, %v894
      %v896 = vrot.slane %v891, %v895
      %v898 = vmul.f32 %v859, %v896
      %v899 = vmul.f32 %v860, %v896
      %v900 = vmul.f32 %v861, %v896
      %v901 = vmul.f32 %v862, %v896
      %v902 = vmul.f32 %v863, %v896
      %v903 = vmul.f32 %v864, %v896
      %v904 = vmul.f32 %v865, %v896
      %v905 = vmul.f32 %v866, %v896
      %v906 = vmul.f32 %v867, %v896
      %v907 = vmul.f32 %v868, %v896
      %v908 = vmul.f32 %v869, %v896
      %v909 = vmul.f32 %v870, %v896
      %v910 = vmul.f32 %v871, %v896
      %v911 = vmul.f32 %v872, %v896
      %v912 = vmul.f32 %v873, %v896
      %v913 = vmul.f32 %v874, %v896
      %v914 = vmul.f32 %v875, %v896
      %v915 = vmul.f32 %v876, %v896
      %v916 = vmul.f32 %v877, %v896
      %v917 = vmul.f32 %v878, %v896
      %v918 = vmul.f32 %v879, %v896
      %v919 = vmul.f32 %v880, %v896
      %v920 = vmul.f32 %v881, %v896
      %v921 = vmul.f32 %v882, %v896
      %v922 = vmul.f32 %v883, %v896
      %v923 = vmul.f32 %v884, %v896
      %v924 = vmul.f32 %v885, %v896
      %v925 = vmul.f32 %v886, %v896
      %v926 = vmul.f32 %v887, %v896
      %v927 = vmul.f32 %v888, %v896
      %v928 = vmul.f32 %v889, %v896
      %v929 = vmul.f32 %v890, %v896
      %v930 = vld [vmem:[%s2] sm:$0x1]
      %v932 = vlaneseq
      %v933 = vshrl.u32 %v932, 7
      %v934 = vsub.s32 0, %v933
      %v935 = vrot.slane %v930, %v934
      %v937 = vadd.f32 %v898, %v935
      %v938 = vadd.f32 %v899, %v935
      %v939 = vadd.f32 %v900, %v935
      %v940 = vadd.f32 %v901, %v935
      %v941 = vadd.f32 %v902, %v935
      %v942 = vadd.f32 %v903, %v935
      %v943 = vadd.f32 %v904, %v935
      %v944 = vadd.f32 %v905, %v935
      %v945 = vadd.f32 %v906, %v935
      %v946 = vadd.f32 %v907, %v935
      %v947 = vadd.f32 %v908, %v935
      %v948 = vadd.f32 %v909, %v935
      %v949 = vadd.f32 %v910, %v935
      %v950 = vadd.f32 %v911, %v935
      %v951 = vadd.f32 %v912, %v935
      %v952 = vadd.f32 %v913, %v935
      %v953 = vadd.f32 %v914, %v935
      %v954 = vadd.f32 %v915, %v935
      %v955 = vadd.f32 %v916, %v935
      %v956 = vadd.f32 %v917, %v935
      %v957 = vadd.f32 %v918, %v935
      %v958 = vadd.f32 %v919, %v935
      %v959 = vadd.f32 %v920, %v935
      %v960 = vadd.f32 %v921, %v935
      %v961 = vadd.f32 %v922, %v935
      %v962 = vadd.f32 %v923, %v935
      %v963 = vadd.f32 %v924, %v935
      %v964 = vadd.f32 %v925, %v935
      %v965 = vadd.f32 %v926, %v935
      %v966 = vadd.f32 %v927, %v935
      %v967 = vadd.f32 %v928, %v935
      %v968 = vadd.f32 %v929, %v935
      %v969 = vld [vmem:[%s3] sm:$0xff]
      %v970 = vld [vmem:[%s3 + $0x8] sm:$0xff]
      %v971 = vld [vmem:[%s3 + $0x10] sm:$0xff]
      %v972 = vld [vmem:[%s3 + $0x18] sm:$0xff]
      %v973 = vld [vmem:[%s3 + $0x20] sm:$0xff]
      %v974 = vld [vmem:[%s3 + $0x28] sm:$0xff]
      %v975 = vld [vmem:[%s3 + $0x30] sm:$0xff]
      %v976 = vld [vmem:[%s3 + $0x38] sm:$0xff]
      %v977 = vld [vmem:[%s3 + $0x40] sm:$0xff]
      %v978 = vld [vmem:[%s3 + $0x48] sm:$0xff]
      %v979 = vld [vmem:[%s3 + $0x50] sm:$0xff]
      %v980 = vld [vmem:[%s3 + $0x58] sm:$0xff]
      %v981 = vld [vmem:[%s3 + $0x60] sm:$0xff]
      %v982 = vld [vmem:[%s3 + $0x68] sm:$0xff]
      %v983 = vld [vmem:[%s3 + $0x70] sm:$0xff]
      %v984 = vld [vmem:[%s3 + $0x78] sm:$0xff]
      %v986 = vsel %vm473, %v937, 0
      %v989 = vsel %vm473, %v938, 0
      %v992 = vsel %vm473, %v939, 0
      %v995 = vsel %vm473, %v940, 0
      %v998 = vsel %vm473, %v941, 0
      %v1001 = vsel %vm473, %v942, 0
      %v1004 = vsel %vm473, %v943, 0
      %v1007 = vsel %vm473, %v944, 0
      %v1010 = vsel %vm473, %v945, 0
      %v1013 = vsel %vm473, %v946, 0
      %v1016 = vsel %vm473, %v947, 0
      %v1019 = vsel %vm473, %v948, 0
      %v1022 = vsel %vm473, %v949, 0
      %v1025 = vsel %vm473, %v950, 0
      %v1028 = vsel %vm473, %v951, 0
      %v1031 = vsel %vm473, %v952, 0
      %v1034 = vsel %vm473, %v953, 0
      %v1037 = vsel %vm473, %v954, 0
      %v1040 = vsel %vm473, %v955, 0
      %v1043 = vsel %vm473, %v956, 0
      %v1046 = vsel %vm473, %v957, 0
      %v1049 = vsel %vm473, %v958, 0
      %v1052 = vsel %vm473, %v959, 0
      %v1055 = vsel %vm473, %v960, 0
      %v1058 = vsel %vm473, %v961, 0
      %v1061 = vsel %vm473, %v962, 0
      %v1064 = vsel %vm473, %v963, 0
      %v1067 = vsel %vm473, %v964, 0
      %v1070 = vsel %vm473, %v965, 0
      %v1073 = vsel %vm473, %v966, 0
      %v1076 = vsel %vm473, %v967, 0
      %v1079 = vsel %vm473, %v968, 0
      %1081 = vmatprep.subr.mxu0 %v970
      %1082 = vmatpush1.msra.mxu0 %v969
      %1083 = vmatprep.subr.mxu0 %v972
      %1084 = vmatpush1.msra.mxu0 %v971
      %1085 = vmatprep.subr.mxu0 %v974
      %1086 = vmatpush1.msra.mxu0 %v973
      %1087 = vmatprep.subr.mxu0 %v976
      %1088 = vmatpush1.msra.mxu0 %v975
      %1089 = vmatprep.subr.mxu0 %v978
      %1090 = vmatpush1.msra.mxu0 %v977
      %1091 = vmatprep.subr.mxu0 %v980
      %1092 = vmatpush1.msra.mxu0 %v979
      %1093 = vmatprep.subr.mxu0 %v982
      %1094 = vmatpush1.msra.mxu0 %v981
      %1095 = vmatprep.subr.mxu0 %v984
      %1096 = vmatpush1.msra.mxu0 %v983
      %1097 = vmatprep.subr.mxu0 0.0
      %1098 = vmatpush1.msra.mxu0 0.0
      %1099 = vmatprep.subr.mxu0 0.0
      %1100 = vmatpush1.msra.mxu0 0.0
      %1101 = vmatprep.subr.mxu0 0.0
      %1102 = vmatpush1.msra.mxu0 0.0
      %1103 = vmatprep.subr.mxu0 0.0
      %1104 = vmatpush1.msra.mxu0 0.0
      %1105 = vmatprep.subr.mxu0 0.0
      %1106 = vmatpush1.msra.mxu0 0.0
      %1107 = vmatprep.subr.mxu0 0.0
      %1108 = vmatpush1.msra.mxu0 0.0
      %1109 = vmatprep.subr.mxu0 0.0
      %1110 = vmatpush1.msra.mxu0 0.0
      %1111 = vmatprep.subr.mxu0 0.0
      %1112 = vmatpush1.msra.mxu0 0.0
      %1113 = vmatprep.subr.mxu0 0.0
      %1114 = vmatpush1.msra.mxu0 0.0
      %1115 = vmatprep.subr.mxu0 0.0
      %1116 = vmatpush1.msra.mxu0 0.0
      %1117 = vmatprep.subr.mxu0 0.0
      %1118 = vmatpush1.msra.mxu0 0.0
      %1119 = vmatprep.subr.mxu0 0.0
      %1120 = vmatpush1.msra.mxu0 0.0
      %1121 = vmatprep.subr.mxu0 0.0
      %1122 = vmatpush1.msra.mxu0 0.0
      %1123 = vmatprep.subr.mxu0 0.0
      %1124 = vmatpush1.msra.mxu0 0.0
      %1125 = vmatprep.subr.mxu0 0.0
      %1126 = vmatpush1.msra.mxu0 0.0
      %1127 = vmatprep.subr.mxu0 0.0
      %1128 = vmatpush1.msra.mxu0 0.0
      %1129 = vmatprep.subr.mxu0 0.0
      %1130 = vmatpush1.msra.mxu0 0.0
      %1131 = vmatprep.subr.mxu0 0.0
      %1132 = vmatpush1.msra.mxu0 0.0
      %1133 = vmatprep.subr.mxu0 0.0
      %1134 = vmatpush1.msra.mxu0 0.0
      %1135 = vmatprep.subr.mxu0 0.0
      %1136 = vmatpush1.msra.mxu0 0.0
      %1137 = vmatprep.subr.mxu0 0.0
      %1138 = vmatpush1.msra.mxu0 0.0
      %1139 = vmatprep.subr.mxu0 0.0
      %1140 = vmatpush1.msra.mxu0 0.0
      %1141 = vmatprep.subr.mxu0 0.0
      %1142 = vmatpush1.msra.mxu0 0.0
      %1143 = vmatprep.subr.mxu0 0.0
      %1144 = vmatpush1.msra.mxu0 0.0
      %1145 = vmatprep.mubr.f32.mxu0 0.0
      %1146 = vmatmul.mubr.f32.gmra.mrb[0].mxu0 %v986
      %v1147 = vpop.f32.mrb[0].mxu0
      %v1148 = vadd.f32 0.0, %v1147
      %v1149 = vpop.f32.mrb[0].mxu0
      %v1150 = vadd.f32 0.0, %v1149
      %1151 = vmatprep.mubr.f32.mxu0 0.0
      %1152 = vmatmul.mubr.f32.gmra.mrb[0].mxu0 %v989
      %v1153 = vpop.f32.mrb[0].mxu0
      %v1154 = vadd.f32 0.0, %v1153
      %v1155 = vpop.f32.mrb[0].mxu0
      %v1156 = vadd.f32 0.0, %v1155
      %1157 = vmatprep.mubr.f32.mxu0 0.0
      %1158 = vmatmul.mubr.f32.gmra.mrb[0].mxu0 %v992
      %v1159 = vpop.f32.mrb[0].mxu0
      %v1160 = vadd.f32 0.0, %v1159
      %v1161 = vpop.f32.mrb[0].mxu0
      %v1162 = vadd.f32 0.0, %v1161
      %1163 = vmatprep.mubr.f32.mxu0 0.0
      %1164 = vmatmul.mubr.f32.gmra.mrb[0].mxu0 %v995
      %v1165 = vpop.f32.mrb[0].mxu0
      %v1166 = vadd.f32 0.0, %v1165
      %v1167 = vpop.f32.mrb[0].mxu0
      %v1168 = vadd.f32 0.0, %v1167
      %1169 = vmatprep.mubr.f32.mxu0 0.0
      %1170 = vmatmul.mubr.f32.gmra.mrb[0].mxu0 %v998
      %v1171 = vpop.f32.mrb[0].mxu0
      %v1172 = vadd.f32 0.0, %v1171
      %v1173 = vpop.f32.mrb[0].mxu0
      %v1174 = vadd.f32 0.0, %v1173
      %1175 = vmatprep.mubr.f32.mxu0 0.0
      %1176 = vmatmul.mubr.f32.gmra.mrb[0].mxu0 %v1001
      %v1177 = vpop.f32.mrb[0].mxu0
      %v1178 = vadd.f32 0.0, %v1177
      %v1179 = vpop.f32.mrb[0].mxu0
      %v1180 = vadd.f32 0.0, %v1179
      %1181 = vmatprep.mubr.f32.mxu0 0.0
      %1182 = vmatmul.mubr.f32.gmra.mrb[0].mxu0 %v1004
      %v1183 = vpop.f32.mrb[0].mxu0
      %v1184 = vadd.f32 0.0, %v1183
      %v1185 = vpop.f32.mrb[0].mxu0
      %v1186 = vadd.f32 0.0, %v1185
      %1187 = vmatprep.mubr.f32.mxu0 0.0
      %1188 = vmatmul.mubr.f32.gmra.mrb[0].mxu0 %v1007
      %v1189 = vpop.f32.mrb[0].mxu0
      %v1190 = vadd.f32 0.0, %v1189
      %v1191 = vpop.f32.mrb[0].mxu0
      %v1192 = vadd.f32 0.0, %v1191
      %1193 = vmatprep.mubr.f32.mxu0 0.0
      %1194 = vmatmul.mubr.f32.gmra.mrb[0].mxu0 %v1010
      %v1195 = vpop.f32.mrb[0].mxu0
      %v1196 = vadd.f32 0.0, %v1195
      %v1197 = vpop.f32.mrb[0].mxu0
      %v1198 = vadd.f32 0.0, %v1197
      %1199 = vmatprep.mubr.f32.mxu0 0.0
      %1200 = vmatmul.mubr.f32.gmra.mrb[0].mxu0 %v1013
      %v1201 = vpop.f32.mrb[0].mxu0
      %v1202 = vadd.f32 0.0, %v1201
      %v1203 = vpop.f32.mrb[0].mxu0
      %v1204 = vadd.f32 0.0, %v1203
      %1205 = vmatprep.mubr.f32.mxu0 0.0
      %1206 = vmatmul.mubr.f32.gmra.mrb[0].mxu0 %v1016
      %v1207 = vpop.f32.mrb[0].mxu0
      %v1208 = vadd.f32 0.0, %v1207
      %v1209 = vpop.f32.mrb[0].mxu0
      %v1210 = vadd.f32 0.0, %v1209
      %1211 = vmatprep.mubr.f32.mxu0 0.0
      %1212 = vmatmul.mubr.f32.gmra.mrb[0].mxu0 %v1019
      %v1213 = vpop.f32.mrb[0].mxu0
      %v1214 = vadd.f32 0.0, %v1213
      %v1215 = vpop.f32.mrb[0].mxu0
      %v1216 = vadd.f32 0.0, %v1215
      %1217 = vmatprep.mubr.f32.mxu0 0.0
      %1218 = vmatmul.mubr.f32.gmra.mrb[0].mxu0 %v1022
      %v1219 = vpop.f32.mrb[0].mxu0
      %v1220 = vadd.f32 0.0, %v1219
      %v1221 = vpop.f32.mrb[0].mxu0
      %v1222 = vadd.f32 0.0, %v1221
      %1223 = vmatprep.mubr.f32.mxu0 0.0
      %1224 = vmatmul.mubr.f32.gmra.mrb[0].mxu0 %v1025
      %v1225 = vpop.f32.mrb[0].mxu0
      %v1226 = vadd.f32 0.0, %v1225
      %v1227 = vpop.f32.mrb[0].mxu0
      %v1228 = vadd.f32 0.0, %v1227
      %1229 = vmatprep.mubr.f32.mxu0 0.0
      %1230 = vmatmul.mubr.f32.gmra.mrb[0].mxu0 %v1028
      %v1231 = vpop.f32.mrb[0].mxu0
      %v1232 = vadd.f32 0.0, %v1231
      %v1233 = vpop.f32.mrb[0].mxu0
      %v1234 = vadd.f32 0.0, %v1233
      %1235 = vmatprep.mubr.f32.mxu0 0.0
      %1236 = vmatmul.mubr.f32.gmra.mrb[0].mxu0 %v1031
      %v1237 = vpop.f32.mrb[0].mxu0
      %v1238 = vadd.f32 0.0, %v1237
      %v1239 = vpop.f32.mrb[0].mxu0
      %v1240 = vadd.f32 0.0, %v1239
      %1241 = vmatprep.mubr.f32.mxu0 0.0
      %1242 = vmatmul.mubr.f32.gmra.mrb[0].mxu0 %v1034
      %v1243 = vpop.f32.mrb[0].mxu0
      %v1244 = vadd.f32 0.0, %v1243
      %v1245 = vpop.f32.mrb[0].mxu0
      %v1246 = vadd.f32 0.0, %v1245
      %1247 = vmatprep.mubr.f32.mxu0 0.0
      %1248 = vmatmul.mubr.f32.gmra.mrb[0].mxu0 %v1037
      %v1249 = vpop.f32.mrb[0].mxu0
      %v1250 = vadd.f32 0.0, %v1249
      %v1251 = vpop.f32.mrb[0].mxu0
      %v1252 = vadd.f32 0.0, %v1251
      %1253 = vmatprep.mubr.f32.mxu0 0.0
      %1254 = vmatmul.mubr.f32.gmra.mrb[0].mxu0 %v1040
      %v1255 = vpop.f32.mrb[0].mxu0
      %v1256 = vadd.f32 0.0, %v1255
      %v1257 = vpop.f32.mrb[0].mxu0
      %v1258 = vadd.f32 0.0, %v1257
      %1259 = vmatprep.mubr.f32.mxu0 0.0
      %1260 = vmatmul.mubr.f32.gmra.mrb[0].mxu0 %v1043
      %v1261 = vpop.f32.mrb[0].mxu0
      %v1262 = vadd.f32 0.0, %v1261
      %v1263 = vpop.f32.mrb[0].mxu0
      %v1264 = vadd.f32 0.0, %v1263
      %1265 = vmatprep.mubr.f32.mxu0 0.0
      %1266 = vmatmul.mubr.f32.gmra.mrb[0].mxu0 %v1046
      %v1267 = vpop.f32.mrb[0].mxu0
      %v1268 = vadd.f32 0.0, %v1267
      %v1269 = vpop.f32.mrb[0].mxu0
      %v1270 = vadd.f32 0.0, %v1269
      %1271 = vmatprep.mubr.f32.mxu0 0.0
      %1272 = vmatmul.mubr.f32.gmra.mrb[0].mxu0 %v1049
      %v1273 = vpop.f32.mrb[0].mxu0
      %v1274 = vadd.f32 0.0, %v1273
      %v1275 = vpop.f32.mrb[0].mxu0
      %v1276 = vadd.f32 0.0, %v1275
      %1277 = vmatprep.mubr.f32.mxu0 0.0
      %1278 = vmatmul.mubr.f32.gmra.mrb[0].mxu0 %v1052
      %v1279 = vpop.f32.mrb[0].mxu0
      %v1280 = vadd.f32 0.0, %v1279
      %v1281 = vpop.f32.mrb[0].mxu0
      %v1282 = vadd.f32 0.0, %v1281
      %1283 = vmatprep.mubr.f32.mxu0 0.0
      %1284 = vmatmul.mubr.f32.gmra.mrb[0].mxu0 %v1055
      %v1285 = vpop.f32.mrb[0].mxu0
      %v1286 = vadd.f32 0.0, %v1285
      %v1287 = vpop.f32.mrb[0].mxu0
      %v1288 = vadd.f32 0.0, %v1287
      %1289 = vmatprep.mubr.f32.mxu0 0.0
      %1290 = vmatmul.mubr.f32.gmra.mrb[0].mxu0 %v1058
      %v1291 = vpop.f32.mrb[0].mxu0
      %v1292 = vadd.f32 0.0, %v1291
      %v1293 = vpop.f32.mrb[0].mxu0
      %v1294 = vadd.f32 0.0, %v1293
      %1295 = vmatprep.mubr.f32.mxu0 0.0
      %1296 = vmatmul.mubr.f32.gmra.mrb[0].mxu0 %v1061
      %v1297 = vpop.f32.mrb[0].mxu0
      %v1298 = vadd.f32 0.0, %v1297
      %v1299 = vpop.f32.mrb[0].mxu0
      %v1300 = vadd.f32 0.0, %v1299
      %1301 = vmatprep.mubr.f32.mxu0 0.0
      %1302 = vmatmul.mubr.f32.gmra.mrb[0].mxu0 %v1064
      %v1303 = vpop.f32.mrb[0].mxu0
      %v1304 = vadd.f32 0.0, %v1303
      %v1305 = vpop.f32.mrb[0].mxu0
      %v1306 = vadd.f32 0.0, %v1305
      %1307 = vmatprep.mubr.f32.mxu0 0.0
      %1308 = vmatmul.mubr.f32.gmra.mrb[0].mxu0 %v1067
      %v1309 = vpop.f32.mrb[0].mxu0
      %v1310 = vadd.f32 0.0, %v1309
      %v1311 = vpop.f32.mrb[0].mxu0
      %v1312 = vadd.f32 0.0, %v1311
      %1313 = vmatprep.mubr.f32.mxu0 0.0
      %1314 = vmatmul.mubr.f32.gmra.mrb[0].mxu0 %v1070
      %v1315 = vpop.f32.mrb[0].mxu0
      %v1316 = vadd.f32 0.0, %v1315
      %v1317 = vpop.f32.mrb[0].mxu0
      %v1318 = vadd.f32 0.0, %v1317
      %1319 = vmatprep.mubr.f32.mxu0 0.0
      %1320 = vmatmul.mubr.f32.gmra.mrb[0].mxu0 %v1073
      %v1321 = vpop.f32.mrb[0].mxu0
      %v1322 = vadd.f32 0.0, %v1321
      %v1323 = vpop.f32.mrb[0].mxu0
      %v1324 = vadd.f32 0.0, %v1323
      %1325 = vmatprep.mubr.f32.mxu0 0.0
      %1326 = vmatmul.mubr.f32.gmra.mrb[0].mxu0 %v1076
      %v1327 = vpop.f32.mrb[0].mxu0
      %v1328 = vadd.f32 0.0, %v1327
      %v1329 = vpop.f32.mrb[0].mxu0
      %v1330 = vadd.f32 0.0, %v1329
      %1331 = vmatprep.mubr.f32.mxu0 0.0
      %1332 = vmatmul.mubr.f32.gmra.mrb[0].mxu0 %v1079
      %v1333 = vpop.f32.mrb[0].mxu0
      %v1334 = vadd.f32 0.0, %v1333
      %v1335 = vpop.f32.mrb[0].mxu0
      %v1336 = vadd.f32 0.0, %v1335
      %1337 = vdwg.mxu0
      %v1338 = vld [vmem:[%s4] sm:$0xff]
      %v1339 = vld [vmem:[%s4 + $0x8] sm:$0xff]
      %v1340 = vld [vmem:[%s4 + $0x10] sm:$0x1]
      %v1341 = vld [vmem:[%s4 + $0x18] sm:$0x1]
      %v1342 = vlaneseq
      %v1343 = vshrl.u32 %v1342, 7
      %v1344 = vadd.s32 %v1343, 8
      %v1345 = vadd.s32 %v1343, 16
      %v1346 = vadd.s32 %v1343, 24
      %v1347 = vadd.s32 %v1343, 32
      %v1348 = vadd.s32 %v1343, 40
      %v1349 = vadd.s32 %v1343, 48
      %v1350 = vadd.s32 %v1343, 56
      %v1351 = vadd.s32 %v1343, 64
      %v1352 = vadd.s32 %v1343, 72
      %v1353 = vadd.s32 %v1343, 80
      %v1354 = vadd.s32 %v1343, 88
      %v1355 = vadd.s32 %v1343, 96
      %v1356 = vadd.s32 %v1343, 104
      %v1357 = vadd.s32 %v1343, 112
      %v1358 = vadd.s32 %v1343, 120
      %v1359 = vadd.s32 %v1343, 128
      %v1360 = vadd.s32 %v1343, 136
      %v1361 = vadd.s32 %v1343, 144
      %v1362 = vadd.s32 %v1343, 152
      %v1363 = vadd.s32 %v1343, 160
      %v1364 = vadd.s32 %v1343, 168
      %v1365 = vadd.s32 %v1343, 176
      %v1366 = vadd.s32 %v1343, 184
      %v1367 = vadd.s32 %v1343, 192
      %v1368 = vadd.s32 %v1343, 200
      %v1369 = vadd.s32 %v1343, 208
      %v1370 = vadd.s32 %v1343, 216
      %v1371 = vadd.s32 %v1343, 224
      %v1372 = vadd.s32 %v1343, 232
      %v1373 = vadd.s32 %v1343, 240
      %v1374 = vadd.s32 %v1343, 248
      %vm1375 = vcmp.lt.s32.totalorder %v1343, 0
      %v1376 = vsub.s32 0, %v1343
      %v1377 = vsel %vm1375, %v1376, %v1343
      %v1378 = vshrl.u32 %v1377, 4
      %v1379 = vand.u32 %v1377, 15
      %v1380 = vsub.s32 0, %v1379
      %v1381 = vsel %vm1375, %v1380, %v1379
      %vm1382 = vcmp.lt.s32.totalorder %v1344, 0
      %v1383 = vsub.s32 0, %v1344
      %v1384 = vsel %vm1382, %v1383, %v1344
      %v1385 = vshrl.u32 %v1384, 4
      %v1386 = vand.u32 %v1384, 15
      %v1387 = vsub.s32 0, %v1386
      %v1388 = vsel %vm1382, %v1387, %v1386
      %vm1389 = vcmp.lt.s32.totalorder %v1345, 0
      %v1390 = vsub.s32 0, %v1345
      %v1391 = vsel %vm1389, %v1390, %v1345
      %v1392 = vshrl.u32 %v1391, 4
      %v1393 = vand.u32 %v1391, 15
      %v1394 = vsub.s32 0, %v1393
      %v1395 = vsel %vm1389, %v1394, %v1393
      %vm1396 = vcmp.lt.s32.totalorder %v1346, 0
      %v1397 = vsub.s32 0, %v1346
      %v1398 = vsel %vm1396, %v1397, %v1346
      %v1399 = vshrl.u32 %v1398, 4
      %v1400 = vand.u32 %v1398, 15
      %v1401 = vsub.s32 0, %v1400
      %v1402 = vsel %vm1396, %v1401, %v1400
      %vm1403 = vcmp.lt.s32.totalorder %v1347, 0
      %v1404 = vsub.s32 0, %v1347
      %v1405 = vsel %vm1403, %v1404, %v1347
      %v1406 = vshrl.u32 %v1405, 4
      %v1407 = vand.u32 %v1405, 15
      %v1408 = vsub.s32 0, %v1407
      %v1409 = vsel %vm1403, %v1408, %v1407
      %vm1410 = vcmp.lt.s32.totalorder %v1348, 0
      %v1411 = vsub.s32 0, %v1348
      %v1412 = vsel %vm1410, %v1411, %v1348
      %v1413 = vshrl.u32 %v1412, 4
      %v1414 = vand.u32 %v1412, 15
      %v1415 = vsub.s32 0, %v1414
      %v1416 = vsel %vm1410, %v1415, %v1414
      %vm1417 = vcmp.lt.s32.totalorder %v1349, 0
      %v1418 = vsub.s32 0, %v1349
      %v1419 = vsel %vm1417, %v1418, %v1349
      %v1420 = vshrl.u32 %v1419, 4
      %v1421 = vand.u32 %v1419, 15
      %v1422 = vsub.s32 0, %v1421
      %v1423 = vsel %vm1417, %v1422, %v1421
      %vm1424 = vcmp.lt.s32.totalorder %v1350, 0
      %v1425 = vsub.s32 0, %v1350
      %v1426 = vsel %vm1424, %v1425, %v1350
      %v1427 = vshrl.u32 %v1426, 4
      %v1428 = vand.u32 %v1426, 15
      %v1429 = vsub.s32 0, %v1428
      %v1430 = vsel %vm1424, %v1429, %v1428
      %vm1431 = vcmp.lt.s32.totalorder %v1351, 0
      %v1432 = vsub.s32 0, %v1351
      %v1433 = vsel %vm1431, %v1432, %v1351
      %v1434 = vshrl.u32 %v1433, 4
      %v1435 = vand.u32 %v1433, 15
      %v1436 = vsub.s32 0, %v1435
      %v1437 = vsel %vm1431, %v1436, %v1435
      %vm1438 = vcmp.lt.s32.totalorder %v1352, 0
      %v1439 = vsub.s32 0, %v1352
      %v1440 = vsel %vm1438, %v1439, %v1352
      %v1441 = vshrl.u32 %v1440, 4
      %v1442 = vand.u32 %v1440, 15
      %v1443 = vsub.s32 0, %v1442
      %v1444 = vsel %vm1438, %v1443, %v1442
      %vm1445 = vcmp.lt.s32.totalorder %v1353, 0
      %v1446 = vsub.s32 0, %v1353
      %v1447 = vsel %vm1445, %v1446, %v1353
      %v1448 = vshrl.u32 %v1447, 4
      %v1449 = vand.u32 %v1447, 15
      %v1450 = vsub.s32 0, %v1449
      %v1451 = vsel %vm1445, %v1450, %v1449
      %vm1452 = vcmp.lt.s32.totalorder %v1354, 0
      %v1453 = vsub.s32 0, %v1354
      %v1454 = vsel %vm1452, %v1453, %v1354
      %v1455 = vshrl.u32 %v1454, 4
      %v1456 = vand.u32 %v1454, 15
      %v1457 = vsub.s32 0, %v1456
      %v1458 = vsel %vm1452, %v1457, %v1456
      %vm1459 = vcmp.lt.s32.totalorder %v1355, 0
      %v1460 = vsub.s32 0, %v1355
      %v1461 = vsel %vm1459, %v1460, %v1355
      %v1462 = vshrl.u32 %v1461, 4
      %v1463 = vand.u32 %v1461, 15
      %v1464 = vsub.s32 0, %v1463
      %v1465 = vsel %vm1459, %v1464, %v1463
      %vm1466 = vcmp.lt.s32.totalorder %v1356, 0
      %v1467 = vsub.s32 0, %v1356
      %v1468 = vsel %vm1466, %v1467, %v1356
      %v1469 = vshrl.u32 %v1468, 4
      %v1470 = vand.u32 %v1468, 15
      %v1471 = vsub.s32 0, %v1470
      %v1472 = vsel %vm1466, %v1471, %v1470
      %vm1473 = vcmp.lt.s32.totalorder %v1357, 0
      %v1474 = vsub.s32 0, %v1357
      %v1475 = vsel %vm1473, %v1474, %v1357
      %v1476 = vshrl.u32 %v1475, 4
      %v1477 = vand.u32 %v1475, 15
      %v1478 = vsub.s32 0, %v1477
      %v1479 = vsel %vm1473, %v1478, %v1477
      %vm1480 = vcmp.lt.s32.totalorder %v1358, 0
      %v1481 = vsub.s32 0, %v1358
      %v1482 = vsel %vm1480, %v1481, %v1358
      %v1483 = vshrl.u32 %v1482, 4
      %v1484 = vand.u32 %v1482, 15
      %v1485 = vsub.s32 0, %v1484
      %v1486 = vsel %vm1480, %v1485, %v1484
      %vm1487 = vcmp.lt.s32.totalorder %v1359, 0
      %v1488 = vsub.s32 0, %v1359
      %v1489 = vsel %vm1487, %v1488, %v1359
      %v1490 = vshrl.u32 %v1489, 4
      %v1491 = vand.u32 %v1489, 15
      %v1492 = vsub.s32 0, %v1491
      %v1493 = vsel %vm1487, %v1492, %v1491
      %vm1494 = vcmp.lt.s32.totalorder %v1360, 0
      %v1495 = vsub.s32 0, %v1360
      %v1496 = vsel %vm1494, %v1495, %v1360
      %v1497 = vshrl.u32 %v1496, 4
      %v1498 = vand.u32 %v1496, 15
      %v1499 = vsub.s32 0, %v1498
      %v1500 = vsel %vm1494, %v1499, %v1498
      %vm1501 = vcmp.lt.s32.totalorder %v1361, 0
      %v1502 = vsub.s32 0, %v1361
      %v1503 = vsel %vm1501, %v1502, %v1361
      %v1504 = vshrl.u32 %v1503, 4
      %v1505 = vand.u32 %v1503, 15
      %v1506 = vsub.s32 0, %v1505
      %v1507 = vsel %vm1501, %v1506, %v1505
      %vm1508 = vcmp.lt.s32.totalorder %v1362, 0
      %v1509 = vsub.s32 0, %v1362
      %v1510 = vsel %vm1508, %v1509, %v1362
      %v1511 = vshrl.u32 %v1510, 4
      %v1512 = vand.u32 %v1510, 15
      %v1513 = vsub.s32 0, %v1512
      %v1514 = vsel %vm1508, %v1513, %v1512
      %vm1515 = vcmp.lt.s32.totalorder %v1363, 0
      %v1516 = vsub.s32 0, %v1363
      %v1517 = vsel %vm1515, %v1516, %v1363
      %v1518 = vshrl.u32 %v1517, 4
      %v1519 = vand.u32 %v1517, 15
      %v1520 = vsub.s32 0, %v1519
      %v1521 = vsel %vm1515, %v1520, %v1519
      %vm1522 = vcmp.lt.s32.totalorder %v1364, 0
      %v1523 = vsub.s32 0, %v1364
      %v1524 = vsel %vm1522, %v1523, %v1364
      %v1525 = vshrl.u32 %v1524, 4
      %v1526 = vand.u32 %v1524, 15
      %v1527 = vsub.s32 0, %v1526
      %v1528 = vsel %vm1522, %v1527, %v1526
      %vm1529 = vcmp.lt.s32.totalorder %v1365, 0
      %v1530 = vsub.s32 0, %v1365
      %v1531 = vsel %vm1529, %v1530, %v1365
      %v1532 = vshrl.u32 %v1531, 4
      %v1533 = vand.u32 %v1531, 15
      %v1534 = vsub.s32 0, %v1533
      %v1535 = vsel %vm1529, %v1534, %v1533
      %vm1536 = vcmp.lt.s32.totalorder %v1366, 0
      %v1537 = vsub.s32 0, %v1366
      %v1538 = vsel %vm1536, %v1537, %v1366
      %v1539 = vshrl.u32 %v1538, 4
      %v1540 = vand.u32 %v1538, 15
      %v1541 = vsub.s32 0, %v1540
      %v1542 = vsel %vm1536, %v1541, %v1540
      %vm1543 = vcmp.lt.s32.totalorder %v1367, 0
      %v1544 = vsub.s32 0, %v1367
      %v1545 = vsel %vm1543, %v1544, %v1367
      %v1546 = vshrl.u32 %v1545, 4
      %v1547 = vand.u32 %v1545, 15
      %v1548 = vsub.s32 0, %v1547
      %v1549 = vsel %vm1543, %v1548, %v1547
      %vm1550 = vcmp.lt.s32.totalorder %v1368, 0
      %v1551 = vsub.s32 0, %v1368
      %v1552 = vsel %vm1550, %v1551, %v1368
      %v1553 = vshrl.u32 %v1552, 4
      %v1554 = vand.u32 %v1552, 15
      %v1555 = vsub.s32 0, %v1554
      %v1556 = vsel %vm1550, %v1555, %v1554
      %vm1557 = vcmp.lt.s32.totalorder %v1369, 0
      %v1558 = vsub.s32 0, %v1369
      %v1559 = vsel %vm1557, %v1558, %v1369
      %v1560 = vshrl.u32 %v1559, 4
      %v1561 = vand.u32 %v1559, 15
      %v1562 = vsub.s32 0, %v1561
      %v1563 = vsel %vm1557, %v1562, %v1561
      %vm1564 = vcmp.lt.s32.totalorder %v1370, 0
      %v1565 = vsub.s32 0, %v1370
      %v1566 = vsel %vm1564, %v1565, %v1370
      %v1567 = vshrl.u32 %v1566, 4
      %v1568 = vand.u32 %v1566, 15
      %v1569 = vsub.s32 0, %v1568
      %v1570 = vsel %vm1564, %v1569, %v1568
      %vm1571 = vcmp.lt.s32.totalorder %v1371, 0
      %v1572 = vsub.s32 0, %v1371
      %v1573 = vsel %vm1571, %v1572, %v1371
      %v1574 = vshrl.u32 %v1573, 4
      %v1575 = vand.u32 %v1573, 15
      %v1576 = vsub.s32 0, %v1575
      %v1577 = vsel %vm1571, %v1576, %v1575
      %vm1578 = vcmp.lt.s32.totalorder %v1372, 0
      %v1579 = vsub.s32 0, %v1372
      %v1580 = vsel %vm1578, %v1579, %v1372
      %v1581 = vshrl.u32 %v1580, 4
      %v1582 = vand.u32 %v1580, 15
      %v1583 = vsub.s32 0, %v1582
      %v1584 = vsel %vm1578, %v1583, %v1582
      %vm1585 = vcmp.lt.s32.totalorder %v1373, 0
      %v1586 = vsub.s32 0, %v1373
      %v1587 = vsel %vm1585, %v1586, %v1373
      %v1588 = vshrl.u32 %v1587, 4
      %v1589 = vand.u32 %v1587, 15
      %v1590 = vsub.s32 0, %v1589
      %v1591 = vsel %vm1585, %v1590, %v1589
      %vm1592 = vcmp.lt.s32.totalorder %v1374, 0
      %v1593 = vsub.s32 0, %v1374
      %v1594 = vsel %vm1592, %v1593, %v1374
      %v1595 = vshrl.u32 %v1594, 4
      %v1596 = vand.u32 %v1594, 15
      %v1597 = vsub.s32 0, %v1596
      %v1598 = vsel %vm1592, %v1597, %v1596
      %vm1599 = vcmp.ne.s32.totalorder %v1381, 0
      %vm1600 = vcmp.ne.s32.totalorder %v1388, 0
      %vm1601 = vcmp.ne.s32.totalorder %v1395, 0
      %vm1602 = vcmp.ne.s32.totalorder %v1402, 0
      %vm1603 = vcmp.ne.s32.totalorder %v1409, 0
      %vm1604 = vcmp.ne.s32.totalorder %v1416, 0
      %vm1605 = vcmp.ne.s32.totalorder %v1423, 0
      %vm1606 = vcmp.ne.s32.totalorder %v1430, 0
      %vm1607 = vcmp.ne.s32.totalorder %v1437, 0
      %vm1608 = vcmp.ne.s32.totalorder %v1444, 0
      %vm1609 = vcmp.ne.s32.totalorder %v1451, 0
      %vm1610 = vcmp.ne.s32.totalorder %v1458, 0
      %vm1611 = vcmp.ne.s32.totalorder %v1465, 0
      %vm1612 = vcmp.ne.s32.totalorder %v1472, 0
      %vm1613 = vcmp.ne.s32.totalorder %v1479, 0
      %vm1614 = vcmp.ne.s32.totalorder %v1486, 0
      %vm1615 = vcmp.ne.s32.totalorder %v1493, 0
      %vm1616 = vcmp.ne.s32.totalorder %v1500, 0
      %vm1617 = vcmp.ne.s32.totalorder %v1507, 0
      %vm1618 = vcmp.ne.s32.totalorder %v1514, 0
      %vm1619 = vcmp.ne.s32.totalorder %v1521, 0
      %vm1620 = vcmp.ne.s32.totalorder %v1528, 0
      %vm1621 = vcmp.ne.s32.totalorder %v1535, 0
      %vm1622 = vcmp.ne.s32.totalorder %v1542, 0
      %vm1623 = vcmp.ne.s32.totalorder %v1549, 0
      %vm1624 = vcmp.ne.s32.totalorder %v1556, 0
      %vm1625 = vcmp.ne.s32.totalorder %v1563, 0
      %vm1626 = vcmp.ne.s32.totalorder %v1570, 0
      %vm1627 = vcmp.ne.s32.totalorder %v1577, 0
      %vm1628 = vcmp.ne.s32.totalorder %v1584, 0
      %vm1629 = vcmp.ne.s32.totalorder %v1591, 0
      %vm1630 = vcmp.ne.s32.totalorder %v1598, 0
      %vm1631 = vcmp.lt.s32.totalorder %v1381, 0
      %vm1632 = vcmp.lt.s32.totalorder %v1388, 0
      %vm1633 = vcmp.lt.s32.totalorder %v1395, 0
      %vm1634 = vcmp.lt.s32.totalorder %v1402, 0
      %vm1635 = vcmp.lt.s32.totalorder %v1409, 0
      %vm1636 = vcmp.lt.s32.totalorder %v1416, 0
      %vm1637 = vcmp.lt.s32.totalorder %v1423, 0
      %vm1638 = vcmp.lt.s32.totalorder %v1430, 0
      %vm1639 = vcmp.lt.s32.totalorder %v1437, 0
      %vm1640 = vcmp.lt.s32.totalorder %v1444, 0
      %vm1641 = vcmp.lt.s32.totalorder %v1451, 0
      %vm1642 = vcmp.lt.s32.totalorder %v1458, 0
      %vm1643 = vcmp.lt.s32.totalorder %v1465, 0
      %vm1644 = vcmp.lt.s32.totalorder %v1472, 0
      %vm1645 = vcmp.lt.s32.totalorder %v1479, 0
      %vm1646 = vcmp.lt.s32.totalorder %v1486, 0
      %vm1647 = vcmp.lt.s32.totalorder %v1493, 0
      %vm1648 = vcmp.lt.s32.totalorder %v1500, 0
      %vm1649 = vcmp.lt.s32.totalorder %v1507, 0
      %vm1650 = vcmp.lt.s32.totalorder %v1514, 0
      %vm1651 = vcmp.lt.s32.totalorder %v1521, 0
      %vm1652 = vcmp.lt.s32.totalorder %v1528, 0
      %vm1653 = vcmp.lt.s32.totalorder %v1535, 0
      %vm1654 = vcmp.lt.s32.totalorder %v1542, 0
      %vm1655 = vcmp.lt.s32.totalorder %v1549, 0
      %vm1656 = vcmp.lt.s32.totalorder %v1556, 0
      %vm1657 = vcmp.lt.s32.totalorder %v1563, 0
      %vm1658 = vcmp.lt.s32.totalorder %v1570, 0
      %vm1659 = vcmp.lt.s32.totalorder %v1577, 0
      %vm1660 = vcmp.lt.s32.totalorder %v1584, 0
      %vm1661 = vcmp.lt.s32.totalorder %v1591, 0
      %vm1662 = vcmp.lt.s32.totalorder %v1598, 0
      %vm1663 = vmand %vm1631, %vm1599
      %vm1664 = vmand %vm1632, %vm1600
      %vm1665 = vmand %vm1633, %vm1601
      %vm1666 = vmand %vm1634, %vm1602
      %vm1667 = vmand %vm1635, %vm1603
      %vm1668 = vmand %vm1636, %vm1604
      %vm1669 = vmand %vm1637, %vm1605
      %vm1670 = vmand %vm1638, %vm1606
      %vm1671 = vmand %vm1639, %vm1607
      %vm1672 = vmand %vm1640, %vm1608
      %vm1673 = vmand %vm1641, %vm1609
      %vm1674 = vmand %vm1642, %vm1610
      %vm1675 = vmand %vm1643, %vm1611
      %vm1676 = vmand %vm1644, %vm1612
      %vm1677 = vmand %vm1645, %vm1613
      %vm1678 = vmand %vm1646, %vm1614
      %vm1679 = vmand %vm1647, %vm1615
      %vm1680 = vmand %vm1648, %vm1616
      %vm1681 = vmand %vm1649, %vm1617
      %vm1682 = vmand %vm1650, %vm1618
      %vm1683 = vmand %vm1651, %vm1619
      %vm1684 = vmand %vm1652, %vm1620
      %vm1685 = vmand %vm1653, %vm1621
      %vm1686 = vmand %vm1654, %vm1622
      %vm1687 = vmand %vm1655, %vm1623
      %vm1688 = vmand %vm1656, %vm1624
      %vm1689 = vmand %vm1657, %vm1625
      %vm1690 = vmand %vm1658, %vm1626
      %vm1691 = vmand %vm1659, %vm1627
      %vm1692 = vmand %vm1660, %vm1628
      %vm1693 = vmand %vm1661, %vm1629
      %vm1694 = vmand %vm1662, %vm1630
      %v1695 = vadd.s32 %v1381, 16
      %v1696 = vadd.s32 %v1388, 16
      %v1697 = vadd.s32 %v1395, 16
      %v1698 = vadd.s32 %v1402, 16
      %v1699 = vadd.s32 %v1409, 16
      %v1700 = vadd.s32 %v1416, 16
      %v1701 = vadd.s32 %v1423, 16
      %v1702 = vadd.s32 %v1430, 16
      %v1703 = vadd.s32 %v1437, 16
      %v1704 = vadd.s32 %v1444, 16
      %v1705 = vadd.s32 %v1451, 16
      %v1706 = vadd.s32 %v1458, 16
      %v1707 = vadd.s32 %v1465, 16
      %v1708 = vadd.s32 %v1472, 16
      %v1709 = vadd.s32 %v1479, 16
      %v1710 = vadd.s32 %v1486, 16
      %v1711 = vadd.s32 %v1493, 16
      %v1712 = vadd.s32 %v1500, 16
      %v1713 = vadd.s32 %v1507, 16
      %v1714 = vadd.s32 %v1514, 16
      %v1715 = vadd.s32 %v1521, 16
      %v1716 = vadd.s32 %v1528, 16
      %v1717 = vadd.s32 %v1535, 16
      %v1718 = vadd.s32 %v1542, 16
      %v1719 = vadd.s32 %v1549, 16
      %v1720 = vadd.s32 %v1556, 16
      %v1721 = vadd.s32 %v1563, 16
      %v1722 = vadd.s32 %v1570, 16
      %v1723 = vadd.s32 %v1577, 16
      %v1724 = vadd.s32 %v1584, 16
      %v1725 = vadd.s32 %v1591, 16
      %v1726 = vadd.s32 %v1598, 16
      %v1727 = vsel %vm1663, %v1695, %v1381
      %v1728 = vsel %vm1664, %v1696, %v1388
      %v1729 = vsel %vm1665, %v1697, %v1395
      %v1730 = vsel %vm1666, %v1698, %v1402
      %v1731 = vsel %vm1667, %v1699, %v1409
      %v1732 = vsel %vm1668, %v1700, %v1416
      %v1733 = vsel %vm1669, %v1701, %v1423
      %v1734 = vsel %vm1670, %v1702, %v1430
      %v1735 = vsel %vm1671, %v1703, %v1437
      %v1736 = vsel %vm1672, %v1704, %v1444
      %v1737 = vsel %vm1673, %v1705, %v1451
      %v1738 = vsel %vm1674, %v1706, %v1458
      %v1739 = vsel %vm1675, %v1707, %v1465
      %v1740 = vsel %vm1676, %v1708, %v1472
      %v1741 = vsel %vm1677, %v1709, %v1479
      %v1742 = vsel %vm1678, %v1710, %v1486
      %v1743 = vsel %vm1679, %v1711, %v1493
      %v1744 = vsel %vm1680, %v1712, %v1500
      %v1745 = vsel %vm1681, %v1713, %v1507
      %v1746 = vsel %vm1682, %v1714, %v1514
      %v1747 = vsel %vm1683, %v1715, %v1521
      %v1748 = vsel %vm1684, %v1716, %v1528
      %v1749 = vsel %vm1685, %v1717, %v1535
      %v1750 = vsel %vm1686, %v1718, %v1542
      %v1751 = vsel %vm1687, %v1719, %v1549
      %v1752 = vsel %vm1688, %v1720, %v1556
      %v1753 = vsel %vm1689, %v1721, %v1563
      %v1754 = vsel %vm1690, %v1722, %v1570
      %v1755 = vsel %vm1691, %v1723, %v1577
      %v1756 = vsel %vm1692, %v1724, %v1584
      %v1757 = vsel %vm1693, %v1725, %v1591
      %v1758 = vsel %vm1694, %v1726, %v1598
      %vm1759 = vcmp.ge.s32.totalorder %v1727, 1
      %vm1760 = vcmp.ge.s32.totalorder %v1728, 1
      %vm1761 = vcmp.ge.s32.totalorder %v1729, 1
      %vm1762 = vcmp.ge.s32.totalorder %v1730, 1
      %vm1763 = vcmp.ge.s32.totalorder %v1731, 1
      %vm1764 = vcmp.ge.s32.totalorder %v1732, 1
      %vm1765 = vcmp.ge.s32.totalorder %v1733, 1
      %vm1766 = vcmp.ge.s32.totalorder %v1734, 1
      %vm1767 = vcmp.ge.s32.totalorder %v1735, 1
      %vm1768 = vcmp.ge.s32.totalorder %v1736, 1
      %vm1769 = vcmp.ge.s32.totalorder %v1737, 1
      %vm1770 = vcmp.ge.s32.totalorder %v1738, 1
      %vm1771 = vcmp.ge.s32.totalorder %v1739, 1
      %vm1772 = vcmp.ge.s32.totalorder %v1740, 1
      %vm1773 = vcmp.ge.s32.totalorder %v1741, 1
      %vm1774 = vcmp.ge.s32.totalorder %v1742, 1
      %vm1775 = vcmp.ge.s32.totalorder %v1743, 1
      %vm1776 = vcmp.ge.s32.totalorder %v1744, 1
      %vm1777 = vcmp.ge.s32.totalorder %v1745, 1
      %vm1778 = vcmp.ge.s32.totalorder %v1746, 1
      %vm1779 = vcmp.ge.s32.totalorder %v1747, 1
      %vm1780 = vcmp.ge.s32.totalorder %v1748, 1
      %vm1781 = vcmp.ge.s32.totalorder %v1749, 1
      %vm1782 = vcmp.ge.s32.totalorder %v1750, 1
      %vm1783 = vcmp.ge.s32.totalorder %v1751, 1
      %vm1784 = vcmp.ge.s32.totalorder %v1752, 1
      %vm1785 = vcmp.ge.s32.totalorder %v1753, 1
      %vm1786 = vcmp.ge.s32.totalorder %v1754, 1
      %vm1787 = vcmp.ge.s32.totalorder %v1755, 1
      %vm1788 = vcmp.ge.s32.totalorder %v1756, 1
      %vm1789 = vcmp.ge.s32.totalorder %v1757, 1
      %vm1790 = vcmp.ge.s32.totalorder %v1758, 1
      %vm1791 = vcmp.le.s32.totalorder %v1727, 14
      %vm1792 = vcmp.le.s32.totalorder %v1728, 14
      %vm1793 = vcmp.le.s32.totalorder %v1729, 14
      %vm1794 = vcmp.le.s32.totalorder %v1730, 14
      %vm1795 = vcmp.le.s32.totalorder %v1731, 14
      %vm1796 = vcmp.le.s32.totalorder %v1732, 14
      %vm1797 = vcmp.le.s32.totalorder %v1733, 14
      %vm1798 = vcmp.le.s32.totalorder %v1734, 14
      %vm1799 = vcmp.le.s32.totalorder %v1735, 14
      %vm1800 = vcmp.le.s32.totalorder %v1736, 14
      %vm1801 = vcmp.le.s32.totalorder %v1737, 14
      %vm1802 = vcmp.le.s32.totalorder %v1738, 14
      %vm1803 = vcmp.le.s32.totalorder %v1739, 14
      %vm1804 = vcmp.le.s32.totalorder %v1740, 14
      %vm1805 = vcmp.le.s32.totalorder %v1741, 14
      %vm1806 = vcmp.le.s32.totalorder %v1742, 14
      %vm1807 = vcmp.le.s32.totalorder %v1743, 14
      %vm1808 = vcmp.le.s32.totalorder %v1744, 14
      %vm1809 = vcmp.le.s32.totalorder %v1745, 14
      %vm1810 = vcmp.le.s32.totalorder %v1746, 14
      %vm1811 = vcmp.le.s32.totalorder %v1747, 14
      %vm1812 = vcmp.le.s32.totalorder %v1748, 14
      %vm1813 = vcmp.le.s32.totalorder %v1749, 14
      %vm1814 = vcmp.le.s32.totalorder %v1750, 14
      %vm1815 = vcmp.le.s32.totalorder %v1751, 14
      %vm1816 = vcmp.le.s32.totalorder %v1752, 14
      %vm1817 = vcmp.le.s32.totalorder %v1753, 14
      %vm1818 = vcmp.le.s32.totalorder %v1754, 14
      %vm1819 = vcmp.le.s32.totalorder %v1755, 14
      %vm1820 = vcmp.le.s32.totalorder %v1756, 14
      %vm1821 = vcmp.le.s32.totalorder %v1757, 14
      %vm1822 = vcmp.le.s32.totalorder %v1758, 14
      %vm1883 = vcmask 1040384
      %v1884 = vrot.slane %v1148, 7
      %v1885 = vrot.slane %v1150, 7
      %v1886 = vrot.slane %v1154, 7
      %v1887 = vsel %vm1883, %v1884, %v1886
      %v1888 = vrot.slane %v1156, 7
      %v1889 = vsel %vm1883, %v1885, %v1888
      %v1890 = vrot.slane %v1160, 7
      %v1891 = vsel %vm1883, %v1886, %v1890
      %v1892 = vrot.slane %v1162, 7
      %v1893 = vsel %vm1883, %v1888, %v1892
      %v1894 = vrot.slane %v1166, 7
      %v1895 = vsel %vm1883, %v1890, %v1894
      %v1896 = vrot.slane %v1168, 7
      %v1897 = vsel %vm1883, %v1892, %v1896
      %v1898 = vrot.slane %v1172, 7
      %v1899 = vsel %vm1883, %v1894, %v1898
      %v1900 = vrot.slane %v1174, 7
      %v1901 = vsel %vm1883, %v1896, %v1900
      %v1902 = vrot.slane %v1178, 7
      %v1903 = vsel %vm1883, %v1898, %v1902
      %v1904 = vrot.slane %v1180, 7
      %v1905 = vsel %vm1883, %v1900, %v1904
      %v1906 = vrot.slane %v1184, 7
      %v1907 = vsel %vm1883, %v1902, %v1906
      %v1908 = vrot.slane %v1186, 7
      %v1909 = vsel %vm1883, %v1904, %v1908
      %v1910 = vrot.slane %v1190, 7
      %v1911 = vsel %vm1883, %v1906, %v1910
      %v1912 = vrot.slane %v1192, 7
      %v1913 = vsel %vm1883, %v1908, %v1912
      %v1914 = vrot.slane %v1196, 7
      %v1915 = vsel %vm1883, %v1910, %v1914
      %v1916 = vrot.slane %v1198, 7
      %v1917 = vsel %vm1883, %v1912, %v1916
      %v1918 = vrot.slane %v1202, 7
      %v1919 = vsel %vm1883, %v1914, %v1918
      %v1920 = vrot.slane %v1204, 7
      %v1921 = vsel %vm1883, %v1916, %v1920
      %v1922 = vrot.slane %v1208, 7
      %v1923 = vsel %vm1883, %v1918, %v1922
      %v1924 = vrot.slane %v1210, 7
      %v1925 = vsel %vm1883, %v1920, %v1924
      %v1926 = vrot.slane %v1214, 7
      %v1927 = vsel %vm1883, %v1922, %v1926
      %v1928 = vrot.slane %v1216, 7
      %v1929 = vsel %vm1883, %v1924, %v1928
      %v1930 = vrot.slane %v1220, 7
      %v1931 = vsel %vm1883, %v1926, %v1930
      %v1932 = vrot.slane %v1222, 7
      %v1933 = vsel %vm1883, %v1928, %v1932
      %v1934 = vrot.slane %v1226, 7
      %v1935 = vsel %vm1883, %v1930, %v1934
      %v1936 = vrot.slane %v1228, 7
      %v1937 = vsel %vm1883, %v1932, %v1936
      %v1938 = vrot.slane %v1232, 7
      %v1939 = vsel %vm1883, %v1934, %v1938
      %v1940 = vrot.slane %v1234, 7
      %v1941 = vsel %vm1883, %v1936, %v1940
      %v1942 = vrot.slane %v1238, 7
      %v1943 = vsel %vm1883, %v1938, %v1942
      %v1944 = vrot.slane %v1240, 7
      %v1945 = vsel %vm1883, %v1940, %v1944
      %v1946 = vrot.slane %v1244, 7
      %v1947 = vsel %vm1883, %v1942, %v1946
      %v1948 = vrot.slane %v1246, 7
      %v1949 = vsel %vm1883, %v1944, %v1948
      %v1950 = vrot.slane %v1250, 7
      %v1951 = vsel %vm1883, %v1946, %v1950
      %v1952 = vrot.slane %v1252, 7
      %v1953 = vsel %vm1883, %v1948, %v1952
      %v1954 = vrot.slane %v1256, 7
      %v1955 = vsel %vm1883, %v1950, %v1954
      %v1956 = vrot.slane %v1258, 7
      %v1957 = vsel %vm1883, %v1952, %v1956
      %v1958 = vrot.slane %v1262, 7
      %v1959 = vsel %vm1883, %v1954, %v1958
      %v1960 = vrot.slane %v1264, 7
      %v1961 = vsel %vm1883, %v1956, %v1960
      %v1962 = vrot.slane %v1268, 7
      %v1963 = vsel %vm1883, %v1958, %v1962
      %v1964 = vrot.slane %v1270, 7
      %v1965 = vsel %vm1883, %v1960, %v1964
      %v1966 = vrot.slane %v1274, 7
      %v1967 = vsel %vm1883, %v1962, %v1966
      %v1968 = vrot.slane %v1276, 7
      %v1969 = vsel %vm1883, %v1964, %v1968
      %v1970 = vrot.slane %v1280, 7
      %v1971 = vsel %vm1883, %v1966, %v1970
      %v1972 = vrot.slane %v1282, 7
      %v1973 = vsel %vm1883, %v1968, %v1972
      %v1974 = vrot.slane %v1286, 7
      %v1975 = vsel %vm1883, %v1970, %v1974
      %v1976 = vrot.slane %v1288, 7
      %v1977 = vsel %vm1883, %v1972, %v1976
      %v1978 = vrot.slane %v1292, 7
      %v1979 = vsel %vm1883, %v1974, %v1978
      %v1980 = vrot.slane %v1294, 7
      %v1981 = vsel %vm1883, %v1976, %v1980
      %v1982 = vrot.slane %v1298, 7
      %v1983 = vsel %vm1883, %v1978, %v1982
      %v1984 = vrot.slane %v1300, 7
      %v1985 = vsel %vm1883, %v1980, %v1984
      %v1986 = vrot.slane %v1304, 7
      %v1987 = vsel %vm1883, %v1982, %v1986
      %v1988 = vrot.slane %v1306, 7
      %v1989 = vsel %vm1883, %v1984, %v1988
      %v1990 = vrot.slane %v1310, 7
      %v1991 = vsel %vm1883, %v1986, %v1990
      %v1992 = vrot.slane %v1312, 7
      %v1993 = vsel %vm1883, %v1988, %v1992
      %v1994 = vrot.slane %v1316, 7
      %v1995 = vsel %vm1883, %v1990, %v1994
      %v1996 = vrot.slane %v1318, 7
      %v1997 = vsel %vm1883, %v1992, %v1996
      %v1998 = vrot.slane %v1322, 7
      %v1999 = vsel %vm1883, %v1994, %v1998
      %v2000 = vrot.slane %v1324, 7
      %v2001 = vsel %vm1883, %v1996, %v2000
      %v2062 = vsel %vm1883, 0.0, %v1884
      %v2063 = vsel %vm1883, 0.0, %v1885
      %v2064 = vsel %vm1761, %v2062, 0.0
      %v2065 = vsel %vm1761, %v2063, 0.0
      %v2066 = vsel %vm1762, %v1887, 0.0
      %v2067 = vsel %vm1762, %v1889, 0.0
      %v2068 = vsel %vm1763, %v1891, 0.0
      %v2069 = vsel %vm1763, %v1893, 0.0
      %v2070 = vsel %vm1764, %v1895, 0.0
      %v2071 = vsel %vm1764, %v1897, 0.0
      %v2072 = vsel %vm1765, %v1899, 0.0
      %v2073 = vsel %vm1765, %v1901, 0.0
      %v2074 = vsel %vm1766, %v1903, 0.0
      %v2075 = vsel %vm1766, %v1905, 0.0
      %v2076 = vsel %vm1767, %v1907, 0.0
      %v2077 = vsel %vm1767, %v1909, 0.0
      %v2078 = vsel %vm1768, %v1911, 0.0
      %v2079 = vsel %vm1768, %v1913, 0.0
      %v2080 = vsel %vm1769, %v1915, 0.0
      %v2081 = vsel %vm1769, %v1917, 0.0
      %v2082 = vsel %vm1770, %v1919, 0.0
      %v2083 = vsel %vm1770, %v1921, 0.0
      %v2084 = vsel %vm1771, %v1923, 0.0
      %v2085 = vsel %vm1771, %v1925, 0.0
      %v2086 = vsel %vm1772, %v1927, 0.0
      %v2087 = vsel %vm1772, %v1929, 0.0
      %v2088 = vsel %vm1773, %v1931, 0.0
      %v2089 = vsel %vm1773, %v1933, 0.0
      %v2090 = vsel %vm1774, %v1935, 0.0
      %v2091 = vsel %vm1774, %v1937, 0.0
      %v2092 = vsel %vm1775, %v1939, 0.0
      %v2093 = vsel %vm1775, %v1941, 0.0
      %v2094 = vsel %vm1776, %v1943, 0.0
      %v2095 = vsel %vm1776, %v1945, 0.0
      %v2096 = vsel %vm1777, %v1947, 0.0
      %v2097 = vsel %vm1777, %v1949, 0.0
      %v2098 = vsel %vm1778, %v1951, 0.0
      %v2099 = vsel %vm1778, %v1953, 0.0
      %v2100 = vsel %vm1779, %v1955, 0.0
      %v2101 = vsel %vm1779, %v1957, 0.0
      %v2102 = vsel %vm1780, %v1959, 0.0
      %v2103 = vsel %vm1780, %v1961, 0.0
      %v2104 = vsel %vm1781, %v1963, 0.0
      %v2105 = vsel %vm1781, %v1965, 0.0
      %v2106 = vsel %vm1782, %v1967, 0.0
      %v2107 = vsel %vm1782, %v1969, 0.0
      %v2108 = vsel %vm1783, %v1971, 0.0
      %v2109 = vsel %vm1783, %v1973, 0.0
      %v2110 = vsel %vm1784, %v1975, 0.0
      %v2111 = vsel %vm1784, %v1977, 0.0
      %v2112 = vsel %vm1785, %v1979, 0.0
      %v2113 = vsel %vm1785, %v1981, 0.0
      %v2114 = vsel %vm1786, %v1983, 0.0
      %v2115 = vsel %vm1786, %v1985, 0.0
      %v2116 = vsel %vm1787, %v1987, 0.0
      %v2117 = vsel %vm1787, %v1989, 0.0
      %v2118 = vsel %vm1788, %v1991, 0.0
      %v2119 = vsel %vm1788, %v1993, 0.0
      %v2120 = vsel %vm1789, %v1995, 0.0
      %v2121 = vsel %vm1789, %v1997, 0.0
      %v2122 = vsel %vm1790, %v1999, 0.0
      %v2123 = vsel %vm1790, %v2001, 0.0
      %v2124 = vlaneseq
      %v2125 = vshrl.u32 %v2124, 7
      %v2126 = vsub.s32 0, %v2125
      %v2127 = vrot.slane %v1338, %v2126
      %v2128 = vlaneseq
      %v2129 = vshrl.u32 %v2128, 7
      %v2130 = vsub.s32 0, %v2129
      %v2131 = vrot.slane %v1339, %v2130
      %v2132 = vmul.f32 %v2127, 0.0
      %v2133 = vmul.f32 %v2131, 0.0
      %v2134 = vmul.f32 %v2064, %v2127
      %v2135 = vmul.f32 %v2065, %v2131
      %v2136 = vmul.f32 %v2066, %v2127
      %v2137 = vmul.f32 %v2067, %v2131
      %v2138 = vmul.f32 %v2068, %v2127
      %v2139 = vmul.f32 %v2069, %v2131
      %v2140 = vmul.f32 %v2070, %v2127
      %v2141 = vmul.f32 %v2071, %v2131
      %v2142 = vmul.f32 %v2072, %v2127
      %v2143 = vmul.f32 %v2073, %v2131
      %v2144 = vmul.f32 %v2074, %v2127
      %v2145 = vmul.f32 %v2075, %v2131
      %v2146 = vmul.f32 %v2076, %v2127
      %v2147 = vmul.f32 %v2077, %v2131
      %v2148 = vmul.f32 %v2078, %v2127
      %v2149 = vmul.f32 %v2079, %v2131
      %v2150 = vmul.f32 %v2080, %v2127
      %v2151 = vmul.f32 %v2081, %v2131
      %v2152 = vmul.f32 %v2082, %v2127
      %v2153 = vmul.f32 %v2083, %v2131
      %v2154 = vmul.f32 %v2084, %v2127
      %v2155 = vmul.f32 %v2085, %v2131
      %v2156 = vmul.f32 %v2086, %v2127
      %v2157 = vmul.f32 %v2087, %v2131
      %v2158 = vmul.f32 %v2088, %v2127
      %v2159 = vmul.f32 %v2089, %v2131
      %v2160 = vmul.f32 %v2090, %v2127
      %v2161 = vmul.f32 %v2091, %v2131
      %v2162 = vmul.f32 %v2092, %v2127
      %v2163 = vmul.f32 %v2093, %v2131
      %v2164 = vmul.f32 %v2094, %v2127
      %v2165 = vmul.f32 %v2095, %v2131
      %v2166 = vmul.f32 %v2096, %v2127
      %v2167 = vmul.f32 %v2097, %v2131
      %v2168 = vmul.f32 %v2098, %v2127
      %v2169 = vmul.f32 %v2099, %v2131
      %v2170 = vmul.f32 %v2100, %v2127
      %v2171 = vmul.f32 %v2101, %v2131
      %v2172 = vmul.f32 %v2102, %v2127
      %v2173 = vmul.f32 %v2103, %v2131
      %v2174 = vmul.f32 %v2104, %v2127
      %v2175 = vmul.f32 %v2105, %v2131
      %v2176 = vmul.f32 %v2106, %v2127
      %v2177 = vmul.f32 %v2107, %v2131
      %v2178 = vmul.f32 %v2108, %v2127
      %v2179 = vmul.f32 %v2109, %v2131
      %v2180 = vmul.f32 %v2110, %v2127
      %v2181 = vmul.f32 %v2111, %v2131
      %v2182 = vmul.f32 %v2112, %v2127
      %v2183 = vmul.f32 %v2113, %v2131
      %v2184 = vmul.f32 %v2114, %v2127
      %v2185 = vmul.f32 %v2115, %v2131
      %v2186 = vmul.f32 %v2116, %v2127
      %v2187 = vmul.f32 %v2117, %v2131
      %v2188 = vmul.f32 %v2118, %v2127
      %v2189 = vmul.f32 %v2119, %v2131
      %v2190 = vmul.f32 %v2120, %v2127
      %v2191 = vmul.f32 %v2121, %v2131
      %v2192 = vmul.f32 %v2122, %v2127
      %v2193 = vmul.f32 %v2123, %v2131
      %v2194 = vadd.f32 %v2132, 0.0
      %v2195 = vadd.f32 %v2133, 0.0
      %v2196 = vadd.f32 %v2134, 0.0
      %v2197 = vadd.f32 %v2135, 0.0
      %v2198 = vadd.f32 %v2136, 0.0
      %v2199 = vadd.f32 %v2137, 0.0
      %v2200 = vadd.f32 %v2138, 0.0
      %v2201 = vadd.f32 %v2139, 0.0
      %v2202 = vadd.f32 %v2140, 0.0
      %v2203 = vadd.f32 %v2141, 0.0
      %v2204 = vadd.f32 %v2142, 0.0
      %v2205 = vadd.f32 %v2143, 0.0
      %v2206 = vadd.f32 %v2144, 0.0
      %v2207 = vadd.f32 %v2145, 0.0
      %v2208 = vadd.f32 %v2146, 0.0
      %v2209 = vadd.f32 %v2147, 0.0
      %v2210 = vadd.f32 %v2148, 0.0
      %v2211 = vadd.f32 %v2149, 0.0
      %v2212 = vadd.f32 %v2150, 0.0
      %v2213 = vadd.f32 %v2151, 0.0
      %v2214 = vadd.f32 %v2152, 0.0
      %v2215 = vadd.f32 %v2153, 0.0
      %v2216 = vadd.f32 %v2154, 0.0
      %v2217 = vadd.f32 %v2155, 0.0
      %v2218 = vadd.f32 %v2156, 0.0
      %v2219 = vadd.f32 %v2157, 0.0
      %v2220 = vadd.f32 %v2158, 0.0
      %v2221 = vadd.f32 %v2159, 0.0
      %v2222 = vadd.f32 %v2160, 0.0
      %v2223 = vadd.f32 %v2161, 0.0
      %v2224 = vadd.f32 %v2162, 0.0
      %v2225 = vadd.f32 %v2163, 0.0
      %v2226 = vadd.f32 %v2164, 0.0
      %v2227 = vadd.f32 %v2165, 0.0
      %v2228 = vadd.f32 %v2166, 0.0
      %v2229 = vadd.f32 %v2167, 0.0
      %v2230 = vadd.f32 %v2168, 0.0
      %v2231 = vadd.f32 %v2169, 0.0
      %v2232 = vadd.f32 %v2170, 0.0
      %v2233 = vadd.f32 %v2171, 0.0
      %v2234 = vadd.f32 %v2172, 0.0
      %v2235 = vadd.f32 %v2173, 0.0
      %v2236 = vadd.f32 %v2174, 0.0
      %v2237 = vadd.f32 %v2175, 0.0
      %v2238 = vadd.f32 %v2176, 0.0
      %v2239 = vadd.f32 %v2177, 0.0
      %v2240 = vadd.f32 %v2178, 0.0
      %v2241 = vadd.f32 %v2179, 0.0
      %v2242 = vadd.f32 %v2180, 0.0
      %v2243 = vadd.f32 %v2181, 0.0
      %v2244 = vadd.f32 %v2182, 0.0
      %v2245 = vadd.f32 %v2183, 0.0
      %v2246 = vadd.f32 %v2184, 0.0
      %v2247 = vadd.f32 %v2185, 0.0
      %v2248 = vadd.f32 %v2186, 0.0
      %v2249 = vadd.f32 %v2187, 0.0
      %v2250 = vadd.f32 %v2188, 0.0
      %v2251 = vadd.f32 %v2189, 0.0
      %v2252 = vadd.f32 %v2190, 0.0
      %v2253 = vadd.f32 %v2191, 0.0
      %v2254 = vadd.f32 %v2192, 0.0
      %v2255 = vadd.f32 %v2193, 0.0
      %v2256 = vlaneseq
      %v2257 = vshrl.u32 %v2256, 7
      %v2258 = vsub.s32 1, %v2257
      %v2259 = vrot.slane %v1338, %v2258
      %v2260 = vlaneseq
      %v2261 = vshrl.u32 %v2260, 7
      %v2262 = vsub.s32 1, %v2261
      %v2263 = vrot.slane %v1339, %v2262
      %v2264 = vmul.f32 %v2259, 0.0
      %v2265 = vmul.f32 %v2263, 0.0
      %v2266 = vmul.f32 %v1148, %v2259
      %v2267 = vmul.f32 %v1150, %v2263
      %v2268 = vmul.f32 %v1154, %v2259
      %v2269 = vmul.f32 %v1156, %v2263
      %v2270 = vmul.f32 %v1160, %v2259
      %v2271 = vmul.f32 %v1162, %v2263
      %v2272 = vmul.f32 %v1166, %v2259
      %v2273 = vmul.f32 %v1168, %v2263
      %v2274 = vmul.f32 %v1172, %v2259
      %v2275 = vmul.f32 %v1174, %v2263
      %v2276 = vmul.f32 %v1178, %v2259
      %v2277 = vmul.f32 %v1180, %v2263
      %v2278 = vmul.f32 %v1184, %v2259
      %v2279 = vmul.f32 %v1186, %v2263
      %v2280 = vmul.f32 %v1190, %v2259
      %v2281 = vmul.f32 %v1192, %v2263
      %v2282 = vmul.f32 %v1196, %v2259
      %v2283 = vmul.f32 %v1198, %v2263
      %v2284 = vmul.f32 %v1202, %v2259
      %v2285 = vmul.f32 %v1204, %v2263
      %v2286 = vmul.f32 %v1208, %v2259
      %v2287 = vmul.f32 %v1210, %v2263
      %v2288 = vmul.f32 %v1214, %v2259
      %v2289 = vmul.f32 %v1216, %v2263
      %v2290 = vmul.f32 %v1220, %v2259
      %v2291 = vmul.f32 %v1222, %v2263
      %v2292 = vmul.f32 %v1226, %v2259
      %v2293 = vmul.f32 %v1228, %v2263
      %v2294 = vmul.f32 %v1232, %v2259
      %v2295 = vmul.f32 %v1234, %v2263
      %v2296 = vmul.f32 %v1238, %v2259
      %v2297 = vmul.f32 %v1240, %v2263
      %v2298 = vmul.f32 %v1244, %v2259
      %v2299 = vmul.f32 %v1246, %v2263
      %v2300 = vmul.f32 %v1250, %v2259
      %v2301 = vmul.f32 %v1252, %v2263
      %v2302 = vmul.f32 %v1256, %v2259
      %v2303 = vmul.f32 %v1258, %v2263
      %v2304 = vmul.f32 %v1262, %v2259
      %v2305 = vmul.f32 %v1264, %v2263
      %v2306 = vmul.f32 %v1268, %v2259
      %v2307 = vmul.f32 %v1270, %v2263
      %v2308 = vmul.f32 %v1274, %v2259
      %v2309 = vmul.f32 %v1276, %v2263
      %v2310 = vmul.f32 %v1280, %v2259
      %v2311 = vmul.f32 %v1282, %v2263
      %v2312 = vmul.f32 %v1286, %v2259
      %v2313 = vmul.f32 %v1288, %v2263
      %v2314 = vmul.f32 %v1292, %v2259
      %v2315 = vmul.f32 %v1294, %v2263
      %v2316 = vmul.f32 %v1298, %v2259
      %v2317 = vmul.f32 %v1300, %v2263
      %v2318 = vmul.f32 %v1304, %v2259
      %v2319 = vmul.f32 %v1306, %v2263
      %v2320 = vmul.f32 %v1310, %v2259
      %v2321 = vmul.f32 %v1312, %v2263
      %v2322 = vmul.f32 %v1316, %v2259
      %v2323 = vmul.f32 %v1318, %v2263
      %v2324 = vmul.f32 %v1322, %v2259
      %v2325 = vmul.f32 %v1324, %v2263
      %v2326 = vadd.f32 %v2194, %v2264
      %v2327 = vadd.f32 %v2195, %v2265
      %v2328 = vadd.f32 %v2196, %v2266
      %v2329 = vadd.f32 %v2197, %v2267
      %v2330 = vadd.f32 %v2198, %v2268
      %v2331 = vadd.f32 %v2199, %v2269
      %v2332 = vadd.f32 %v2200, %v2270
      %v2333 = vadd.f32 %v2201, %v2271
      %v2334 = vadd.f32 %v2202, %v2272
      %v2335 = vadd.f32 %v2203, %v2273
      %v2336 = vadd.f32 %v2204, %v2274
      %v2337 = vadd.f32 %v2205, %v2275
      %v2338 = vadd.f32 %v2206, %v2276
      %v2339 = vadd.f32 %v2207, %v2277
      %v2340 = vadd.f32 %v2208, %v2278
      %v2341 = vadd.f32 %v2209, %v2279
      %v2342 = vadd.f32 %v2210, %v2280
      %v2343 = vadd.f32 %v2211, %v2281
      %v2344 = vadd.f32 %v2212, %v2282
      %v2345 = vadd.f32 %v2213, %v2283
      %v2346 = vadd.f32 %v2214, %v2284
      %v2347 = vadd.f32 %v2215, %v2285
      %v2348 = vadd.f32 %v2216, %v2286
      %v2349 = vadd.f32 %v2217, %v2287
      %v2350 = vadd.f32 %v2218, %v2288
      %v2351 = vadd.f32 %v2219, %v2289
      %v2352 = vadd.f32 %v2220, %v2290
      %v2353 = vadd.f32 %v2221, %v2291
      %v2354 = vadd.f32 %v2222, %v2292
      %v2355 = vadd.f32 %v2223, %v2293
      %v2356 = vadd.f32 %v2224, %v2294
      %v2357 = vadd.f32 %v2225, %v2295
      %v2358 = vadd.f32 %v2226, %v2296
      %v2359 = vadd.f32 %v2227, %v2297
      %v2360 = vadd.f32 %v2228, %v2298
      %v2361 = vadd.f32 %v2229, %v2299
      %v2362 = vadd.f32 %v2230, %v2300
      %v2363 = vadd.f32 %v2231, %v2301
      %v2364 = vadd.f32 %v2232, %v2302
      %v2365 = vadd.f32 %v2233, %v2303
      %v2366 = vadd.f32 %v2234, %v2304
      %v2367 = vadd.f32 %v2235, %v2305
      %v2368 = vadd.f32 %v2236, %v2306
      %v2369 = vadd.f32 %v2237, %v2307
      %v2370 = vadd.f32 %v2238, %v2308
      %v2371 = vadd.f32 %v2239, %v2309
      %v2372 = vadd.f32 %v2240, %v2310
      %v2373 = vadd.f32 %v2241, %v2311
      %v2374 = vadd.f32 %v2242, %v2312
      %v2375 = vadd.f32 %v2243, %v2313
      %v2376 = vadd.f32 %v2244, %v2314
      %v2377 = vadd.f32 %v2245, %v2315
      %v2378 = vadd.f32 %v2246, %v2316
      %v2379 = vadd.f32 %v2247, %v2317
      %v2380 = vadd.f32 %v2248, %v2318
      %v2381 = vadd.f32 %v2249, %v2319
      %v2382 = vadd.f32 %v2250, %v2320
      %v2383 = vadd.f32 %v2251, %v2321
      %v2384 = vadd.f32 %v2252, %v2322
      %v2385 = vadd.f32 %v2253, %v2323
      %v2386 = vadd.f32 %v2254, %v2324
      %v2387 = vadd.f32 %v2255, %v2325
      %vm2390 = vcmask 1046528
      %v2391 = vrot.slane %v1148, 1
      %v2392 = vrot.slane %v1150, 1
      %v2393 = vrot.slane %v1154, 1
      %v2394 = vsel %vm2390, %v2391, %v2393
      %v2395 = vrot.slane %v1156, 1
      %v2396 = vsel %vm2390, %v2392, %v2395
      %v2397 = vrot.slane %v1160, 1
      %v2398 = vsel %vm2390, %v2393, %v2397
      %v2399 = vrot.slane %v1162, 1
      %v2400 = vsel %vm2390, %v2395, %v2399
      %v2401 = vrot.slane %v1166, 1
      %v2402 = vsel %vm2390, %v2397, %v2401
      %v2403 = vrot.slane %v1168, 1
      %v2404 = vsel %vm2390, %v2399, %v2403
      %v2405 = vrot.slane %v1172, 1
      %v2406 = vsel %vm2390, %v2401, %v2405
      %v2407 = vrot.slane %v1174, 1
      %v2408 = vsel %vm2390, %v2403, %v2407
      %v2409 = vrot.slane %v1178, 1
      %v2410 = vsel %vm2390, %v2405, %v2409
      %v2411 = vrot.slane %v1180, 1
      %v2412 = vsel %vm2390, %v2407, %v2411
      %v2413 = vrot.slane %v1184, 1
      %v2414 = vsel %vm2390, %v2409, %v2413
      %v2415 = vrot.slane %v1186, 1
      %v2416 = vsel %vm2390, %v2411, %v2415
      %v2417 = vrot.slane %v1190, 1
      %v2418 = vsel %vm2390, %v2413, %v2417
      %v2419 = vrot.slane %v1192, 1
      %v2420 = vsel %vm2390, %v2415, %v2419
      %v2421 = vrot.slane %v1196, 1
      %v2422 = vsel %vm2390, %v2417, %v2421
      %v2423 = vrot.slane %v1198, 1
      %v2424 = vsel %vm2390, %v2419, %v2423
      %v2425 = vrot.slane %v1202, 1
      %v2426 = vsel %vm2390, %v2421, %v2425
      %v2427 = vrot.slane %v1204, 1
      %v2428 = vsel %vm2390, %v2423, %v2427
      %v2429 = vrot.slane %v1208, 1
      %v2430 = vsel %vm2390, %v2425, %v2429
      %v2431 = vrot.slane %v1210, 1
      %v2432 = vsel %vm2390, %v2427, %v2431
      %v2433 = vrot.slane %v1214, 1
      %v2434 = vsel %vm2390, %v2429, %v2433
      %v2435 = vrot.slane %v1216, 1
      %v2436 = vsel %vm2390, %v2431, %v2435
      %v2437 = vrot.slane %v1220, 1
      %v2438 = vsel %vm2390, %v2433, %v2437
      %v2439 = vrot.slane %v1222, 1
      %v2440 = vsel %vm2390, %v2435, %v2439
      %v2441 = vrot.slane %v1226, 1
      %v2442 = vsel %vm2390, %v2437, %v2441
      %v2443 = vrot.slane %v1228, 1
      %v2444 = vsel %vm2390, %v2439, %v2443
      %v2445 = vrot.slane %v1232, 1
      %v2446 = vsel %vm2390, %v2441, %v2445
      %v2447 = vrot.slane %v1234, 1
      %v2448 = vsel %vm2390, %v2443, %v2447
      %v2449 = vrot.slane %v1238, 1
      %v2450 = vsel %vm2390, %v2445, %v2449
      %v2451 = vrot.slane %v1240, 1
      %v2452 = vsel %vm2390, %v2447, %v2451
      %v2453 = vrot.slane %v1244, 1
      %v2454 = vsel %vm2390, %v2449, %v2453
      %v2455 = vrot.slane %v1246, 1
      %v2456 = vsel %vm2390, %v2451, %v2455
      %v2457 = vrot.slane %v1250, 1
      %v2458 = vsel %vm2390, %v2453, %v2457
      %v2459 = vrot.slane %v1252, 1
      %v2460 = vsel %vm2390, %v2455, %v2459
      %v2461 = vrot.slane %v1256, 1
      %v2462 = vsel %vm2390, %v2457, %v2461
      %v2463 = vrot.slane %v1258, 1
      %v2464 = vsel %vm2390, %v2459, %v2463
      %v2465 = vrot.slane %v1262, 1
      %v2466 = vsel %vm2390, %v2461, %v2465
      %v2467 = vrot.slane %v1264, 1
      %v2468 = vsel %vm2390, %v2463, %v2467
      %v2469 = vrot.slane %v1268, 1
      %v2470 = vsel %vm2390, %v2465, %v2469
      %v2471 = vrot.slane %v1270, 1
      %v2472 = vsel %vm2390, %v2467, %v2471
      %v2473 = vrot.slane %v1274, 1
      %v2474 = vsel %vm2390, %v2469, %v2473
      %v2475 = vrot.slane %v1276, 1
      %v2476 = vsel %vm2390, %v2471, %v2475
      %v2477 = vrot.slane %v1280, 1
      %v2478 = vsel %vm2390, %v2473, %v2477
      %v2479 = vrot.slane %v1282, 1
      %v2480 = vsel %vm2390, %v2475, %v2479
      %v2481 = vrot.slane %v1286, 1
      %v2482 = vsel %vm2390, %v2477, %v2481
      %v2483 = vrot.slane %v1288, 1
      %v2484 = vsel %vm2390, %v2479, %v2483
      %v2485 = vrot.slane %v1292, 1
      %v2486 = vsel %vm2390, %v2481, %v2485
      %v2487 = vrot.slane %v1294, 1
      %v2488 = vsel %vm2390, %v2483, %v2487
      %v2489 = vrot.slane %v1298, 1
      %v2490 = vsel %vm2390, %v2485, %v2489
      %v2491 = vrot.slane %v1300, 1
      %v2492 = vsel %vm2390, %v2487, %v2491
      %v2493 = vrot.slane %v1304, 1
      %v2494 = vsel %vm2390, %v2489, %v2493
      %v2495 = vrot.slane %v1306, 1
      %v2496 = vsel %vm2390, %v2491, %v2495
      %v2497 = vrot.slane %v1310, 1
      %v2498 = vsel %vm2390, %v2493, %v2497
      %v2499 = vrot.slane %v1312, 1
      %v2500 = vsel %vm2390, %v2495, %v2499
      %v2501 = vrot.slane %v1316, 1
      %v2502 = vsel %vm2390, %v2497, %v2501
      %v2503 = vrot.slane %v1318, 1
      %v2504 = vsel %vm2390, %v2499, %v2503
      %v2505 = vrot.slane %v1322, 1
      %v2506 = vsel %vm2390, %v2501, %v2505
      %v2507 = vrot.slane %v1324, 1
      %v2508 = vsel %vm2390, %v2503, %v2507
      %v2509 = vrot.slane %v1328, 1
      %v2510 = vsel %vm2390, %v2505, %v2509
      %v2511 = vrot.slane %v1330, 1
      %v2512 = vsel %vm2390, %v2507, %v2511
      %v2575 = vsel %vm2390, 0.0, %v2391
      %v2576 = vsel %vm2390, 0.0, %v2392
      %v2577 = vsel %vm1792, %v2575, 0.0
      %v2578 = vsel %vm1792, %v2576, 0.0
      %v2579 = vsel %vm1793, %v2394, 0.0
      %v2580 = vsel %vm1793, %v2396, 0.0
      %v2581 = vsel %vm1794, %v2398, 0.0
      %v2582 = vsel %vm1794, %v2400, 0.0
      %v2583 = vsel %vm1795, %v2402, 0.0
      %v2584 = vsel %vm1795, %v2404, 0.0
      %v2585 = vsel %vm1796, %v2406, 0.0
      %v2586 = vsel %vm1796, %v2408, 0.0
      %v2587 = vsel %vm1797, %v2410, 0.0
      %v2588 = vsel %vm1797, %v2412, 0.0
      %v2589 = vsel %vm1798, %v2414, 0.0
      %v2590 = vsel %vm1798, %v2416, 0.0
      %v2591 = vsel %vm1799, %v2418, 0.0
      %v2592 = vsel %vm1799, %v2420, 0.0
      %v2593 = vsel %vm1800, %v2422, 0.0
      %v2594 = vsel %vm1800, %v2424, 0.0
      %v2595 = vsel %vm1801, %v2426, 0.0
      %v2596 = vsel %vm1801, %v2428, 0.0
      %v2597 = vsel %vm1802, %v2430, 0.0
      %v2598 = vsel %vm1802, %v2432, 0.0
      %v2599 = vsel %vm1803, %v2434, 0.0
      %v2600 = vsel %vm1803, %v2436, 0.0
      %v2601 = vsel %vm1804, %v2438, 0.0
      %v2602 = vsel %vm1804, %v2440, 0.0
      %v2603 = vsel %vm1805, %v2442, 0.0
      %v2604 = vsel %vm1805, %v2444, 0.0
      %v2605 = vsel %vm1806, %v2446, 0.0
      %v2606 = vsel %vm1806, %v2448, 0.0
      %v2607 = vsel %vm1807, %v2450, 0.0
      %v2608 = vsel %vm1807, %v2452, 0.0
      %v2609 = vsel %vm1808, %v2454, 0.0
      %v2610 = vsel %vm1808, %v2456, 0.0
      %v2611 = vsel %vm1809, %v2458, 0.0
      %v2612 = vsel %vm1809, %v2460, 0.0
      %v2613 = vsel %vm1810, %v2462, 0.0
      %v2614 = vsel %vm1810, %v2464, 0.0
      %v2615 = vsel %vm1811, %v2466, 0.0
      %v2616 = vsel %vm1811, %v2468, 0.0
      %v2617 = vsel %vm1812, %v2470, 0.0
      %v2618 = vsel %vm1812, %v2472, 0.0
      %v2619 = vsel %vm1813, %v2474, 0.0
      %v2620 = vsel %vm1813, %v2476, 0.0
      %v2621 = vsel %vm1814, %v2478, 0.0
      %v2622 = vsel %vm1814, %v2480, 0.0
      %v2623 = vsel %vm1815, %v2482, 0.0
      %v2624 = vsel %vm1815, %v2484, 0.0
      %v2625 = vsel %vm1816, %v2486, 0.0
      %v2626 = vsel %vm1816, %v2488, 0.0
      %v2627 = vsel %vm1817, %v2490, 0.0
      %v2628 = vsel %vm1817, %v2492, 0.0
      %v2629 = vsel %vm1818, %v2494, 0.0
      %v2630 = vsel %vm1818, %v2496, 0.0
      %v2631 = vsel %vm1819, %v2498, 0.0
      %v2632 = vsel %vm1819, %v2500, 0.0
      %v2633 = vsel %vm1820, %v2502, 0.0
      %v2634 = vsel %vm1820, %v2504, 0.0
      %v2635 = vsel %vm1821, %v2506, 0.0
      %v2636 = vsel %vm1821, %v2508, 0.0
      %v2637 = vsel %vm1822, %v2510, 0.0
      %v2638 = vsel %vm1822, %v2512, 0.0
      %v2639 = vlaneseq
      %v2640 = vshrl.u32 %v2639, 7
      %v2641 = vsub.s32 2, %v2640
      %v2642 = vrot.slane %v1338, %v2641
      %v2643 = vlaneseq
      %v2644 = vshrl.u32 %v2643, 7
      %v2645 = vsub.s32 2, %v2644
      %v2646 = vrot.slane %v1339, %v2645
      %v2647 = vmul.f32 %v2642, 0.0
      %v2648 = vmul.f32 %v2646, 0.0
      %v2649 = vmul.f32 %v2577, %v2642
      %v2650 = vmul.f32 %v2578, %v2646
      %v2651 = vmul.f32 %v2579, %v2642
      %v2652 = vmul.f32 %v2580, %v2646
      %v2653 = vmul.f32 %v2581, %v2642
      %v2654 = vmul.f32 %v2582, %v2646
      %v2655 = vmul.f32 %v2583, %v2642
      %v2656 = vmul.f32 %v2584, %v2646
      %v2657 = vmul.f32 %v2585, %v2642
      %v2658 = vmul.f32 %v2586, %v2646
      %v2659 = vmul.f32 %v2587, %v2642
      %v2660 = vmul.f32 %v2588, %v2646
      %v2661 = vmul.f32 %v2589, %v2642
      %v2662 = vmul.f32 %v2590, %v2646
      %v2663 = vmul.f32 %v2591, %v2642
      %v2664 = vmul.f32 %v2592, %v2646
      %v2665 = vmul.f32 %v2593, %v2642
      %v2666 = vmul.f32 %v2594, %v2646
      %v2667 = vmul.f32 %v2595, %v2642
      %v2668 = vmul.f32 %v2596, %v2646
      %v2669 = vmul.f32 %v2597, %v2642
      %v2670 = vmul.f32 %v2598, %v2646
      %v2671 = vmul.f32 %v2599, %v2642
      %v2672 = vmul.f32 %v2600, %v2646
      %v2673 = vmul.f32 %v2601, %v2642
      %v2674 = vmul.f32 %v2602, %v2646
      %v2675 = vmul.f32 %v2603, %v2642
      %v2676 = vmul.f32 %v2604, %v2646
      %v2677 = vmul.f32 %v2605, %v2642
      %v2678 = vmul.f32 %v2606, %v2646
      %v2679 = vmul.f32 %v2607, %v2642
      %v2680 = vmul.f32 %v2608, %v2646
      %v2681 = vmul.f32 %v2609, %v2642
      %v2682 = vmul.f32 %v2610, %v2646
      %v2683 = vmul.f32 %v2611, %v2642
      %v2684 = vmul.f32 %v2612, %v2646
      %v2685 = vmul.f32 %v2613, %v2642
      %v2686 = vmul.f32 %v2614, %v2646
      %v2687 = vmul.f32 %v2615, %v2642
      %v2688 = vmul.f32 %v2616, %v2646
      %v2689 = vmul.f32 %v2617, %v2642
      %v2690 = vmul.f32 %v2618, %v2646
      %v2691 = vmul.f32 %v2619, %v2642
      %v2692 = vmul.f32 %v2620, %v2646
      %v2693 = vmul.f32 %v2621, %v2642
      %v2694 = vmul.f32 %v2622, %v2646
      %v2695 = vmul.f32 %v2623, %v2642
      %v2696 = vmul.f32 %v2624, %v2646
      %v2697 = vmul.f32 %v2625, %v2642
      %v2698 = vmul.f32 %v2626, %v2646
      %v2699 = vmul.f32 %v2627, %v2642
      %v2700 = vmul.f32 %v2628, %v2646
      %v2701 = vmul.f32 %v2629, %v2642
      %v2702 = vmul.f32 %v2630, %v2646
      %v2703 = vmul.f32 %v2631, %v2642
      %v2704 = vmul.f32 %v2632, %v2646
      %v2705 = vmul.f32 %v2633, %v2642
      %v2706 = vmul.f32 %v2634, %v2646
      %v2707 = vmul.f32 %v2635, %v2642
      %v2708 = vmul.f32 %v2636, %v2646
      %v2709 = vmul.f32 %v2637, %v2642
      %v2710 = vmul.f32 %v2638, %v2646
      %v2711 = vadd.f32 %v2326, %v2647
      %v2712 = vadd.f32 %v2327, %v2648
      %v2713 = vadd.f32 %v2326, %v2649
      %v2714 = vadd.f32 %v2327, %v2650
      %v2715 = vadd.f32 %v2328, %v2651
      %v2716 = vadd.f32 %v2329, %v2652
      %v2717 = vadd.f32 %v2330, %v2653
      %v2718 = vadd.f32 %v2331, %v2654
      %v2719 = vadd.f32 %v2332, %v2655
      %v2720 = vadd.f32 %v2333, %v2656
      %v2721 = vadd.f32 %v2334, %v2657
      %v2722 = vadd.f32 %v2335, %v2658
      %v2723 = vadd.f32 %v2336, %v2659
      %v2724 = vadd.f32 %v2337, %v2660
      %v2725 = vadd.f32 %v2338, %v2661
      %v2726 = vadd.f32 %v2339, %v2662
      %v2727 = vadd.f32 %v2340, %v2663
      %v2728 = vadd.f32 %v2341, %v2664
      %v2729 = vadd.f32 %v2342, %v2665
      %v2730 = vadd.f32 %v2343, %v2666
      %v2731 = vadd.f32 %v2344, %v2667
      %v2732 = vadd.f32 %v2345, %v2668
      %v2733 = vadd.f32 %v2346, %v2669
      %v2734 = vadd.f32 %v2347, %v2670
      %v2735 = vadd.f32 %v2348, %v2671
      %v2736 = vadd.f32 %v2349, %v2672
      %v2737 = vadd.f32 %v2350, %v2673
      %v2738 = vadd.f32 %v2351, %v2674
      %v2739 = vadd.f32 %v2352, %v2675
      %v2740 = vadd.f32 %v2353, %v2676
      %v2741 = vadd.f32 %v2354, %v2677
      %v2742 = vadd.f32 %v2355, %v2678
      %v2743 = vadd.f32 %v2356, %v2679
      %v2744 = vadd.f32 %v2357, %v2680
      %v2745 = vadd.f32 %v2358, %v2681
      %v2746 = vadd.f32 %v2359, %v2682
      %v2747 = vadd.f32 %v2360, %v2683
      %v2748 = vadd.f32 %v2361, %v2684
      %v2749 = vadd.f32 %v2362, %v2685
      %v2750 = vadd.f32 %v2363, %v2686
      %v2751 = vadd.f32 %v2364, %v2687
      %v2752 = vadd.f32 %v2365, %v2688
      %v2753 = vadd.f32 %v2366, %v2689
      %v2754 = vadd.f32 %v2367, %v2690
      %v2755 = vadd.f32 %v2368, %v2691
      %v2756 = vadd.f32 %v2369, %v2692
      %v2757 = vadd.f32 %v2370, %v2693
      %v2758 = vadd.f32 %v2371, %v2694
      %v2759 = vadd.f32 %v2372, %v2695
      %v2760 = vadd.f32 %v2373, %v2696
      %v2761 = vadd.f32 %v2374, %v2697
      %v2762 = vadd.f32 %v2375, %v2698
      %v2763 = vadd.f32 %v2376, %v2699
      %v2764 = vadd.f32 %v2377, %v2700
      %v2765 = vadd.f32 %v2378, %v2701
      %v2766 = vadd.f32 %v2379, %v2702
      %v2767 = vadd.f32 %v2380, %v2703
      %v2768 = vadd.f32 %v2381, %v2704
      %v2769 = vadd.f32 %v2382, %v2705
      %v2770 = vadd.f32 %v2383, %v2706
      %v2771 = vadd.f32 %v2384, %v2707
      %v2772 = vadd.f32 %v2385, %v2708
      %v2773 = vadd.f32 %v2386, %v2709
      %v2774 = vadd.f32 %v2387, %v2710
      %v2777 = vrot.slane %v1328, 7
      %v2778 = vsel %vm1883, %v1998, %v2777
      %v2779 = vrot.slane %v1330, 7
      %v2780 = vsel %vm1883, %v2000, %v2779
      %v2781 = vrot.slane %v1334, 7
      %v2782 = vsel %vm1883, %v2777, %v2781
      %v2783 = vrot.slane %v1336, 7
      %v2784 = vsel %vm1883, %v2779, %v2783
      %v2789 = vsel %vm1759, %v2062, 0.0
      %v2790 = vsel %vm1759, %v2063, 0.0
      %v2791 = vsel %vm1760, %v1887, 0.0
      %v2792 = vsel %vm1760, %v1889, 0.0
      %v2793 = vsel %vm1761, %v1891, 0.0
      %v2794 = vsel %vm1761, %v1893, 0.0
      %v2795 = vsel %vm1762, %v1895, 0.0
      %v2796 = vsel %vm1762, %v1897, 0.0
      %v2797 = vsel %vm1763, %v1899, 0.0
      %v2798 = vsel %vm1763, %v1901, 0.0
      %v2799 = vsel %vm1764, %v1903, 0.0
      %v2800 = vsel %vm1764, %v1905, 0.0
      %v2801 = vsel %vm1765, %v1907, 0.0
      %v2802 = vsel %vm1765, %v1909, 0.0
      %v2803 = vsel %vm1766, %v1911, 0.0
      %v2804 = vsel %vm1766, %v1913, 0.0
      %v2805 = vsel %vm1767, %v1915, 0.0
      %v2806 = vsel %vm1767, %v1917, 0.0
      %v2807 = vsel %vm1768, %v1919, 0.0
      %v2808 = vsel %vm1768, %v1921, 0.0
      %v2809 = vsel %vm1769, %v1923, 0.0
      %v2810 = vsel %vm1769, %v1925, 0.0
      %v2811 = vsel %vm1770, %v1927, 0.0
      %v2812 = vsel %vm1770, %v1929, 0.0
      %v2813 = vsel %vm1771, %v1931, 0.0
      %v2814 = vsel %vm1771, %v1933, 0.0
      %v2815 = vsel %vm1772, %v1935, 0.0
      %v2816 = vsel %vm1772, %v1937, 0.0
      %v2817 = vsel %vm1773, %v1939, 0.0
      %v2818 = vsel %vm1773, %v1941, 0.0
      %v2819 = vsel %vm1774, %v1943, 0.0
      %v2820 = vsel %vm1774, %v1945, 0.0
      %v2821 = vsel %vm1775, %v1947, 0.0
      %v2822 = vsel %vm1775, %v1949, 0.0
      %v2823 = vsel %vm1776, %v1951, 0.0
      %v2824 = vsel %vm1776, %v1953, 0.0
      %v2825 = vsel %vm1777, %v1955, 0.0
      %v2826 = vsel %vm1777, %v1957, 0.0
      %v2827 = vsel %vm1778, %v1959, 0.0
      %v2828 = vsel %vm1778, %v1961, 0.0
      %v2829 = vsel %vm1779, %v1963, 0.0
      %v2830 = vsel %vm1779, %v1965, 0.0
      %v2831 = vsel %vm1780, %v1967, 0.0
      %v2832 = vsel %vm1780, %v1969, 0.0
      %v2833 = vsel %vm1781, %v1971, 0.0
      %v2834 = vsel %vm1781, %v1973, 0.0
      %v2835 = vsel %vm1782, %v1975, 0.0
      %v2836 = vsel %vm1782, %v1977, 0.0
      %v2837 = vsel %vm1783, %v1979, 0.0
      %v2838 = vsel %vm1783, %v1981, 0.0
      %v2839 = vsel %vm1784, %v1983, 0.0
      %v2840 = vsel %vm1784, %v1985, 0.0
      %v2841 = vsel %vm1785, %v1987, 0.0
      %v2842 = vsel %vm1785, %v1989, 0.0
      %v2843 = vsel %vm1786, %v1991, 0.0
      %v2844 = vsel %vm1786, %v1993, 0.0
      %v2845 = vsel %vm1787, %v1995, 0.0
      %v2846 = vsel %vm1787, %v1997, 0.0
      %v2847 = vsel %vm1788, %v1999, 0.0
      %v2848 = vsel %vm1788, %v2001, 0.0
      %v2849 = vsel %vm1789, %v2778, 0.0
      %v2850 = vsel %vm1789, %v2780, 0.0
      %v2851 = vsel %vm1790, %v2782, 0.0
      %v2852 = vsel %vm1790, %v2784, 0.0
      %v2853 = vlaneseq
      %v2854 = vshrl.u32 %v2853, 7
      %v2855 = vsub.s32 3, %v2854
      %v2856 = vrot.slane %v1338, %v2855
      %v2857 = vlaneseq
      %v2858 = vshrl.u32 %v2857, 7
      %v2859 = vsub.s32 3, %v2858
      %v2860 = vrot.slane %v1339, %v2859
      %v2861 = vmul.f32 %v2789, %v2856
      %v2862 = vmul.f32 %v2790, %v2860
      %v2863 = vmul.f32 %v2791, %v2856
      %v2864 = vmul.f32 %v2792, %v2860
      %v2865 = vmul.f32 %v2793, %v2856
      %v2866 = vmul.f32 %v2794, %v2860
      %v2867 = vmul.f32 %v2795, %v2856
      %v2868 = vmul.f32 %v2796, %v2860
      %v2869 = vmul.f32 %v2797, %v2856
      %v2870 = vmul.f32 %v2798, %v2860
      %v2871 = vmul.f32 %v2799, %v2856
      %v2872 = vmul.f32 %v2800, %v2860
      %v2873 = vmul.f32 %v2801, %v2856
      %v2874 = vmul.f32 %v2802, %v2860
      %v2875 = vmul.f32 %v2803, %v2856
      %v2876 = vmul.f32 %v2804, %v2860
      %v2877 = vmul.f32 %v2805, %v2856
      %v2878 = vmul.f32 %v2806, %v2860
      %v2879 = vmul.f32 %v2807, %v2856
      %v2880 = vmul.f32 %v2808, %v2860
      %v2881 = vmul.f32 %v2809, %v2856
      %v2882 = vmul.f32 %v2810, %v2860
      %v2883 = vmul.f32 %v2811, %v2856
      %v2884 = vmul.f32 %v2812, %v2860
      %v2885 = vmul.f32 %v2813, %v2856
      %v2886 = vmul.f32 %v2814, %v2860
      %v2887 = vmul.f32 %v2815, %v2856
      %v2888 = vmul.f32 %v2816, %v2860
      %v2889 = vmul.f32 %v2817, %v2856
      %v2890 = vmul.f32 %v2818, %v2860
      %v2891 = vmul.f32 %v2819, %v2856
      %v2892 = vmul.f32 %v2820, %v2860
      %v2893 = vmul.f32 %v2821, %v2856
      %v2894 = vmul.f32 %v2822, %v2860
      %v2895 = vmul.f32 %v2823, %v2856
      %v2896 = vmul.f32 %v2824, %v2860
      %v2897 = vmul.f32 %v2825, %v2856
      %v2898 = vmul.f32 %v2826, %v2860
      %v2899 = vmul.f32 %v2827, %v2856
      %v2900 = vmul.f32 %v2828, %v2860
      %v2901 = vmul.f32 %v2829, %v2856
      %v2902 = vmul.f32 %v2830, %v2860
      %v2903 = vmul.f32 %v2831, %v2856
      %v2904 = vmul.f32 %v2832, %v2860
      %v2905 = vmul.f32 %v2833, %v2856
      %v2906 = vmul.f32 %v2834, %v2860
      %v2907 = vmul.f32 %v2835, %v2856
      %v2908 = vmul.f32 %v2836, %v2860
      %v2909 = vmul.f32 %v2837, %v2856
      %v2910 = vmul.f32 %v2838, %v2860
      %v2911 = vmul.f32 %v2839, %v2856
      %v2912 = vmul.f32 %v2840, %v2860
      %v2913 = vmul.f32 %v2841, %v2856
      %v2914 = vmul.f32 %v2842, %v2860
      %v2915 = vmul.f32 %v2843, %v2856
      %v2916 = vmul.f32 %v2844, %v2860
      %v2917 = vmul.f32 %v2845, %v2856
      %v2918 = vmul.f32 %v2846, %v2860
      %v2919 = vmul.f32 %v2847, %v2856
      %v2920 = vmul.f32 %v2848, %v2860
      %v2921 = vmul.f32 %v2849, %v2856
      %v2922 = vmul.f32 %v2850, %v2860
      %v2923 = vmul.f32 %v2851, %v2856
      %v2924 = vmul.f32 %v2852, %v2860
      %v2925 = vadd.f32 %v2711, %v2861
      %v2926 = vadd.f32 %v2712, %v2862
      %v2927 = vadd.f32 %v2713, %v2863
      %v2928 = vadd.f32 %v2714, %v2864
      %v2929 = vadd.f32 %v2715, %v2865
      %v2930 = vadd.f32 %v2716, %v2866
      %v2931 = vadd.f32 %v2717, %v2867
      %v2932 = vadd.f32 %v2718, %v2868
      %v2933 = vadd.f32 %v2719, %v2869
      %v2934 = vadd.f32 %v2720, %v2870
      %v2935 = vadd.f32 %v2721, %v2871
      %v2936 = vadd.f32 %v2722, %v2872
      %v2937 = vadd.f32 %v2723, %v2873
      %v2938 = vadd.f32 %v2724, %v2874
      %v2939 = vadd.f32 %v2725, %v2875
      %v2940 = vadd.f32 %v2726, %v2876
      %v2941 = vadd.f32 %v2727, %v2877
      %v2942 = vadd.f32 %v2728, %v2878
      %v2943 = vadd.f32 %v2729, %v2879
      %v2944 = vadd.f32 %v2730, %v2880
      %v2945 = vadd.f32 %v2731, %v2881
      %v2946 = vadd.f32 %v2732, %v2882
      %v2947 = vadd.f32 %v2733, %v2883
      %v2948 = vadd.f32 %v2734, %v2884
      %v2949 = vadd.f32 %v2735, %v2885
      %v2950 = vadd.f32 %v2736, %v2886
      %v2951 = vadd.f32 %v2737, %v2887
      %v2952 = vadd.f32 %v2738, %v2888
      %v2953 = vadd.f32 %v2739, %v2889
      %v2954 = vadd.f32 %v2740, %v2890
      %v2955 = vadd.f32 %v2741, %v2891
      %v2956 = vadd.f32 %v2742, %v2892
      %v2957 = vadd.f32 %v2743, %v2893
      %v2958 = vadd.f32 %v2744, %v2894
      %v2959 = vadd.f32 %v2745, %v2895
      %v2960 = vadd.f32 %v2746, %v2896
      %v2961 = vadd.f32 %v2747, %v2897
      %v2962 = vadd.f32 %v2748, %v2898
      %v2963 = vadd.f32 %v2749, %v2899
      %v2964 = vadd.f32 %v2750, %v2900
      %v2965 = vadd.f32 %v2751, %v2901
      %v2966 = vadd.f32 %v2752, %v2902
      %v2967 = vadd.f32 %v2753, %v2903
      %v2968 = vadd.f32 %v2754, %v2904
      %v2969 = vadd.f32 %v2755, %v2905
      %v2970 = vadd.f32 %v2756, %v2906
      %v2971 = vadd.f32 %v2757, %v2907
      %v2972 = vadd.f32 %v2758, %v2908
      %v2973 = vadd.f32 %v2759, %v2909
      %v2974 = vadd.f32 %v2760, %v2910
      %v2975 = vadd.f32 %v2761, %v2911
      %v2976 = vadd.f32 %v2762, %v2912
      %v2977 = vadd.f32 %v2763, %v2913
      %v2978 = vadd.f32 %v2764, %v2914
      %v2979 = vadd.f32 %v2765, %v2915
      %v2980 = vadd.f32 %v2766, %v2916
      %v2981 = vadd.f32 %v2767, %v2917
      %v2982 = vadd.f32 %v2768, %v2918
      %v2983 = vadd.f32 %v2769, %v2919
      %v2984 = vadd.f32 %v2770, %v2920
      %v2985 = vadd.f32 %v2771, %v2921
      %v2986 = vadd.f32 %v2772, %v2922
      %v2987 = vadd.f32 %v2773, %v2923
      %v2988 = vadd.f32 %v2774, %v2924
      %v2989 = vlaneseq
      %v2990 = vshrl.u32 %v2989, 7
      %v2991 = vsub.s32 4, %v2990
      %v2992 = vrot.slane %v1338, %v2991
      %v2993 = vlaneseq
      %v2994 = vshrl.u32 %v2993, 7
      %v2995 = vsub.s32 4, %v2994
      %v2996 = vrot.slane %v1339, %v2995
      %v2997 = vmul.f32 %v1148, %v2992
      %v2998 = vmul.f32 %v1150, %v2996
      %v2999 = vmul.f32 %v1154, %v2992
      %v3000 = vmul.f32 %v1156, %v2996
      %v3001 = vmul.f32 %v1160, %v2992
      %v3002 = vmul.f32 %v1162, %v2996
      %v3003 = vmul.f32 %v1166, %v2992
      %v3004 = vmul.f32 %v1168, %v2996
      %v3005 = vmul.f32 %v1172, %v2992
      %v3006 = vmul.f32 %v1174, %v2996
      %v3007 = vmul.f32 %v1178, %v2992
      %v3008 = vmul.f32 %v1180, %v2996
      %v3009 = vmul.f32 %v1184, %v2992
      %v3010 = vmul.f32 %v1186, %v2996
      %v3011 = vmul.f32 %v1190, %v2992
      %v3012 = vmul.f32 %v1192, %v2996
      %v3013 = vmul.f32 %v1196, %v2992
      %v3014 = vmul.f32 %v1198, %v2996
      %v3015 = vmul.f32 %v1202, %v2992
      %v3016 = vmul.f32 %v1204, %v2996
      %v3017 = vmul.f32 %v1208, %v2992
      %v3018 = vmul.f32 %v1210, %v2996
      %v3019 = vmul.f32 %v1214, %v2992
      %v3020 = vmul.f32 %v1216, %v2996
      %v3021 = vmul.f32 %v1220, %v2992
      %v3022 = vmul.f32 %v1222, %v2996
      %v3023 = vmul.f32 %v1226, %v2992
      %v3024 = vmul.f32 %v1228, %v2996
      %v3025 = vmul.f32 %v1232, %v2992
      %v3026 = vmul.f32 %v1234, %v2996
      %v3027 = vmul.f32 %v1238, %v2992
      %v3028 = vmul.f32 %v1240, %v2996
      %v3029 = vmul.f32 %v1244, %v2992
      %v3030 = vmul.f32 %v1246, %v2996
      %v3031 = vmul.f32 %v1250, %v2992
      %v3032 = vmul.f32 %v1252, %v2996
      %v3033 = vmul.f32 %v1256, %v2992
      %v3034 = vmul.f32 %v1258, %v2996
      %v3035 = vmul.f32 %v1262, %v2992
      %v3036 = vmul.f32 %v1264, %v2996
      %v3037 = vmul.f32 %v1268, %v2992
      %v3038 = vmul.f32 %v1270, %v2996
      %v3039 = vmul.f32 %v1274, %v2992
      %v3040 = vmul.f32 %v1276, %v2996
      %v3041 = vmul.f32 %v1280, %v2992
      %v3042 = vmul.f32 %v1282, %v2996
      %v3043 = vmul.f32 %v1286, %v2992
      %v3044 = vmul.f32 %v1288, %v2996
      %v3045 = vmul.f32 %v1292, %v2992
      %v3046 = vmul.f32 %v1294, %v2996
      %v3047 = vmul.f32 %v1298, %v2992
      %v3048 = vmul.f32 %v1300, %v2996
      %v3049 = vmul.f32 %v1304, %v2992
      %v3050 = vmul.f32 %v1306, %v2996
      %v3051 = vmul.f32 %v1310, %v2992
      %v3052 = vmul.f32 %v1312, %v2996
      %v3053 = vmul.f32 %v1316, %v2992
      %v3054 = vmul.f32 %v1318, %v2996
      %v3055 = vmul.f32 %v1322, %v2992
      %v3056 = vmul.f32 %v1324, %v2996
      %v3057 = vmul.f32 %v1328, %v2992
      %v3058 = vmul.f32 %v1330, %v2996
      %v3059 = vmul.f32 %v1334, %v2992
      %v3060 = vmul.f32 %v1336, %v2996
      %v3061 = vadd.f32 %v2925, %v2997
      %v3062 = vadd.f32 %v2926, %v2998
      %v3063 = vadd.f32 %v2927, %v2999
      %v3064 = vadd.f32 %v2928, %v3000
      %v3065 = vadd.f32 %v2929, %v3001
      %v3066 = vadd.f32 %v2930, %v3002
      %v3067 = vadd.f32 %v2931, %v3003
      %v3068 = vadd.f32 %v2932, %v3004
      %v3069 = vadd.f32 %v2933, %v3005
      %v3070 = vadd.f32 %v2934, %v3006
      %v3071 = vadd.f32 %v2935, %v3007
      %v3072 = vadd.f32 %v2936, %v3008
      %v3073 = vadd.f32 %v2937, %v3009
      %v3074 = vadd.f32 %v2938, %v3010
      %v3075 = vadd.f32 %v2939, %v3011
      %v3076 = vadd.f32 %v2940, %v3012
      %v3077 = vadd.f32 %v2941, %v3013
      %v3078 = vadd.f32 %v2942, %v3014
      %v3079 = vadd.f32 %v2943, %v3015
      %v3080 = vadd.f32 %v2944, %v3016
      %v3081 = vadd.f32 %v2945, %v3017
      %v3082 = vadd.f32 %v2946, %v3018
      %v3083 = vadd.f32 %v2947, %v3019
      %v3084 = vadd.f32 %v2948, %v3020
      %v3085 = vadd.f32 %v2949, %v3021
      %v3086 = vadd.f32 %v2950, %v3022
      %v3087 = vadd.f32 %v2951, %v3023
      %v3088 = vadd.f32 %v2952, %v3024
      %v3089 = vadd.f32 %v2953, %v3025
      %v3090 = vadd.f32 %v2954, %v3026
      %v3091 = vadd.f32 %v2955, %v3027
      %v3092 = vadd.f32 %v2956, %v3028
      %v3093 = vadd.f32 %v2957, %v3029
      %v3094 = vadd.f32 %v2958, %v3030
      %v3095 = vadd.f32 %v2959, %v3031
      %v3096 = vadd.f32 %v2960, %v3032
      %v3097 = vadd.f32 %v2961, %v3033
      %v3098 = vadd.f32 %v2962, %v3034
      %v3099 = vadd.f32 %v2963, %v3035
      %v3100 = vadd.f32 %v2964, %v3036
      %v3101 = vadd.f32 %v2965, %v3037
      %v3102 = vadd.f32 %v2966, %v3038
      %v3103 = vadd.f32 %v2967, %v3039
      %v3104 = vadd.f32 %v2968, %v3040
      %v3105 = vadd.f32 %v2969, %v3041
      %v3106 = vadd.f32 %v2970, %v3042
      %v3107 = vadd.f32 %v2971, %v3043
      %v3108 = vadd.f32 %v2972, %v3044
      %v3109 = vadd.f32 %v2973, %v3045
      %v3110 = vadd.f32 %v2974, %v3046
      %v3111 = vadd.f32 %v2975, %v3047
      %v3112 = vadd.f32 %v2976, %v3048
      %v3113 = vadd.f32 %v2977, %v3049
      %v3114 = vadd.f32 %v2978, %v3050
      %v3115 = vadd.f32 %v2979, %v3051
      %v3116 = vadd.f32 %v2980, %v3052
      %v3117 = vadd.f32 %v2981, %v3053
      %v3118 = vadd.f32 %v2982, %v3054
      %v3119 = vadd.f32 %v2983, %v3055
      %v3120 = vadd.f32 %v2984, %v3056
      %v3121 = vadd.f32 %v2985, %v3057
      %v3122 = vadd.f32 %v2986, %v3058
      %v3123 = vadd.f32 %v2987, %v3059
      %v3124 = vadd.f32 %v2988, %v3060
      %v3125 = vrot.slane %v1334, 1
      %v3126 = vsel %vm2390, %v2509, %v3125
      %v3127 = vrot.slane %v1336, 1
      %v3128 = vsel %vm2390, %v2511, %v3127
      %v3133 = vsel %vm2390, %v3125, 0.0
      %v3134 = vsel %vm2390, %v3127, 0.0
      %v3135 = vsel %vm1791, %v2394, 0.0
      %v3136 = vsel %vm1791, %v2396, 0.0
      %v3137 = vsel %vm1792, %v2398, 0.0
      %v3138 = vsel %vm1792, %v2400, 0.0
      %v3139 = vsel %vm1793, %v2402, 0.0
      %v3140 = vsel %vm1793, %v2404, 0.0
      %v3141 = vsel %vm1794, %v2406, 0.0
      %v3142 = vsel %vm1794, %v2408, 0.0
      %v3143 = vsel %vm1795, %v2410, 0.0
      %v3144 = vsel %vm1795, %v2412, 0.0
      %v3145 = vsel %vm1796, %v2414, 0.0
      %v3146 = vsel %vm1796, %v2416, 0.0
      %v3147 = vsel %vm1797, %v2418, 0.0
      %v3148 = vsel %vm1797, %v2420, 0.0
      %v3149 = vsel %vm1798, %v2422, 0.0
      %v3150 = vsel %vm1798, %v2424, 0.0
      %v3151 = vsel %vm1799, %v2426, 0.0
      %v3152 = vsel %vm1799, %v2428, 0.0
      %v3153 = vsel %vm1800, %v2430, 0.0
      %v3154 = vsel %vm1800, %v2432, 0.0
      %v3155 = vsel %vm1801, %v2434, 0.0
      %v3156 = vsel %vm1801, %v2436, 0.0
      %v3157 = vsel %vm1802, %v2438, 0.0
      %v3158 = vsel %vm1802, %v2440, 0.0
      %v3159 = vsel %vm1803, %v2442, 0.0
      %v3160 = vsel %vm1803, %v2444, 0.0
      %v3161 = vsel %vm1804, %v2446, 0.0
      %v3162 = vsel %vm1804, %v2448, 0.0
      %v3163 = vsel %vm1805, %v2450, 0.0
      %v3164 = vsel %vm1805, %v2452, 0.0
      %v3165 = vsel %vm1806, %v2454, 0.0
      %v3166 = vsel %vm1806, %v2456, 0.0
      %v3167 = vsel %vm1807, %v2458, 0.0
      %v3168 = vsel %vm1807, %v2460, 0.0
      %v3169 = vsel %vm1808, %v2462, 0.0
      %v3170 = vsel %vm1808, %v2464, 0.0
      %v3171 = vsel %vm1809, %v2466, 0.0
      %v3172 = vsel %vm1809, %v2468, 0.0
      %v3173 = vsel %vm1810, %v2470, 0.0
      %v3174 = vsel %vm1810, %v2472, 0.0
      %v3175 = vsel %vm1811, %v2474, 0.0
      %v3176 = vsel %vm1811, %v2476, 0.0
      %v3177 = vsel %vm1812, %v2478, 0.0
      %v3178 = vsel %vm1812, %v2480, 0.0
      %v3179 = vsel %vm1813, %v2482, 0.0
      %v3180 = vsel %vm1813, %v2484, 0.0
      %v3181 = vsel %vm1814, %v2486, 0.0
      %v3182 = vsel %vm1814, %v2488, 0.0
      %v3183 = vsel %vm1815, %v2490, 0.0
      %v3184 = vsel %vm1815, %v2492, 0.0
      %v3185 = vsel %vm1816, %v2494, 0.0
      %v3186 = vsel %vm1816, %v2496, 0.0
      %v3187 = vsel %vm1817, %v2498, 0.0
      %v3188 = vsel %vm1817, %v2500, 0.0
      %v3189 = vsel %vm1818, %v2502, 0.0
      %v3190 = vsel %vm1818, %v2504, 0.0
      %v3191 = vsel %vm1819, %v2506, 0.0
      %v3192 = vsel %vm1819, %v2508, 0.0
      %v3193 = vsel %vm1820, %v2510, 0.0
      %v3194 = vsel %vm1820, %v2512, 0.0
      %v3195 = vsel %vm1821, %v3126, 0.0
      %v3196 = vsel %vm1821, %v3128, 0.0
      %v3197 = vsel %vm1822, %v3133, 0.0
      %v3198 = vsel %vm1822, %v3134, 0.0
      %v3199 = vlaneseq
      %v3200 = vshrl.u32 %v3199, 7
      %v3201 = vsub.s32 5, %v3200
      %v3202 = vrot.slane %v1338, %v3201
      %v3203 = vlaneseq
      %v3204 = vshrl.u32 %v3203, 7
      %v3205 = vsub.s32 5, %v3204
      %v3206 = vrot.slane %v1339, %v3205
      %v3207 = vmul.f32 %v3135, %v3202
      %v3208 = vmul.f32 %v3136, %v3206
      %v3209 = vmul.f32 %v3137, %v3202
      %v3210 = vmul.f32 %v3138, %v3206
      %v3211 = vmul.f32 %v3139, %v3202
      %v3212 = vmul.f32 %v3140, %v3206
      %v3213 = vmul.f32 %v3141, %v3202
      %v3214 = vmul.f32 %v3142, %v3206
      %v3215 = vmul.f32 %v3143, %v3202
      %v3216 = vmul.f32 %v3144, %v3206
      %v3217 = vmul.f32 %v3145, %v3202
      %v3218 = vmul.f32 %v3146, %v3206
      %v3219 = vmul.f32 %v3147, %v3202
      %v3220 = vmul.f32 %v3148, %v3206
      %v3221 = vmul.f32 %v3149, %v3202
      %v3222 = vmul.f32 %v3150, %v3206
      %v3223 = vmul.f32 %v3151, %v3202
      %v3224 = vmul.f32 %v3152, %v3206
      %v3225 = vmul.f32 %v3153, %v3202
      %v3226 = vmul.f32 %v3154, %v3206
      %v3227 = vmul.f32 %v3155, %v3202
      %v3228 = vmul.f32 %v3156, %v3206
      %v3229 = vmul.f32 %v3157, %v3202
      %v3230 = vmul.f32 %v3158, %v3206
      %v3231 = vmul.f32 %v3159, %v3202
      %v3232 = vmul.f32 %v3160, %v3206
      %v3233 = vmul.f32 %v3161, %v3202
      %v3234 = vmul.f32 %v3162, %v3206
      %v3235 = vmul.f32 %v3163, %v3202
      %v3236 = vmul.f32 %v3164, %v3206
      %v3237 = vmul.f32 %v3165, %v3202
      %v3238 = vmul.f32 %v3166, %v3206
      %v3239 = vmul.f32 %v3167, %v3202
      %v3240 = vmul.f32 %v3168, %v3206
      %v3241 = vmul.f32 %v3169, %v3202
      %v3242 = vmul.f32 %v3170, %v3206
      %v3243 = vmul.f32 %v3171, %v3202
      %v3244 = vmul.f32 %v3172, %v3206
      %v3245 = vmul.f32 %v3173, %v3202
      %v3246 = vmul.f32 %v3174, %v3206
      %v3247 = vmul.f32 %v3175, %v3202
      %v3248 = vmul.f32 %v3176, %v3206
      %v3249 = vmul.f32 %v3177, %v3202
      %v3250 = vmul.f32 %v3178, %v3206
      %v3251 = vmul.f32 %v3179, %v3202
      %v3252 = vmul.f32 %v3180, %v3206
      %v3253 = vmul.f32 %v3181, %v3202
      %v3254 = vmul.f32 %v3182, %v3206
      %v3255 = vmul.f32 %v3183, %v3202
      %v3256 = vmul.f32 %v3184, %v3206
      %v3257 = vmul.f32 %v3185, %v3202
      %v3258 = vmul.f32 %v3186, %v3206
      %v3259 = vmul.f32 %v3187, %v3202
      %v3260 = vmul.f32 %v3188, %v3206
      %v3261 = vmul.f32 %v3189, %v3202
      %v3262 = vmul.f32 %v3190, %v3206
      %v3263 = vmul.f32 %v3191, %v3202
      %v3264 = vmul.f32 %v3192, %v3206
      %v3265 = vmul.f32 %v3193, %v3202
      %v3266 = vmul.f32 %v3194, %v3206
      %v3267 = vmul.f32 %v3195, %v3202
      %v3268 = vmul.f32 %v3196, %v3206
      %v3269 = vmul.f32 %v3197, %v3202
      %v3270 = vmul.f32 %v3198, %v3206
      %v3271 = vadd.f32 %v3061, %v3207
      %v3272 = vadd.f32 %v3062, %v3208
      %v3273 = vadd.f32 %v3063, %v3209
      %v3274 = vadd.f32 %v3064, %v3210
      %v3275 = vadd.f32 %v3065, %v3211
      %v3276 = vadd.f32 %v3066, %v3212
      %v3277 = vadd.f32 %v3067, %v3213
      %v3278 = vadd.f32 %v3068, %v3214
      %v3279 = vadd.f32 %v3069, %v3215
      %v3280 = vadd.f32 %v3070, %v3216
      %v3281 = vadd.f32 %v3071, %v3217
      %v3282 = vadd.f32 %v3072, %v3218
      %v3283 = vadd.f32 %v3073, %v3219
      %v3284 = vadd.f32 %v3074, %v3220
      %v3285 = vadd.f32 %v3075, %v3221
      %v3286 = vadd.f32 %v3076, %v3222
      %v3287 = vadd.f32 %v3077, %v3223
      %v3288 = vadd.f32 %v3078, %v3224
      %v3289 = vadd.f32 %v3079, %v3225
      %v3290 = vadd.f32 %v3080, %v3226
      %v3291 = vadd.f32 %v3081, %v3227
      %v3292 = vadd.f32 %v3082, %v3228
      %v3293 = vadd.f32 %v3083, %v3229
      %v3294 = vadd.f32 %v3084, %v3230
      %v3295 = vadd.f32 %v3085, %v3231
      %v3296 = vadd.f32 %v3086, %v3232
      %v3297 = vadd.f32 %v3087, %v3233
      %v3298 = vadd.f32 %v3088, %v3234
      %v3299 = vadd.f32 %v3089, %v3235
      %v3300 = vadd.f32 %v3090, %v3236
      %v3301 = vadd.f32 %v3091, %v3237
      %v3302 = vadd.f32 %v3092, %v3238
      %v3303 = vadd.f32 %v3093, %v3239
      %v3304 = vadd.f32 %v3094, %v3240
      %v3305 = vadd.f32 %v3095, %v3241
      %v3306 = vadd.f32 %v3096, %v3242
      %v3307 = vadd.f32 %v3097, %v3243
      %v3308 = vadd.f32 %v3098, %v3244
      %v3309 = vadd.f32 %v3099, %v3245
      %v3310 = vadd.f32 %v3100, %v3246
      %v3311 = vadd.f32 %v3101, %v3247
      %v3312 = vadd.f32 %v3102, %v3248
      %v3313 = vadd.f32 %v3103, %v3249
      %v3314 = vadd.f32 %v3104, %v3250
      %v3315 = vadd.f32 %v3105, %v3251
      %v3316 = vadd.f32 %v3106, %v3252
      %v3317 = vadd.f32 %v3107, %v3253
      %v3318 = vadd.f32 %v3108, %v3254
      %v3319 = vadd.f32 %v3109, %v3255
      %v3320 = vadd.f32 %v3110, %v3256
      %v3321 = vadd.f32 %v3111, %v3257
      %v3322 = vadd.f32 %v3112, %v3258
      %v3323 = vadd.f32 %v3113, %v3259
      %v3324 = vadd.f32 %v3114, %v3260
      %v3325 = vadd.f32 %v3115, %v3261
      %v3326 = vadd.f32 %v3116, %v3262
      %v3327 = vadd.f32 %v3117, %v3263
      %v3328 = vadd.f32 %v3118, %v3264
      %v3329 = vadd.f32 %v3119, %v3265
      %v3330 = vadd.f32 %v3120, %v3266
      %v3331 = vadd.f32 %v3121, %v3267
      %v3332 = vadd.f32 %v3122, %v3268
      %v3333 = vadd.f32 %v3123, %v3269
      %v3334 = vadd.f32 %v3124, %v3270
      %v3337 = vsel %vm1883, %v2781, 0.0
      %v3338 = vsel %vm1883, %v2783, 0.0
      %v3339 = vsel %vm1759, %v1891, 0.0
      %v3340 = vsel %vm1759, %v1893, 0.0
      %v3341 = vsel %vm1760, %v1895, 0.0
      %v3342 = vsel %vm1760, %v1897, 0.0
      %v3343 = vsel %vm1761, %v1899, 0.0
      %v3344 = vsel %vm1761, %v1901, 0.0
      %v3345 = vsel %vm1762, %v1903, 0.0
      %v3346 = vsel %vm1762, %v1905, 0.0
      %v3347 = vsel %vm1763, %v1907, 0.0
      %v3348 = vsel %vm1763, %v1909, 0.0
      %v3349 = vsel %vm1764, %v1911, 0.0
      %v3350 = vsel %vm1764, %v1913, 0.0
      %v3351 = vsel %vm1765, %v1915, 0.0
      %v3352 = vsel %vm1765, %v1917, 0.0
      %v3353 = vsel %vm1766, %v1919, 0.0
      %v3354 = vsel %vm1766, %v1921, 0.0
      %v3355 = vsel %vm1767, %v1923, 0.0
      %v3356 = vsel %vm1767, %v1925, 0.0
      %v3357 = vsel %vm1768, %v1927, 0.0
      %v3358 = vsel %vm1768, %v1929, 0.0
      %v3359 = vsel %vm1769, %v1931, 0.0
      %v3360 = vsel %vm1769, %v1933, 0.0
      %v3361 = vsel %vm1770, %v1935, 0.0
      %v3362 = vsel %vm1770, %v1937, 0.0
      %v3363 = vsel %vm1771, %v1939, 0.0
      %v3364 = vsel %vm1771, %v1941, 0.0
      %v3365 = vsel %vm1772, %v1943, 0.0
      %v3366 = vsel %vm1772, %v1945, 0.0
      %v3367 = vsel %vm1773, %v1947, 0.0
      %v3368 = vsel %vm1773, %v1949, 0.0
      %v3369 = vsel %vm1774, %v1951, 0.0
      %v3370 = vsel %vm1774, %v1953, 0.0
      %v3371 = vsel %vm1775, %v1955, 0.0
      %v3372 = vsel %vm1775, %v1957, 0.0
      %v3373 = vsel %vm1776, %v1959, 0.0
      %v3374 = vsel %vm1776, %v1961, 0.0
      %v3375 = vsel %vm1777, %v1963, 0.0
      %v3376 = vsel %vm1777, %v1965, 0.0
      %v3377 = vsel %vm1778, %v1967, 0.0
      %v3378 = vsel %vm1778, %v1969, 0.0
      %v3379 = vsel %vm1779, %v1971, 0.0
      %v3380 = vsel %vm1779, %v1973, 0.0
      %v3381 = vsel %vm1780, %v1975, 0.0
      %v3382 = vsel %vm1780, %v1977, 0.0
      %v3383 = vsel %vm1781, %v1979, 0.0
      %v3384 = vsel %vm1781, %v1981, 0.0
      %v3385 = vsel %vm1782, %v1983, 0.0
      %v3386 = vsel %vm1782, %v1985, 0.0
      %v3387 = vsel %vm1783, %v1987, 0.0
      %v3388 = vsel %vm1783, %v1989, 0.0
      %v3389 = vsel %vm1784, %v1991, 0.0
      %v3390 = vsel %vm1784, %v1993, 0.0
      %v3391 = vsel %vm1785, %v1995, 0.0
      %v3392 = vsel %vm1785, %v1997, 0.0
      %v3393 = vsel %vm1786, %v1999, 0.0
      %v3394 = vsel %vm1786, %v2001, 0.0
      %v3395 = vsel %vm1787, %v2778, 0.0
      %v3396 = vsel %vm1787, %v2780, 0.0
      %v3397 = vsel %vm1788, %v2782, 0.0
      %v3398 = vsel %vm1788, %v2784, 0.0
      %v3399 = vsel %vm1789, %v3337, 0.0
      %v3400 = vsel %vm1789, %v3338, 0.0
      %v3401 = vlaneseq
      %v3402 = vshrl.u32 %v3401, 7
      %v3403 = vsub.s32 6, %v3402
      %v3404 = vrot.slane %v1338, %v3403
      %v3405 = vlaneseq
      %v3406 = vshrl.u32 %v3405, 7
      %v3407 = vsub.s32 6, %v3406
      %v3408 = vrot.slane %v1339, %v3407
      %v3409 = vmul.f32 %v3339, %v3404
      %v3410 = vmul.f32 %v3340, %v3408
      %v3411 = vmul.f32 %v3341, %v3404
      %v3412 = vmul.f32 %v3342, %v3408
      %v3413 = vmul.f32 %v3343, %v3404
      %v3414 = vmul.f32 %v3344, %v3408
      %v3415 = vmul.f32 %v3345, %v3404
      %v3416 = vmul.f32 %v3346, %v3408
      %v3417 = vmul.f32 %v3347, %v3404
      %v3418 = vmul.f32 %v3348, %v3408
      %v3419 = vmul.f32 %v3349, %v3404
      %v3420 = vmul.f32 %v3350, %v3408
      %v3421 = vmul.f32 %v3351, %v3404
      %v3422 = vmul.f32 %v3352, %v3408
      %v3423 = vmul.f32 %v3353, %v3404
      %v3424 = vmul.f32 %v3354, %v3408
      %v3425 = vmul.f32 %v3355, %v3404
      %v3426 = vmul.f32 %v3356, %v3408
      %v3427 = vmul.f32 %v3357, %v3404
      %v3428 = vmul.f32 %v3358, %v3408
      %v3429 = vmul.f32 %v3359, %v3404
      %v3430 = vmul.f32 %v3360, %v3408
      %v3431 = vmul.f32 %v3361, %v3404
      %v3432 = vmul.f32 %v3362, %v3408
      %v3433 = vmul.f32 %v3363, %v3404
      %v3434 = vmul.f32 %v3364, %v3408
      %v3435 = vmul.f32 %v3365, %v3404
      %v3436 = vmul.f32 %v3366, %v3408
      %v3437 = vmul.f32 %v3367, %v3404
      %v3438 = vmul.f32 %v3368, %v3408
      %v3439 = vmul.f32 %v3369, %v3404
      %v3440 = vmul.f32 %v3370, %v3408
      %v3441 = vmul.f32 %v3371, %v3404
      %v3442 = vmul.f32 %v3372, %v3408
      %v3443 = vmul.f32 %v3373, %v3404
      %v3444 = vmul.f32 %v3374, %v3408
      %v3445 = vmul.f32 %v3375, %v3404
      %v3446 = vmul.f32 %v3376, %v3408
      %v3447 = vmul.f32 %v3377, %v3404
      %v3448 = vmul.f32 %v3378, %v3408
      %v3449 = vmul.f32 %v3379, %v3404
      %v3450 = vmul.f32 %v3380, %v3408
      %v3451 = vmul.f32 %v3381, %v3404
      %v3452 = vmul.f32 %v3382, %v3408
      %v3453 = vmul.f32 %v3383, %v3404
      %v3454 = vmul.f32 %v3384, %v3408
      %v3455 = vmul.f32 %v3385, %v3404
      %v3456 = vmul.f32 %v3386, %v3408
      %v3457 = vmul.f32 %v3387, %v3404
      %v3458 = vmul.f32 %v3388, %v3408
      %v3459 = vmul.f32 %v3389, %v3404
      %v3460 = vmul.f32 %v3390, %v3408
      %v3461 = vmul.f32 %v3391, %v3404
      %v3462 = vmul.f32 %v3392, %v3408
      %v3463 = vmul.f32 %v3393, %v3404
      %v3464 = vmul.f32 %v3394, %v3408
      %v3465 = vmul.f32 %v3395, %v3404
      %v3466 = vmul.f32 %v3396, %v3408
      %v3467 = vmul.f32 %v3397, %v3404
      %v3468 = vmul.f32 %v3398, %v3408
      %v3469 = vmul.f32 %v3399, %v3404
      %v3470 = vmul.f32 %v3400, %v3408
      %v3471 = vmul.f32 %v3404, 0.0
      %v3472 = vmul.f32 %v3408, 0.0
      %v3473 = vadd.f32 %v3271, %v3409
      %v3474 = vadd.f32 %v3272, %v3410
      %v3475 = vadd.f32 %v3273, %v3411
      %v3476 = vadd.f32 %v3274, %v3412
      %v3477 = vadd.f32 %v3275, %v3413
      %v3478 = vadd.f32 %v3276, %v3414
      %v3479 = vadd.f32 %v3277, %v3415
      %v3480 = vadd.f32 %v3278, %v3416
      %v3481 = vadd.f32 %v3279, %v3417
      %v3482 = vadd.f32 %v3280, %v3418
      %v3483 = vadd.f32 %v3281, %v3419
      %v3484 = vadd.f32 %v3282, %v3420
      %v3485 = vadd.f32 %v3283, %v3421
      %v3486 = vadd.f32 %v3284, %v3422
      %v3487 = vadd.f32 %v3285, %v3423
      %v3488 = vadd.f32 %v3286, %v3424
      %v3489 = vadd.f32 %v3287, %v3425
      %v3490 = vadd.f32 %v3288, %v3426
      %v3491 = vadd.f32 %v3289, %v3427
      %v3492 = vadd.f32 %v3290, %v3428
      %v3493 = vadd.f32 %v3291, %v3429
      %v3494 = vadd.f32 %v3292, %v3430
      %v3495 = vadd.f32 %v3293, %v3431
      %v3496 = vadd.f32 %v3294, %v3432
      %v3497 = vadd.f32 %v3295, %v3433
      %v3498 = vadd.f32 %v3296, %v3434
      %v3499 = vadd.f32 %v3297, %v3435
      %v3500 = vadd.f32 %v3298, %v3436
      %v3501 = vadd.f32 %v3299, %v3437
      %v3502 = vadd.f32 %v3300, %v3438
      %v3503 = vadd.f32 %v3301, %v3439
      %v3504 = vadd.f32 %v3302, %v3440
      %v3505 = vadd.f32 %v3303, %v3441
      %v3506 = vadd.f32 %v3304, %v3442
      %v3507 = vadd.f32 %v3305, %v3443
      %v3508 = vadd.f32 %v3306, %v3444
      %v3509 = vadd.f32 %v3307, %v3445
      %v3510 = vadd.f32 %v3308, %v3446
      %v3511 = vadd.f32 %v3309, %v3447
      %v3512 = vadd.f32 %v3310, %v3448
      %v3513 = vadd.f32 %v3311, %v3449
      %v3514 = vadd.f32 %v3312, %v3450
      %v3515 = vadd.f32 %v3313, %v3451
      %v3516 = vadd.f32 %v3314, %v3452
      %v3517 = vadd.f32 %v3315, %v3453
      %v3518 = vadd.f32 %v3316, %v3454
      %v3519 = vadd.f32 %v3317, %v3455
      %v3520 = vadd.f32 %v3318, %v3456
      %v3521 = vadd.f32 %v3319, %v3457
      %v3522 = vadd.f32 %v3320, %v3458
      %v3523 = vadd.f32 %v3321, %v3459
      %v3524 = vadd.f32 %v3322, %v3460
      %v3525 = vadd.f32 %v3323, %v3461
      %v3526 = vadd.f32 %v3324, %v3462
      %v3527 = vadd.f32 %v3325, %v3463
      %v3528 = vadd.f32 %v3326, %v3464
      %v3529 = vadd.f32 %v3327, %v3465
      %v3530 = vadd.f32 %v3328, %v3466
      %v3531 = vadd.f32 %v3329, %v3467
      %v3532 = vadd.f32 %v3330, %v3468
      %v3533 = vadd.f32 %v3331, %v3469
      %v3534 = vadd.f32 %v3332, %v3470
      %v3535 = vadd.f32 %v3333, %v3471
      %v3536 = vadd.f32 %v3334, %v3472
      %v3537 = vlaneseq
      %v3538 = vshrl.u32 %v3537, 7
      %v3539 = vsub.s32 7, %v3538
      %v3540 = vrot.slane %v1338, %v3539
      %v3541 = vlaneseq
      %v3542 = vshrl.u32 %v3541, 7
      %v3543 = vsub.s32 7, %v3542
      %v3544 = vrot.slane %v1339, %v3543
      %v3545 = vmul.f32 %v1160, %v3540
      %v3546 = vmul.f32 %v1162, %v3544
      %v3547 = vmul.f32 %v1166, %v3540
      %v3548 = vmul.f32 %v1168, %v3544
      %v3549 = vmul.f32 %v1172, %v3540
      %v3550 = vmul.f32 %v1174, %v3544
      %v3551 = vmul.f32 %v1178, %v3540
      %v3552 = vmul.f32 %v1180, %v3544
      %v3553 = vmul.f32 %v1184, %v3540
      %v3554 = vmul.f32 %v1186, %v3544
      %v3555 = vmul.f32 %v1190, %v3540
      %v3556 = vmul.f32 %v1192, %v3544
      %v3557 = vmul.f32 %v1196, %v3540
      %v3558 = vmul.f32 %v1198, %v3544
      %v3559 = vmul.f32 %v1202, %v3540
      %v3560 = vmul.f32 %v1204, %v3544
      %v3561 = vmul.f32 %v1208, %v3540
      %v3562 = vmul.f32 %v1210, %v3544
      %v3563 = vmul.f32 %v1214, %v3540
      %v3564 = vmul.f32 %v1216, %v3544
      %v3565 = vmul.f32 %v1220, %v3540
      %v3566 = vmul.f32 %v1222, %v3544
      %v3567 = vmul.f32 %v1226, %v3540
      %v3568 = vmul.f32 %v1228, %v3544
      %v3569 = vmul.f32 %v1232, %v3540
      %v3570 = vmul.f32 %v1234, %v3544
      %v3571 = vmul.f32 %v1238, %v3540
      %v3572 = vmul.f32 %v1240, %v3544
      %v3573 = vmul.f32 %v1244, %v3540
      %v3574 = vmul.f32 %v1246, %v3544
      %v3575 = vmul.f32 %v1250, %v3540
      %v3576 = vmul.f32 %v1252, %v3544
      %v3577 = vmul.f32 %v1256, %v3540
      %v3578 = vmul.f32 %v1258, %v3544
      %v3579 = vmul.f32 %v1262, %v3540
      %v3580 = vmul.f32 %v1264, %v3544
      %v3581 = vmul.f32 %v1268, %v3540
      %v3582 = vmul.f32 %v1270, %v3544
      %v3583 = vmul.f32 %v1274, %v3540
      %v3584 = vmul.f32 %v1276, %v3544
      %v3585 = vmul.f32 %v1280, %v3540
      %v3586 = vmul.f32 %v1282, %v3544
      %v3587 = vmul.f32 %v1286, %v3540
      %v3588 = vmul.f32 %v1288, %v3544
      %v3589 = vmul.f32 %v1292, %v3540
      %v3590 = vmul.f32 %v1294, %v3544
      %v3591 = vmul.f32 %v1298, %v3540
      %v3592 = vmul.f32 %v1300, %v3544
      %v3593 = vmul.f32 %v1304, %v3540
      %v3594 = vmul.f32 %v1306, %v3544
      %v3595 = vmul.f32 %v1310, %v3540
      %v3596 = vmul.f32 %v1312, %v3544
      %v3597 = vmul.f32 %v1316, %v3540
      %v3598 = vmul.f32 %v1318, %v3544
      %v3599 = vmul.f32 %v1322, %v3540
      %v3600 = vmul.f32 %v1324, %v3544
      %v3601 = vmul.f32 %v1328, %v3540
      %v3602 = vmul.f32 %v1330, %v3544
      %v3603 = vmul.f32 %v1334, %v3540
      %v3604 = vmul.f32 %v1336, %v3544
      %v3605 = vmul.f32 %v3540, 0.0
      %v3606 = vmul.f32 %v3544, 0.0
      %v3607 = vadd.f32 %v3473, %v3545
      %v3608 = vadd.f32 %v3474, %v3546
      %v3609 = vadd.f32 %v3475, %v3547
      %v3610 = vadd.f32 %v3476, %v3548
      %v3611 = vadd.f32 %v3477, %v3549
      %v3612 = vadd.f32 %v3478, %v3550
      %v3613 = vadd.f32 %v3479, %v3551
      %v3614 = vadd.f32 %v3480, %v3552
      %v3615 = vadd.f32 %v3481, %v3553
      %v3616 = vadd.f32 %v3482, %v3554
      %v3617 = vadd.f32 %v3483, %v3555
      %v3618 = vadd.f32 %v3484, %v3556
      %v3619 = vadd.f32 %v3485, %v3557
      %v3620 = vadd.f32 %v3486, %v3558
      %v3621 = vadd.f32 %v3487, %v3559
      %v3622 = vadd.f32 %v3488, %v3560
      %v3623 = vadd.f32 %v3489, %v3561
      %v3624 = vadd.f32 %v3490, %v3562
      %v3625 = vadd.f32 %v3491, %v3563
      %v3626 = vadd.f32 %v3492, %v3564
      %v3627 = vadd.f32 %v3493, %v3565
      %v3628 = vadd.f32 %v3494, %v3566
      %v3629 = vadd.f32 %v3495, %v3567
      %v3630 = vadd.f32 %v3496, %v3568
      %v3631 = vadd.f32 %v3497, %v3569
      %v3632 = vadd.f32 %v3498, %v3570
      %v3633 = vadd.f32 %v3499, %v3571
      %v3634 = vadd.f32 %v3500, %v3572
      %v3635 = vadd.f32 %v3501, %v3573
      %v3636 = vadd.f32 %v3502, %v3574
      %v3637 = vadd.f32 %v3503, %v3575
      %v3638 = vadd.f32 %v3504, %v3576
      %v3639 = vadd.f32 %v3505, %v3577
      %v3640 = vadd.f32 %v3506, %v3578
      %v3641 = vadd.f32 %v3507, %v3579
      %v3642 = vadd.f32 %v3508, %v3580
      %v3643 = vadd.f32 %v3509, %v3581
      %v3644 = vadd.f32 %v3510, %v3582
      %v3645 = vadd.f32 %v3511, %v3583
      %v3646 = vadd.f32 %v3512, %v3584
      %v3647 = vadd.f32 %v3513, %v3585
      %v3648 = vadd.f32 %v3514, %v3586
      %v3649 = vadd.f32 %v3515, %v3587
      %v3650 = vadd.f32 %v3516, %v3588
      %v3651 = vadd.f32 %v3517, %v3589
      %v3652 = vadd.f32 %v3518, %v3590
      %v3653 = vadd.f32 %v3519, %v3591
      %v3654 = vadd.f32 %v3520, %v3592
      %v3655 = vadd.f32 %v3521, %v3593
      %v3656 = vadd.f32 %v3522, %v3594
      %v3657 = vadd.f32 %v3523, %v3595
      %v3658 = vadd.f32 %v3524, %v3596
      %v3659 = vadd.f32 %v3525, %v3597
      %v3660 = vadd.f32 %v3526, %v3598
      %v3661 = vadd.f32 %v3527, %v3599
      %v3662 = vadd.f32 %v3528, %v3600
      %v3663 = vadd.f32 %v3529, %v3601
      %v3664 = vadd.f32 %v3530, %v3602
      %v3665 = vadd.f32 %v3531, %v3603
      %v3666 = vadd.f32 %v3532, %v3604
      %v3667 = vadd.f32 %v3533, %v3605
      %v3668 = vadd.f32 %v3534, %v3606
      %v3669 = vadd.f32 %v3535, %v3605
      %v3670 = vadd.f32 %v3536, %v3606
      %v3671 = vsel %vm1791, %v2402, 0.0
      %v3672 = vsel %vm1791, %v2404, 0.0
      %v3673 = vsel %vm1792, %v2406, 0.0
      %v3674 = vsel %vm1792, %v2408, 0.0
      %v3675 = vsel %vm1793, %v2410, 0.0
      %v3676 = vsel %vm1793, %v2412, 0.0
      %v3677 = vsel %vm1794, %v2414, 0.0
      %v3678 = vsel %vm1794, %v2416, 0.0
      %v3679 = vsel %vm1795, %v2418, 0.0
      %v3680 = vsel %vm1795, %v2420, 0.0
      %v3681 = vsel %vm1796, %v2422, 0.0
      %v3682 = vsel %vm1796, %v2424, 0.0
      %v3683 = vsel %vm1797, %v2426, 0.0
      %v3684 = vsel %vm1797, %v2428, 0.0
      %v3685 = vsel %vm1798, %v2430, 0.0
      %v3686 = vsel %vm1798, %v2432, 0.0
      %v3687 = vsel %vm1799, %v2434, 0.0
      %v3688 = vsel %vm1799, %v2436, 0.0
      %v3689 = vsel %vm1800, %v2438, 0.0
      %v3690 = vsel %vm1800, %v2440, 0.0
      %v3691 = vsel %vm1801, %v2442, 0.0
      %v3692 = vsel %vm1801, %v2444, 0.0
      %v3693 = vsel %vm1802, %v2446, 0.0
      %v3694 = vsel %vm1802, %v2448, 0.0
      %v3695 = vsel %vm1803, %v2450, 0.0
      %v3696 = vsel %vm1803, %v2452, 0.0
      %v3697 = vsel %vm1804, %v2454, 0.0
      %v3698 = vsel %vm1804, %v2456, 0.0
      %v3699 = vsel %vm1805, %v2458, 0.0
      %v3700 = vsel %vm1805, %v2460, 0.0
      %v3701 = vsel %vm1806, %v2462, 0.0
      %v3702 = vsel %vm1806, %v2464, 0.0
      %v3703 = vsel %vm1807, %v2466, 0.0
      %v3704 = vsel %vm1807, %v2468, 0.0
      %v3705 = vsel %vm1808, %v2470, 0.0
      %v3706 = vsel %vm1808, %v2472, 0.0
      %v3707 = vsel %vm1809, %v2474, 0.0
      %v3708 = vsel %vm1809, %v2476, 0.0
      %v3709 = vsel %vm1810, %v2478, 0.0
      %v3710 = vsel %vm1810, %v2480, 0.0
      %v3711 = vsel %vm1811, %v2482, 0.0
      %v3712 = vsel %vm1811, %v2484, 0.0
      %v3713 = vsel %vm1812, %v2486, 0.0
      %v3714 = vsel %vm1812, %v2488, 0.0
      %v3715 = vsel %vm1813, %v2490, 0.0
      %v3716 = vsel %vm1813, %v2492, 0.0
      %v3717 = vsel %vm1814, %v2494, 0.0
      %v3718 = vsel %vm1814, %v2496, 0.0
      %v3719 = vsel %vm1815, %v2498, 0.0
      %v3720 = vsel %vm1815, %v2500, 0.0
      %v3721 = vsel %vm1816, %v2502, 0.0
      %v3722 = vsel %vm1816, %v2504, 0.0
      %v3723 = vsel %vm1817, %v2506, 0.0
      %v3724 = vsel %vm1817, %v2508, 0.0
      %v3725 = vsel %vm1818, %v2510, 0.0
      %v3726 = vsel %vm1818, %v2512, 0.0
      %v3727 = vsel %vm1819, %v3126, 0.0
      %v3728 = vsel %vm1819, %v3128, 0.0
      %v3729 = vsel %vm1820, %v3133, 0.0
      %v3730 = vsel %vm1820, %v3134, 0.0
      %v3731 = vlaneseq
      %v3732 = vshrl.u32 %v3731, 7
      %v3733 = vsub.s32 0, %v3732
      %v3734 = vrot.slane %v1340, %v3733
      %v3735 = vlaneseq
      %v3736 = vshrl.u32 %v3735, 7
      %v3737 = vsub.s32 0, %v3736
      %v3738 = vrot.slane %v1341, %v3737
      %v3739 = vmul.f32 %v3671, %v3734
      %v3740 = vmul.f32 %v3672, %v3738
      %v3741 = vmul.f32 %v3673, %v3734
      %v3742 = vmul.f32 %v3674, %v3738
      %v3743 = vmul.f32 %v3675, %v3734
      %v3744 = vmul.f32 %v3676, %v3738
      %v3745 = vmul.f32 %v3677, %v3734
      %v3746 = vmul.f32 %v3678, %v3738
      %v3747 = vmul.f32 %v3679, %v3734
      %v3748 = vmul.f32 %v3680, %v3738
      %v3749 = vmul.f32 %v3681, %v3734
      %v3750 = vmul.f32 %v3682, %v3738
      %v3751 = vmul.f32 %v3683, %v3734
      %v3752 = vmul.f32 %v3684, %v3738
      %v3753 = vmul.f32 %v3685, %v3734
      %v3754 = vmul.f32 %v3686, %v3738
      %v3755 = vmul.f32 %v3687, %v3734
      %v3756 = vmul.f32 %v3688, %v3738
      %v3757 = vmul.f32 %v3689, %v3734
      %v3758 = vmul.f32 %v3690, %v3738
      %v3759 = vmul.f32 %v3691, %v3734
      %v3760 = vmul.f32 %v3692, %v3738
      %v3761 = vmul.f32 %v3693, %v3734
      %v3762 = vmul.f32 %v3694, %v3738
      %v3763 = vmul.f32 %v3695, %v3734
      %v3764 = vmul.f32 %v3696, %v3738
      %v3765 = vmul.f32 %v3697, %v3734
      %v3766 = vmul.f32 %v3698, %v3738
      %v3767 = vmul.f32 %v3699, %v3734
      %v3768 = vmul.f32 %v3700, %v3738
      %v3769 = vmul.f32 %v3701, %v3734
      %v3770 = vmul.f32 %v3702, %v3738
      %v3771 = vmul.f32 %v3703, %v3734
      %v3772 = vmul.f32 %v3704, %v3738
      %v3773 = vmul.f32 %v3705, %v3734
      %v3774 = vmul.f32 %v3706, %v3738
      %v3775 = vmul.f32 %v3707, %v3734
      %v3776 = vmul.f32 %v3708, %v3738
      %v3777 = vmul.f32 %v3709, %v3734
      %v3778 = vmul.f32 %v3710, %v3738
      %v3779 = vmul.f32 %v3711, %v3734
      %v3780 = vmul.f32 %v3712, %v3738
      %v3781 = vmul.f32 %v3713, %v3734
      %v3782 = vmul.f32 %v3714, %v3738
      %v3783 = vmul.f32 %v3715, %v3734
      %v3784 = vmul.f32 %v3716, %v3738
      %v3785 = vmul.f32 %v3717, %v3734
      %v3786 = vmul.f32 %v3718, %v3738
      %v3787 = vmul.f32 %v3719, %v3734
      %v3788 = vmul.f32 %v3720, %v3738
      %v3789 = vmul.f32 %v3721, %v3734
      %v3790 = vmul.f32 %v3722, %v3738
      %v3791 = vmul.f32 %v3723, %v3734
      %v3792 = vmul.f32 %v3724, %v3738
      %v3793 = vmul.f32 %v3725, %v3734
      %v3794 = vmul.f32 %v3726, %v3738
      %v3795 = vmul.f32 %v3727, %v3734
      %v3796 = vmul.f32 %v3728, %v3738
      %v3797 = vmul.f32 %v3729, %v3734
      %v3798 = vmul.f32 %v3730, %v3738
      %v3799 = vmul.f32 %v3734, 0.0
      %v3800 = vmul.f32 %v3738, 0.0
      %v3801 = vadd.f32 %v3607, %v3739
      %v3802 = vadd.f32 %v3608, %v3740
      %v3803 = vadd.f32 %v3609, %v3741
      %v3804 = vadd.f32 %v3610, %v3742
      %v3805 = vadd.f32 %v3611, %v3743
      %v3806 = vadd.f32 %v3612, %v3744
      %v3807 = vadd.f32 %v3613, %v3745
      %v3808 = vadd.f32 %v3614, %v3746
      %v3809 = vadd.f32 %v3615, %v3747
      %v3810 = vadd.f32 %v3616, %v3748
      %v3811 = vadd.f32 %v3617, %v3749
      %v3812 = vadd.f32 %v3618, %v3750
      %v3813 = vadd.f32 %v3619, %v3751
      %v3814 = vadd.f32 %v3620, %v3752
      %v3815 = vadd.f32 %v3621, %v3753
      %v3816 = vadd.f32 %v3622, %v3754
      %v3817 = vadd.f32 %v3623, %v3755
      %v3818 = vadd.f32 %v3624, %v3756
      %v3819 = vadd.f32 %v3625, %v3757
      %v3820 = vadd.f32 %v3626, %v3758
      %v3821 = vadd.f32 %v3627, %v3759
      %v3822 = vadd.f32 %v3628, %v3760
      %v3823 = vadd.f32 %v3629, %v3761
      %v3824 = vadd.f32 %v3630, %v3762
      %v3825 = vadd.f32 %v3631, %v3763
      %v3826 = vadd.f32 %v3632, %v3764
      %v3827 = vadd.f32 %v3633, %v3765
      %v3828 = vadd.f32 %v3634, %v3766
      %v3829 = vadd.f32 %v3635, %v3767
      %v3830 = vadd.f32 %v3636, %v3768
      %v3831 = vadd.f32 %v3637, %v3769
      %v3832 = vadd.f32 %v3638, %v3770
      %v3833 = vadd.f32 %v3639, %v3771
      %v3834 = vadd.f32 %v3640, %v3772
      %v3835 = vadd.f32 %v3641, %v3773
      %v3836 = vadd.f32 %v3642, %v3774
      %v3837 = vadd.f32 %v3643, %v3775
      %v3838 = vadd.f32 %v3644, %v3776
      %v3839 = vadd.f32 %v3645, %v3777
      %v3840 = vadd.f32 %v3646, %v3778
      %v3841 = vadd.f32 %v3647, %v3779
      %v3842 = vadd.f32 %v3648, %v3780
      %v3843 = vadd.f32 %v3649, %v3781
      %v3844 = vadd.f32 %v3650, %v3782
      %v3845 = vadd.f32 %v3651, %v3783
      %v3846 = vadd.f32 %v3652, %v3784
      %v3847 = vadd.f32 %v3653, %v3785
      %v3848 = vadd.f32 %v3654, %v3786
      %v3849 = vadd.f32 %v3655, %v3787
      %v3850 = vadd.f32 %v3656, %v3788
      %v3851 = vadd.f32 %v3657, %v3789
      %v3852 = vadd.f32 %v3658, %v3790
      %v3853 = vadd.f32 %v3659, %v3791
      %v3854 = vadd.f32 %v3660, %v3792
      %v3855 = vadd.f32 %v3661, %v3793
      %v3856 = vadd.f32 %v3662, %v3794
      %v3857 = vadd.f32 %v3663, %v3795
      %v3858 = vadd.f32 %v3664, %v3796
      %v3859 = vadd.f32 %v3665, %v3797
      %v3860 = vadd.f32 %v3666, %v3798
      %v3861 = vadd.f32 %v3667, %v3799
      %v3862 = vadd.f32 %v3668, %v3800
      %v3863 = vadd.f32 %v3669, %v3799
      %v3864 = vadd.f32 %v3670, %v3800
      %v3865 = vmul.f32 %v1148, 0.7
      %v3866 = vmul.f32 %v1150, 0.7
      %v3867 = vmul.f32 %v1154, 0.7
      %v3868 = vmul.f32 %v1156, 0.7
      %v3869 = vmul.f32 %v1160, 0.7
      %v3870 = vmul.f32 %v1162, 0.7
      %v3871 = vmul.f32 %v1166, 0.7
      %v3872 = vmul.f32 %v1168, 0.7
      %v3873 = vmul.f32 %v1172, 0.7
      %v3874 = vmul.f32 %v1174, 0.7
      %v3875 = vmul.f32 %v1178, 0.7
      %v3876 = vmul.f32 %v1180, 0.7
      %v3877 = vmul.f32 %v1184, 0.7
      %v3878 = vmul.f32 %v1186, 0.7
      %v3879 = vmul.f32 %v1190, 0.7
      %v3880 = vmul.f32 %v1192, 0.7
      %v3881 = vmul.f32 %v1196, 0.7
      %v3882 = vmul.f32 %v1198, 0.7
      %v3883 = vmul.f32 %v1202, 0.7
      %v3884 = vmul.f32 %v1204, 0.7
      %v3885 = vmul.f32 %v1208, 0.7
      %v3886 = vmul.f32 %v1210, 0.7
      %v3887 = vmul.f32 %v1214, 0.7
      %v3888 = vmul.f32 %v1216, 0.7
      %v3889 = vmul.f32 %v1220, 0.7
      %v3890 = vmul.f32 %v1222, 0.7
      %v3891 = vmul.f32 %v1226, 0.7
      %v3892 = vmul.f32 %v1228, 0.7
      %v3893 = vmul.f32 %v1232, 0.7
      %v3894 = vmul.f32 %v1234, 0.7
      %v3895 = vmul.f32 %v1238, 0.7
      %v3896 = vmul.f32 %v1240, 0.7
      %v3897 = vmul.f32 %v1244, 0.7
      %v3898 = vmul.f32 %v1246, 0.7
      %v3899 = vmul.f32 %v1250, 0.7
      %v3900 = vmul.f32 %v1252, 0.7
      %v3901 = vmul.f32 %v1256, 0.7
      %v3902 = vmul.f32 %v1258, 0.7
      %v3903 = vmul.f32 %v1262, 0.7
      %v3904 = vmul.f32 %v1264, 0.7
      %v3905 = vmul.f32 %v1268, 0.7
      %v3906 = vmul.f32 %v1270, 0.7
      %v3907 = vmul.f32 %v1274, 0.7
      %v3908 = vmul.f32 %v1276, 0.7
      %v3909 = vmul.f32 %v1280, 0.7
      %v3910 = vmul.f32 %v1282, 0.7
      %v3911 = vmul.f32 %v1286, 0.7
      %v3912 = vmul.f32 %v1288, 0.7
      %v3913 = vmul.f32 %v1292, 0.7
      %v3914 = vmul.f32 %v1294, 0.7
      %v3915 = vmul.f32 %v1298, 0.7
      %v3916 = vmul.f32 %v1300, 0.7
      %v3917 = vmul.f32 %v1304, 0.7
      %v3918 = vmul.f32 %v1306, 0.7
      %v3919 = vmul.f32 %v1310, 0.7
      %v3920 = vmul.f32 %v1312, 0.7
      %v3921 = vmul.f32 %v1316, 0.7
      %v3922 = vmul.f32 %v1318, 0.7
      %v3923 = vmul.f32 %v1322, 0.7
      %v3924 = vmul.f32 %v1324, 0.7
      %v3925 = vmul.f32 %v1328, 0.7
      %v3926 = vmul.f32 %v1330, 0.7
      %v3927 = vmul.f32 %v1334, 0.7
      %v3928 = vmul.f32 %v1336, 0.7
      %v3929 = vld [vmem:[%s5] sm:$0x3]
      %v3931 = vlaneseq
      %v3932 = vshrl.u32 %v3931, 7
      %v3933 = vsub.s32 0, %v3932
      %v3934 = vrot.slane %v3929, %v3933
      %v3935 = vlaneseq
      %v3936 = vshrl.u32 %v3935, 7
      %v3937 = vsub.s32 1, %v3936
      %v3938 = vrot.slane %v3929, %v3937
      %v3941 = vmul.f32 %v3865, %v3934
      %v3942 = vmul.f32 %v3866, %v3938
      %v3943 = vmul.f32 %v3867, %v3934
      %v3944 = vmul.f32 %v3868, %v3938
      %v3945 = vmul.f32 %v3869, %v3934
      %v3946 = vmul.f32 %v3870, %v3938
      %v3947 = vmul.f32 %v3871, %v3934
      %v3948 = vmul.f32 %v3872, %v3938
      %v3949 = vmul.f32 %v3873, %v3934
      %v3950 = vmul.f32 %v3874, %v3938
      %v3951 = vmul.f32 %v3875, %v3934
      %v3952 = vmul.f32 %v3876, %v3938
      %v3953 = vmul.f32 %v3877, %v3934
      %v3954 = vmul.f32 %v3878, %v3938
      %v3955 = vmul.f32 %v3879, %v3934
      %v3956 = vmul.f32 %v3880, %v3938
      %v3957 = vmul.f32 %v3881, %v3934
      %v3958 = vmul.f32 %v3882, %v3938
      %v3959 = vmul.f32 %v3883, %v3934
      %v3960 = vmul.f32 %v3884, %v3938
      %v3961 = vmul.f32 %v3885, %v3934
      %v3962 = vmul.f32 %v3886, %v3938
      %v3963 = vmul.f32 %v3887, %v3934
      %v3964 = vmul.f32 %v3888, %v3938
      %v3965 = vmul.f32 %v3889, %v3934
      %v3966 = vmul.f32 %v3890, %v3938
      %v3967 = vmul.f32 %v3891, %v3934
      %v3968 = vmul.f32 %v3892, %v3938
      %v3969 = vmul.f32 %v3893, %v3934
      %v3970 = vmul.f32 %v3894, %v3938
      %v3971 = vmul.f32 %v3895, %v3934
      %v3972 = vmul.f32 %v3896, %v3938
      %v3973 = vmul.f32 %v3897, %v3934
      %v3974 = vmul.f32 %v3898, %v3938
      %v3975 = vmul.f32 %v3899, %v3934
      %v3976 = vmul.f32 %v3900, %v3938
      %v3977 = vmul.f32 %v3901, %v3934
      %v3978 = vmul.f32 %v3902, %v3938
      %v3979 = vmul.f32 %v3903, %v3934
      %v3980 = vmul.f32 %v3904, %v3938
      %v3981 = vmul.f32 %v3905, %v3934
      %v3982 = vmul.f32 %v3906, %v3938
      %v3983 = vmul.f32 %v3907, %v3934
      %v3984 = vmul.f32 %v3908, %v3938
      %v3985 = vmul.f32 %v3909, %v3934
      %v3986 = vmul.f32 %v3910, %v3938
      %v3987 = vmul.f32 %v3911, %v3934
      %v3988 = vmul.f32 %v3912, %v3938
      %v3989 = vmul.f32 %v3913, %v3934
      %v3990 = vmul.f32 %v3914, %v3938
      %v3991 = vmul.f32 %v3915, %v3934
      %v3992 = vmul.f32 %v3916, %v3938
      %v3993 = vmul.f32 %v3917, %v3934
      %v3994 = vmul.f32 %v3918, %v3938
      %v3995 = vmul.f32 %v3919, %v3934
      %v3996 = vmul.f32 %v3920, %v3938
      %v3997 = vmul.f32 %v3921, %v3934
      %v3998 = vmul.f32 %v3922, %v3938
      %v3999 = vmul.f32 %v3923, %v3934
      %v4000 = vmul.f32 %v3924, %v3938
      %v4001 = vmul.f32 %v3925, %v3934
      %v4002 = vmul.f32 %v3926, %v3938
      %v4003 = vmul.f32 %v3927, %v3934
      %v4004 = vmul.f32 %v3928, %v3938
      %v4005 = vsub.f32 %v3801, %v3941
      %v4006 = vsub.f32 %v3802, %v3942
      %v4007 = vsub.f32 %v3803, %v3943
      %v4008 = vsub.f32 %v3804, %v3944
      %v4009 = vsub.f32 %v3805, %v3945
      %v4010 = vsub.f32 %v3806, %v3946
      %v4011 = vsub.f32 %v3807, %v3947
      %v4012 = vsub.f32 %v3808, %v3948
      %v4013 = vsub.f32 %v3809, %v3949
      %v4014 = vsub.f32 %v3810, %v3950
      %v4015 = vsub.f32 %v3811, %v3951
      %v4016 = vsub.f32 %v3812, %v3952
      %v4017 = vsub.f32 %v3813, %v3953
      %v4018 = vsub.f32 %v3814, %v3954
      %v4019 = vsub.f32 %v3815, %v3955
      %v4020 = vsub.f32 %v3816, %v3956
      %v4021 = vsub.f32 %v3817, %v3957
      %v4022 = vsub.f32 %v3818, %v3958
      %v4023 = vsub.f32 %v3819, %v3959
      %v4024 = vsub.f32 %v3820, %v3960
      %v4025 = vsub.f32 %v3821, %v3961
      %v4026 = vsub.f32 %v3822, %v3962
      %v4027 = vsub.f32 %v3823, %v3963
      %v4028 = vsub.f32 %v3824, %v3964
      %v4029 = vsub.f32 %v3825, %v3965
      %v4030 = vsub.f32 %v3826, %v3966
      %v4031 = vsub.f32 %v3827, %v3967
      %v4032 = vsub.f32 %v3828, %v3968
      %v4033 = vsub.f32 %v3829, %v3969
      %v4034 = vsub.f32 %v3830, %v3970
      %v4035 = vsub.f32 %v3831, %v3971
      %v4036 = vsub.f32 %v3832, %v3972
      %v4037 = vsub.f32 %v3833, %v3973
      %v4038 = vsub.f32 %v3834, %v3974
      %v4039 = vsub.f32 %v3835, %v3975
      %v4040 = vsub.f32 %v3836, %v3976
      %v4041 = vsub.f32 %v3837, %v3977
      %v4042 = vsub.f32 %v3838, %v3978
      %v4043 = vsub.f32 %v3839, %v3979
      %v4044 = vsub.f32 %v3840, %v3980
      %v4045 = vsub.f32 %v3841, %v3981
      %v4046 = vsub.f32 %v3842, %v3982
      %v4047 = vsub.f32 %v3843, %v3983
      %v4048 = vsub.f32 %v3844, %v3984
      %v4049 = vsub.f32 %v3845, %v3985
      %v4050 = vsub.f32 %v3846, %v3986
      %v4051 = vsub.f32 %v3847, %v3987
      %v4052 = vsub.f32 %v3848, %v3988
      %v4053 = vsub.f32 %v3849, %v3989
      %v4054 = vsub.f32 %v3850, %v3990
      %v4055 = vsub.f32 %v3851, %v3991
      %v4056 = vsub.f32 %v3852, %v3992
      %v4057 = vsub.f32 %v3853, %v3993
      %v4058 = vsub.f32 %v3854, %v3994
      %v4059 = vsub.f32 %v3855, %v3995
      %v4060 = vsub.f32 %v3856, %v3996
      %v4061 = vsub.f32 %v3857, %v3997
      %v4062 = vsub.f32 %v3858, %v3998
      %v4063 = vsub.f32 %v3859, %v3999
      %v4064 = vsub.f32 %v3860, %v4000
      %v4065 = vsub.f32 %v3861, %v4001
      %v4066 = vsub.f32 %v3862, %v4002
      %v4067 = vsub.f32 %v3863, %v4003
      %v4068 = vsub.f32 %v3864, %v4004
      %v4069 = vmul.f32 %v4005, %v4005
      %v4070 = vmul.f32 %v4007, %v4007
      %v4071 = vmul.f32 %v4009, %v4009
      %v4072 = vmul.f32 %v4011, %v4011
      %v4073 = vmul.f32 %v4013, %v4013
      %v4074 = vmul.f32 %v4015, %v4015
      %v4075 = vmul.f32 %v4017, %v4017
      %v4076 = vmul.f32 %v4019, %v4019
      %v4077 = vmul.f32 %v4021, %v4021
      %v4078 = vmul.f32 %v4023, %v4023
      %v4079 = vmul.f32 %v4025, %v4025
      %v4080 = vmul.f32 %v4027, %v4027
      %v4081 = vmul.f32 %v4029, %v4029
      %v4082 = vmul.f32 %v4031, %v4031
      %v4083 = vmul.f32 %v4033, %v4033
      %v4084 = vmul.f32 %v4035, %v4035
      %v4085 = vmul.f32 %v4037, %v4037
      %v4086 = vmul.f32 %v4039, %v4039
      %v4087 = vmul.f32 %v4041, %v4041
      %v4088 = vmul.f32 %v4043, %v4043
      %v4089 = vmul.f32 %v4045, %v4045
      %v4090 = vmul.f32 %v4047, %v4047
      %v4091 = vmul.f32 %v4049, %v4049
      %v4092 = vmul.f32 %v4051, %v4051
      %v4093 = vmul.f32 %v4053, %v4053
      %v4094 = vmul.f32 %v4055, %v4055
      %v4095 = vmul.f32 %v4057, %v4057
      %v4096 = vmul.f32 %v4059, %v4059
      %v4097 = vmul.f32 %v4061, %v4061
      %v4098 = vmul.f32 %v4063, %v4063
      %v4099 = vmul.f32 %v4065, %v4065
      %v4100 = vmul.f32 %v4067, %v4067
      %v4101 = vsel %vm473, %v4069, 0.0
      %v4102 = vsel %vm473, %v4070, 0.0
      %v4103 = vadd.f32 %v4101, %v4102
      %v4104 = vsel %vm473, %v4071, 0.0
      %v4105 = vadd.f32 %v4103, %v4104
      %v4106 = vsel %vm473, %v4072, 0.0
      %v4107 = vadd.f32 %v4105, %v4106
      %v4108 = vsel %vm473, %v4073, 0.0
      %v4109 = vadd.f32 %v4107, %v4108
      %v4110 = vsel %vm473, %v4074, 0.0
      %v4111 = vadd.f32 %v4109, %v4110
      %v4112 = vsel %vm473, %v4075, 0.0
      %v4113 = vadd.f32 %v4111, %v4112
      %v4114 = vsel %vm473, %v4076, 0.0
      %v4115 = vadd.f32 %v4113, %v4114
      %v4116 = vsel %vm473, %v4077, 0.0
      %v4117 = vadd.f32 %v4115, %v4116
      %v4118 = vsel %vm473, %v4078, 0.0
      %v4119 = vadd.f32 %v4117, %v4118
      %v4120 = vsel %vm473, %v4079, 0.0
      %v4121 = vadd.f32 %v4119, %v4120
      %v4122 = vsel %vm473, %v4080, 0.0
      %v4123 = vadd.f32 %v4121, %v4122
      %v4124 = vsel %vm473, %v4081, 0.0
      %v4125 = vadd.f32 %v4123, %v4124
      %v4126 = vsel %vm473, %v4082, 0.0
      %v4127 = vadd.f32 %v4125, %v4126
      %v4128 = vsel %vm473, %v4083, 0.0
      %v4129 = vadd.f32 %v4127, %v4128
      %v4130 = vsel %vm473, %v4084, 0.0
      %v4131 = vadd.f32 %v4129, %v4130
      %v4132 = vsel %vm473, %v4085, 0.0
      %v4133 = vadd.f32 %v4131, %v4132
      %v4134 = vsel %vm473, %v4086, 0.0
      %v4135 = vadd.f32 %v4133, %v4134
      %v4136 = vsel %vm473, %v4087, 0.0
      %v4137 = vadd.f32 %v4135, %v4136
      %v4138 = vsel %vm473, %v4088, 0.0
      %v4139 = vadd.f32 %v4137, %v4138
      %v4140 = vsel %vm473, %v4089, 0.0
      %v4141 = vadd.f32 %v4139, %v4140
      %v4142 = vsel %vm473, %v4090, 0.0
      %v4143 = vadd.f32 %v4141, %v4142
      %v4144 = vsel %vm473, %v4091, 0.0
      %v4145 = vadd.f32 %v4143, %v4144
      %v4146 = vsel %vm473, %v4092, 0.0
      %v4147 = vadd.f32 %v4145, %v4146
      %v4148 = vsel %vm473, %v4093, 0.0
      %v4149 = vadd.f32 %v4147, %v4148
      %v4150 = vsel %vm473, %v4094, 0.0
      %v4151 = vadd.f32 %v4149, %v4150
      %v4152 = vsel %vm473, %v4095, 0.0
      %v4153 = vadd.f32 %v4151, %v4152
      %v4154 = vsel %vm473, %v4096, 0.0
      %v4155 = vadd.f32 %v4153, %v4154
      %v4156 = vsel %vm473, %v4097, 0.0
      %v4157 = vadd.f32 %v4155, %v4156
      %v4158 = vsel %vm473, %v4098, 0.0
      %v4159 = vadd.f32 %v4157, %v4158
      %v4160 = vsel %vm473, %v4099, 0.0
      %v4161 = vadd.f32 %v4159, %v4160
      %v4162 = vsel %vm473, %v4100, 0.0
      %v4163 = vadd.f32 %v4161, %v4162
      %v4164 = vrot.slane %v4163, 4
      %v4165 = vadd.f32 %v4163, %v4164
      %v4166 = vrot.slane %v4165, 2
      %v4167 = vadd.f32 %v4165, %v4166
      %v4168 = vrot.slane %v4167, 1
      %v4169 = vadd.f32 %v4167, %v4168
      %v4170 = vrsqrt.pop %v4169
      %v4171 = vmul.f32 %v4169, %v4170
      %vm4172 = vcmp.eq.f32.partialorder %v4169, inf
      %v4173 = vsel %vm4172, %v4169, %v4171
      %vm4174 = vcmp.eq.f32.partialorder %v4169, 0.0
      %v4175 = vand.u32 %v4169, 2147483648
      %v4176 = vsel %vm4174, %v4175, %v4173
      %v4177 = vmax.f32 %v4176, 1e-12
      %v4178 = vrcp.pop %v4177
      %v4179 = vmul.f32 %v4005, %v4178
      %v4180 = vmul.f32 %v4007, %v4178
      %v4181 = vmul.f32 %v4009, %v4178
      %v4182 = vmul.f32 %v4011, %v4178
      %v4183 = vmul.f32 %v4013, %v4178
      %v4184 = vmul.f32 %v4015, %v4178
      %v4185 = vmul.f32 %v4017, %v4178
      %v4186 = vmul.f32 %v4019, %v4178
      %v4187 = vmul.f32 %v4021, %v4178
      %v4188 = vmul.f32 %v4023, %v4178
      %v4189 = vmul.f32 %v4025, %v4178
      %v4190 = vmul.f32 %v4027, %v4178
      %v4191 = vmul.f32 %v4029, %v4178
      %v4192 = vmul.f32 %v4031, %v4178
      %v4193 = vmul.f32 %v4033, %v4178
      %v4194 = vmul.f32 %v4035, %v4178
      %v4195 = vmul.f32 %v4037, %v4178
      %v4196 = vmul.f32 %v4039, %v4178
      %v4197 = vmul.f32 %v4041, %v4178
      %v4198 = vmul.f32 %v4043, %v4178
      %v4199 = vmul.f32 %v4045, %v4178
      %v4200 = vmul.f32 %v4047, %v4178
      %v4201 = vmul.f32 %v4049, %v4178
      %v4202 = vmul.f32 %v4051, %v4178
      %v4203 = vmul.f32 %v4053, %v4178
      %v4204 = vmul.f32 %v4055, %v4178
      %v4205 = vmul.f32 %v4057, %v4178
      %v4206 = vmul.f32 %v4059, %v4178
      %v4207 = vmul.f32 %v4061, %v4178
      %v4208 = vmul.f32 %v4063, %v4178
      %v4209 = vmul.f32 %v4065, %v4178
      %v4210 = vmul.f32 %v4067, %v4178
      %vm4211 = vcmask 1048064
      %v4212 = vsel %vm4211, %v4069, 0.0
      %v4213 = vsel %vm4211, %v4070, 0.0
      %v4214 = vadd.f32 %v4212, %v4213
      %v4215 = vsel %vm4211, %v4071, 0.0
      %v4216 = vadd.f32 %v4214, %v4215
      %v4217 = vsel %vm4211, %v4072, 0.0
      %v4218 = vadd.f32 %v4216, %v4217
      %v4219 = vsel %vm4211, %v4073, 0.0
      %v4220 = vadd.f32 %v4218, %v4219
      %v4221 = vsel %vm4211, %v4074, 0.0
      %v4222 = vadd.f32 %v4220, %v4221
      %v4223 = vsel %vm4211, %v4075, 0.0
      %v4224 = vadd.f32 %v4222, %v4223
      %v4225 = vsel %vm4211, %v4076, 0.0
      %v4226 = vadd.f32 %v4224, %v4225
      %v4227 = vsel %vm4211, %v4077, 0.0
      %v4228 = vadd.f32 %v4226, %v4227
      %v4229 = vsel %vm4211, %v4078, 0.0
      %v4230 = vadd.f32 %v4228, %v4229
      %v4231 = vsel %vm4211, %v4079, 0.0
      %v4232 = vadd.f32 %v4230, %v4231
      %v4233 = vsel %vm4211, %v4080, 0.0
      %v4234 = vadd.f32 %v4232, %v4233
      %v4235 = vsel %vm4211, %v4081, 0.0
      %v4236 = vadd.f32 %v4234, %v4235
      %v4237 = vsel %vm4211, %v4082, 0.0
      %v4238 = vadd.f32 %v4236, %v4237
      %v4239 = vsel %vm4211, %v4083, 0.0
      %v4240 = vadd.f32 %v4238, %v4239
      %v4241 = vsel %vm4211, %v4084, 0.0
      %v4242 = vadd.f32 %v4240, %v4241
      %v4243 = vsel %vm4211, %v4085, 0.0
      %v4244 = vadd.f32 %v4242, %v4243
      %v4245 = vsel %vm4211, %v4086, 0.0
      %v4246 = vadd.f32 %v4244, %v4245
      %v4247 = vsel %vm4211, %v4087, 0.0
      %v4248 = vadd.f32 %v4246, %v4247
      %v4249 = vsel %vm4211, %v4088, 0.0
      %v4250 = vadd.f32 %v4248, %v4249
      %v4251 = vsel %vm4211, %v4089, 0.0
      %v4252 = vadd.f32 %v4250, %v4251
      %v4253 = vsel %vm4211, %v4090, 0.0
      %v4254 = vadd.f32 %v4252, %v4253
      %v4255 = vsel %vm4211, %v4091, 0.0
      %v4256 = vadd.f32 %v4254, %v4255
      %v4257 = vsel %vm4211, %v4092, 0.0
      %v4258 = vadd.f32 %v4256, %v4257
      %v4259 = vsel %vm4211, %v4093, 0.0
      %v4260 = vadd.f32 %v4258, %v4259
      %v4261 = vsel %vm4211, %v4094, 0.0
      %v4262 = vadd.f32 %v4260, %v4261
      %v4263 = vsel %vm4211, %v4095, 0.0
      %v4264 = vadd.f32 %v4262, %v4263
      %v4265 = vsel %vm4211, %v4096, 0.0
      %v4266 = vadd.f32 %v4264, %v4265
      %v4267 = vsel %vm4211, %v4097, 0.0
      %v4268 = vadd.f32 %v4266, %v4267
      %v4269 = vsel %vm4211, %v4098, 0.0
      %v4270 = vadd.f32 %v4268, %v4269
      %v4271 = vsel %vm4211, %v4099, 0.0
      %v4272 = vadd.f32 %v4270, %v4271
      %v4273 = vsel %vm4211, %v4100, 0.0
      %v4274 = vadd.f32 %v4272, %v4273
      %v4275 = vrot.slane %v4274, 4
      %v4276 = vadd.f32 %v4274, %v4275
      %v4277 = vrot.slane %v4276, 2
      %v4278 = vadd.f32 %v4276, %v4277
      %v4279 = vrot.slane %v4278, 1
      %v4280 = vadd.f32 %v4278, %v4279
      %v4281 = vrsqrt.pop %v4280
      %v4282 = vmul.f32 %v4280, %v4281
      %vm4283 = vcmp.eq.f32.partialorder %v4280, inf
      %v4284 = vsel %vm4283, %v4280, %v4282
      %vm4285 = vcmp.eq.f32.partialorder %v4280, 0.0
      %v4286 = vand.u32 %v4280, 2147483648
      %v4287 = vsel %vm4285, %v4286, %v4284
      %v4288 = vmax.f32 %v4287, 1e-12
      %v4289 = vrcp.pop %v4288
      %v4290 = vmul.f32 %v4005, %v4289
      %v4291 = vmul.f32 %v4007, %v4289
      %v4292 = vmul.f32 %v4009, %v4289
      %v4293 = vmul.f32 %v4011, %v4289
      %v4294 = vmul.f32 %v4013, %v4289
      %v4295 = vmul.f32 %v4015, %v4289
      %v4296 = vmul.f32 %v4017, %v4289
      %v4297 = vmul.f32 %v4019, %v4289
      %v4298 = vmul.f32 %v4021, %v4289
      %v4299 = vmul.f32 %v4023, %v4289
      %v4300 = vmul.f32 %v4025, %v4289
      %v4301 = vmul.f32 %v4027, %v4289
      %v4302 = vmul.f32 %v4029, %v4289
      %v4303 = vmul.f32 %v4031, %v4289
      %v4304 = vmul.f32 %v4033, %v4289
      %v4305 = vmul.f32 %v4035, %v4289
      %v4306 = vmul.f32 %v4037, %v4289
      %v4307 = vmul.f32 %v4039, %v4289
      %v4308 = vmul.f32 %v4041, %v4289
      %v4309 = vmul.f32 %v4043, %v4289
      %v4310 = vmul.f32 %v4045, %v4289
      %v4311 = vmul.f32 %v4047, %v4289
      %v4312 = vmul.f32 %v4049, %v4289
      %v4313 = vmul.f32 %v4051, %v4289
      %v4314 = vmul.f32 %v4053, %v4289
      %v4315 = vmul.f32 %v4055, %v4289
      %v4316 = vmul.f32 %v4057, %v4289
      %v4317 = vmul.f32 %v4059, %v4289
      %v4318 = vmul.f32 %v4061, %v4289
      %v4319 = vmul.f32 %v4063, %v4289
      %v4320 = vmul.f32 %v4065, %v4289
      %v4321 = vmul.f32 %v4067, %v4289
      %4322 = vxpose.xlu0.b32.start [1/16] %v4179, 128
      %4323 = vxpose.xlu0.b32.cont [2/16] %v4180, 128
      %4324 = vxpose.xlu0.b32.cont [3/16] %v4181, 128
      %4325 = vxpose.xlu0.b32.cont [4/16] %v4182, 128
      %4326 = vxpose.xlu0.b32.cont [5/16] %v4183, 128
      %4327 = vxpose.xlu0.b32.cont [6/16] %v4184, 128
      %4328 = vxpose.xlu0.b32.cont [7/16] %v4185, 128
      %4329 = vxpose.xlu0.b32.cont [8/16] %v4186, 128
      %4330 = vxpose.xlu0.b32.cont [9/16] %v4187, 128
      %4331 = vxpose.xlu0.b32.cont [10/16] %v4188, 128
      %4332 = vxpose.xlu0.b32.cont [11/16] %v4189, 128
      %4333 = vxpose.xlu0.b32.cont [12/16] %v4190, 128
      %4334 = vxpose.xlu0.b32.cont [13/16] %v4191, 128
      %4335 = vxpose.xlu0.b32.cont [14/16] %v4192, 128
      %4336 = vxpose.xlu0.b32.cont [15/16] %v4193, 128
      %4337 = vxpose.xlu0.b32.end [16/16] %v4194, 128
      %v4338 = vpop.trf.xlu0
      %v4339 = vpop.trf.xlu0
      %v4340 = vpop.trf.xlu0
      %v4341 = vpop.trf.xlu0
      %v4342 = vpop.trf.xlu0
      %v4343 = vpop.trf.xlu0
      %v4344 = vpop.trf.xlu0
      %v4345 = vpop.trf.xlu0
      %v4346 = vpop.trf.xlu0
      %v4347 = vpop.trf.xlu0
      %v4348 = vpop.trf.xlu0
      %v4349 = vpop.trf.xlu0
      %v4350 = vpop.trf.xlu0
      %v4351 = vpop.trf.xlu0
      %v4352 = vpop.trf.xlu0
      %v4353 = vpop.trf.xlu0
      %4354 = vxpose.xlu0.b32.start [1/16] %v4195, 128
      %4355 = vxpose.xlu0.b32.cont [2/16] %v4196, 128
      %4356 = vxpose.xlu0.b32.cont [3/16] %v4197, 128
      %4357 = vxpose.xlu0.b32.cont [4/16] %v4198, 128
      %4358 = vxpose.xlu0.b32.cont [5/16] %v4199, 128
      %4359 = vxpose.xlu0.b32.cont [6/16] %v4200, 128
      %4360 = vxpose.xlu0.b32.cont [7/16] %v4201, 128
      %4361 = vxpose.xlu0.b32.cont [8/16] %v4202, 128
      %4362 = vxpose.xlu0.b32.cont [9/16] %v4203, 128
      %4363 = vxpose.xlu0.b32.cont [10/16] %v4204, 128
      %4364 = vxpose.xlu0.b32.cont [11/16] %v4205, 128
      %4365 = vxpose.xlu0.b32.cont [12/16] %v4206, 128
      %4366 = vxpose.xlu0.b32.cont [13/16] %v4207, 128
      %4367 = vxpose.xlu0.b32.cont [14/16] %v4208, 128
      %4368 = vxpose.xlu0.b32.cont [15/16] %v4209, 128
      %4369 = vxpose.xlu0.b32.end [16/16] %v4210, 128
      %v4370 = vpop.trf.xlu0
      %v4371 = vpop.trf.xlu0
      %v4372 = vpop.trf.xlu0
      %v4373 = vpop.trf.xlu0
      %v4374 = vpop.trf.xlu0
      %v4375 = vpop.trf.xlu0
      %v4376 = vpop.trf.xlu0
      %v4377 = vpop.trf.xlu0
      %v4378 = vpop.trf.xlu0
      %v4379 = vpop.trf.xlu0
      %v4380 = vpop.trf.xlu0
      %v4381 = vpop.trf.xlu0
      %v4382 = vpop.trf.xlu0
      %v4383 = vpop.trf.xlu0
      %v4384 = vpop.trf.xlu0
      %v4385 = vpop.trf.xlu0
      %4418 = vrot.lane.b32.xlu0 %v4290, 64
      %v4419 = vpop.permute.xlu0 %4418
      %4420 = vrot.lane.b32.xlu0 %v4291, 64
      %v4421 = vpop.permute.xlu0 %4420
      %4422 = vrot.lane.b32.xlu0 %v4292, 64
      %v4423 = vpop.permute.xlu0 %4422
      %4424 = vrot.lane.b32.xlu0 %v4293, 64
      %v4425 = vpop.permute.xlu0 %4424
      %4426 = vrot.lane.b32.xlu0 %v4294, 64
      %v4427 = vpop.permute.xlu0 %4426
      %4428 = vrot.lane.b32.xlu0 %v4295, 64
      %v4429 = vpop.permute.xlu0 %4428
      %4430 = vrot.lane.b32.xlu0 %v4296, 64
      %v4431 = vpop.permute.xlu0 %4430
      %4432 = vrot.lane.b32.xlu0 %v4297, 64
      %v4433 = vpop.permute.xlu0 %4432
      %4434 = vrot.lane.b32.xlu0 %v4298, 64
      %v4435 = vpop.permute.xlu0 %4434
      %4436 = vrot.lane.b32.xlu0 %v4299, 64
      %v4437 = vpop.permute.xlu0 %4436
      %4438 = vrot.lane.b32.xlu0 %v4300, 64
      %v4439 = vpop.permute.xlu0 %4438
      %4440 = vrot.lane.b32.xlu0 %v4301, 64
      %v4441 = vpop.permute.xlu0 %4440
      %4442 = vrot.lane.b32.xlu0 %v4302, 64
      %v4443 = vpop.permute.xlu0 %4442
      %4444 = vrot.lane.b32.xlu0 %v4303, 64
      %v4445 = vpop.permute.xlu0 %4444
      %4446 = vrot.lane.b32.xlu0 %v4304, 64
      %v4447 = vpop.permute.xlu0 %4446
      %4448 = vrot.lane.b32.xlu0 %v4305, 64
      %v4449 = vpop.permute.xlu0 %4448
      %4450 = vrot.lane.b32.xlu0 %v4306, 64
      %v4451 = vpop.permute.xlu0 %4450
      %4452 = vrot.lane.b32.xlu0 %v4307, 64
      %v4453 = vpop.permute.xlu0 %4452
      %4454 = vrot.lane.b32.xlu0 %v4308, 64
      %v4455 = vpop.permute.xlu0 %4454
      %4456 = vrot.lane.b32.xlu0 %v4309, 64
      %v4457 = vpop.permute.xlu0 %4456
      %4458 = vrot.lane.b32.xlu0 %v4310, 64
      %v4459 = vpop.permute.xlu0 %4458
      %4460 = vrot.lane.b32.xlu0 %v4311, 64
      %v4461 = vpop.permute.xlu0 %4460
      %4462 = vrot.lane.b32.xlu0 %v4312, 64
      %v4463 = vpop.permute.xlu0 %4462
      %4464 = vrot.lane.b32.xlu0 %v4313, 64
      %v4465 = vpop.permute.xlu0 %4464
      %4466 = vrot.lane.b32.xlu0 %v4314, 64
      %v4467 = vpop.permute.xlu0 %4466
      %4468 = vrot.lane.b32.xlu0 %v4315, 64
      %v4469 = vpop.permute.xlu0 %4468
      %4470 = vrot.lane.b32.xlu0 %v4316, 64
      %v4471 = vpop.permute.xlu0 %4470
      %4472 = vrot.lane.b32.xlu0 %v4317, 64
      %v4473 = vpop.permute.xlu0 %4472
      %4474 = vrot.lane.b32.xlu0 %v4318, 64
      %v4475 = vpop.permute.xlu0 %4474
      %4476 = vrot.lane.b32.xlu0 %v4319, 64
      %v4477 = vpop.permute.xlu0 %4476
      %4478 = vrot.lane.b32.xlu0 %v4320, 64
      %v4479 = vpop.permute.xlu0 %4478
      %4480 = vrot.lane.b32.xlu0 %v4321, 64
      %v4481 = vpop.permute.xlu0 %4480
      %4514 = vmatprep.subr.mxu0 0.0
      %4515 = vmatpush1.msra.mxu0 %v4419
      %4516 = vmatprep.subr.mxu0 0.0
      %4517 = vmatpush1.msra.mxu0 %v4421
      %4518 = vmatprep.subr.mxu0 0.0
      %4519 = vmatpush1.msra.mxu0 %v4423
      %4520 = vmatprep.subr.mxu0 0.0
      %4521 = vmatpush1.msra.mxu0 %v4425
      %4522 = vmatprep.subr.mxu0 0.0
      %4523 = vmatpush1.msra.mxu0 %v4427
      %4524 = vmatprep.subr.mxu0 0.0
      %4525 = vmatpush1.msra.mxu0 %v4429
      %4526 = vmatprep.subr.mxu0 0.0
      %4527 = vmatpush1.msra.mxu0 %v4431
      %4528 = vmatprep.subr.mxu0 0.0
      %4529 = vmatpush1.msra.mxu0 %v4433
      %4530 = vmatprep.subr.mxu0 0.0
      %4531 = vmatpush1.msra.mxu0 %v4435
      %4532 = vmatprep.subr.mxu0 0.0
      %4533 = vmatpush1.msra.mxu0 %v4437
      %4534 = vmatprep.subr.mxu0 0.0
      %4535 = vmatpush1.msra.mxu0 %v4439
      %4536 = vmatprep.subr.mxu0 0.0
      %4537 = vmatpush1.msra.mxu0 %v4441
      %4538 = vmatprep.subr.mxu0 0.0
      %4539 = vmatpush1.msra.mxu0 %v4443
      %4540 = vmatprep.subr.mxu0 0.0
      %4541 = vmatpush1.msra.mxu0 %v4445
      %4542 = vmatprep.subr.mxu0 0.0
      %4543 = vmatpush1.msra.mxu0 %v4447
      %4544 = vmatprep.subr.mxu0 0.0
      %4545 = vmatpush1.msra.mxu0 %v4449
      %4546 = vmatprep.subr.mxu0 0.0
      %4547 = vmatpush1.msra.mxu0 %v4451
      %4548 = vmatprep.subr.mxu0 0.0
      %4549 = vmatpush1.msra.mxu0 %v4453
      %4550 = vmatprep.subr.mxu0 0.0
      %4551 = vmatpush1.msra.mxu0 %v4455
      %4552 = vmatprep.subr.mxu0 0.0
      %4553 = vmatpush1.msra.mxu0 %v4457
      %4554 = vmatprep.subr.mxu0 0.0
      %4555 = vmatpush1.msra.mxu0 %v4459
      %4556 = vmatprep.subr.mxu0 0.0
      %4557 = vmatpush1.msra.mxu0 %v4461
      %4558 = vmatprep.subr.mxu0 0.0
      %4559 = vmatpush1.msra.mxu0 %v4463
      %4560 = vmatprep.subr.mxu0 0.0
      %4561 = vmatpush1.msra.mxu0 %v4465
      %4562 = vmatprep.subr.mxu0 0.0
      %4563 = vmatpush1.msra.mxu0 %v4467
      %4564 = vmatprep.subr.mxu0 0.0
      %4565 = vmatpush1.msra.mxu0 %v4469
      %4566 = vmatprep.subr.mxu0 0.0
      %4567 = vmatpush1.msra.mxu0 %v4471
      %4568 = vmatprep.subr.mxu0 0.0
      %4569 = vmatpush1.msra.mxu0 %v4473
      %4570 = vmatprep.subr.mxu0 0.0
      %4571 = vmatpush1.msra.mxu0 %v4475
      %4572 = vmatprep.subr.mxu0 0.0
      %4573 = vmatpush1.msra.mxu0 %v4477
      %4574 = vmatprep.subr.mxu0 0.0
      %4575 = vmatpush1.msra.mxu0 %v4479
      %4576 = vmatprep.subr.mxu0 0.0
      %4577 = vmatpush1.msra.mxu0 %v4481
      %4578 = vmatprep.mubr.f32.mxu0 %v4370
      %4579 = vmatmul.mubr.f32.gmra.mrb[0].mxu0 %v4338
      %v4580 = vpop.f32.mrb[0].mxu0
      %v4581 = vadd.f32 0.0, %v4580
      %v4582 = vpop.f32.mrb[0].mxu0
      %4583 = vmatprep.mubr.f32.mxu0 %v4371
      %4584 = vmatmul.mubr.f32.gmra.mrb[0].mxu0 %v4339
      %v4585 = vpop.f32.mrb[0].mxu0
      %v4586 = vadd.f32 0.0, %v4585
      %v4587 = vpop.f32.mrb[0].mxu0
      %4588 = vmatprep.mubr.f32.mxu0 %v4372
      %4589 = vmatmul.mubr.f32.gmra.mrb[0].mxu0 %v4340
      %v4590 = vpop.f32.mrb[0].mxu0
      %v4591 = vadd.f32 0.0, %v4590
      %v4592 = vpop.f32.mrb[0].mxu0
      %4593 = vmatprep.mubr.f32.mxu0 %v4373
      %4594 = vmatmul.mubr.f32.gmra.mrb[0].mxu0 %v4341
      %v4595 = vpop.f32.mrb[0].mxu0
      %v4596 = vadd.f32 0.0, %v4595
      %v4597 = vpop.f32.mrb[0].mxu0
      %4598 = vmatprep.mubr.f32.mxu0 %v4374
      %4599 = vmatmul.mubr.f32.gmra.mrb[0].mxu0 %v4342
      %v4600 = vpop.f32.mrb[0].mxu0
      %v4601 = vadd.f32 0.0, %v4600
      %v4602 = vpop.f32.mrb[0].mxu0
      %4603 = vmatprep.mubr.f32.mxu0 %v4375
      %4604 = vmatmul.mubr.f32.gmra.mrb[0].mxu0 %v4343
      %v4605 = vpop.f32.mrb[0].mxu0
      %v4606 = vadd.f32 0.0, %v4605
      %v4607 = vpop.f32.mrb[0].mxu0
      %4608 = vmatprep.mubr.f32.mxu0 %v4376
      %4609 = vmatmul.mubr.f32.gmra.mrb[0].mxu0 %v4344
      %v4610 = vpop.f32.mrb[0].mxu0
      %v4611 = vadd.f32 0.0, %v4610
      %v4612 = vpop.f32.mrb[0].mxu0
      %4613 = vmatprep.mubr.f32.mxu0 %v4377
      %4614 = vmatmul.mubr.f32.gmra.mrb[0].mxu0 %v4345
      %v4615 = vpop.f32.mrb[0].mxu0
      %v4616 = vadd.f32 0.0, %v4615
      %v4617 = vpop.f32.mrb[0].mxu0
      %4618 = vdwg.mxu0
      %v4619 = vld [vmem:[%s6] sm:$0x1]
      %v4621 = vlaneseq
      %v4622 = vshrl.u32 %v4621, 7
      %v4623 = vsub.s32 0, %v4622
      %v4624 = vrot.slane %v4619, %v4623
      %v4626 = vmul.f32 %v4581, %v4624
      %v4627 = vmul.f32 %v4586, %v4624
      %v4628 = vmul.f32 %v4591, %v4624
      %v4629 = vmul.f32 %v4596, %v4624
      %v4630 = vmul.f32 %v4601, %v4624
      %v4631 = vmul.f32 %v4606, %v4624
      %v4632 = vmul.f32 %v4611, %v4624
      %v4633 = vmul.f32 %v4616, %v4624
      %v4634 = vld [vmem:[%s7] sm:$0xff]
      %v4635 = vld [vmem:[%s7 + $0x8] sm:$0xff]
      %v4636 = vld [vmem:[%s7 + $0x10] sm:$0xff]
      %v4637 = vld [vmem:[%s7 + $0x18] sm:$0xff]
      %v4638 = vld [vmem:[%s7 + $0x20] sm:$0xff]
      %v4639 = vld [vmem:[%s7 + $0x28] sm:$0xff]
      %v4640 = vld [vmem:[%s7 + $0x30] sm:$0xff]
      %v4641 = vld [vmem:[%s7 + $0x38] sm:$0xff]
      %vm4642 = vcmp.gt.f32.partialorder %v4634, 0.5
      %vm4643 = vcmp.gt.f32.partialorder %v4635, 0.5
      %vm4644 = vcmp.gt.f32.partialorder %v4636, 0.5
      %vm4645 = vcmp.gt.f32.partialorder %v4637, 0.5
      %vm4646 = vcmp.gt.f32.partialorder %v4638, 0.5
      %vm4647 = vcmp.gt.f32.partialorder %v4639, 0.5
      %vm4648 = vcmp.gt.f32.partialorder %v4640, 0.5
      %vm4649 = vcmp.gt.f32.partialorder %v4641, 0.5
      %v4650 = vsel %vm4642, %v4626, -1e+30
      %v4651 = vsel %vm4643, %v4627, -1e+30
      %v4652 = vsel %vm4644, %v4628, -1e+30
      %v4653 = vsel %vm4645, %v4629, -1e+30
      %v4654 = vsel %vm4646, %v4630, -1e+30
      %v4655 = vsel %vm4647, %v4631, -1e+30
      %v4656 = vsel %vm4648, %v4632, -1e+30
      %v4657 = vsel %vm4649, %v4633, -1e+30
      %v4658 = vsel %vm473, %v4650, -inf
      %4659 = vmax.xlane.f32.xlu0 %v4658
      %v4660 = vpop.xlane.xlu0 %4659
      %v4661 = vsel %vm473, %v4651, -inf
      %4662 = vmax.xlane.f32.xlu0 %v4661
      %v4663 = vpop.xlane.xlu0 %4662
      %v4664 = vsel %vm473, %v4652, -inf
      %4665 = vmax.xlane.f32.xlu0 %v4664
      %v4666 = vpop.xlane.xlu0 %4665
      %v4667 = vsel %vm473, %v4653, -inf
      %4668 = vmax.xlane.f32.xlu0 %v4667
      %v4669 = vpop.xlane.xlu0 %4668
      %v4670 = vsel %vm473, %v4654, -inf
      %4671 = vmax.xlane.f32.xlu0 %v4670
      %v4672 = vpop.xlane.xlu0 %4671
      %v4673 = vsel %vm473, %v4655, -inf
      %4674 = vmax.xlane.f32.xlu0 %v4673
      %v4675 = vpop.xlane.xlu0 %4674
      %v4676 = vsel %vm473, %v4656, -inf
      %4677 = vmax.xlane.f32.xlu0 %v4676
      %v4678 = vpop.xlane.xlu0 %4677
      %v4679 = vsel %vm473, %v4657, -inf
      %4680 = vmax.xlane.f32.xlu0 %v4679
      %v4681 = vpop.xlane.xlu0 %4680
      %v4682 = vsub.f32 %v4650, %v4660
      %v4683 = vsub.f32 %v4651, %v4663
      %v4684 = vsub.f32 %v4652, %v4666
      %v4685 = vsub.f32 %v4653, %v4669
      %v4686 = vsub.f32 %v4654, %v4672
      %v4687 = vsub.f32 %v4655, %v4675
      %v4688 = vsub.f32 %v4656, %v4678
      %v4689 = vsub.f32 %v4657, %v4681
      %v4690 = vmul.f32 %v4682, 1.442695
      %v4691 = vpow.pop %v4690
      %v4692 = vmul.f32 %v4683, 1.442695
      %v4693 = vpow.pop %v4692
      %v4694 = vmul.f32 %v4684, 1.442695
      %v4695 = vpow.pop %v4694
      %v4696 = vmul.f32 %v4685, 1.442695
      %v4697 = vpow.pop %v4696
      %v4698 = vmul.f32 %v4686, 1.442695
      %v4699 = vpow.pop %v4698
      %v4700 = vmul.f32 %v4687, 1.442695
      %v4701 = vpow.pop %v4700
      %v4702 = vmul.f32 %v4688, 1.442695
      %v4703 = vpow.pop %v4702
      %v4704 = vmul.f32 %v4689, 1.442695
      %v4705 = vpow.pop %v4704
      %v4706 = vsel %vm473, %v4691, 0.0
      %4707 = vadd.xlane.f32.xlu0 %v4706
      %v4708 = vpop.xlane.xlu0 %4707
      %v4709 = vsel %vm473, %v4693, 0.0
      %4710 = vadd.xlane.f32.xlu0 %v4709
      %v4711 = vpop.xlane.xlu0 %4710
      %v4712 = vsel %vm473, %v4695, 0.0
      %4713 = vadd.xlane.f32.xlu0 %v4712
      %v4714 = vpop.xlane.xlu0 %4713
      %v4715 = vsel %vm473, %v4697, 0.0
      %4716 = vadd.xlane.f32.xlu0 %v4715
      %v4717 = vpop.xlane.xlu0 %4716
      %v4718 = vsel %vm473, %v4699, 0.0
      %4719 = vadd.xlane.f32.xlu0 %v4718
      %v4720 = vpop.xlane.xlu0 %4719
      %v4721 = vsel %vm473, %v4701, 0.0
      %4722 = vadd.xlane.f32.xlu0 %v4721
      %v4723 = vpop.xlane.xlu0 %4722
      %v4724 = vsel %vm473, %v4703, 0.0
      %4725 = vadd.xlane.f32.xlu0 %v4724
      %v4726 = vpop.xlane.xlu0 %4725
      %v4727 = vsel %vm473, %v4705, 0.0
      %4728 = vadd.xlane.f32.xlu0 %v4727
      %v4729 = vpop.xlane.xlu0 %4728
      %v4730 = vrcp.pop %v4708
      %v4731 = vmul.f32 %v4691, %v4730
      %v4732 = vrcp.pop %v4711
      %v4733 = vmul.f32 %v4693, %v4732
      %v4734 = vrcp.pop %v4714
      %v4735 = vmul.f32 %v4695, %v4734
      %v4736 = vrcp.pop %v4717
      %v4737 = vmul.f32 %v4697, %v4736
      %v4738 = vrcp.pop %v4720
      %v4739 = vmul.f32 %v4699, %v4738
      %v4740 = vrcp.pop %v4723
      %v4741 = vmul.f32 %v4701, %v4740
      %v4742 = vrcp.pop %v4726
      %v4743 = vmul.f32 %v4703, %v4742
      %v4744 = vrcp.pop %v4729
      %v4745 = vmul.f32 %v4705, %v4744
      %v4747 = vsel %vm473, %v4006, 0
      %v4750 = vsel %vm473, %v4008, 0
      %v4753 = vsel %vm473, %v4010, 0
      %v4756 = vsel %vm473, %v4012, 0
      %v4759 = vsel %vm473, %v4014, 0
      %v4762 = vsel %vm473, %v4016, 0
      %v4765 = vsel %vm473, %v4018, 0
      %v4768 = vsel %vm473, %v4020, 0
      %v4771 = vsel %vm473, %v4022, 0
      %v4774 = vsel %vm473, %v4024, 0
      %v4777 = vsel %vm473, %v4026, 0
      %v4780 = vsel %vm473, %v4028, 0
      %v4783 = vsel %vm473, %v4030, 0
      %v4786 = vsel %vm473, %v4032, 0
      %v4789 = vsel %vm473, %v4034, 0
      %v4792 = vsel %vm473, %v4036, 0
      %v4795 = vsel %vm473, %v4038, 0
      %v4798 = vsel %vm473, %v4040, 0
      %v4801 = vsel %vm473, %v4042, 0
      %v4804 = vsel %vm473, %v4044, 0
      %v4807 = vsel %vm473, %v4046, 0
      %v4810 = vsel %vm473, %v4048, 0
      %v4813 = vsel %vm473, %v4050, 0
      %v4816 = vsel %vm473, %v4052, 0
      %v4819 = vsel %vm473, %v4054, 0
      %v4822 = vsel %vm473, %v4056, 0
      %v4825 = vsel %vm473, %v4058, 0
      %v4828 = vsel %vm473, %v4060, 0
      %v4831 = vsel %vm473, %v4062, 0
      %v4834 = vsel %vm473, %v4064, 0
      %v4837 = vsel %vm473, %v4066, 0
      %v4840 = vsel %vm473, %v4068, 0
      %v4843 = vsel %vm473, %v4731, 0
      %v4846 = vsel %vm473, %v4733, 0
      %v4849 = vsel %vm473, %v4735, 0
      %v4852 = vsel %vm473, %v4737, 0
      %v4855 = vsel %vm473, %v4739, 0
      %v4858 = vsel %vm473, %v4741, 0
      %v4861 = vsel %vm473, %v4743, 0
      %v4864 = vsel %vm473, %v4745, 0
      %4866 = vmatprep.subr.mxu0 0.0
      %4867 = vmatpush1.xpose.msra.mxu0 %v4843
      %4868 = vmatprep.subr.mxu0 0.0
      %4869 = vmatpush1.xpose.msra.mxu0 %v4846
      %4870 = vmatprep.subr.mxu0 0.0
      %4871 = vmatpush1.xpose.msra.mxu0 %v4849
      %4872 = vmatprep.subr.mxu0 0.0
      %4873 = vmatpush1.xpose.msra.mxu0 %v4852
      %4874 = vmatprep.subr.mxu0 0.0
      %4875 = vmatpush1.xpose.msra.mxu0 %v4855
      %4876 = vmatprep.subr.mxu0 0.0
      %4877 = vmatpush1.xpose.msra.mxu0 %v4858
      %4878 = vmatprep.subr.mxu0 0.0
      %4879 = vmatpush1.xpose.msra.mxu0 %v4861
      %4880 = vmatprep.subr.mxu0 0.0
      %4881 = vmatpush1.xpose.msra.mxu0 %v4864
      %4882 = vmatprep.subr.mxu0 0.0
      %4883 = vmatpush1.xpose.msra.mxu0 0.0
      %4884 = vmatprep.subr.mxu0 0.0
      %4885 = vmatpush1.xpose.msra.mxu0 0.0
      %4886 = vmatprep.subr.mxu0 0.0
      %4887 = vmatpush1.xpose.msra.mxu0 0.0
      %4888 = vmatprep.subr.mxu0 0.0
      %4889 = vmatpush1.xpose.msra.mxu0 0.0
      %4890 = vmatprep.subr.mxu0 0.0
      %4891 = vmatpush1.xpose.msra.mxu0 0.0
      %4892 = vmatprep.subr.mxu0 0.0
      %4893 = vmatpush1.xpose.msra.mxu0 0.0
      %4894 = vmatprep.subr.mxu0 0.0
      %4895 = vmatpush1.xpose.msra.mxu0 0.0
      %4896 = vmatprep.subr.mxu0 0.0
      %4897 = vmatpush1.xpose.msra.mxu0 0.0
      %4898 = vmatprep.subr.mxu0 0.0
      %4899 = vmatpush1.xpose.msra.mxu0 0.0
      %4900 = vmatprep.subr.mxu0 0.0
      %4901 = vmatpush1.xpose.msra.mxu0 0.0
      %4902 = vmatprep.subr.mxu0 0.0
      %4903 = vmatpush1.xpose.msra.mxu0 0.0
      %4904 = vmatprep.subr.mxu0 0.0
      %4905 = vmatpush1.xpose.msra.mxu0 0.0
      %4906 = vmatprep.subr.mxu0 0.0
      %4907 = vmatpush1.xpose.msra.mxu0 0.0
      %4908 = vmatprep.subr.mxu0 0.0
      %4909 = vmatpush1.xpose.msra.mxu0 0.0
      %4910 = vmatprep.subr.mxu0 0.0
      %4911 = vmatpush1.xpose.msra.mxu0 0.0
      %4912 = vmatprep.subr.mxu0 0.0
      %4913 = vmatpush1.xpose.msra.mxu0 0.0
      %4914 = vmatprep.subr.mxu0 0.0
      %4915 = vmatpush1.xpose.msra.mxu0 0.0
      %4916 = vmatprep.subr.mxu0 0.0
      %4917 = vmatpush1.xpose.msra.mxu0 0.0
      %4918 = vmatprep.subr.mxu0 0.0
      %4919 = vmatpush1.xpose.msra.mxu0 0.0
      %4920 = vmatprep.subr.mxu0 0.0
      %4921 = vmatpush1.xpose.msra.mxu0 0.0
      %4922 = vmatprep.subr.mxu0 0.0
      %4923 = vmatpush1.xpose.msra.mxu0 0.0
      %4924 = vmatprep.subr.mxu0 0.0
      %4925 = vmatpush1.xpose.msra.mxu0 0.0
      %4926 = vmatprep.subr.mxu0 0.0
      %4927 = vmatpush1.xpose.msra.mxu0 0.0
      %4928 = vmatprep.subr.mxu0 0.0
      %4929 = vmatpush1.xpose.msra.mxu0 0.0
      %4930 = vmatprep.mubr.f32.mxu0 0.0
      %4931 = vmatmul.mubr.f32.gmra.mrb[0].mxu0 %v4747
      %v4932 = vpop.f32.mrb[0].mxu0
      %v4933 = vadd.f32 0.0, %v4932
      %v4934 = vpop.f32.mrb[0].mxu0
      %4935 = vmatprep.mubr.f32.mxu0 0.0
      %4936 = vmatmul.mubr.f32.gmra.mrb[0].mxu0 %v4750
      %v4937 = vpop.f32.mrb[0].mxu0
      %v4938 = vadd.f32 0.0, %v4937
      %v4939 = vpop.f32.mrb[0].mxu0
      %4940 = vmatprep.mubr.f32.mxu0 0.0
      %4941 = vmatmul.mubr.f32.gmra.mrb[0].mxu0 %v4753
      %v4942 = vpop.f32.mrb[0].mxu0
      %v4943 = vadd.f32 0.0, %v4942
      %v4944 = vpop.f32.mrb[0].mxu0
      %4945 = vmatprep.mubr.f32.mxu0 0.0
      %4946 = vmatmul.mubr.f32.gmra.mrb[0].mxu0 %v4756
      %v4947 = vpop.f32.mrb[0].mxu0
      %v4948 = vadd.f32 0.0, %v4947
      %v4949 = vpop.f32.mrb[0].mxu0
      %4950 = vmatprep.mubr.f32.mxu0 0.0
      %4951 = vmatmul.mubr.f32.gmra.mrb[0].mxu0 %v4759
      %v4952 = vpop.f32.mrb[0].mxu0
      %v4953 = vadd.f32 0.0, %v4952
      %v4954 = vpop.f32.mrb[0].mxu0
      %4955 = vmatprep.mubr.f32.mxu0 0.0
      %4956 = vmatmul.mubr.f32.gmra.mrb[0].mxu0 %v4762
      %v4957 = vpop.f32.mrb[0].mxu0
      %v4958 = vadd.f32 0.0, %v4957
      %v4959 = vpop.f32.mrb[0].mxu0
      %4960 = vmatprep.mubr.f32.mxu0 0.0
      %4961 = vmatmul.mubr.f32.gmra.mrb[0].mxu0 %v4765
      %v4962 = vpop.f32.mrb[0].mxu0
      %v4963 = vadd.f32 0.0, %v4962
      %v4964 = vpop.f32.mrb[0].mxu0
      %4965 = vmatprep.mubr.f32.mxu0 0.0
      %4966 = vmatmul.mubr.f32.gmra.mrb[0].mxu0 %v4768
      %v4967 = vpop.f32.mrb[0].mxu0
      %v4968 = vadd.f32 0.0, %v4967
      %v4969 = vpop.f32.mrb[0].mxu0
      %4970 = vmatprep.mubr.f32.mxu0 0.0
      %4971 = vmatmul.mubr.f32.gmra.mrb[0].mxu0 %v4771
      %v4972 = vpop.f32.mrb[0].mxu0
      %v4973 = vadd.f32 0.0, %v4972
      %v4974 = vpop.f32.mrb[0].mxu0
      %4975 = vmatprep.mubr.f32.mxu0 0.0
      %4976 = vmatmul.mubr.f32.gmra.mrb[0].mxu0 %v4774
      %v4977 = vpop.f32.mrb[0].mxu0
      %v4978 = vadd.f32 0.0, %v4977
      %v4979 = vpop.f32.mrb[0].mxu0
      %4980 = vmatprep.mubr.f32.mxu0 0.0
      %4981 = vmatmul.mubr.f32.gmra.mrb[0].mxu0 %v4777
      %v4982 = vpop.f32.mrb[0].mxu0
      %v4983 = vadd.f32 0.0, %v4982
      %v4984 = vpop.f32.mrb[0].mxu0
      %4985 = vmatprep.mubr.f32.mxu0 0.0
      %4986 = vmatmul.mubr.f32.gmra.mrb[0].mxu0 %v4780
      %v4987 = vpop.f32.mrb[0].mxu0
      %v4988 = vadd.f32 0.0, %v4987
      %v4989 = vpop.f32.mrb[0].mxu0
      %4990 = vmatprep.mubr.f32.mxu0 0.0
      %4991 = vmatmul.mubr.f32.gmra.mrb[0].mxu0 %v4783
      %v4992 = vpop.f32.mrb[0].mxu0
      %v4993 = vadd.f32 0.0, %v4992
      %v4994 = vpop.f32.mrb[0].mxu0
      %4995 = vmatprep.mubr.f32.mxu0 0.0
      %4996 = vmatmul.mubr.f32.gmra.mrb[0].mxu0 %v4786
      %v4997 = vpop.f32.mrb[0].mxu0
      %v4998 = vadd.f32 0.0, %v4997
      %v4999 = vpop.f32.mrb[0].mxu0
      %5000 = vmatprep.mubr.f32.mxu0 0.0
      %5001 = vmatmul.mubr.f32.gmra.mrb[0].mxu0 %v4789
      %v5002 = vpop.f32.mrb[0].mxu0
      %v5003 = vadd.f32 0.0, %v5002
      %v5004 = vpop.f32.mrb[0].mxu0
      %5005 = vmatprep.mubr.f32.mxu0 0.0
      %5006 = vmatmul.mubr.f32.gmra.mrb[0].mxu0 %v4792
      %v5007 = vpop.f32.mrb[0].mxu0
      %v5008 = vadd.f32 0.0, %v5007
      %v5009 = vpop.f32.mrb[0].mxu0
      %5010 = vmatprep.mubr.f32.mxu0 0.0
      %5011 = vmatmul.mubr.f32.gmra.mrb[0].mxu0 %v4795
      %v5012 = vpop.f32.mrb[0].mxu0
      %v5013 = vadd.f32 0.0, %v5012
      %v5014 = vpop.f32.mrb[0].mxu0
      %5015 = vmatprep.mubr.f32.mxu0 0.0
      %5016 = vmatmul.mubr.f32.gmra.mrb[0].mxu0 %v4798
      %v5017 = vpop.f32.mrb[0].mxu0
      %v5018 = vadd.f32 0.0, %v5017
      %v5019 = vpop.f32.mrb[0].mxu0
      %5020 = vmatprep.mubr.f32.mxu0 0.0
      %5021 = vmatmul.mubr.f32.gmra.mrb[0].mxu0 %v4801
      %v5022 = vpop.f32.mrb[0].mxu0
      %v5023 = vadd.f32 0.0, %v5022
      %v5024 = vpop.f32.mrb[0].mxu0
      %5025 = vmatprep.mubr.f32.mxu0 0.0
      %5026 = vmatmul.mubr.f32.gmra.mrb[0].mxu0 %v4804
      %v5027 = vpop.f32.mrb[0].mxu0
      %v5028 = vadd.f32 0.0, %v5027
      %v5029 = vpop.f32.mrb[0].mxu0
      %5030 = vmatprep.mubr.f32.mxu0 0.0
      %5031 = vmatmul.mubr.f32.gmra.mrb[0].mxu0 %v4807
      %v5032 = vpop.f32.mrb[0].mxu0
      %v5033 = vadd.f32 0.0, %v5032
      %v5034 = vpop.f32.mrb[0].mxu0
      %5035 = vmatprep.mubr.f32.mxu0 0.0
      %5036 = vmatmul.mubr.f32.gmra.mrb[0].mxu0 %v4810
      %v5037 = vpop.f32.mrb[0].mxu0
      %v5038 = vadd.f32 0.0, %v5037
      %v5039 = vpop.f32.mrb[0].mxu0
      %5040 = vmatprep.mubr.f32.mxu0 0.0
      %5041 = vmatmul.mubr.f32.gmra.mrb[0].mxu0 %v4813
      %v5042 = vpop.f32.mrb[0].mxu0
      %v5043 = vadd.f32 0.0, %v5042
      %v5044 = vpop.f32.mrb[0].mxu0
      %5045 = vmatprep.mubr.f32.mxu0 0.0
      %5046 = vmatmul.mubr.f32.gmra.mrb[0].mxu0 %v4816
      %v5047 = vpop.f32.mrb[0].mxu0
      %v5048 = vadd.f32 0.0, %v5047
      %v5049 = vpop.f32.mrb[0].mxu0
      %5050 = vmatprep.mubr.f32.mxu0 0.0
      %5051 = vmatmul.mubr.f32.gmra.mrb[0].mxu0 %v4819
      %v5052 = vpop.f32.mrb[0].mxu0
      %v5053 = vadd.f32 0.0, %v5052
      %v5054 = vpop.f32.mrb[0].mxu0
      %5055 = vmatprep.mubr.f32.mxu0 0.0
      %5056 = vmatmul.mubr.f32.gmra.mrb[0].mxu0 %v4822
      %v5057 = vpop.f32.mrb[0].mxu0
      %v5058 = vadd.f32 0.0, %v5057
      %v5059 = vpop.f32.mrb[0].mxu0
      %5060 = vmatprep.mubr.f32.mxu0 0.0
      %5061 = vmatmul.mubr.f32.gmra.mrb[0].mxu0 %v4825
      %v5062 = vpop.f32.mrb[0].mxu0
      %v5063 = vadd.f32 0.0, %v5062
      %v5064 = vpop.f32.mrb[0].mxu0
      %5065 = vmatprep.mubr.f32.mxu0 0.0
      %5066 = vmatmul.mubr.f32.gmra.mrb[0].mxu0 %v4828
      %v5067 = vpop.f32.mrb[0].mxu0
      %v5068 = vadd.f32 0.0, %v5067
      %v5069 = vpop.f32.mrb[0].mxu0
      %5070 = vmatprep.mubr.f32.mxu0 0.0
      %5071 = vmatmul.mubr.f32.gmra.mrb[0].mxu0 %v4831
      %v5072 = vpop.f32.mrb[0].mxu0
      %v5073 = vadd.f32 0.0, %v5072
      %v5074 = vpop.f32.mrb[0].mxu0
      %5075 = vmatprep.mubr.f32.mxu0 0.0
      %5076 = vmatmul.mubr.f32.gmra.mrb[0].mxu0 %v4834
      %v5077 = vpop.f32.mrb[0].mxu0
      %v5078 = vadd.f32 0.0, %v5077
      %v5079 = vpop.f32.mrb[0].mxu0
      %5080 = vmatprep.mubr.f32.mxu0 0.0
      %5081 = vmatmul.mubr.f32.gmra.mrb[0].mxu0 %v4837
      %v5082 = vpop.f32.mrb[0].mxu0
      %v5083 = vadd.f32 0.0, %v5082
      %v5084 = vpop.f32.mrb[0].mxu0
      %5085 = vmatprep.mubr.f32.mxu0 0.0
      %5086 = vmatmul.mubr.f32.gmra.mrb[0].mxu0 %v4840
      %v5087 = vpop.f32.mrb[0].mxu0
      %v5088 = vadd.f32 0.0, %v5087
      %v5089 = vpop.f32.mrb[0].mxu0
      %5090 = vdwg.mxu0
      %v5091 = vld [vmem:[%s8] sm:$0xff]
      %v5092 = vld [vmem:[%s8 + $0x8] sm:$0xff]
      %v5093 = vld [vmem:[%s8 + $0x10] sm:$0xff]
      %v5094 = vld [vmem:[%s8 + $0x18] sm:$0xff]
      %v5095 = vld [vmem:[%s8 + $0x20] sm:$0xff]
      %v5096 = vld [vmem:[%s8 + $0x28] sm:$0xff]
      %v5097 = vld [vmem:[%s8 + $0x30] sm:$0xff]
      %v5098 = vld [vmem:[%s8 + $0x38] sm:$0xff]
      %v5100 = vsel %vm473, %v4933, 0
      %v5103 = vsel %vm473, %v4938, 0
      %v5106 = vsel %vm473, %v4943, 0
      %v5109 = vsel %vm473, %v4948, 0
      %v5112 = vsel %vm473, %v4953, 0
      %v5115 = vsel %vm473, %v4958, 0
      %v5118 = vsel %vm473, %v4963, 0
      %v5121 = vsel %vm473, %v4968, 0
      %v5124 = vsel %vm473, %v4973, 0
      %v5127 = vsel %vm473, %v4978, 0
      %v5130 = vsel %vm473, %v4983, 0
      %v5133 = vsel %vm473, %v4988, 0
      %v5136 = vsel %vm473, %v4993, 0
      %v5139 = vsel %vm473, %v4998, 0
      %v5142 = vsel %vm473, %v5003, 0
      %v5145 = vsel %vm473, %v5008, 0
      %v5148 = vsel %vm473, %v5013, 0
      %v5151 = vsel %vm473, %v5018, 0
      %v5154 = vsel %vm473, %v5023, 0
      %v5157 = vsel %vm473, %v5028, 0
      %v5160 = vsel %vm473, %v5033, 0
      %v5163 = vsel %vm473, %v5038, 0
      %v5166 = vsel %vm473, %v5043, 0
      %v5169 = vsel %vm473, %v5048, 0
      %v5172 = vsel %vm473, %v5053, 0
      %v5175 = vsel %vm473, %v5058, 0
      %v5178 = vsel %vm473, %v5063, 0
      %v5181 = vsel %vm473, %v5068, 0
      %v5184 = vsel %vm473, %v5073, 0
      %v5187 = vsel %vm473, %v5078, 0
      %v5190 = vsel %vm473, %v5083, 0
      %v5193 = vsel %vm473, %v5088, 0
      %5195 = vmatprep.subr.mxu0 0.0
      %5196 = vmatpush1.msra.mxu0 %v5091
      %5197 = vmatprep.subr.mxu0 0.0
      %5198 = vmatpush1.msra.mxu0 %v5092
      %5199 = vmatprep.subr.mxu0 0.0
      %5200 = vmatpush1.msra.mxu0 %v5093
      %5201 = vmatprep.subr.mxu0 0.0
      %5202 = vmatpush1.msra.mxu0 %v5094
      %5203 = vmatprep.subr.mxu0 0.0
      %5204 = vmatpush1.msra.mxu0 %v5095
      %5205 = vmatprep.subr.mxu0 0.0
      %5206 = vmatpush1.msra.mxu0 %v5096
      %5207 = vmatprep.subr.mxu0 0.0
      %5208 = vmatpush1.msra.mxu0 %v5097
      %5209 = vmatprep.subr.mxu0 0.0
      %5210 = vmatpush1.msra.mxu0 %v5098
      %5211 = vmatprep.subr.mxu0 0.0
      %5212 = vmatpush1.msra.mxu0 0.0
      %5213 = vmatprep.subr.mxu0 0.0
      %5214 = vmatpush1.msra.mxu0 0.0
      %5215 = vmatprep.subr.mxu0 0.0
      %5216 = vmatpush1.msra.mxu0 0.0
      %5217 = vmatprep.subr.mxu0 0.0
      %5218 = vmatpush1.msra.mxu0 0.0
      %5219 = vmatprep.subr.mxu0 0.0
      %5220 = vmatpush1.msra.mxu0 0.0
      %5221 = vmatprep.subr.mxu0 0.0
      %5222 = vmatpush1.msra.mxu0 0.0
      %5223 = vmatprep.subr.mxu0 0.0
      %5224 = vmatpush1.msra.mxu0 0.0
      %5225 = vmatprep.subr.mxu0 0.0
      %5226 = vmatpush1.msra.mxu0 0.0
      %5227 = vmatprep.subr.mxu0 0.0
      %5228 = vmatpush1.msra.mxu0 0.0
      %5229 = vmatprep.subr.mxu0 0.0
      %5230 = vmatpush1.msra.mxu0 0.0
      %5231 = vmatprep.subr.mxu0 0.0
      %5232 = vmatpush1.msra.mxu0 0.0
      %5233 = vmatprep.subr.mxu0 0.0
      %5234 = vmatpush1.msra.mxu0 0.0
      %5235 = vmatprep.subr.mxu0 0.0
      %5236 = vmatpush1.msra.mxu0 0.0
      %5237 = vmatprep.subr.mxu0 0.0
      %5238 = vmatpush1.msra.mxu0 0.0
      %5239 = vmatprep.subr.mxu0 0.0
      %5240 = vmatpush1.msra.mxu0 0.0
      %5241 = vmatprep.subr.mxu0 0.0
      %5242 = vmatpush1.msra.mxu0 0.0
      %5243 = vmatprep.subr.mxu0 0.0
      %5244 = vmatpush1.msra.mxu0 0.0
      %5245 = vmatprep.subr.mxu0 0.0
      %5246 = vmatpush1.msra.mxu0 0.0
      %5247 = vmatprep.subr.mxu0 0.0
      %5248 = vmatpush1.msra.mxu0 0.0
      %5249 = vmatprep.subr.mxu0 0.0
      %5250 = vmatpush1.msra.mxu0 0.0
      %5251 = vmatprep.subr.mxu0 0.0
      %5252 = vmatpush1.msra.mxu0 0.0
      %5253 = vmatprep.subr.mxu0 0.0
      %5254 = vmatpush1.msra.mxu0 0.0
      %5255 = vmatprep.subr.mxu0 0.0
      %5256 = vmatpush1.msra.mxu0 0.0
      %5257 = vmatprep.subr.mxu0 0.0
      %5258 = vmatpush1.msra.mxu0 0.0
      %5259 = vmatprep.mubr.f32.mxu0 0.0
      %5260 = vmatmul.mubr.f32.gmra.mrb[0].mxu0 %v5100
      %v5261 = vpop.f32.mrb[0].mxu0
      %v5262 = vadd.f32 0.0, %v5261
      %v5263 = vpop.f32.mrb[0].mxu0
      %5264 = vmatprep.mubr.f32.mxu0 0.0
      %5265 = vmatmul.mubr.f32.gmra.mrb[0].mxu0 %v5103
      %v5266 = vpop.f32.mrb[0].mxu0
      %v5267 = vadd.f32 0.0, %v5266
      %v5268 = vpop.f32.mrb[0].mxu0
      %5269 = vmatprep.mubr.f32.mxu0 0.0
      %5270 = vmatmul.mubr.f32.gmra.mrb[0].mxu0 %v5106
      %v5271 = vpop.f32.mrb[0].mxu0
      %v5272 = vadd.f32 0.0, %v5271
      %v5273 = vpop.f32.mrb[0].mxu0
      %5274 = vmatprep.mubr.f32.mxu0 0.0
      %5275 = vmatmul.mubr.f32.gmra.mrb[0].mxu0 %v5109
      %v5276 = vpop.f32.mrb[0].mxu0
      %v5277 = vadd.f32 0.0, %v5276
      %v5278 = vpop.f32.mrb[0].mxu0
      %5279 = vmatprep.mubr.f32.mxu0 0.0
      %5280 = vmatmul.mubr.f32.gmra.mrb[0].mxu0 %v5112
      %v5281 = vpop.f32.mrb[0].mxu0
      %v5282 = vadd.f32 0.0, %v5281
      %v5283 = vpop.f32.mrb[0].mxu0
      %5284 = vmatprep.mubr.f32.mxu0 0.0
      %5285 = vmatmul.mubr.f32.gmra.mrb[0].mxu0 %v5115
      %v5286 = vpop.f32.mrb[0].mxu0
      %v5287 = vadd.f32 0.0, %v5286
      %v5288 = vpop.f32.mrb[0].mxu0
      %5289 = vmatprep.mubr.f32.mxu0 0.0
      %5290 = vmatmul.mubr.f32.gmra.mrb[0].mxu0 %v5118
      %v5291 = vpop.f32.mrb[0].mxu0
      %v5292 = vadd.f32 0.0, %v5291
      %v5293 = vpop.f32.mrb[0].mxu0
      %5294 = vmatprep.mubr.f32.mxu0 0.0
      %5295 = vmatmul.mubr.f32.gmra.mrb[0].mxu0 %v5121
      %v5296 = vpop.f32.mrb[0].mxu0
      %v5297 = vadd.f32 0.0, %v5296
      %v5298 = vpop.f32.mrb[0].mxu0
      %5299 = vmatprep.mubr.f32.mxu0 0.0
      %5300 = vmatmul.mubr.f32.gmra.mrb[0].mxu0 %v5124
      %v5301 = vpop.f32.mrb[0].mxu0
      %v5302 = vadd.f32 0.0, %v5301
      %v5303 = vpop.f32.mrb[0].mxu0
      %5304 = vmatprep.mubr.f32.mxu0 0.0
      %5305 = vmatmul.mubr.f32.gmra.mrb[0].mxu0 %v5127
      %v5306 = vpop.f32.mrb[0].mxu0
      %v5307 = vadd.f32 0.0, %v5306
      %v5308 = vpop.f32.mrb[0].mxu0
      %5309 = vmatprep.mubr.f32.mxu0 0.0
      %5310 = vmatmul.mubr.f32.gmra.mrb[0].mxu0 %v5130
      %v5311 = vpop.f32.mrb[0].mxu0
      %v5312 = vadd.f32 0.0, %v5311
      %v5313 = vpop.f32.mrb[0].mxu0
      %5314 = vmatprep.mubr.f32.mxu0 0.0
      %5315 = vmatmul.mubr.f32.gmra.mrb[0].mxu0 %v5133
      %v5316 = vpop.f32.mrb[0].mxu0
      %v5317 = vadd.f32 0.0, %v5316
      %v5318 = vpop.f32.mrb[0].mxu0
      %5319 = vmatprep.mubr.f32.mxu0 0.0
      %5320 = vmatmul.mubr.f32.gmra.mrb[0].mxu0 %v5136
      %v5321 = vpop.f32.mrb[0].mxu0
      %v5322 = vadd.f32 0.0, %v5321
      %v5323 = vpop.f32.mrb[0].mxu0
      %5324 = vmatprep.mubr.f32.mxu0 0.0
      %5325 = vmatmul.mubr.f32.gmra.mrb[0].mxu0 %v5139
      %v5326 = vpop.f32.mrb[0].mxu0
      %v5327 = vadd.f32 0.0, %v5326
      %v5328 = vpop.f32.mrb[0].mxu0
      %5329 = vmatprep.mubr.f32.mxu0 0.0
      %5330 = vmatmul.mubr.f32.gmra.mrb[0].mxu0 %v5142
      %v5331 = vpop.f32.mrb[0].mxu0
      %v5332 = vadd.f32 0.0, %v5331
      %v5333 = vpop.f32.mrb[0].mxu0
      %5334 = vmatprep.mubr.f32.mxu0 0.0
      %5335 = vmatmul.mubr.f32.gmra.mrb[0].mxu0 %v5145
      %v5336 = vpop.f32.mrb[0].mxu0
      %v5337 = vadd.f32 0.0, %v5336
      %v5338 = vpop.f32.mrb[0].mxu0
      %5339 = vmatprep.mubr.f32.mxu0 0.0
      %5340 = vmatmul.mubr.f32.gmra.mrb[0].mxu0 %v5148
      %v5341 = vpop.f32.mrb[0].mxu0
      %v5342 = vadd.f32 0.0, %v5341
      %v5343 = vpop.f32.mrb[0].mxu0
      %5344 = vmatprep.mubr.f32.mxu0 0.0
      %5345 = vmatmul.mubr.f32.gmra.mrb[0].mxu0 %v5151
      %v5346 = vpop.f32.mrb[0].mxu0
      %v5347 = vadd.f32 0.0, %v5346
      %v5348 = vpop.f32.mrb[0].mxu0
      %5349 = vmatprep.mubr.f32.mxu0 0.0
      %5350 = vmatmul.mubr.f32.gmra.mrb[0].mxu0 %v5154
      %v5351 = vpop.f32.mrb[0].mxu0
      %v5352 = vadd.f32 0.0, %v5351
      %v5353 = vpop.f32.mrb[0].mxu0
      %5354 = vmatprep.mubr.f32.mxu0 0.0
      %5355 = vmatmul.mubr.f32.gmra.mrb[0].mxu0 %v5157
      %v5356 = vpop.f32.mrb[0].mxu0
      %v5357 = vadd.f32 0.0, %v5356
      %v5358 = vpop.f32.mrb[0].mxu0
      %5359 = vmatprep.mubr.f32.mxu0 0.0
      %5360 = vmatmul.mubr.f32.gmra.mrb[0].mxu0 %v5160
      %v5361 = vpop.f32.mrb[0].mxu0
      %v5362 = vadd.f32 0.0, %v5361
      %v5363 = vpop.f32.mrb[0].mxu0
      %5364 = vmatprep.mubr.f32.mxu0 0.0
      %5365 = vmatmul.mubr.f32.gmra.mrb[0].mxu0 %v5163
      %v5366 = vpop.f32.mrb[0].mxu0
      %v5367 = vadd.f32 0.0, %v5366
      %v5368 = vpop.f32.mrb[0].mxu0
      %5369 = vmatprep.mubr.f32.mxu0 0.0
      %5370 = vmatmul.mubr.f32.gmra.mrb[0].mxu0 %v5166
      %v5371 = vpop.f32.mrb[0].mxu0
      %v5372 = vadd.f32 0.0, %v5371
      %v5373 = vpop.f32.mrb[0].mxu0
      %5374 = vmatprep.mubr.f32.mxu0 0.0
      %5375 = vmatmul.mubr.f32.gmra.mrb[0].mxu0 %v5169
      %v5376 = vpop.f32.mrb[0].mxu0
      %v5377 = vadd.f32 0.0, %v5376
      %v5378 = vpop.f32.mrb[0].mxu0
      %5379 = vmatprep.mubr.f32.mxu0 0.0
      %5380 = vmatmul.mubr.f32.gmra.mrb[0].mxu0 %v5172
      %v5381 = vpop.f32.mrb[0].mxu0
      %v5382 = vadd.f32 0.0, %v5381
      %v5383 = vpop.f32.mrb[0].mxu0
      %5384 = vmatprep.mubr.f32.mxu0 0.0
      %5385 = vmatmul.mubr.f32.gmra.mrb[0].mxu0 %v5175
      %v5386 = vpop.f32.mrb[0].mxu0
      %v5387 = vadd.f32 0.0, %v5386
      %v5388 = vpop.f32.mrb[0].mxu0
      %5389 = vmatprep.mubr.f32.mxu0 0.0
      %5390 = vmatmul.mubr.f32.gmra.mrb[0].mxu0 %v5178
      %v5391 = vpop.f32.mrb[0].mxu0
      %v5392 = vadd.f32 0.0, %v5391
      %v5393 = vpop.f32.mrb[0].mxu0
      %5394 = vmatprep.mubr.f32.mxu0 0.0
      %5395 = vmatmul.mubr.f32.gmra.mrb[0].mxu0 %v5181
      %v5396 = vpop.f32.mrb[0].mxu0
      %v5397 = vadd.f32 0.0, %v5396
      %v5398 = vpop.f32.mrb[0].mxu0
      %5399 = vmatprep.mubr.f32.mxu0 0.0
      %5400 = vmatmul.mubr.f32.gmra.mrb[0].mxu0 %v5184
      %v5401 = vpop.f32.mrb[0].mxu0
      %v5402 = vadd.f32 0.0, %v5401
      %v5403 = vpop.f32.mrb[0].mxu0
      %5404 = vmatprep.mubr.f32.mxu0 0.0
      %5405 = vmatmul.mubr.f32.gmra.mrb[0].mxu0 %v5187
      %v5406 = vpop.f32.mrb[0].mxu0
      %v5407 = vadd.f32 0.0, %v5406
      %v5408 = vpop.f32.mrb[0].mxu0
      %5409 = vmatprep.mubr.f32.mxu0 0.0
      %5410 = vmatmul.mubr.f32.gmra.mrb[0].mxu0 %v5190
      %v5411 = vpop.f32.mrb[0].mxu0
      %v5412 = vadd.f32 0.0, %v5411
      %v5413 = vpop.f32.mrb[0].mxu0
      %5414 = vmatprep.mubr.f32.mxu0 0.0
      %5415 = vmatmul.mubr.f32.gmra.mrb[0].mxu0 %v5193
      %v5416 = vpop.f32.mrb[0].mxu0
      %v5417 = vadd.f32 0.0, %v5416
      %v5418 = vpop.f32.mrb[0].mxu0
      %5419 = vdwg.mxu0
      %v5420 = vadd.f32 %v441, %v5262
      %v5421 = vadd.f32 %v442, %v5267
      %v5422 = vadd.f32 %v443, %v5272
      %v5423 = vadd.f32 %v444, %v5277
      %v5424 = vadd.f32 %v445, %v5282
      %v5425 = vadd.f32 %v446, %v5287
      %v5426 = vadd.f32 %v447, %v5292
      %v5427 = vadd.f32 %v448, %v5297
      %v5428 = vadd.f32 %v449, %v5302
      %v5429 = vadd.f32 %v450, %v5307
      %v5430 = vadd.f32 %v451, %v5312
      %v5431 = vadd.f32 %v452, %v5317
      %v5432 = vadd.f32 %v453, %v5322
      %v5433 = vadd.f32 %v454, %v5327
      %v5434 = vadd.f32 %v455, %v5332
      %v5435 = vadd.f32 %v456, %v5337
      %v5436 = vadd.f32 %v457, %v5342
      %v5437 = vadd.f32 %v458, %v5347
      %v5438 = vadd.f32 %v459, %v5352
      %v5439 = vadd.f32 %v460, %v5357
      %v5440 = vadd.f32 %v461, %v5362
      %v5441 = vadd.f32 %v462, %v5367
      %v5442 = vadd.f32 %v463, %v5372
      %v5443 = vadd.f32 %v464, %v5377
      %v5444 = vadd.f32 %v465, %v5382
      %v5445 = vadd.f32 %v466, %v5387
      %v5446 = vadd.f32 %v467, %v5392
      %v5447 = vadd.f32 %v468, %v5397
      %v5448 = vadd.f32 %v469, %v5402
      %v5449 = vadd.f32 %v470, %v5407
      %v5450 = vadd.f32 %v471, %v5412
      %v5451 = vadd.f32 %v472, %v5417
      %v5452 = vsel %vm473, %v5420, 0.0
      %5453 = vadd.xlane.f32.xlu0 %v5452
      %v5454 = vpop.xlane.xlu0 %5453
      %v5455 = vsel %vm473, %v5421, 0.0
      %5456 = vadd.xlane.f32.xlu0 %v5455
      %v5457 = vpop.xlane.xlu0 %5456
      %v5458 = vsel %vm473, %v5422, 0.0
      %5459 = vadd.xlane.f32.xlu0 %v5458
      %v5460 = vpop.xlane.xlu0 %5459
      %v5461 = vsel %vm473, %v5423, 0.0
      %5462 = vadd.xlane.f32.xlu0 %v5461
      %v5463 = vpop.xlane.xlu0 %5462
      %v5464 = vsel %vm473, %v5424, 0.0
      %5465 = vadd.xlane.f32.xlu0 %v5464
      %v5466 = vpop.xlane.xlu0 %5465
      %v5467 = vsel %vm473, %v5425, 0.0
      %5468 = vadd.xlane.f32.xlu0 %v5467
      %v5469 = vpop.xlane.xlu0 %5468
      %v5470 = vsel %vm473, %v5426, 0.0
      %5471 = vadd.xlane.f32.xlu0 %v5470
      %v5472 = vpop.xlane.xlu0 %5471
      %v5473 = vsel %vm473, %v5427, 0.0
      %5474 = vadd.xlane.f32.xlu0 %v5473
      %v5475 = vpop.xlane.xlu0 %5474
      %v5476 = vsel %vm473, %v5428, 0.0
      %5477 = vadd.xlane.f32.xlu0 %v5476
      %v5478 = vpop.xlane.xlu0 %5477
      %v5479 = vsel %vm473, %v5429, 0.0
      %5480 = vadd.xlane.f32.xlu0 %v5479
      %v5481 = vpop.xlane.xlu0 %5480
      %v5482 = vsel %vm473, %v5430, 0.0
      %5483 = vadd.xlane.f32.xlu0 %v5482
      %v5484 = vpop.xlane.xlu0 %5483
      %v5485 = vsel %vm473, %v5431, 0.0
      %5486 = vadd.xlane.f32.xlu0 %v5485
      %v5487 = vpop.xlane.xlu0 %5486
      %v5488 = vsel %vm473, %v5432, 0.0
      %5489 = vadd.xlane.f32.xlu0 %v5488
      %v5490 = vpop.xlane.xlu0 %5489
      %v5491 = vsel %vm473, %v5433, 0.0
      %5492 = vadd.xlane.f32.xlu0 %v5491
      %v5493 = vpop.xlane.xlu0 %5492
      %v5494 = vsel %vm473, %v5434, 0.0
      %5495 = vadd.xlane.f32.xlu0 %v5494
      %v5496 = vpop.xlane.xlu0 %5495
      %v5497 = vsel %vm473, %v5435, 0.0
      %5498 = vadd.xlane.f32.xlu0 %v5497
      %v5499 = vpop.xlane.xlu0 %5498
      %v5500 = vsel %vm473, %v5436, 0.0
      %5501 = vadd.xlane.f32.xlu0 %v5500
      %v5502 = vpop.xlane.xlu0 %5501
      %v5503 = vsel %vm473, %v5437, 0.0
      %5504 = vadd.xlane.f32.xlu0 %v5503
      %v5505 = vpop.xlane.xlu0 %5504
      %v5506 = vsel %vm473, %v5438, 0.0
      %5507 = vadd.xlane.f32.xlu0 %v5506
      %v5508 = vpop.xlane.xlu0 %5507
      %v5509 = vsel %vm473, %v5439, 0.0
      %5510 = vadd.xlane.f32.xlu0 %v5509
      %v5511 = vpop.xlane.xlu0 %5510
      %v5512 = vsel %vm473, %v5440, 0.0
      %5513 = vadd.xlane.f32.xlu0 %v5512
      %v5514 = vpop.xlane.xlu0 %5513
      %v5515 = vsel %vm473, %v5441, 0.0
      %5516 = vadd.xlane.f32.xlu0 %v5515
      %v5517 = vpop.xlane.xlu0 %5516
      %v5518 = vsel %vm473, %v5442, 0.0
      %5519 = vadd.xlane.f32.xlu0 %v5518
      %v5520 = vpop.xlane.xlu0 %5519
      %v5521 = vsel %vm473, %v5443, 0.0
      %5522 = vadd.xlane.f32.xlu0 %v5521
      %v5523 = vpop.xlane.xlu0 %5522
      %v5524 = vsel %vm473, %v5444, 0.0
      %5525 = vadd.xlane.f32.xlu0 %v5524
      %v5526 = vpop.xlane.xlu0 %5525
      %v5527 = vsel %vm473, %v5445, 0.0
      %5528 = vadd.xlane.f32.xlu0 %v5527
      %v5529 = vpop.xlane.xlu0 %5528
      %v5530 = vsel %vm473, %v5446, 0.0
      %5531 = vadd.xlane.f32.xlu0 %v5530
      %v5532 = vpop.xlane.xlu0 %5531
      %v5533 = vsel %vm473, %v5447, 0.0
      %5534 = vadd.xlane.f32.xlu0 %v5533
      %v5535 = vpop.xlane.xlu0 %5534
      %v5536 = vsel %vm473, %v5448, 0.0
      %5537 = vadd.xlane.f32.xlu0 %v5536
      %v5538 = vpop.xlane.xlu0 %5537
      %v5539 = vsel %vm473, %v5449, 0.0
      %5540 = vadd.xlane.f32.xlu0 %v5539
      %v5541 = vpop.xlane.xlu0 %5540
      %v5542 = vsel %vm473, %v5450, 0.0
      %5543 = vadd.xlane.f32.xlu0 %v5542
      %v5544 = vpop.xlane.xlu0 %5543
      %v5545 = vsel %vm473, %v5451, 0.0
      %5546 = vadd.xlane.f32.xlu0 %v5545
      %v5547 = vpop.xlane.xlu0 %5546
      %v5548 = vmul.f32 %v5454, %v570
      %v5549 = vmul.f32 %v5457, %v570
      %v5550 = vmul.f32 %v5460, %v570
      %v5551 = vmul.f32 %v5463, %v570
      %v5552 = vmul.f32 %v5466, %v570
      %v5553 = vmul.f32 %v5469, %v570
      %v5554 = vmul.f32 %v5472, %v570
      %v5555 = vmul.f32 %v5475, %v570
      %v5556 = vmul.f32 %v5478, %v570
      %v5557 = vmul.f32 %v5481, %v570
      %v5558 = vmul.f32 %v5484, %v570
      %v5559 = vmul.f32 %v5487, %v570
      %v5560 = vmul.f32 %v5490, %v570
      %v5561 = vmul.f32 %v5493, %v570
      %v5562 = vmul.f32 %v5496, %v570
      %v5563 = vmul.f32 %v5499, %v570
      %v5564 = vmul.f32 %v5502, %v570
      %v5565 = vmul.f32 %v5505, %v570
      %v5566 = vmul.f32 %v5508, %v570
      %v5567 = vmul.f32 %v5511, %v570
      %v5568 = vmul.f32 %v5514, %v570
      %v5569 = vmul.f32 %v5517, %v570
      %v5570 = vmul.f32 %v5520, %v570
      %v5571 = vmul.f32 %v5523, %v570
      %v5572 = vmul.f32 %v5526, %v570
      %v5573 = vmul.f32 %v5529, %v570
      %v5574 = vmul.f32 %v5532, %v570
      %v5575 = vmul.f32 %v5535, %v570
      %v5576 = vmul.f32 %v5538, %v570
      %v5577 = vmul.f32 %v5541, %v570
      %v5578 = vmul.f32 %v5544, %v570
      %v5579 = vmul.f32 %v5547, %v570
      %v5580 = vsub.f32 %v5420, %v5548
      %v5581 = vsub.f32 %v5421, %v5549
      %v5582 = vsub.f32 %v5422, %v5550
      %v5583 = vsub.f32 %v5423, %v5551
      %v5584 = vsub.f32 %v5424, %v5552
      %v5585 = vsub.f32 %v5425, %v5553
      %v5586 = vsub.f32 %v5426, %v5554
      %v5587 = vsub.f32 %v5427, %v5555
      %v5588 = vsub.f32 %v5428, %v5556
      %v5589 = vsub.f32 %v5429, %v5557
      %v5590 = vsub.f32 %v5430, %v5558
      %v5591 = vsub.f32 %v5431, %v5559
      %v5592 = vsub.f32 %v5432, %v5560
      %v5593 = vsub.f32 %v5433, %v5561
      %v5594 = vsub.f32 %v5434, %v5562
      %v5595 = vsub.f32 %v5435, %v5563
      %v5596 = vsub.f32 %v5436, %v5564
      %v5597 = vsub.f32 %v5437, %v5565
      %v5598 = vsub.f32 %v5438, %v5566
      %v5599 = vsub.f32 %v5439, %v5567
      %v5600 = vsub.f32 %v5440, %v5568
      %v5601 = vsub.f32 %v5441, %v5569
      %v5602 = vsub.f32 %v5442, %v5570
      %v5603 = vsub.f32 %v5443, %v5571
      %v5604 = vsub.f32 %v5444, %v5572
      %v5605 = vsub.f32 %v5445, %v5573
      %v5606 = vsub.f32 %v5446, %v5574
      %v5607 = vsub.f32 %v5447, %v5575
      %v5608 = vsub.f32 %v5448, %v5576
      %v5609 = vsub.f32 %v5449, %v5577
      %v5610 = vsub.f32 %v5450, %v5578
      %v5611 = vsub.f32 %v5451, %v5579
      %v5612 = vmul.f32 %v5580, %v5580
      %v5613 = vmul.f32 %v5581, %v5581
      %v5614 = vmul.f32 %v5582, %v5582
      %v5615 = vmul.f32 %v5583, %v5583
      %v5616 = vmul.f32 %v5584, %v5584
      %v5617 = vmul.f32 %v5585, %v5585
      %v5618 = vmul.f32 %v5586, %v5586
      %v5619 = vmul.f32 %v5587, %v5587
      %v5620 = vmul.f32 %v5588, %v5588
      %v5621 = vmul.f32 %v5589, %v5589
      %v5622 = vmul.f32 %v5590, %v5590
      %v5623 = vmul.f32 %v5591, %v5591
      %v5624 = vmul.f32 %v5592, %v5592
      %v5625 = vmul.f32 %v5593, %v5593
      %v5626 = vmul.f32 %v5594, %v5594
      %v5627 = vmul.f32 %v5595, %v5595
      %v5628 = vmul.f32 %v5596, %v5596
      %v5629 = vmul.f32 %v5597, %v5597
      %v5630 = vmul.f32 %v5598, %v5598
      %v5631 = vmul.f32 %v5599, %v5599
      %v5632 = vmul.f32 %v5600, %v5600
      %v5633 = vmul.f32 %v5601, %v5601
      %v5634 = vmul.f32 %v5602, %v5602
      %v5635 = vmul.f32 %v5603, %v5603
      %v5636 = vmul.f32 %v5604, %v5604
      %v5637 = vmul.f32 %v5605, %v5605
      %v5638 = vmul.f32 %v5606, %v5606
      %v5639 = vmul.f32 %v5607, %v5607
      %v5640 = vmul.f32 %v5608, %v5608
      %v5641 = vmul.f32 %v5609, %v5609
      %v5642 = vmul.f32 %v5610, %v5610
      %v5643 = vmul.f32 %v5611, %v5611
      %v5644 = vsel %vm473, %v5612, 0.0
      %5645 = vadd.xlane.f32.xlu0 %v5644
      %v5646 = vpop.xlane.xlu0 %5645
      %v5647 = vsel %vm473, %v5613, 0.0
      %5648 = vadd.xlane.f32.xlu0 %v5647
      %v5649 = vpop.xlane.xlu0 %5648
      %v5650 = vsel %vm473, %v5614, 0.0
      %5651 = vadd.xlane.f32.xlu0 %v5650
      %v5652 = vpop.xlane.xlu0 %5651
      %v5653 = vsel %vm473, %v5615, 0.0
      %5654 = vadd.xlane.f32.xlu0 %v5653
      %v5655 = vpop.xlane.xlu0 %5654
      %v5656 = vsel %vm473, %v5616, 0.0
      %5657 = vadd.xlane.f32.xlu0 %v5656
      %v5658 = vpop.xlane.xlu0 %5657
      %v5659 = vsel %vm473, %v5617, 0.0
      %5660 = vadd.xlane.f32.xlu0 %v5659
      %v5661 = vpop.xlane.xlu0 %5660
      %v5662 = vsel %vm473, %v5618, 0.0
      %5663 = vadd.xlane.f32.xlu0 %v5662
      %v5664 = vpop.xlane.xlu0 %5663
      %v5665 = vsel %vm473, %v5619, 0.0
      %5666 = vadd.xlane.f32.xlu0 %v5665
      %v5667 = vpop.xlane.xlu0 %5666
      %v5668 = vsel %vm473, %v5620, 0.0
      %5669 = vadd.xlane.f32.xlu0 %v5668
      %v5670 = vpop.xlane.xlu0 %5669
      %v5671 = vsel %vm473, %v5621, 0.0
      %5672 = vadd.xlane.f32.xlu0 %v5671
      %v5673 = vpop.xlane.xlu0 %5672
      %v5674 = vsel %vm473, %v5622, 0.0
      %5675 = vadd.xlane.f32.xlu0 %v5674
      %v5676 = vpop.xlane.xlu0 %5675
      %v5677 = vsel %vm473, %v5623, 0.0
      %5678 = vadd.xlane.f32.xlu0 %v5677
      %v5679 = vpop.xlane.xlu0 %5678
      %v5680 = vsel %vm473, %v5624, 0.0
      %5681 = vadd.xlane.f32.xlu0 %v5680
      %v5682 = vpop.xlane.xlu0 %5681
      %v5683 = vsel %vm473, %v5625, 0.0
      %5684 = vadd.xlane.f32.xlu0 %v5683
      %v5685 = vpop.xlane.xlu0 %5684
      %v5686 = vsel %vm473, %v5626, 0.0
      %5687 = vadd.xlane.f32.xlu0 %v5686
      %v5688 = vpop.xlane.xlu0 %5687
      %v5689 = vsel %vm473, %v5627, 0.0
      %5690 = vadd.xlane.f32.xlu0 %v5689
      %v5691 = vpop.xlane.xlu0 %5690
      %v5692 = vsel %vm473, %v5628, 0.0
      %5693 = vadd.xlane.f32.xlu0 %v5692
      %v5694 = vpop.xlane.xlu0 %5693
      %v5695 = vsel %vm473, %v5629, 0.0
      %5696 = vadd.xlane.f32.xlu0 %v5695
      %v5697 = vpop.xlane.xlu0 %5696
      %v5698 = vsel %vm473, %v5630, 0.0
      %5699 = vadd.xlane.f32.xlu0 %v5698
      %v5700 = vpop.xlane.xlu0 %5699
      %v5701 = vsel %vm473, %v5631, 0.0
      %5702 = vadd.xlane.f32.xlu0 %v5701
      %v5703 = vpop.xlane.xlu0 %5702
      %v5704 = vsel %vm473, %v5632, 0.0
      %5705 = vadd.xlane.f32.xlu0 %v5704
      %v5706 = vpop.xlane.xlu0 %5705
      %v5707 = vsel %vm473, %v5633, 0.0
      %5708 = vadd.xlane.f32.xlu0 %v5707
      %v5709 = vpop.xlane.xlu0 %5708
      %v5710 = vsel %vm473, %v5634, 0.0
      %5711 = vadd.xlane.f32.xlu0 %v5710
      %v5712 = vpop.xlane.xlu0 %5711
      %v5713 = vsel %vm473, %v5635, 0.0
      %5714 = vadd.xlane.f32.xlu0 %v5713
      %v5715 = vpop.xlane.xlu0 %5714
      %v5716 = vsel %vm473, %v5636, 0.0
      %5717 = vadd.xlane.f32.xlu0 %v5716
      %v5718 = vpop.xlane.xlu0 %5717
      %v5719 = vsel %vm473, %v5637, 0.0
      %5720 = vadd.xlane.f32.xlu0 %v5719
      %v5721 = vpop.xlane.xlu0 %5720
      %v5722 = vsel %vm473, %v5638, 0.0
      %5723 = vadd.xlane.f32.xlu0 %v5722
      %v5724 = vpop.xlane.xlu0 %5723
      %v5725 = vsel %vm473, %v5639, 0.0
      %5726 = vadd.xlane.f32.xlu0 %v5725
      %v5727 = vpop.xlane.xlu0 %5726
      %v5728 = vsel %vm473, %v5640, 0.0
      %5729 = vadd.xlane.f32.xlu0 %v5728
      %v5730 = vpop.xlane.xlu0 %5729
      %v5731 = vsel %vm473, %v5641, 0.0
      %5732 = vadd.xlane.f32.xlu0 %v5731
      %v5733 = vpop.xlane.xlu0 %5732
      %v5734 = vsel %vm473, %v5642, 0.0
      %5735 = vadd.xlane.f32.xlu0 %v5734
      %v5736 = vpop.xlane.xlu0 %5735
      %v5737 = vsel %vm473, %v5643, 0.0
      %5738 = vadd.xlane.f32.xlu0 %v5737
      %v5739 = vpop.xlane.xlu0 %5738
      %v5740 = vmul.f32 %v5646, %v570
      %v5741 = vmul.f32 %v5649, %v570
      %v5742 = vmul.f32 %v5652, %v570
      %v5743 = vmul.f32 %v5655, %v570
      %v5744 = vmul.f32 %v5658, %v570
      %v5745 = vmul.f32 %v5661, %v570
      %v5746 = vmul.f32 %v5664, %v570
      %v5747 = vmul.f32 %v5667, %v570
      %v5748 = vmul.f32 %v5670, %v570
      %v5749 = vmul.f32 %v5673, %v570
      %v5750 = vmul.f32 %v5676, %v570
      %v5751 = vmul.f32 %v5679, %v570
      %v5752 = vmul.f32 %v5682, %v570
      %v5753 = vmul.f32 %v5685, %v570
      %v5754 = vmul.f32 %v5688, %v570
      %v5755 = vmul.f32 %v5691, %v570
      %v5756 = vmul.f32 %v5694, %v570
      %v5757 = vmul.f32 %v5697, %v570
      %v5758 = vmul.f32 %v5700, %v570
      %v5759 = vmul.f32 %v5703, %v570
      %v5760 = vmul.f32 %v5706, %v570
      %v5761 = vmul.f32 %v5709, %v570
      %v5762 = vmul.f32 %v5712, %v570
      %v5763 = vmul.f32 %v5715, %v570
      %v5764 = vmul.f32 %v5718, %v570
      %v5765 = vmul.f32 %v5721, %v570
      %v5766 = vmul.f32 %v5724, %v570
      %v5767 = vmul.f32 %v5727, %v570
      %v5768 = vmul.f32 %v5730, %v570
      %v5769 = vmul.f32 %v5733, %v570
      %v5770 = vmul.f32 %v5736, %v570
      %v5771 = vmul.f32 %v5739, %v570
      %v5772 = vadd.f32 %v5740, 1e-05
      %v5773 = vadd.f32 %v5741, 1e-05
      %v5774 = vadd.f32 %v5742, 1e-05
      %v5775 = vadd.f32 %v5743, 1e-05
      %v5776 = vadd.f32 %v5744, 1e-05
      %v5777 = vadd.f32 %v5745, 1e-05
      %v5778 = vadd.f32 %v5746, 1e-05
      %v5779 = vadd.f32 %v5747, 1e-05
      %v5780 = vadd.f32 %v5748, 1e-05
      %v5781 = vadd.f32 %v5749, 1e-05
      %v5782 = vadd.f32 %v5750, 1e-05
      %v5783 = vadd.f32 %v5751, 1e-05
      %v5784 = vadd.f32 %v5752, 1e-05
      %v5785 = vadd.f32 %v5753, 1e-05
      %v5786 = vadd.f32 %v5754, 1e-05
      %v5787 = vadd.f32 %v5755, 1e-05
      %v5788 = vadd.f32 %v5756, 1e-05
      %v5789 = vadd.f32 %v5757, 1e-05
      %v5790 = vadd.f32 %v5758, 1e-05
      %v5791 = vadd.f32 %v5759, 1e-05
      %v5792 = vadd.f32 %v5760, 1e-05
      %v5793 = vadd.f32 %v5761, 1e-05
      %v5794 = vadd.f32 %v5762, 1e-05
      %v5795 = vadd.f32 %v5763, 1e-05
      %v5796 = vadd.f32 %v5764, 1e-05
      %v5797 = vadd.f32 %v5765, 1e-05
      %v5798 = vadd.f32 %v5766, 1e-05
      %v5799 = vadd.f32 %v5767, 1e-05
      %v5800 = vadd.f32 %v5768, 1e-05
      %v5801 = vadd.f32 %v5769, 1e-05
      %v5802 = vadd.f32 %v5770, 1e-05
      %v5803 = vadd.f32 %v5771, 1e-05
      %v5804 = vrsqrt.pop %v5772
      %v5805 = vrsqrt.pop %v5773
      %v5806 = vrsqrt.pop %v5774
      %v5807 = vrsqrt.pop %v5775
      %v5808 = vrsqrt.pop %v5776
      %v5809 = vrsqrt.pop %v5777
      %v5810 = vrsqrt.pop %v5778
      %v5811 = vrsqrt.pop %v5779
      %v5812 = vrsqrt.pop %v5780
      %v5813 = vrsqrt.pop %v5781
      %v5814 = vrsqrt.pop %v5782
      %v5815 = vrsqrt.pop %v5783
      %v5816 = vrsqrt.pop %v5784
      %v5817 = vrsqrt.pop %v5785
      %v5818 = vrsqrt.pop %v5786
      %v5819 = vrsqrt.pop %v5787
      %v5820 = vrsqrt.pop %v5788
      %v5821 = vrsqrt.pop %v5789
      %v5822 = vrsqrt.pop %v5790
      %v5823 = vrsqrt.pop %v5791
      %v5824 = vrsqrt.pop %v5792
      %v5825 = vrsqrt.pop %v5793
      %v5826 = vrsqrt.pop %v5794
      %v5827 = vrsqrt.pop %v5795
      %v5828 = vrsqrt.pop %v5796
      %v5829 = vrsqrt.pop %v5797
      %v5830 = vrsqrt.pop %v5798
      %v5831 = vrsqrt.pop %v5799
      %v5832 = vrsqrt.pop %v5800
      %v5833 = vrsqrt.pop %v5801
      %v5834 = vrsqrt.pop %v5802
      %v5835 = vrsqrt.pop %v5803
      %v5836 = vmul.f32 %v5580, %v5804
      %v5837 = vmul.f32 %v5581, %v5805
      %v5838 = vmul.f32 %v5582, %v5806
      %v5839 = vmul.f32 %v5583, %v5807
      %v5840 = vmul.f32 %v5584, %v5808
      %v5841 = vmul.f32 %v5585, %v5809
      %v5842 = vmul.f32 %v5586, %v5810
      %v5843 = vmul.f32 %v5587, %v5811
      %v5844 = vmul.f32 %v5588, %v5812
      %v5845 = vmul.f32 %v5589, %v5813
      %v5846 = vmul.f32 %v5590, %v5814
      %v5847 = vmul.f32 %v5591, %v5815
      %v5848 = vmul.f32 %v5592, %v5816
      %v5849 = vmul.f32 %v5593, %v5817
      %v5850 = vmul.f32 %v5594, %v5818
      %v5851 = vmul.f32 %v5595, %v5819
      %v5852 = vmul.f32 %v5596, %v5820
      %v5853 = vmul.f32 %v5597, %v5821
      %v5854 = vmul.f32 %v5598, %v5822
      %v5855 = vmul.f32 %v5599, %v5823
      %v5856 = vmul.f32 %v5600, %v5824
      %v5857 = vmul.f32 %v5601, %v5825
      %v5858 = vmul.f32 %v5602, %v5826
      %v5859 = vmul.f32 %v5603, %v5827
      %v5860 = vmul.f32 %v5604, %v5828
      %v5861 = vmul.f32 %v5605, %v5829
      %v5862 = vmul.f32 %v5606, %v5830
      %v5863 = vmul.f32 %v5607, %v5831
      %v5864 = vmul.f32 %v5608, %v5832
      %v5865 = vmul.f32 %v5609, %v5833
      %v5866 = vmul.f32 %v5610, %v5834
      %v5867 = vmul.f32 %v5611, %v5835
      %v5868 = vld [vmem:[%s9] sm:$0x1]
      %v5870 = vlaneseq
      %v5871 = vshrl.u32 %v5870, 7
      %v5872 = vsub.s32 0, %v5871
      %v5873 = vrot.slane %v5868, %v5872
      %v5875 = vmul.f32 %v5836, %v5873
      %v5876 = vmul.f32 %v5837, %v5873
      %v5877 = vmul.f32 %v5838, %v5873
      %v5878 = vmul.f32 %v5839, %v5873
      %v5879 = vmul.f32 %v5840, %v5873
      %v5880 = vmul.f32 %v5841, %v5873
      %v5881 = vmul.f32 %v5842, %v5873
      %v5882 = vmul.f32 %v5843, %v5873
      %v5883 = vmul.f32 %v5844, %v5873
      %v5884 = vmul.f32 %v5845, %v5873
      %v5885 = vmul.f32 %v5846, %v5873
      %v5886 = vmul.f32 %v5847, %v5873
      %v5887 = vmul.f32 %v5848, %v5873
      %v5888 = vmul.f32 %v5849, %v5873
      %v5889 = vmul.f32 %v5850, %v5873
      %v5890 = vmul.f32 %v5851, %v5873
      %v5891 = vmul.f32 %v5852, %v5873
      %v5892 = vmul.f32 %v5853, %v5873
      %v5893 = vmul.f32 %v5854, %v5873
      %v5894 = vmul.f32 %v5855, %v5873
      %v5895 = vmul.f32 %v5856, %v5873
      %v5896 = vmul.f32 %v5857, %v5873
      %v5897 = vmul.f32 %v5858, %v5873
      %v5898 = vmul.f32 %v5859, %v5873
      %v5899 = vmul.f32 %v5860, %v5873
      %v5900 = vmul.f32 %v5861, %v5873
      %v5901 = vmul.f32 %v5862, %v5873
      %v5902 = vmul.f32 %v5863, %v5873
      %v5903 = vmul.f32 %v5864, %v5873
      %v5904 = vmul.f32 %v5865, %v5873
      %v5905 = vmul.f32 %v5866, %v5873
      %v5906 = vmul.f32 %v5867, %v5873
      %v5907 = vld [vmem:[%s10] sm:$0x1]
      %v5909 = vlaneseq
      %v5910 = vshrl.u32 %v5909, 7
      %v5911 = vsub.s32 0, %v5910
      %v5912 = vrot.slane %v5907, %v5911
      %v5914 = vadd.f32 %v5875, %v5912
      %v5915 = vadd.f32 %v5876, %v5912
      %v5916 = vadd.f32 %v5877, %v5912
      %v5917 = vadd.f32 %v5878, %v5912
      %v5918 = vadd.f32 %v5879, %v5912
      %v5919 = vadd.f32 %v5880, %v5912
      %v5920 = vadd.f32 %v5881, %v5912
      %v5921 = vadd.f32 %v5882, %v5912
      %v5922 = vadd.f32 %v5883, %v5912
      %v5923 = vadd.f32 %v5884, %v5912
      %v5924 = vadd.f32 %v5885, %v5912
      %v5925 = vadd.f32 %v5886, %v5912
      %v5926 = vadd.f32 %v5887, %v5912
      %v5927 = vadd.f32 %v5888, %v5912
      %v5928 = vadd.f32 %v5889, %v5912
      %v5929 = vadd.f32 %v5890, %v5912
      %v5930 = vadd.f32 %v5891, %v5912
      %v5931 = vadd.f32 %v5892, %v5912
      %v5932 = vadd.f32 %v5893, %v5912
      %v5933 = vadd.f32 %v5894, %v5912
      %v5934 = vadd.f32 %v5895, %v5912
      %v5935 = vadd.f32 %v5896, %v5912
      %v5936 = vadd.f32 %v5897, %v5912
      %v5937 = vadd.f32 %v5898, %v5912
      %v5938 = vadd.f32 %v5899, %v5912
      %v5939 = vadd.f32 %v5900, %v5912
      %v5940 = vadd.f32 %v5901, %v5912
      %v5941 = vadd.f32 %v5902, %v5912
      %v5942 = vadd.f32 %v5903, %v5912
      %v5943 = vadd.f32 %v5904, %v5912
      %v5944 = vadd.f32 %v5905, %v5912
      %v5945 = vadd.f32 %v5906, %v5912
      %v5946 = vld [vmem:[%s11] sm:$0xff]
      %v5947 = vld [vmem:[%s11 + $0x8] sm:$0xff]
      %v5948 = vld [vmem:[%s11 + $0x10] sm:$0xff]
      %v5949 = vld [vmem:[%s11 + $0x18] sm:$0xff]
      %v5950 = vld [vmem:[%s11 + $0x20] sm:$0xff]
      %v5951 = vld [vmem:[%s11 + $0x28] sm:$0xff]
      %v5952 = vld [vmem:[%s11 + $0x30] sm:$0xff]
      %v5953 = vld [vmem:[%s11 + $0x38] sm:$0xff]
      %v5954 = vld [vmem:[%s11 + $0x40] sm:$0xff]
      %v5955 = vld [vmem:[%s11 + $0x48] sm:$0xff]
      %v5956 = vld [vmem:[%s11 + $0x50] sm:$0xff]
      %v5957 = vld [vmem:[%s11 + $0x58] sm:$0xff]
      %v5958 = vld [vmem:[%s11 + $0x60] sm:$0xff]
      %v5959 = vld [vmem:[%s11 + $0x68] sm:$0xff]
      %v5960 = vld [vmem:[%s11 + $0x70] sm:$0xff]
      %v5961 = vld [vmem:[%s11 + $0x78] sm:$0xff]
      %v5963 = vsel %vm473, %v5914, 0
      %v5966 = vsel %vm473, %v5915, 0
      %v5969 = vsel %vm473, %v5916, 0
      %v5972 = vsel %vm473, %v5917, 0
      %v5975 = vsel %vm473, %v5918, 0
      %v5978 = vsel %vm473, %v5919, 0
      %v5981 = vsel %vm473, %v5920, 0
      %v5984 = vsel %vm473, %v5921, 0
      %v5987 = vsel %vm473, %v5922, 0
      %v5990 = vsel %vm473, %v5923, 0
      %v5993 = vsel %vm473, %v5924, 0
      %v5996 = vsel %vm473, %v5925, 0
      %v5999 = vsel %vm473, %v5926, 0
      %v6002 = vsel %vm473, %v5927, 0
      %v6005 = vsel %vm473, %v5928, 0
      %v6008 = vsel %vm473, %v5929, 0
      %v6011 = vsel %vm473, %v5930, 0
      %v6014 = vsel %vm473, %v5931, 0
      %v6017 = vsel %vm473, %v5932, 0
      %v6020 = vsel %vm473, %v5933, 0
      %v6023 = vsel %vm473, %v5934, 0
      %v6026 = vsel %vm473, %v5935, 0
      %v6029 = vsel %vm473, %v5936, 0
      %v6032 = vsel %vm473, %v5937, 0
      %v6035 = vsel %vm473, %v5938, 0
      %v6038 = vsel %vm473, %v5939, 0
      %v6041 = vsel %vm473, %v5940, 0
      %v6044 = vsel %vm473, %v5941, 0
      %v6047 = vsel %vm473, %v5942, 0
      %v6050 = vsel %vm473, %v5943, 0
      %v6053 = vsel %vm473, %v5944, 0
      %v6056 = vsel %vm473, %v5945, 0
      %6058 = vmatprep.subr.mxu0 %v5947
      %6059 = vmatpush1.msra.mxu0 %v5946
      %6060 = vmatprep.subr.mxu0 %v5949
      %6061 = vmatpush1.msra.mxu0 %v5948
      %6062 = vmatprep.subr.mxu0 %v5951
      %6063 = vmatpush1.msra.mxu0 %v5950
      %6064 = vmatprep.subr.mxu0 %v5953
      %6065 = vmatpush1.msra.mxu0 %v5952
      %6066 = vmatprep.subr.mxu0 %v5955
      %6067 = vmatpush1.msra.mxu0 %v5954
      %6068 = vmatprep.subr.mxu0 %v5957
      %6069 = vmatpush1.msra.mxu0 %v5956
      %6070 = vmatprep.subr.mxu0 %v5959
      %6071 = vmatpush1.msra.mxu0 %v5958
      %6072 = vmatprep.subr.mxu0 %v5961
      %6073 = vmatpush1.msra.mxu0 %v5960
      %6074 = vmatprep.subr.mxu0 0.0
      %6075 = vmatpush1.msra.mxu0 0.0
      %6076 = vmatprep.subr.mxu0 0.0
      %6077 = vmatpush1.msra.mxu0 0.0
      %6078 = vmatprep.subr.mxu0 0.0
      %6079 = vmatpush1.msra.mxu0 0.0
      %6080 = vmatprep.subr.mxu0 0.0
      %6081 = vmatpush1.msra.mxu0 0.0
      %6082 = vmatprep.subr.mxu0 0.0
      %6083 = vmatpush1.msra.mxu0 0.0
      %6084 = vmatprep.subr.mxu0 0.0
      %6085 = vmatpush1.msra.mxu0 0.0
      %6086 = vmatprep.subr.mxu0 0.0
      %6087 = vmatpush1.msra.mxu0 0.0
      %6088 = vmatprep.subr.mxu0 0.0
      %6089 = vmatpush1.msra.mxu0 0.0
      %6090 = vmatprep.subr.mxu0 0.0
      %6091 = vmatpush1.msra.mxu0 0.0
      %6092 = vmatprep.subr.mxu0 0.0
      %6093 = vmatpush1.msra.mxu0 0.0
      %6094 = vmatprep.subr.mxu0 0.0
      %6095 = vmatpush1.msra.mxu0 0.0
      %6096 = vmatprep.subr.mxu0 0.0
      %6097 = vmatpush1.msra.mxu0 0.0
      %6098 = vmatprep.subr.mxu0 0.0
      %6099 = vmatpush1.msra.mxu0 0.0
      %6100 = vmatprep.subr.mxu0 0.0
      %6101 = vmatpush1.msra.mxu0 0.0
      %6102 = vmatprep.subr.mxu0 0.0
      %6103 = vmatpush1.msra.mxu0 0.0
      %6104 = vmatprep.subr.mxu0 0.0
      %6105 = vmatpush1.msra.mxu0 0.0
      %6106 = vmatprep.subr.mxu0 0.0
      %6107 = vmatpush1.msra.mxu0 0.0
      %6108 = vmatprep.subr.mxu0 0.0
      %6109 = vmatpush1.msra.mxu0 0.0
      %6110 = vmatprep.subr.mxu0 0.0
      %6111 = vmatpush1.msra.mxu0 0.0
      %6112 = vmatprep.subr.mxu0 0.0
      %6113 = vmatpush1.msra.mxu0 0.0
      %6114 = vmatprep.subr.mxu0 0.0
      %6115 = vmatpush1.msra.mxu0 0.0
      %6116 = vmatprep.subr.mxu0 0.0
      %6117 = vmatpush1.msra.mxu0 0.0
      %6118 = vmatprep.subr.mxu0 0.0
      %6119 = vmatpush1.msra.mxu0 0.0
      %6120 = vmatprep.subr.mxu0 0.0
      %6121 = vmatpush1.msra.mxu0 0.0
      %6122 = vmatprep.mubr.f32.mxu0 0.0
      %6123 = vmatmul.mubr.f32.gmra.mrb[0].mxu0 %v5963
      %v6124 = vpop.f32.mrb[0].mxu0
      %v6125 = vadd.f32 0.0, %v6124
      %v6126 = vpop.f32.mrb[0].mxu0
      %v6127 = vadd.f32 0.0, %v6126
      %6128 = vmatprep.mubr.f32.mxu0 0.0
      %6129 = vmatmul.mubr.f32.gmra.mrb[0].mxu0 %v5966
      %v6130 = vpop.f32.mrb[0].mxu0
      %v6131 = vadd.f32 0.0, %v6130
      %v6132 = vpop.f32.mrb[0].mxu0
      %v6133 = vadd.f32 0.0, %v6132
      %6134 = vmatprep.mubr.f32.mxu0 0.0
      %6135 = vmatmul.mubr.f32.gmra.mrb[0].mxu0 %v5969
      %v6136 = vpop.f32.mrb[0].mxu0
      %v6137 = vadd.f32 0.0, %v6136
      %v6138 = vpop.f32.mrb[0].mxu0
      %v6139 = vadd.f32 0.0, %v6138
      %6140 = vmatprep.mubr.f32.mxu0 0.0
      %6141 = vmatmul.mubr.f32.gmra.mrb[0].mxu0 %v5972
      %v6142 = vpop.f32.mrb[0].mxu0
      %v6143 = vadd.f32 0.0, %v6142
      %v6144 = vpop.f32.mrb[0].mxu0
      %v6145 = vadd.f32 0.0, %v6144
      %6146 = vmatprep.mubr.f32.mxu0 0.0
      %6147 = vmatmul.mubr.f32.gmra.mrb[0].mxu0 %v5975
      %v6148 = vpop.f32.mrb[0].mxu0
      %v6149 = vadd.f32 0.0, %v6148
      %v6150 = vpop.f32.mrb[0].mxu0
      %v6151 = vadd.f32 0.0, %v6150
      %6152 = vmatprep.mubr.f32.mxu0 0.0
      %6153 = vmatmul.mubr.f32.gmra.mrb[0].mxu0 %v5978
      %v6154 = vpop.f32.mrb[0].mxu0
      %v6155 = vadd.f32 0.0, %v6154
      %v6156 = vpop.f32.mrb[0].mxu0
      %v6157 = vadd.f32 0.0, %v6156
      %6158 = vmatprep.mubr.f32.mxu0 0.0
      %6159 = vmatmul.mubr.f32.gmra.mrb[0].mxu0 %v5981
      %v6160 = vpop.f32.mrb[0].mxu0
      %v6161 = vadd.f32 0.0, %v6160
      %v6162 = vpop.f32.mrb[0].mxu0
      %v6163 = vadd.f32 0.0, %v6162
      %6164 = vmatprep.mubr.f32.mxu0 0.0
      %6165 = vmatmul.mubr.f32.gmra.mrb[0].mxu0 %v5984
      %v6166 = vpop.f32.mrb[0].mxu0
      %v6167 = vadd.f32 0.0, %v6166
      %v6168 = vpop.f32.mrb[0].mxu0
      %v6169 = vadd.f32 0.0, %v6168
      %6170 = vmatprep.mubr.f32.mxu0 0.0
      %6171 = vmatmul.mubr.f32.gmra.mrb[0].mxu0 %v5987
      %v6172 = vpop.f32.mrb[0].mxu0
      %v6173 = vadd.f32 0.0, %v6172
      %v6174 = vpop.f32.mrb[0].mxu0
      %v6175 = vadd.f32 0.0, %v6174
      %6176 = vmatprep.mubr.f32.mxu0 0.0
      %6177 = vmatmul.mubr.f32.gmra.mrb[0].mxu0 %v5990
      %v6178 = vpop.f32.mrb[0].mxu0
      %v6179 = vadd.f32 0.0, %v6178
      %v6180 = vpop.f32.mrb[0].mxu0
      %v6181 = vadd.f32 0.0, %v6180
      %6182 = vmatprep.mubr.f32.mxu0 0.0
      %6183 = vmatmul.mubr.f32.gmra.mrb[0].mxu0 %v5993
      %v6184 = vpop.f32.mrb[0].mxu0
      %v6185 = vadd.f32 0.0, %v6184
      %v6186 = vpop.f32.mrb[0].mxu0
      %v6187 = vadd.f32 0.0, %v6186
      %6188 = vmatprep.mubr.f32.mxu0 0.0
      %6189 = vmatmul.mubr.f32.gmra.mrb[0].mxu0 %v5996
      %v6190 = vpop.f32.mrb[0].mxu0
      %v6191 = vadd.f32 0.0, %v6190
      %v6192 = vpop.f32.mrb[0].mxu0
      %v6193 = vadd.f32 0.0, %v6192
      %6194 = vmatprep.mubr.f32.mxu0 0.0
      %6195 = vmatmul.mubr.f32.gmra.mrb[0].mxu0 %v5999
      %v6196 = vpop.f32.mrb[0].mxu0
      %v6197 = vadd.f32 0.0, %v6196
      %v6198 = vpop.f32.mrb[0].mxu0
      %v6199 = vadd.f32 0.0, %v6198
      %6200 = vmatprep.mubr.f32.mxu0 0.0
      %6201 = vmatmul.mubr.f32.gmra.mrb[0].mxu0 %v6002
      %v6202 = vpop.f32.mrb[0].mxu0
      %v6203 = vadd.f32 0.0, %v6202
      %v6204 = vpop.f32.mrb[0].mxu0
      %v6205 = vadd.f32 0.0, %v6204
      %6206 = vmatprep.mubr.f32.mxu0 0.0
      %6207 = vmatmul.mubr.f32.gmra.mrb[0].mxu0 %v6005
      %v6208 = vpop.f32.mrb[0].mxu0
      %v6209 = vadd.f32 0.0, %v6208
      %v6210 = vpop.f32.mrb[0].mxu0
      %v6211 = vadd.f32 0.0, %v6210
      %6212 = vmatprep.mubr.f32.mxu0 0.0
      %6213 = vmatmul.mubr.f32.gmra.mrb[0].mxu0 %v6008
      %v6214 = vpop.f32.mrb[0].mxu0
      %v6215 = vadd.f32 0.0, %v6214
      %v6216 = vpop.f32.mrb[0].mxu0
      %v6217 = vadd.f32 0.0, %v6216
      %6218 = vmatprep.mubr.f32.mxu0 0.0
      %6219 = vmatmul.mubr.f32.gmra.mrb[0].mxu0 %v6011
      %v6220 = vpop.f32.mrb[0].mxu0
      %v6221 = vadd.f32 0.0, %v6220
      %v6222 = vpop.f32.mrb[0].mxu0
      %v6223 = vadd.f32 0.0, %v6222
      %6224 = vmatprep.mubr.f32.mxu0 0.0
      %6225 = vmatmul.mubr.f32.gmra.mrb[0].mxu0 %v6014
      %v6226 = vpop.f32.mrb[0].mxu0
      %v6227 = vadd.f32 0.0, %v6226
      %v6228 = vpop.f32.mrb[0].mxu0
      %v6229 = vadd.f32 0.0, %v6228
      %6230 = vmatprep.mubr.f32.mxu0 0.0
      %6231 = vmatmul.mubr.f32.gmra.mrb[0].mxu0 %v6017
      %v6232 = vpop.f32.mrb[0].mxu0
      %v6233 = vadd.f32 0.0, %v6232
      %v6234 = vpop.f32.mrb[0].mxu0
      %v6235 = vadd.f32 0.0, %v6234
      %6236 = vmatprep.mubr.f32.mxu0 0.0
      %6237 = vmatmul.mubr.f32.gmra.mrb[0].mxu0 %v6020
      %v6238 = vpop.f32.mrb[0].mxu0
      %v6239 = vadd.f32 0.0, %v6238
      %v6240 = vpop.f32.mrb[0].mxu0
      %v6241 = vadd.f32 0.0, %v6240
      %6242 = vmatprep.mubr.f32.mxu0 0.0
      %6243 = vmatmul.mubr.f32.gmra.mrb[0].mxu0 %v6023
      %v6244 = vpop.f32.mrb[0].mxu0
      %v6245 = vadd.f32 0.0, %v6244
      %v6246 = vpop.f32.mrb[0].mxu0
      %v6247 = vadd.f32 0.0, %v6246
      %6248 = vmatprep.mubr.f32.mxu0 0.0
      %6249 = vmatmul.mubr.f32.gmra.mrb[0].mxu0 %v6026
      %v6250 = vpop.f32.mrb[0].mxu0
      %v6251 = vadd.f32 0.0, %v6250
      %v6252 = vpop.f32.mrb[0].mxu0
      %v6253 = vadd.f32 0.0, %v6252
      %6254 = vmatprep.mubr.f32.mxu0 0.0
      %6255 = vmatmul.mubr.f32.gmra.mrb[0].mxu0 %v6029
      %v6256 = vpop.f32.mrb[0].mxu0
      %v6257 = vadd.f32 0.0, %v6256
      %v6258 = vpop.f32.mrb[0].mxu0
      %v6259 = vadd.f32 0.0, %v6258
      %6260 = vmatprep.mubr.f32.mxu0 0.0
      %6261 = vmatmul.mubr.f32.gmra.mrb[0].mxu0 %v6032
      %v6262 = vpop.f32.mrb[0].mxu0
      %v6263 = vadd.f32 0.0, %v6262
      %v6264 = vpop.f32.mrb[0].mxu0
      %v6265 = vadd.f32 0.0, %v6264
      %6266 = vmatprep.mubr.f32.mxu0 0.0
      %6267 = vmatmul.mubr.f32.gmra.mrb[0].mxu0 %v6035
      %v6268 = vpop.f32.mrb[0].mxu0
      %v6269 = vadd.f32 0.0, %v6268
      %v6270 = vpop.f32.mrb[0].mxu0
      %v6271 = vadd.f32 0.0, %v6270
      %6272 = vmatprep.mubr.f32.mxu0 0.0
      %6273 = vmatmul.mubr.f32.gmra.mrb[0].mxu0 %v6038
      %v6274 = vpop.f32.mrb[0].mxu0
      %v6275 = vadd.f32 0.0, %v6274
      %v6276 = vpop.f32.mrb[0].mxu0
      %v6277 = vadd.f32 0.0, %v6276
      %6278 = vmatprep.mubr.f32.mxu0 0.0
      %6279 = vmatmul.mubr.f32.gmra.mrb[0].mxu0 %v6041
      %v6280 = vpop.f32.mrb[0].mxu0
      %v6281 = vadd.f32 0.0, %v6280
      %v6282 = vpop.f32.mrb[0].mxu0
      %v6283 = vadd.f32 0.0, %v6282
      %6284 = vmatprep.mubr.f32.mxu0 0.0
      %6285 = vmatmul.mubr.f32.gmra.mrb[0].mxu0 %v6044
      %v6286 = vpop.f32.mrb[0].mxu0
      %v6287 = vadd.f32 0.0, %v6286
      %v6288 = vpop.f32.mrb[0].mxu0
      %v6289 = vadd.f32 0.0, %v6288
      %6290 = vmatprep.mubr.f32.mxu0 0.0
      %6291 = vmatmul.mubr.f32.gmra.mrb[0].mxu0 %v6047
      %v6292 = vpop.f32.mrb[0].mxu0
      %v6293 = vadd.f32 0.0, %v6292
      %v6294 = vpop.f32.mrb[0].mxu0
      %v6295 = vadd.f32 0.0, %v6294
      %6296 = vmatprep.mubr.f32.mxu0 0.0
      %6297 = vmatmul.mubr.f32.gmra.mrb[0].mxu0 %v6050
      %v6298 = vpop.f32.mrb[0].mxu0
      %v6299 = vadd.f32 0.0, %v6298
      %v6300 = vpop.f32.mrb[0].mxu0
      %v6301 = vadd.f32 0.0, %v6300
      %6302 = vmatprep.mubr.f32.mxu0 0.0
      %6303 = vmatmul.mubr.f32.gmra.mrb[0].mxu0 %v6053
      %v6304 = vpop.f32.mrb[0].mxu0
      %v6305 = vadd.f32 0.0, %v6304
      %v6306 = vpop.f32.mrb[0].mxu0
      %v6307 = vadd.f32 0.0, %v6306
      %6308 = vmatprep.mubr.f32.mxu0 0.0
      %6309 = vmatmul.mubr.f32.gmra.mrb[0].mxu0 %v6056
      %v6310 = vpop.f32.mrb[0].mxu0
      %v6311 = vadd.f32 0.0, %v6310
      %v6312 = vpop.f32.mrb[0].mxu0
      %v6313 = vadd.f32 0.0, %v6312
      %6314 = vdwg.mxu0
      %v6315 = vmul.f32 %v6125, 0.5
      %v6316 = vmul.f32 %v6131, 0.5
      %v6317 = vmul.f32 %v6137, 0.5
      %v6318 = vmul.f32 %v6143, 0.5
      %v6319 = vmul.f32 %v6149, 0.5
      %v6320 = vmul.f32 %v6155, 0.5
      %v6321 = vmul.f32 %v6161, 0.5
      %v6322 = vmul.f32 %v6167, 0.5
      %v6323 = vmul.f32 %v6173, 0.5
      %v6324 = vmul.f32 %v6179, 0.5
      %v6325 = vmul.f32 %v6185, 0.5
      %v6326 = vmul.f32 %v6191, 0.5
      %v6327 = vmul.f32 %v6197, 0.5
      %v6328 = vmul.f32 %v6203, 0.5
      %v6329 = vmul.f32 %v6209, 0.5
      %v6330 = vmul.f32 %v6215, 0.5
      %v6331 = vmul.f32 %v6221, 0.5
      %v6332 = vmul.f32 %v6227, 0.5
      %v6333 = vmul.f32 %v6233, 0.5
      %v6334 = vmul.f32 %v6239, 0.5
      %v6335 = vmul.f32 %v6245, 0.5
      %v6336 = vmul.f32 %v6251, 0.5
      %v6337 = vmul.f32 %v6257, 0.5
      %v6338 = vmul.f32 %v6263, 0.5
      %v6339 = vmul.f32 %v6269, 0.5
      %v6340 = vmul.f32 %v6275, 0.5
      %v6341 = vmul.f32 %v6281, 0.5
      %v6342 = vmul.f32 %v6287, 0.5
      %v6343 = vmul.f32 %v6293, 0.5
      %v6344 = vmul.f32 %v6299, 0.5
      %v6345 = vmul.f32 %v6305, 0.5
      %v6346 = vmul.f32 %v6311, 0.5
      %v6347 = vmul.f32 %v6125, 0.044715
      %v6348 = vmul.f32 %v6131, 0.044715
      %v6349 = vmul.f32 %v6137, 0.044715
      %v6350 = vmul.f32 %v6143, 0.044715
      %v6351 = vmul.f32 %v6149, 0.044715
      %v6352 = vmul.f32 %v6155, 0.044715
      %v6353 = vmul.f32 %v6161, 0.044715
      %v6354 = vmul.f32 %v6167, 0.044715
      %v6355 = vmul.f32 %v6173, 0.044715
      %v6356 = vmul.f32 %v6179, 0.044715
      %v6357 = vmul.f32 %v6185, 0.044715
      %v6358 = vmul.f32 %v6191, 0.044715
      %v6359 = vmul.f32 %v6197, 0.044715
      %v6360 = vmul.f32 %v6203, 0.044715
      %v6361 = vmul.f32 %v6209, 0.044715
      %v6362 = vmul.f32 %v6215, 0.044715
      %v6363 = vmul.f32 %v6221, 0.044715
      %v6364 = vmul.f32 %v6227, 0.044715
      %v6365 = vmul.f32 %v6233, 0.044715
      %v6366 = vmul.f32 %v6239, 0.044715
      %v6367 = vmul.f32 %v6245, 0.044715
      %v6368 = vmul.f32 %v6251, 0.044715
      %v6369 = vmul.f32 %v6257, 0.044715
      %v6370 = vmul.f32 %v6263, 0.044715
      %v6371 = vmul.f32 %v6269, 0.044715
      %v6372 = vmul.f32 %v6275, 0.044715
      %v6373 = vmul.f32 %v6281, 0.044715
      %v6374 = vmul.f32 %v6287, 0.044715
      %v6375 = vmul.f32 %v6293, 0.044715
      %v6376 = vmul.f32 %v6299, 0.044715
      %v6377 = vmul.f32 %v6305, 0.044715
      %v6378 = vmul.f32 %v6311, 0.044715
      %v6379 = vmul.f32 %v6347, %v6125
      %v6380 = vmul.f32 %v6348, %v6131
      %v6381 = vmul.f32 %v6349, %v6137
      %v6382 = vmul.f32 %v6350, %v6143
      %v6383 = vmul.f32 %v6351, %v6149
      %v6384 = vmul.f32 %v6352, %v6155
      %v6385 = vmul.f32 %v6353, %v6161
      %v6386 = vmul.f32 %v6354, %v6167
      %v6387 = vmul.f32 %v6355, %v6173
      %v6388 = vmul.f32 %v6356, %v6179
      %v6389 = vmul.f32 %v6357, %v6185
      %v6390 = vmul.f32 %v6358, %v6191
      %v6391 = vmul.f32 %v6359, %v6197
      %v6392 = vmul.f32 %v6360, %v6203
      %v6393 = vmul.f32 %v6361, %v6209
      %v6394 = vmul.f32 %v6362, %v6215
      %v6395 = vmul.f32 %v6363, %v6221
      %v6396 = vmul.f32 %v6364, %v6227
      %v6397 = vmul.f32 %v6365, %v6233
      %v6398 = vmul.f32 %v6366, %v6239
      %v6399 = vmul.f32 %v6367, %v6245
      %v6400 = vmul.f32 %v6368, %v6251
      %v6401 = vmul.f32 %v6369, %v6257
      %v6402 = vmul.f32 %v6370, %v6263
      %v6403 = vmul.f32 %v6371, %v6269
      %v6404 = vmul.f32 %v6372, %v6275
      %v6405 = vmul.f32 %v6373, %v6281
      %v6406 = vmul.f32 %v6374, %v6287
      %v6407 = vmul.f32 %v6375, %v6293
      %v6408 = vmul.f32 %v6376, %v6299
      %v6409 = vmul.f32 %v6377, %v6305
      %v6410 = vmul.f32 %v6378, %v6311
      %v6411 = vmul.f32 %v6379, %v6125
      %v6412 = vmul.f32 %v6380, %v6131
      %v6413 = vmul.f32 %v6381, %v6137
      %v6414 = vmul.f32 %v6382, %v6143
      %v6415 = vmul.f32 %v6383, %v6149
      %v6416 = vmul.f32 %v6384, %v6155
      %v6417 = vmul.f32 %v6385, %v6161
      %v6418 = vmul.f32 %v6386, %v6167
      %v6419 = vmul.f32 %v6387, %v6173
      %v6420 = vmul.f32 %v6388, %v6179
      %v6421 = vmul.f32 %v6389, %v6185
      %v6422 = vmul.f32 %v6390, %v6191
      %v6423 = vmul.f32 %v6391, %v6197
      %v6424 = vmul.f32 %v6392, %v6203
      %v6425 = vmul.f32 %v6393, %v6209
      %v6426 = vmul.f32 %v6394, %v6215
      %v6427 = vmul.f32 %v6395, %v6221
      %v6428 = vmul.f32 %v6396, %v6227
      %v6429 = vmul.f32 %v6397, %v6233
      %v6430 = vmul.f32 %v6398, %v6239
      %v6431 = vmul.f32 %v6399, %v6245
      %v6432 = vmul.f32 %v6400, %v6251
      %v6433 = vmul.f32 %v6401, %v6257
      %v6434 = vmul.f32 %v6402, %v6263
      %v6435 = vmul.f32 %v6403, %v6269
      %v6436 = vmul.f32 %v6404, %v6275
      %v6437 = vmul.f32 %v6405, %v6281
      %v6438 = vmul.f32 %v6406, %v6287
      %v6439 = vmul.f32 %v6407, %v6293
      %v6440 = vmul.f32 %v6408, %v6299
      %v6441 = vmul.f32 %v6409, %v6305
      %v6442 = vmul.f32 %v6410, %v6311
      %v6443 = vadd.f32 %v6125, %v6411
      %v6444 = vadd.f32 %v6131, %v6412
      %v6445 = vadd.f32 %v6137, %v6413
      %v6446 = vadd.f32 %v6143, %v6414
      %v6447 = vadd.f32 %v6149, %v6415
      %v6448 = vadd.f32 %v6155, %v6416
      %v6449 = vadd.f32 %v6161, %v6417
      %v6450 = vadd.f32 %v6167, %v6418
      %v6451 = vadd.f32 %v6173, %v6419
      %v6452 = vadd.f32 %v6179, %v6420
      %v6453 = vadd.f32 %v6185, %v6421
      %v6454 = vadd.f32 %v6191, %v6422
      %v6455 = vadd.f32 %v6197, %v6423
      %v6456 = vadd.f32 %v6203, %v6424
      %v6457 = vadd.f32 %v6209, %v6425
      %v6458 = vadd.f32 %v6215, %v6426
      %v6459 = vadd.f32 %v6221, %v6427
      %v6460 = vadd.f32 %v6227, %v6428
      %v6461 = vadd.f32 %v6233, %v6429
      %v6462 = vadd.f32 %v6239, %v6430
      %v6463 = vadd.f32 %v6245, %v6431
      %v6464 = vadd.f32 %v6251, %v6432
      %v6465 = vadd.f32 %v6257, %v6433
      %v6466 = vadd.f32 %v6263, %v6434
      %v6467 = vadd.f32 %v6269, %v6435
      %v6468 = vadd.f32 %v6275, %v6436
      %v6469 = vadd.f32 %v6281, %v6437
      %v6470 = vadd.f32 %v6287, %v6438
      %v6471 = vadd.f32 %v6293, %v6439
      %v6472 = vadd.f32 %v6299, %v6440
      %v6473 = vadd.f32 %v6305, %v6441
      %v6474 = vadd.f32 %v6311, %v6442
      %v6475 = vmul.f32 %v6443, 0.7978846
      %v6476 = vmul.f32 %v6444, 0.7978846
      %v6477 = vmul.f32 %v6445, 0.7978846
      %v6478 = vmul.f32 %v6446, 0.7978846
      %v6479 = vmul.f32 %v6447, 0.7978846
      %v6480 = vmul.f32 %v6448, 0.7978846
      %v6481 = vmul.f32 %v6449, 0.7978846
      %v6482 = vmul.f32 %v6450, 0.7978846
      %v6483 = vmul.f32 %v6451, 0.7978846
      %v6484 = vmul.f32 %v6452, 0.7978846
      %v6485 = vmul.f32 %v6453, 0.7978846
      %v6486 = vmul.f32 %v6454, 0.7978846
      %v6487 = vmul.f32 %v6455, 0.7978846
      %v6488 = vmul.f32 %v6456, 0.7978846
      %v6489 = vmul.f32 %v6457, 0.7978846
      %v6490 = vmul.f32 %v6458, 0.7978846
      %v6491 = vmul.f32 %v6459, 0.7978846
      %v6492 = vmul.f32 %v6460, 0.7978846
      %v6493 = vmul.f32 %v6461, 0.7978846
      %v6494 = vmul.f32 %v6462, 0.7978846
      %v6495 = vmul.f32 %v6463, 0.7978846
      %v6496 = vmul.f32 %v6464, 0.7978846
      %v6497 = vmul.f32 %v6465, 0.7978846
      %v6498 = vmul.f32 %v6466, 0.7978846
      %v6499 = vmul.f32 %v6467, 0.7978846
      %v6500 = vmul.f32 %v6468, 0.7978846
      %v6501 = vmul.f32 %v6469, 0.7978846
      %v6502 = vmul.f32 %v6470, 0.7978846
      %v6503 = vmul.f32 %v6471, 0.7978846
      %v6504 = vmul.f32 %v6472, 0.7978846
      %v6505 = vmul.f32 %v6473, 0.7978846
      %v6506 = vmul.f32 %v6474, 0.7978846
      %v6507 = vtanh.pop %v6475
      %v6508 = vtanh.pop %v6476
      %v6509 = vtanh.pop %v6477
      %v6510 = vtanh.pop %v6478
      %v6511 = vtanh.pop %v6479
      %v6512 = vtanh.pop %v6480
      %v6513 = vtanh.pop %v6481
      %v6514 = vtanh.pop %v6482
      %v6515 = vtanh.pop %v6483
      %v6516 = vtanh.pop %v6484
      %v6517 = vtanh.pop %v6485
      %v6518 = vtanh.pop %v6486
      %v6519 = vtanh.pop %v6487
      %v6520 = vtanh.pop %v6488
      %v6521 = vtanh.pop %v6489
      %v6522 = vtanh.pop %v6490
      %v6523 = vtanh.pop %v6491
      %v6524 = vtanh.pop %v6492
      %v6525 = vtanh.pop %v6493
      %v6526 = vtanh.pop %v6494
      %v6527 = vtanh.pop %v6495
      %v6528 = vtanh.pop %v6496
      %v6529 = vtanh.pop %v6497
      %v6530 = vtanh.pop %v6498
      %v6531 = vtanh.pop %v6499
      %v6532 = vtanh.pop %v6500
      %v6533 = vtanh.pop %v6501
      %v6534 = vtanh.pop %v6502
      %v6535 = vtanh.pop %v6503
      %v6536 = vtanh.pop %v6504
      %v6537 = vtanh.pop %v6505
      %v6538 = vtanh.pop %v6506
      %v6539 = vadd.f32 %v6507, 1.0
      %v6540 = vadd.f32 %v6508, 1.0
      %v6541 = vadd.f32 %v6509, 1.0
      %v6542 = vadd.f32 %v6510, 1.0
      %v6543 = vadd.f32 %v6511, 1.0
      %v6544 = vadd.f32 %v6512, 1.0
      %v6545 = vadd.f32 %v6513, 1.0
      %v6546 = vadd.f32 %v6514, 1.0
      %v6547 = vadd.f32 %v6515, 1.0
      %v6548 = vadd.f32 %v6516, 1.0
      %v6549 = vadd.f32 %v6517, 1.0
      %v6550 = vadd.f32 %v6518, 1.0
      %v6551 = vadd.f32 %v6519, 1.0
      %v6552 = vadd.f32 %v6520, 1.0
      %v6553 = vadd.f32 %v6521, 1.0
      %v6554 = vadd.f32 %v6522, 1.0
      %v6555 = vadd.f32 %v6523, 1.0
      %v6556 = vadd.f32 %v6524, 1.0
      %v6557 = vadd.f32 %v6525, 1.0
      %v6558 = vadd.f32 %v6526, 1.0
      %v6559 = vadd.f32 %v6527, 1.0
      %v6560 = vadd.f32 %v6528, 1.0
      %v6561 = vadd.f32 %v6529, 1.0
      %v6562 = vadd.f32 %v6530, 1.0
      %v6563 = vadd.f32 %v6531, 1.0
      %v6564 = vadd.f32 %v6532, 1.0
      %v6565 = vadd.f32 %v6533, 1.0
      %v6566 = vadd.f32 %v6534, 1.0
      %v6567 = vadd.f32 %v6535, 1.0
      %v6568 = vadd.f32 %v6536, 1.0
      %v6569 = vadd.f32 %v6537, 1.0
      %v6570 = vadd.f32 %v6538, 1.0
      %v6571 = vmul.f32 %v6315, %v6539
      %v6572 = vmul.f32 %v6316, %v6540
      %v6573 = vmul.f32 %v6317, %v6541
      %v6574 = vmul.f32 %v6318, %v6542
      %v6575 = vmul.f32 %v6319, %v6543
      %v6576 = vmul.f32 %v6320, %v6544
      %v6577 = vmul.f32 %v6321, %v6545
      %v6578 = vmul.f32 %v6322, %v6546
      %v6579 = vmul.f32 %v6323, %v6547
      %v6580 = vmul.f32 %v6324, %v6548
      %v6581 = vmul.f32 %v6325, %v6549
      %v6582 = vmul.f32 %v6326, %v6550
      %v6583 = vmul.f32 %v6327, %v6551
      %v6584 = vmul.f32 %v6328, %v6552
      %v6585 = vmul.f32 %v6329, %v6553
      %v6586 = vmul.f32 %v6330, %v6554
      %v6587 = vmul.f32 %v6331, %v6555
      %v6588 = vmul.f32 %v6332, %v6556
      %v6589 = vmul.f32 %v6333, %v6557
      %v6590 = vmul.f32 %v6334, %v6558
      %v6591 = vmul.f32 %v6335, %v6559
      %v6592 = vmul.f32 %v6336, %v6560
      %v6593 = vmul.f32 %v6337, %v6561
      %v6594 = vmul.f32 %v6338, %v6562
      %v6595 = vmul.f32 %v6339, %v6563
      %v6596 = vmul.f32 %v6340, %v6564
      %v6597 = vmul.f32 %v6341, %v6565
      %v6598 = vmul.f32 %v6342, %v6566
      %v6599 = vmul.f32 %v6343, %v6567
      %v6600 = vmul.f32 %v6344, %v6568
      %v6601 = vmul.f32 %v6345, %v6569
      %v6602 = vmul.f32 %v6346, %v6570
      %v6603 = vmul.f32 %v6571, %v6127
      %v6604 = vmul.f32 %v6572, %v6133
      %v6605 = vmul.f32 %v6573, %v6139
      %v6606 = vmul.f32 %v6574, %v6145
      %v6607 = vmul.f32 %v6575, %v6151
      %v6608 = vmul.f32 %v6576, %v6157
      %v6609 = vmul.f32 %v6577, %v6163
      %v6610 = vmul.f32 %v6578, %v6169
      %v6611 = vmul.f32 %v6579, %v6175
      %v6612 = vmul.f32 %v6580, %v6181
      %v6613 = vmul.f32 %v6581, %v6187
      %v6614 = vmul.f32 %v6582, %v6193
      %v6615 = vmul.f32 %v6583, %v6199
      %v6616 = vmul.f32 %v6584, %v6205
      %v6617 = vmul.f32 %v6585, %v6211
      %v6618 = vmul.f32 %v6586, %v6217
      %v6619 = vmul.f32 %v6587, %v6223
      %v6620 = vmul.f32 %v6588, %v6229
      %v6621 = vmul.f32 %v6589, %v6235
      %v6622 = vmul.f32 %v6590, %v6241
      %v6623 = vmul.f32 %v6591, %v6247
      %v6624 = vmul.f32 %v6592, %v6253
      %v6625 = vmul.f32 %v6593, %v6259
      %v6626 = vmul.f32 %v6594, %v6265
      %v6627 = vmul.f32 %v6595, %v6271
      %v6628 = vmul.f32 %v6596, %v6277
      %v6629 = vmul.f32 %v6597, %v6283
      %v6630 = vmul.f32 %v6598, %v6289
      %v6631 = vmul.f32 %v6599, %v6295
      %v6632 = vmul.f32 %v6600, %v6301
      %v6633 = vmul.f32 %v6601, %v6307
      %v6634 = vmul.f32 %v6602, %v6313
      %v6635 = vld [vmem:[%s12] sm:$0xff]
      %v6636 = vld [vmem:[%s12 + $0x8] sm:$0xff]
      %v6637 = vld [vmem:[%s12 + $0x10] sm:$0xff]
      %v6638 = vld [vmem:[%s12 + $0x18] sm:$0xff]
      %v6639 = vld [vmem:[%s12 + $0x20] sm:$0xff]
      %v6640 = vld [vmem:[%s12 + $0x28] sm:$0xff]
      %v6641 = vld [vmem:[%s12 + $0x30] sm:$0xff]
      %v6642 = vld [vmem:[%s12 + $0x38] sm:$0xff]
      %v6643 = vld [vmem:[%s12 + $0x40] sm:$0xff]
      %v6644 = vld [vmem:[%s12 + $0x48] sm:$0xff]
      %v6645 = vld [vmem:[%s12 + $0x50] sm:$0xff]
      %v6646 = vld [vmem:[%s12 + $0x58] sm:$0xff]
      %v6647 = vld [vmem:[%s12 + $0x60] sm:$0xff]
      %v6648 = vld [vmem:[%s12 + $0x68] sm:$0xff]
      %v6649 = vld [vmem:[%s12 + $0x70] sm:$0xff]
      %v6650 = vld [vmem:[%s12 + $0x78] sm:$0xff]
      %6651 = vmatprep.subr.mxu0 0.0
      %6652 = vmatpush1.msra.mxu0 %v6635
      %6653 = vmatprep.subr.mxu0 0.0
      %6654 = vmatpush1.msra.mxu0 %v6636
      %6655 = vmatprep.subr.mxu0 0.0
      %6656 = vmatpush1.msra.mxu0 %v6637
      %6657 = vmatprep.subr.mxu0 0.0
      %6658 = vmatpush1.msra.mxu0 %v6638
      %6659 = vmatprep.subr.mxu0 0.0
      %6660 = vmatpush1.msra.mxu0 %v6639
      %6661 = vmatprep.subr.mxu0 0.0
      %6662 = vmatpush1.msra.mxu0 %v6640
      %6663 = vmatprep.subr.mxu0 0.0
      %6664 = vmatpush1.msra.mxu0 %v6641
      %6665 = vmatprep.subr.mxu0 0.0
      %6666 = vmatpush1.msra.mxu0 %v6642
      %6667 = vmatprep.subr.mxu0 0.0
      %6668 = vmatpush1.msra.mxu0 %v6643
      %6669 = vmatprep.subr.mxu0 0.0
      %6670 = vmatpush1.msra.mxu0 %v6644
      %6671 = vmatprep.subr.mxu0 0.0
      %6672 = vmatpush1.msra.mxu0 %v6645
      %6673 = vmatprep.subr.mxu0 0.0
      %6674 = vmatpush1.msra.mxu0 %v6646
      %6675 = vmatprep.subr.mxu0 0.0
      %6676 = vmatpush1.msra.mxu0 %v6647
      %6677 = vmatprep.subr.mxu0 0.0
      %6678 = vmatpush1.msra.mxu0 %v6648
      %6679 = vmatprep.subr.mxu0 0.0
      %6680 = vmatpush1.msra.mxu0 %v6649
      %6681 = vmatprep.subr.mxu0 0.0
      %6682 = vmatpush1.msra.mxu0 %v6650
      %6683 = vmatprep.subr.mxu0 0.0
      %6684 = vmatpush1.msra.mxu0 0.0
      %6685 = vmatprep.subr.mxu0 0.0
      %6686 = vmatpush1.msra.mxu0 0.0
      %6687 = vmatprep.subr.mxu0 0.0
      %6688 = vmatpush1.msra.mxu0 0.0
      %6689 = vmatprep.subr.mxu0 0.0
      %6690 = vmatpush1.msra.mxu0 0.0
      %6691 = vmatprep.subr.mxu0 0.0
      %6692 = vmatpush1.msra.mxu0 0.0
      %6693 = vmatprep.subr.mxu0 0.0
      %6694 = vmatpush1.msra.mxu0 0.0
      %6695 = vmatprep.subr.mxu0 0.0
      %6696 = vmatpush1.msra.mxu0 0.0
      %6697 = vmatprep.subr.mxu0 0.0
      %6698 = vmatpush1.msra.mxu0 0.0
      %6699 = vmatprep.subr.mxu0 0.0
      %6700 = vmatpush1.msra.mxu0 0.0
      %6701 = vmatprep.subr.mxu0 0.0
      %6702 = vmatpush1.msra.mxu0 0.0
      %6703 = vmatprep.subr.mxu0 0.0
      %6704 = vmatpush1.msra.mxu0 0.0
      %6705 = vmatprep.subr.mxu0 0.0
      %6706 = vmatpush1.msra.mxu0 0.0
      %6707 = vmatprep.subr.mxu0 0.0
      %6708 = vmatpush1.msra.mxu0 0.0
      %6709 = vmatprep.subr.mxu0 0.0
      %6710 = vmatpush1.msra.mxu0 0.0
      %6711 = vmatprep.subr.mxu0 0.0
      %6712 = vmatpush1.msra.mxu0 0.0
      %6713 = vmatprep.subr.mxu0 0.0
      %6714 = vmatpush1.msra.mxu0 0.0
      %6715 = vmatprep.mubr.f32.mxu0 0.0
      %6716 = vmatmul.mubr.f32.gmra.mrb[0].mxu0 %v6603
      %v6717 = vpop.f32.mrb[0].mxu0
      %v6718 = vadd.f32 0.0, %v6717
      %v6719 = vpop.f32.mrb[0].mxu0
      %6720 = vmatprep.mubr.f32.mxu0 0.0
      %6721 = vmatmul.mubr.f32.gmra.mrb[0].mxu0 %v6604
      %v6722 = vpop.f32.mrb[0].mxu0
      %v6723 = vadd.f32 0.0, %v6722
      %v6724 = vpop.f32.mrb[0].mxu0
      %6725 = vmatprep.mubr.f32.mxu0 0.0
      %6726 = vmatmul.mubr.f32.gmra.mrb[0].mxu0 %v6605
      %v6727 = vpop.f32.mrb[0].mxu0
      %v6728 = vadd.f32 0.0, %v6727
      %v6729 = vpop.f32.mrb[0].mxu0
      %6730 = vmatprep.mubr.f32.mxu0 0.0
      %6731 = vmatmul.mubr.f32.gmra.mrb[0].mxu0 %v6606
      %v6732 = vpop.f32.mrb[0].mxu0
      %v6733 = vadd.f32 0.0, %v6732
      %v6734 = vpop.f32.mrb[0].mxu0
      %6735 = vmatprep.mubr.f32.mxu0 0.0
      %6736 = vmatmul.mubr.f32.gmra.mrb[0].mxu0 %v6607
      %v6737 = vpop.f32.mrb[0].mxu0
      %v6738 = vadd.f32 0.0, %v6737
      %v6739 = vpop.f32.mrb[0].mxu0
      %6740 = vmatprep.mubr.f32.mxu0 0.0
      %6741 = vmatmul.mubr.f32.gmra.mrb[0].mxu0 %v6608
      %v6742 = vpop.f32.mrb[0].mxu0
      %v6743 = vadd.f32 0.0, %v6742
      %v6744 = vpop.f32.mrb[0].mxu0
      %6745 = vmatprep.mubr.f32.mxu0 0.0
      %6746 = vmatmul.mubr.f32.gmra.mrb[0].mxu0 %v6609
      %v6747 = vpop.f32.mrb[0].mxu0
      %v6748 = vadd.f32 0.0, %v6747
      %v6749 = vpop.f32.mrb[0].mxu0
      %6750 = vmatprep.mubr.f32.mxu0 0.0
      %6751 = vmatmul.mubr.f32.gmra.mrb[0].mxu0 %v6610
      %v6752 = vpop.f32.mrb[0].mxu0
      %v6753 = vadd.f32 0.0, %v6752
      %v6754 = vpop.f32.mrb[0].mxu0
      %6755 = vmatprep.mubr.f32.mxu0 0.0
      %6756 = vmatmul.mubr.f32.gmra.mrb[0].mxu0 %v6611
      %v6757 = vpop.f32.mrb[0].mxu0
      %v6758 = vadd.f32 0.0, %v6757
      %v6759 = vpop.f32.mrb[0].mxu0
      %6760 = vmatprep.mubr.f32.mxu0 0.0
      %6761 = vmatmul.mubr.f32.gmra.mrb[0].mxu0 %v6612
      %v6762 = vpop.f32.mrb[0].mxu0
      %v6763 = vadd.f32 0.0, %v6762
      %v6764 = vpop.f32.mrb[0].mxu0
      %6765 = vmatprep.mubr.f32.mxu0 0.0
      %6766 = vmatmul.mubr.f32.gmra.mrb[0].mxu0 %v6613
      %v6767 = vpop.f32.mrb[0].mxu0
      %v6768 = vadd.f32 0.0, %v6767
      %v6769 = vpop.f32.mrb[0].mxu0
      %6770 = vmatprep.mubr.f32.mxu0 0.0
      %6771 = vmatmul.mubr.f32.gmra.mrb[0].mxu0 %v6614
      %v6772 = vpop.f32.mrb[0].mxu0
      %v6773 = vadd.f32 0.0, %v6772
      %v6774 = vpop.f32.mrb[0].mxu0
      %6775 = vmatprep.mubr.f32.mxu0 0.0
      %6776 = vmatmul.mubr.f32.gmra.mrb[0].mxu0 %v6615
      %v6777 = vpop.f32.mrb[0].mxu0
      %v6778 = vadd.f32 0.0, %v6777
      %v6779 = vpop.f32.mrb[0].mxu0
      %6780 = vmatprep.mubr.f32.mxu0 0.0
      %6781 = vmatmul.mubr.f32.gmra.mrb[0].mxu0 %v6616
      %v6782 = vpop.f32.mrb[0].mxu0
      %v6783 = vadd.f32 0.0, %v6782
      %v6784 = vpop.f32.mrb[0].mxu0
      %6785 = vmatprep.mubr.f32.mxu0 0.0
      %6786 = vmatmul.mubr.f32.gmra.mrb[0].mxu0 %v6617
      %v6787 = vpop.f32.mrb[0].mxu0
      %v6788 = vadd.f32 0.0, %v6787
      %v6789 = vpop.f32.mrb[0].mxu0
      %6790 = vmatprep.mubr.f32.mxu0 0.0
      %6791 = vmatmul.mubr.f32.gmra.mrb[0].mxu0 %v6618
      %v6792 = vpop.f32.mrb[0].mxu0
      %v6793 = vadd.f32 0.0, %v6792
      %v6794 = vpop.f32.mrb[0].mxu0
      %6795 = vmatprep.mubr.f32.mxu0 0.0
      %6796 = vmatmul.mubr.f32.gmra.mrb[0].mxu0 %v6619
      %v6797 = vpop.f32.mrb[0].mxu0
      %v6798 = vadd.f32 0.0, %v6797
      %v6799 = vpop.f32.mrb[0].mxu0
      %6800 = vmatprep.mubr.f32.mxu0 0.0
      %6801 = vmatmul.mubr.f32.gmra.mrb[0].mxu0 %v6620
      %v6802 = vpop.f32.mrb[0].mxu0
      %v6803 = vadd.f32 0.0, %v6802
      %v6804 = vpop.f32.mrb[0].mxu0
      %6805 = vmatprep.mubr.f32.mxu0 0.0
      %6806 = vmatmul.mubr.f32.gmra.mrb[0].mxu0 %v6621
      %v6807 = vpop.f32.mrb[0].mxu0
      %v6808 = vadd.f32 0.0, %v6807
      %v6809 = vpop.f32.mrb[0].mxu0
      %6810 = vmatprep.mubr.f32.mxu0 0.0
      %6811 = vmatmul.mubr.f32.gmra.mrb[0].mxu0 %v6622
      %v6812 = vpop.f32.mrb[0].mxu0
      %v6813 = vadd.f32 0.0, %v6812
      %v6814 = vpop.f32.mrb[0].mxu0
      %6815 = vmatprep.mubr.f32.mxu0 0.0
      %6816 = vmatmul.mubr.f32.gmra.mrb[0].mxu0 %v6623
      %v6817 = vpop.f32.mrb[0].mxu0
      %v6818 = vadd.f32 0.0, %v6817
      %v6819 = vpop.f32.mrb[0].mxu0
      %6820 = vmatprep.mubr.f32.mxu0 0.0
      %6821 = vmatmul.mubr.f32.gmra.mrb[0].mxu0 %v6624
      %v6822 = vpop.f32.mrb[0].mxu0
      %v6823 = vadd.f32 0.0, %v6822
      %v6824 = vpop.f32.mrb[0].mxu0
      %6825 = vmatprep.mubr.f32.mxu0 0.0
      %6826 = vmatmul.mubr.f32.gmra.mrb[0].mxu0 %v6625
      %v6827 = vpop.f32.mrb[0].mxu0
      %v6828 = vadd.f32 0.0, %v6827
      %v6829 = vpop.f32.mrb[0].mxu0
      %6830 = vmatprep.mubr.f32.mxu0 0.0
      %6831 = vmatmul.mubr.f32.gmra.mrb[0].mxu0 %v6626
      %v6832 = vpop.f32.mrb[0].mxu0
      %v6833 = vadd.f32 0.0, %v6832
      %v6834 = vpop.f32.mrb[0].mxu0
      %6835 = vmatprep.mubr.f32.mxu0 0.0
      %6836 = vmatmul.mubr.f32.gmra.mrb[0].mxu0 %v6627
      %v6837 = vpop.f32.mrb[0].mxu0
      %v6838 = vadd.f32 0.0, %v6837
      %v6839 = vpop.f32.mrb[0].mxu0
      %6840 = vmatprep.mubr.f32.mxu0 0.0
      %6841 = vmatmul.mubr.f32.gmra.mrb[0].mxu0 %v6628
      %v6842 = vpop.f32.mrb[0].mxu0
      %v6843 = vadd.f32 0.0, %v6842
      %v6844 = vpop.f32.mrb[0].mxu0
      %6845 = vmatprep.mubr.f32.mxu0 0.0
      %6846 = vmatmul.mubr.f32.gmra.mrb[0].mxu0 %v6629
      %v6847 = vpop.f32.mrb[0].mxu0
      %v6848 = vadd.f32 0.0, %v6847
      %v6849 = vpop.f32.mrb[0].mxu0
      %6850 = vmatprep.mubr.f32.mxu0 0.0
      %6851 = vmatmul.mubr.f32.gmra.mrb[0].mxu0 %v6630
      %v6852 = vpop.f32.mrb[0].mxu0
      %v6853 = vadd.f32 0.0, %v6852
      %v6854 = vpop.f32.mrb[0].mxu0
      %6855 = vmatprep.mubr.f32.mxu0 0.0
      %6856 = vmatmul.mubr.f32.gmra.mrb[0].mxu0 %v6631
      %v6857 = vpop.f32.mrb[0].mxu0
      %v6858 = vadd.f32 0.0, %v6857
      %v6859 = vpop.f32.mrb[0].mxu0
      %6860 = vmatprep.mubr.f32.mxu0 0.0
      %6861 = vmatmul.mubr.f32.gmra.mrb[0].mxu0 %v6632
      %v6862 = vpop.f32.mrb[0].mxu0
      %v6863 = vadd.f32 0.0, %v6862
      %v6864 = vpop.f32.mrb[0].mxu0
      %6865 = vmatprep.mubr.f32.mxu0 0.0
      %6866 = vmatmul.mubr.f32.gmra.mrb[0].mxu0 %v6633
      %v6867 = vpop.f32.mrb[0].mxu0
      %v6868 = vadd.f32 0.0, %v6867
      %v6869 = vpop.f32.mrb[0].mxu0
      %6870 = vmatprep.mubr.f32.mxu0 0.0
      %6871 = vmatmul.mubr.f32.gmra.mrb[0].mxu0 %v6634
      %v6872 = vpop.f32.mrb[0].mxu0
      %v6873 = vadd.f32 0.0, %v6872
      %v6874 = vpop.f32.mrb[0].mxu0
      %6875 = vdwg.mxu0
      %v6876 = vadd.f32 %v5420, %v6718
      %v6877 = vadd.f32 %v5421, %v6723
      %v6878 = vadd.f32 %v5422, %v6728
      %v6879 = vadd.f32 %v5423, %v6733
      %v6880 = vadd.f32 %v5424, %v6738
      %v6881 = vadd.f32 %v5425, %v6743
      %v6882 = vadd.f32 %v5426, %v6748
      %v6883 = vadd.f32 %v5427, %v6753
      %v6884 = vadd.f32 %v5428, %v6758
      %v6885 = vadd.f32 %v5429, %v6763
      %v6886 = vadd.f32 %v5430, %v6768
      %v6887 = vadd.f32 %v5431, %v6773
      %v6888 = vadd.f32 %v5432, %v6778
      %v6889 = vadd.f32 %v5433, %v6783
      %v6890 = vadd.f32 %v5434, %v6788
      %v6891 = vadd.f32 %v5435, %v6793
      %v6892 = vadd.f32 %v5436, %v6798
      %v6893 = vadd.f32 %v5437, %v6803
      %v6894 = vadd.f32 %v5438, %v6808
      %v6895 = vadd.f32 %v5439, %v6813
      %v6896 = vadd.f32 %v5440, %v6818
      %v6897 = vadd.f32 %v5441, %v6823
      %v6898 = vadd.f32 %v5442, %v6828
      %v6899 = vadd.f32 %v5443, %v6833
      %v6900 = vadd.f32 %v5444, %v6838
      %v6901 = vadd.f32 %v5445, %v6843
      %v6902 = vadd.f32 %v5446, %v6848
      %v6903 = vadd.f32 %v5447, %v6853
      %v6904 = vadd.f32 %v5448, %v6858
      %v6905 = vadd.f32 %v5449, %v6863
      %v6906 = vadd.f32 %v5450, %v6868
      %v6907 = vadd.f32 %v5451, %v6873
      %6908 = vst.msk [vmem:[%s440] sm:$0xff] %vm473, %v6876
      %6909 = vst.msk [vmem:[%s440 + $0x8] sm:$0xff] %vm473, %v6877
      %6910 = vst.msk [vmem:[%s440 + $0x10] sm:$0xff] %vm473, %v6878
      %6911 = vst.msk [vmem:[%s440 + $0x18] sm:$0xff] %vm473, %v6879
      %6912 = vst.msk [vmem:[%s440 + $0x20] sm:$0xff] %vm473, %v6880
      %6913 = vst.msk [vmem:[%s440 + $0x28] sm:$0xff] %vm473, %v6881
      %6914 = vst.msk [vmem:[%s440 + $0x30] sm:$0xff] %vm473, %v6882
      %6915 = vst.msk [vmem:[%s440 + $0x38] sm:$0xff] %vm473, %v6883
      %6916 = vst.msk [vmem:[%s440 + $0x40] sm:$0xff] %vm473, %v6884
      %6917 = vst.msk [vmem:[%s440 + $0x48] sm:$0xff] %vm473, %v6885
      %6918 = vst.msk [vmem:[%s440 + $0x50] sm:$0xff] %vm473, %v6886
      %6919 = vst.msk [vmem:[%s440 + $0x58] sm:$0xff] %vm473, %v6887
      %6920 = vst.msk [vmem:[%s440 + $0x60] sm:$0xff] %vm473, %v6888
      %6921 = vst.msk [vmem:[%s440 + $0x68] sm:$0xff] %vm473, %v6889
      %6922 = vst.msk [vmem:[%s440 + $0x70] sm:$0xff] %vm473, %v6890
      %6923 = vst.msk [vmem:[%s440 + $0x78] sm:$0xff] %vm473, %v6891
      %6924 = vst.msk [vmem:[%s440 + $0x80] sm:$0xff] %vm473, %v6892
      %6925 = vst.msk [vmem:[%s440 + $0x88] sm:$0xff] %vm473, %v6893
      %6926 = vst.msk [vmem:[%s440 + $0x90] sm:$0xff] %vm473, %v6894
      %6927 = vst.msk [vmem:[%s440 + $0x98] sm:$0xff] %vm473, %v6895
      %6928 = vst.msk [vmem:[%s440 + $0xa0] sm:$0xff] %vm473, %v6896
      %6929 = vst.msk [vmem:[%s440 + $0xa8] sm:$0xff] %vm473, %v6897
      %6930 = vst.msk [vmem:[%s440 + $0xb0] sm:$0xff] %vm473, %v6898
      %6931 = vst.msk [vmem:[%s440 + $0xb8] sm:$0xff] %vm473, %v6899
      %6932 = vst.msk [vmem:[%s440 + $0xc0] sm:$0xff] %vm473, %v6900
      %6933 = vst.msk [vmem:[%s440 + $0xc8] sm:$0xff] %vm473, %v6901
      %6934 = vst.msk [vmem:[%s440 + $0xd0] sm:$0xff] %vm473, %v6902
      %6935 = vst.msk [vmem:[%s440 + $0xd8] sm:$0xff] %vm473, %v6903
      %6936 = vst.msk [vmem:[%s440 + $0xe0] sm:$0xff] %vm473, %v6904
      %6937 = vst.msk [vmem:[%s440 + $0xe8] sm:$0xff] %vm473, %v6905
      %6938 = vst.msk [vmem:[%s440 + $0xf0] sm:$0xff] %vm473, %v6906
      %6939 = vst.msk [vmem:[%s440 + $0xf8] sm:$0xff] %vm473, %v6907
      %p6940 = scmp.lt.s32.totalorder %s24, 1
      %s6941 = scalar_select %p6940, %s24, 1
      %s6942 = smul.addr %s6941, 32
      %s6943 = smul.addr %s6942, 8
      %s6944 = scalar_lea.vmem %s13, %s6943
      // Predicated region
      $region73: #{tpu_custom_call.1} parent=71 // pred_check
        %p6945 = pneg %p320
      $region74: #{tpu_custom_call.1} parent=71 // pred_check_branch
        %6947 = sbr.rel (%p6945) target = $region76
      $region75: #{tpu_custom_call.1} parent=71 // pred_region
        _
      $region76: #{tpu_custom_call.1} parent=71 // pred_fallthru
        _
    $region72: #{tpu_custom_call.1} parent=5 // pred_fallthru
      _
    %p6948 = scmp.le.s32.totalorder 2, %s19
    // Predicated region
    $region77: #{tpu_custom_call.1} parent=5 // pred_check
      %p6949 = pneg %p6948
    $region78: #{tpu_custom_call.1} parent=5 // pred_check_branch
      %6951 = sbr.rel (%p6949) target = $region80
    $region79: #{tpu_custom_call.1} parent=5 // pred_region
      %s6952 = ssub.s32 %s19, 2
      // Predicated region
      $region81: #{tpu_custom_call.1} parent=79 // pred_check
        %p6953 = pneg %p326
      $region82: #{tpu_custom_call.1} parent=79 // pred_check_branch
        %6955 = sbr.rel (%p6953) target = $region84
      $region83: #{tpu_custom_call.1} parent=79 // pred_region
        %p6956 = scmp.lt.s32.totalorder %s25, 1
        %s6957 = scalar_select %p6956, %s25, 1
        %s6958 = smul.addr %s6957, 32
        %s6959 = smul.addr %s6958, 8
        %s6960 = scalar_lea.vmem %s13, %s6959
      $region84: #{tpu_custom_call.1} parent=79 // pred_fallthru
        _
    $region80: #{tpu_custom_call.1} parent=5 // pred_fallthru
      _
  $region6: #{tpu_custom_call.1} parent=0 // loop_footer
    %s23 = sadd.s32 1, %s19
  $region7: #{tpu_custom_call.1} parent=0 // loop_footer_branch
    %18 = sbr.rel target = $region3
  $region8: #{tpu_custom_call.1} parent=0 // loop_exit
    _

</llo_original>
